<compile_context>
chip_gen: v6e
topology: v6e:2x2x1
jax: 0.10.0
libtpu: 0.0.40
codegen_flags: <defaults>
</compile_context>

<pallas_src>
import functools
import math
from typing import NamedTuple, Tuple

import jax
import jax.numpy as jnp
from jax.experimental import pallas as pl
from jax.experimental.pallas import tpu as pltpu

LANE = 128
SUBLANE = 8


def _round_up(x, m):
    return (x + m - 1) // m * m


def _pad2d(a, rows, cols):
    return jnp.pad(a, ((0, rows - a.shape[0]), (0, cols - a.shape[1])))


# ------------------------------ Fused kernel --------------------------------


def _fused_kernel(x_ref,
                  we0, we1, we2, we3,          # encoder weights (Din_p, Dout_p) bf16
                  wd0, wd1, wd2, wd3,          # decoder weights bf16
                  b_ref,                       # (16, max_dout_p) f32: 8 biases + c2 row
                  ct_ref,                      # (nz_p, K_p) f32: transposed padded centroids
                  z_ref, xbar_ref, q_ref,      # outputs
                  *, n_clusters):
    h = x_ref[...]                             # f32 (TB, Din_p)

    # ---------------- Encoder: 4 Linears, ReLU on all but last -------------
    bias_row = 0
    for idx, w in enumerate((we0, we1, we2, we3)):
        wv = w[...]                            # bf16 tile, VMEM-resident
        y = jnp.dot(h.astype(wv.dtype), wv, preferred_element_type=jnp.float32)
        y = y + b_ref[bias_row:bias_row + 1, :y.shape[1]]
        if idx < 3:
            y = jnp.maximum(y, 0.0)
        h = y
        bias_row += 1
    z = h                                      # (TB, nz_p) f32, padded cols are exactly 0
    z_ref[...] = z.astype(z_ref.dtype)

    # ---------------- Decoder: 4 Linears, ReLU on all but last -------------
    for idx, w in enumerate((wd0, wd1, wd2, wd3)):
        wv = w[...]
        y = jnp.dot(h.astype(wv.dtype), wv, preferred_element_type=jnp.float32)
        y = y + b_ref[bias_row:bias_row + 1, :y.shape[1]]
        if idx < 3:
            y = jnp.maximum(y, 0.0)
        h = y
        bias_row += 1
    xbar_ref[...] = h.astype(xbar_ref.dtype)

    # --------- Clustering: Student-t assignment, row-normalized ------------
    # q_unnorm[b,k] = 1 / (1 + ||z_b - c_k||^2)
    ct = ct_ref[...]                                                  # (nz_p, K_p)
    cross = jnp.dot(z, ct, preferred_element_type=jnp.float32)        # (TB, K_p)
    z2 = jnp.sum(z * z, axis=1, keepdims=True)                        # (TB, 1)
    c2 = b_ref[SUBLANE:SUBLANE + 1, :cross.shape[1]]                  # (1, K_p) precomputed
    d2 = jnp.maximum(z2 + c2 - 2.0 * cross, 0.0)                      # clamp fp cancellation
    tb, kp = d2.shape
    # Padded (all-zero) centroid columns would contribute 1/(1+||z||^2); mask them.
    mask = jax.lax.broadcasted_iota(jnp.int32, (tb, kp), 1) < n_clusters
    qu = jnp.where(mask, 1.0 / (1.0 + d2), 0.0)
    denom = jnp.sum(qu, axis=1, keepdims=True)
    q_ref[...] = (qu / denom).astype(q_ref.dtype)


# ------------------------ One-time parameter preparation ---------------------


class Prepared(NamedTuple):
    weights: Tuple[jnp.ndarray, ...]   # 8 padded (Din_p, Dout_p) bf16 arrays
    bias_c2: jnp.ndarray               # (16, max_dout_p) f32
    cent_t: jnp.ndarray                # (nz_p, K_p) f32
    input_size: int
    feature_dim: int
    n_clusters: int


def prepare_params(enc_params, dec_params, centroids, *, weight_dtype=jnp.bfloat16):
    """Hoisted padding / consolidation: do this once, reuse across forward calls."""
    input_size = enc_params[0][0].shape[0]
    feature_dim = enc_params[-1][0].shape[1]
    n_clusters = centroids.shape[0]

    all_params = list(enc_params) + list(dec_params)
    w_padded = tuple(
        _pad2d(w, _round_up(w.shape[0], LANE), _round_up(w.shape[1], LANE))
        .astype(weight_dtype)
        for (w, _) in all_params)
    max_dout = max(w.shape[1] for w in w_padded)

    nz_p = _round_up(feature_dim, LANE)
    k_p = _round_up(n_clusters, LANE)

    cent_p = _pad2d(centroids.astype(jnp.float32), k_p, nz_p)      # (K_p, nz_p)
    cent_t = cent_p.T                                              # (nz_p, K_p)
    c2 = jnp.sum(cent_p * cent_p, axis=1)                          # (K_p,)

    # Rows 0..7: layer biases; row 8: centroid squared norms.  Sublane aligned.
    bias_c2 = jnp.zeros((2 * SUBLANE, max_dout), jnp.float32)
    for i, (_, b) in enumerate(all_params):
        bias_c2 = bias_c2.at[i, : b.shape[-1]].set(b.reshape(-1).astype(jnp.float32))
    bias_c2 = bias_c2.at[SUBLANE, :k_p].set(c2)

    return Prepared(w_padded, bias_c2, cent_t, input_size, feature_dim, n_clusters)


# ---------------------------------- Wrapper ----------------------------------


def my_forward(x, prep: Prepared, *, batch_tile=512):
    """Fused forward. x: (B, ...) flattened to (B, input_size). Returns (z, x_bar, q)."""
    x = x.reshape(x.shape[0], -1).astype(jnp.float32)
    B, Din = x.shape
    assert Din == prep.input_size

    din0_p = prep.weights[0].shape[0]
    nz_p = _round_up(prep.feature_dim, LANE)
    k_p = _round_up(prep.n_clusters, LANE)
    xbar_p_dim = prep.weights[-1].shape[1]
    max_dout = max(w.shape[1] for w in prep.weights)

    # ---- batch tiling (parallel grid axis; weights constant-indexed) -------
    b_pad0 = _round_up(B, SUBLANE)
    tb = min(b_pad0, batch_tile)
    # Give the grid >=2 steps when the batch allows it so v7x's second
    # TensorCore gets work; neutral on single-TC v5e/v6e.
    if b_pad0 > 2 * SUBLANE and b_pad0 <= 2 * batch_tile:
        tb = min(tb, _round_up((b_pad0 + 1) // 2, SUBLANE))
    b_pad = _round_up(b_pad0, tb)
    grid = (b_pad // tb,)

    x_p = _pad2d(x, b_pad, din0_p)

    # ---- VMEM budget derived from actual buffer sizes ----------------------
    weight_bytes = sum(w.size * w.dtype.itemsize for w in prep.weights)   # Buffered(1)
    const_bytes = prep.bias_c2.size * 4 + prep.cent_t.size * 4            # Buffered(1)
    in_bytes = tb * din0_p * 4 * 2                                        # double-buffered x tile
    out_bytes = tb * (nz_p + xbar_p_dim + k_p) * 4 * 2                    # double-buffered outputs
    act_bytes = tb * max_dout * 4 * 4                                     # in-flight f32 activations
    vmem_limit = int(weight_bytes + const_bytes + in_bytes + out_bytes
                     + act_bytes + (8 << 20))                             # compiler headroom
    vmem_limit = min(max(vmem_limit, 32 << 20), 112 << 20)

    # ---- advisory cost estimate for the XLA scheduler -----------------------
    flops = 2 * b_pad * (sum(w.shape[0] * w.shape[1] for w in prep.weights)
                         + nz_p * k_p)
    bytes_accessed = (weight_bytes + const_bytes + x_p.size * 4
                      + b_pad * (nz_p + xbar_p_dim + k_p) * 4)
    cost = pl.CostEstimate(flops=flops, transcendentals=0,
                           bytes_accessed=bytes_accessed)

    def batch_spec(cols):
        return pl.BlockSpec((tb, cols), lambda i: (i, 0))

    def resident_spec(shape):
        # Grid-invariant input: fetch once, keep a single VMEM-resident buffer.
        return pl.BlockSpec(shape, lambda i: (0, 0), pipeline_mode=pl.Buffered(1))

    kern = functools.partial(_fused_kernel, n_clusters=prep.n_clusters)

    z_p, xbar_p, q_p = pl.pallas_call(
        kern,
        grid=grid,
        in_specs=[batch_spec(din0_p)]
                 + [resident_spec(w.shape) for w in prep.weights]
                 + [resident_spec(prep.bias_c2.shape),
                    resident_spec(prep.cent_t.shape)],
        out_specs=[batch_spec(nz_p), batch_spec(xbar_p_dim), batch_spec(k_p)],
        out_shape=[
            jax.ShapeDtypeStruct((b_pad, nz_p), jnp.float32),
            jax.ShapeDtypeStruct((b_pad, xbar_p_dim), jnp.float32),
            jax.ShapeDtypeStruct((b_pad, k_p), jnp.float32),
        ],
        compiler_params=pltpu.CompilerParams(
            dimension_semantics=("parallel",),
            vmem_limit_bytes=vmem_limit),
        cost_estimate=cost,
    )(x_p, *prep.weights, prep.bias_c2, prep.cent_t)

    z = z_p[:B, :prep.feature_dim]
    x_bar = xbar_p[:B, :Din]
    q = q_p[:B, :prep.n_clusters]
    return z, x_bar, q


# --------------------------- Parameter construction --------------------------


def xavier_uniform_relu(key, fan_in, fan_out):
    """torch.nn.init.xavier_uniform_ with gain=calculate_gain('relu')=sqrt(2).

    Weight stored as (fan_in, fan_out) (transpose of torch's (out, in) layout).
    """
    gain = math.sqrt(2.0)
    bound = gain * math.sqrt(6.0 / (fan_in + fan_out))
    return jax.random.uniform(
        key, (fan_in, fan_out), minval=-bound, maxval=bound, dtype=jnp.float32)


def init_params(key, input_size, feature_dim, n_clusters):
    enc_dims = [(input_size, 500), (500, 500), (500, 2000), (2000, feature_dim)]
    dec_dims = [(feature_dim, 2000), (2000, 500), (500, 500), (500, input_size)]
    keys = jax.random.split(key, len(enc_dims) + len(dec_dims) + 1)

    enc = [(xavier_uniform_relu(keys[i], din, dout),
            jnp.zeros((dout,), jnp.float32))
           for i, (din, dout) in enumerate(enc_dims)]
    dec = [(xavier_uniform_relu(keys[len(enc_dims) + j], din, dout),
            jnp.zeros((dout,), jnp.float32))
           for j, (din, dout) in enumerate(dec_dims)]

    # TODO(synk): torch leaves ClusteringLayer.centroids uninitialized (set by
    # k-means later); use a deterministic normal init here for the smoke test.
    centroids = jax.random.normal(keys[-1], (n_clusters, feature_dim),
                                  dtype=jnp.float32)
    return enc, dec, centroids


# --------------------------- Pure-JAX references ------------------------------


def ref_forward(x, enc_params, dec_params, centroids, *, weight_dtype=None):
    """weight_dtype=None -> full f32 (HIGHEST).  weight_dtype=bf16 mirrors the kernel."""
    def dense(h, w):
        if weight_dtype is None:
            return jnp.dot(h, w, precision=jax.lax.Precision.HIGHEST)
        return jnp.dot(h.astype(weight_dtype), w.astype(weight_dtype),
                       preferred_element_type=jnp.float32)

    h = x.reshape(x.shape[0], -1)
    for i, (w, b) in enumerate(enc_params):
        h = dense(h, w) + b
        if i < len(enc_params) - 1:
            h = jnp.maximum(h, 0.0)
    z = h
    h = z
    for i, (w, b) in enumerate(dec_params):
        h = dense(h, w) + b
        if i < len(dec_params) - 1:
            h = jnp.maximum(h, 0.0)
    x_bar = h
    d2 = jnp.sum((z[:, None, :] - centroids[None, :, :]) ** 2, axis=2)
    qu = 1.0 / (1.0 + d2)
    q = qu / jnp.sum(qu, axis=1, keepdims=True)
    return z, x_bar, q


# ---------------------------------- Main --------------------------------------

if __name__ == "__main__":
    batch = 8
    input_size = 64
    feature_dim = 10
    n_clusters = 3

    key = jax.random.PRNGKey(0)
    k_x, k_p = jax.random.split(key)

    x = jax.random.normal(k_x, (batch, input_size), dtype=jnp.float32)
    enc_params, dec_params, centroids = init_params(
        k_p, input_size, feature_dim, n_clusters)

    prep = prepare_params(enc_params, dec_params, centroids)
    z, x_bar, q = my_forward(x, prep)
    jax.block_until_ready((z, x_bar, q))

    assert z.shape == (batch, feature_dim)
    assert x_bar.shape == (batch, input_size)
    assert q.shape == (batch, n_clusters)
    assert bool(jnp.all(jnp.isfinite(z))) and bool(jnp.all(jnp.isfinite(x_bar)))
    # q rows must sum to 1.
    assert jnp.allclose(jnp.sum(q, axis=1), 1.0, atol=1e-5)

    # Tight check vs. a reference with the same bf16-weight / f32-accum numerics.
    z_m, xbar_m, q_m = ref_forward(x, enc_params, dec_params, centroids,
                                   weight_dtype=jnp.bfloat16)
    assert jnp.allclose(z, z_m, rtol=2e-3, atol=2e-3)
    assert jnp.allclose(x_bar, xbar_m, rtol=2e-3, atol=2e-3)
    assert jnp.allclose(q, q_m, rtol=2e-3, atol=2e-3)

    # Loose check vs. the full f32 HIGHEST-precision reference.
    z_r, xbar_r, q_r = ref_forward(x, enc_params, dec_params, centroids)
    assert jnp.allclose(z, z_r, rtol=5e-2, atol=5e-2)
    assert jnp.allclose(x_bar, xbar_r, rtol=5e-2, atol=5e-2)
    assert jnp.allclose(q, q_r, rtol=5e-2, atol=5e-2)

    print("KERNEL_OK")
</pallas_src>

<mosaic_0001>
module attributes {stable_mosaic.version = 11 : i64} {
  func.func @_fused_kernel(%arg0: i32, %arg1: memref<8x128xf32, #tpu.memory_space<vmem>>, %arg2: memref<128x512xbf16, #tpu.memory_space<vmem>>, %arg3: memref<512x512xbf16, #tpu.memory_space<vmem>>, %arg4: memref<512x2048xbf16, #tpu.memory_space<vmem>>, %arg5: memref<2048x128xbf16, #tpu.memory_space<vmem>>, %arg6: memref<128x2048xbf16, #tpu.memory_space<vmem>>, %arg7: memref<2048x512xbf16, #tpu.memory_space<vmem>>, %arg8: memref<512x512xbf16, #tpu.memory_space<vmem>>, %arg9: memref<512x128xbf16, #tpu.memory_space<vmem>>, %arg10: memref<16x2048xf32, #tpu.memory_space<vmem>>, %arg11: memref<128x128xf32, #tpu.memory_space<vmem>>, %arg12: memref<8x128xf32, #tpu.memory_space<vmem>>, %arg13: memref<8x128xf32, #tpu.memory_space<vmem>>, %arg14: memref<8x128xf32, #tpu.memory_space<vmem>>) attributes {dimension_semantics = [#tpu.dimension_semantics<parallel>], iteration_bounds = array<i64: 1>, scalar_prefetch = 0 : i64, scratch_operands = 0 : i64, tpu.core_type = #tpu.core_type<tc>, window_params = [{transform_indices = @transform_0, window_bounds = array<i64: 8, 128>}, {pipeline_mode = #tpu.pipeline_mode<synchronous>, transform_indices = @transform_1, window_bounds = array<i64: 128, 512>}, {pipeline_mode = #tpu.pipeline_mode<synchronous>, transform_indices = @transform_2, window_bounds = array<i64: 512, 512>}, {pipeline_mode = #tpu.pipeline_mode<synchronous>, transform_indices = @transform_3, window_bounds = array<i64: 512, 2048>}, {pipeline_mode = #tpu.pipeline_mode<synchronous>, transform_indices = @transform_4, window_bounds = array<i64: 2048, 128>}, {pipeline_mode = #tpu.pipeline_mode<synchronous>, transform_indices = @transform_5, window_bounds = array<i64: 128, 2048>}, {pipeline_mode = #tpu.pipeline_mode<synchronous>, transform_indices = @transform_6, window_bounds = array<i64: 2048, 512>}, {pipeline_mode = #tpu.pipeline_mode<synchronous>, transform_indices = @transform_7, window_bounds = array<i64: 512, 512>}, {pipeline_mode = #tpu.pipeline_mode<synchronous>, transform_indices = @transform_8, window_bounds = array<i64: 512, 128>}, {pipeline_mode = #tpu.pipeline_mode<synchronous>, transform_indices = @transform_9, window_bounds = array<i64: 16, 2048>}, {pipeline_mode = #tpu.pipeline_mode<synchronous>, transform_indices = @transform_10, window_bounds = array<i64: 128, 128>}, {transform_indices = @transform_11, window_bounds = array<i64: 8, 128>}, {transform_indices = @transform_12, window_bounds = array<i64: 8, 128>}, {transform_indices = @transform_13, window_bounds = array<i64: 8, 128>}]} {
    %c0 = arith.constant 0 : index
    %c0_0 = arith.constant 0 : index
    %0 = vector.load %arg1[%c0, %c0_0] : memref<8x128xf32, #tpu.memory_space<vmem>>, vector<8x128xf32>
    %c0_1 = arith.constant 0 : index
    %c0_2 = arith.constant 0 : index
    %1 = vector.load %arg2[%c0_1, %c0_2] : memref<128x512xbf16, #tpu.memory_space<vmem>>, vector<128x512xbf16>
    %2 = arith.truncf %0 : vector<8x128xf32> to vector<8x128xbf16>
    %cst = arith.constant dense<0.000000e+00> : vector<8x512xf32>
    %3 = tpu.matmul %2, %1, %cst {dimension_numbers = #tpu.dot_dimension_numbers<[1], [0], [0], [1], [0, 0, 1, 1], [], []>} : vector<8x128xbf16>, vector<128x512xbf16>, vector<8x512xf32> -> vector<8x512xf32>
    %c0_3 = arith.constant 0 : index
    %c0_4 = arith.constant 0 : index
    %4 = vector.load %arg10[%c0_3, %c0_4] : memref<16x2048xf32, #tpu.memory_space<vmem>>, vector<1x512xf32>
    %5 = vector.broadcast %4 : vector<1x512xf32> to vector<8x512xf32>
    %6 = arith.addf %3, %5 : vector<8x512xf32>
    %cst_5 = arith.constant 0.000000e+00 : f32
    %7 = vector.broadcast %cst_5 : f32 to vector<8x512xf32>
    %8 = arith.maximumf %6, %7 : vector<8x512xf32>
    %c0_6 = arith.constant 0 : index
    %c0_7 = arith.constant 0 : index
    %9 = vector.load %arg3[%c0_6, %c0_7] : memref<512x512xbf16, #tpu.memory_space<vmem>>, vector<512x512xbf16>
    %10 = arith.truncf %8 : vector<8x512xf32> to vector<8x512xbf16>
    %cst_8 = arith.constant dense<0.000000e+00> : vector<8x512xf32>
    %11 = tpu.matmul %10, %9, %cst_8 {dimension_numbers = #tpu.dot_dimension_numbers<[1], [0], [0], [1], [0, 0, 1, 1], [], []>} : vector<8x512xbf16>, vector<512x512xbf16>, vector<8x512xf32> -> vector<8x512xf32>
    %c1 = arith.constant 1 : index
    %c0_9 = arith.constant 0 : index
    %12 = vector.load %arg10[%c1, %c0_9] : memref<16x2048xf32, #tpu.memory_space<vmem>>, vector<1x512xf32>
    %13 = vector.broadcast %12 : vector<1x512xf32> to vector<8x512xf32>
    %14 = arith.addf %11, %13 : vector<8x512xf32>
    %cst_10 = arith.constant 0.000000e+00 : f32
    %15 = vector.broadcast %cst_10 : f32 to vector<8x512xf32>
    %16 = arith.maximumf %14, %15 : vector<8x512xf32>
    %c0_11 = arith.constant 0 : index
    %c0_12 = arith.constant 0 : index
    %17 = vector.load %arg4[%c0_11, %c0_12] : memref<512x2048xbf16, #tpu.memory_space<vmem>>, vector<512x2048xbf16>
    %18 = arith.truncf %16 : vector<8x512xf32> to vector<8x512xbf16>
    %cst_13 = arith.constant dense<0.000000e+00> : vector<8x2048xf32>
    %19 = tpu.matmul %18, %17, %cst_13 {dimension_numbers = #tpu.dot_dimension_numbers<[1], [0], [0], [1], [0, 0, 1, 1], [], []>} : vector<8x512xbf16>, vector<512x2048xbf16>, vector<8x2048xf32> -> vector<8x2048xf32>
    %c2 = arith.constant 2 : index
    %c0_14 = arith.constant 0 : index
    %20 = vector.load %arg10[%c2, %c0_14] : memref<16x2048xf32, #tpu.memory_space<vmem>>, vector<1x2048xf32>
    %21 = vector.broadcast %20 : vector<1x2048xf32> to vector<8x2048xf32>
    %22 = arith.addf %19, %21 : vector<8x2048xf32>
    %cst_15 = arith.constant 0.000000e+00 : f32
    %23 = vector.broadcast %cst_15 : f32 to vector<8x2048xf32>
    %24 = arith.maximumf %22, %23 : vector<8x2048xf32>
    %c0_16 = arith.constant 0 : index
    %c0_17 = arith.constant 0 : index
    %25 = vector.load %arg5[%c0_16, %c0_17] : memref<2048x128xbf16, #tpu.memory_space<vmem>>, vector<2048x128xbf16>
    %26 = arith.truncf %24 : vector<8x2048xf32> to vector<8x2048xbf16>
    %cst_18 = arith.constant dense<0.000000e+00> : vector<8x128xf32>
    %27 = tpu.matmul %26, %25, %cst_18 {dimension_numbers = #tpu.dot_dimension_numbers<[1], [0], [0], [1], [0, 0, 1, 1], [], []>} : vector<8x2048xbf16>, vector<2048x128xbf16>, vector<8x128xf32> -> vector<8x128xf32>
    %c3 = arith.constant 3 : index
    %c0_19 = arith.constant 0 : index
    %28 = vector.load %arg10[%c3, %c0_19] : memref<16x2048xf32, #tpu.memory_space<vmem>>, vector<1x128xf32>
    %29 = vector.broadcast %28 : vector<1x128xf32> to vector<8x128xf32>
    %30 = arith.addf %27, %29 : vector<8x128xf32>
    %c0_20 = arith.constant 0 : index
    %c0_21 = arith.constant 0 : index
    %31 = vector.load %arg12[%c0_20, %c0_21] : memref<8x128xf32, #tpu.memory_space<vmem>>, vector<8x128xf32>
    tpu.vector_store %arg12[%c0_20, %c0_21], %30 {strides = array<i32>} : memref<8x128xf32, #tpu.memory_space<vmem>>, vector<8x128xf32>,
    %c0_22 = arith.constant 0 : index
    %c0_23 = arith.constant 0 : index
    %32 = vector.load %arg6[%c0_22, %c0_23] : memref<128x2048xbf16, #tpu.memory_space<vmem>>, vector<128x2048xbf16>
    %33 = arith.truncf %30 : vector<8x128xf32> to vector<8x128xbf16>
    %cst_24 = arith.constant dense<0.000000e+00> : vector<8x2048xf32>
    %34 = tpu.matmul %33, %32, %cst_24 {dimension_numbers = #tpu.dot_dimension_numbers<[1], [0], [0], [1], [0, 0, 1, 1], [], []>} : vector<8x128xbf16>, vector<128x2048xbf16>, vector<8x2048xf32> -> vector<8x2048xf32>
    %c4 = arith.constant 4 : index
    %c0_25 = arith.constant 0 : index
    %35 = vector.load %arg10[%c4, %c0_25] : memref<16x2048xf32, #tpu.memory_space<vmem>>, vector<1x2048xf32>
    %36 = vector.broadcast %35 : vector<1x2048xf32> to vector<8x2048xf32>
    %37 = arith.addf %34, %36 : vector<8x2048xf32>
    %cst_26 = arith.constant 0.000000e+00 : f32
    %38 = vector.broadcast %cst_26 : f32 to vector<8x2048xf32>
    %39 = arith.maximumf %37, %38 : vector<8x2048xf32>
    %c0_27 = arith.constant 0 : index
    %c0_28 = arith.constant 0 : index
    %40 = vector.load %arg7[%c0_27, %c0_28] : memref<2048x512xbf16, #tpu.memory_space<vmem>>, vector<2048x512xbf16>
    %41 = arith.truncf %39 : vector<8x2048xf32> to vector<8x2048xbf16>
    %cst_29 = arith.constant dense<0.000000e+00> : vector<8x512xf32>
    %42 = tpu.matmul %41, %40, %cst_29 {dimension_numbers = #tpu.dot_dimension_numbers<[1], [0], [0], [1], [0, 0, 1, 1], [], []>} : vector<8x2048xbf16>, vector<2048x512xbf16>, vector<8x512xf32> -> vector<8x512xf32>
    %c5 = arith.constant 5 : index
    %c0_30 = arith.constant 0 : index
    %43 = vector.load %arg10[%c5, %c0_30] : memref<16x2048xf32, #tpu.memory_space<vmem>>, vector<1x512xf32>
    %44 = vector.broadcast %43 : vector<1x512xf32> to vector<8x512xf32>
    %45 = arith.addf %42, %44 : vector<8x512xf32>
    %cst_31 = arith.constant 0.000000e+00 : f32
    %46 = vector.broadcast %cst_31 : f32 to vector<8x512xf32>
    %47 = arith.maximumf %45, %46 : vector<8x512xf32>
    %c0_32 = arith.constant 0 : index
    %c0_33 = arith.constant 0 : index
    %48 = vector.load %arg8[%c0_32, %c0_33] : memref<512x512xbf16, #tpu.memory_space<vmem>>, vector<512x512xbf16>
    %49 = arith.truncf %47 : vector<8x512xf32> to vector<8x512xbf16>
    %cst_34 = arith.constant dense<0.000000e+00> : vector<8x512xf32>
    %50 = tpu.matmul %49, %48, %cst_34 {dimension_numbers = #tpu.dot_dimension_numbers<[1], [0], [0], [1], [0, 0, 1, 1], [], []>} : vector<8x512xbf16>, vector<512x512xbf16>, vector<8x512xf32> -> vector<8x512xf32>
    %c6 = arith.constant 6 : index
    %c0_35 = arith.constant 0 : index
    %51 = vector.load %arg10[%c6, %c0_35] : memref<16x2048xf32, #tpu.memory_space<vmem>>, vector<1x512xf32>
    %52 = vector.broadcast %51 : vector<1x512xf32> to vector<8x512xf32>
    %53 = arith.addf %50, %52 : vector<8x512xf32>
    %cst_36 = arith.constant 0.000000e+00 : f32
    %54 = vector.broadcast %cst_36 : f32 to vector<8x512xf32>
    %55 = arith.maximumf %53, %54 : vector<8x512xf32>
    %c0_37 = arith.constant 0 : index
    %c0_38 = arith.constant 0 : index
    %56 = vector.load %arg9[%c0_37, %c0_38] : memref<512x128xbf16, #tpu.memory_space<vmem>>, vector<512x128xbf16>
    %57 = arith.truncf %55 : vector<8x512xf32> to vector<8x512xbf16>
    %cst_39 = arith.constant dense<0.000000e+00> : vector<8x128xf32>
    %58 = tpu.matmul %57, %56, %cst_39 {dimension_numbers = #tpu.dot_dimension_numbers<[1], [0], [0], [1], [0, 0, 1, 1], [], []>} : vector<8x512xbf16>, vector<512x128xbf16>, vector<8x128xf32> -> vector<8x128xf32>
    %c7 = arith.constant 7 : index
    %c0_40 = arith.constant 0 : index
    %59 = vector.load %arg10[%c7, %c0_40] : memref<16x2048xf32, #tpu.memory_space<vmem>>, vector<1x128xf32>
    %60 = vector.broadcast %59 : vector<1x128xf32> to vector<8x128xf32>
    %61 = arith.addf %58, %60 : vector<8x128xf32>
    %c0_41 = arith.constant 0 : index
    %c0_42 = arith.constant 0 : index
    %62 = vector.load %arg13[%c0_41, %c0_42] : memref<8x128xf32, #tpu.memory_space<vmem>>, vector<8x128xf32>
    tpu.vector_store %arg13[%c0_41, %c0_42], %61 {strides = array<i32>} : memref<8x128xf32, #tpu.memory_space<vmem>>, vector<8x128xf32>,
    %c0_43 = arith.constant 0 : index
    %c0_44 = arith.constant 0 : index
    %63 = vector.load %arg11[%c0_43, %c0_44] : memref<128x128xf32, #tpu.memory_space<vmem>>, vector<128x128xf32>
    %cst_45 = arith.constant dense<0.000000e+00> : vector<8x128xf32>
    %64 = tpu.matmul %30, %63, %cst_45 {dimension_numbers = #tpu.dot_dimension_numbers<[1], [0], [0], [1], [0, 0, 1, 1], [], []>} : vector<8x128xf32>, vector<128x128xf32>, vector<8x128xf32> -> vector<8x128xf32>
    %65 = arith.mulf %30, %30 : vector<8x128xf32>
    %cst_46 = arith.constant dense<0.000000e+00> : vector<8xf32>
    %66 = vector.multi_reduction <add>, %65, %cst_46 [1] : vector<8x128xf32> to vector<8xf32>
    %67 = vector.shape_cast %66 : vector<8xf32> to vector<8x1xf32>
    %c8 = arith.constant 8 : index
    %c0_47 = arith.constant 0 : index
    %68 = vector.load %arg10[%c8, %c0_47] : memref<16x2048xf32, #tpu.memory_space<vmem>>, vector<1x128xf32>
    %69 = vector.broadcast %67 : vector<8x1xf32> to vector<8x128xf32>
    %70 = vector.broadcast %68 : vector<1x128xf32> to vector<8x128xf32>
    %71 = arith.addf %69, %70 : vector<8x128xf32>
    %cst_48 = arith.constant 2.000000e+00 : f32
    %72 = vector.broadcast %cst_48 : f32 to vector<8x128xf32>
    %73 = arith.mulf %72, %64 : vector<8x128xf32>
    %74 = arith.subf %71, %73 : vector<8x128xf32>
    %cst_49 = arith.constant 0.000000e+00 : f32
    %75 = vector.broadcast %cst_49 : f32 to vector<8x128xf32>
    %76 = arith.maximumf %74, %75 : vector<8x128xf32>
    %77 = tpu.iota {dimensions = array<i32: 1>} : vector<8x128xi32>
    %c3_i32 = arith.constant 3 : i32
    %78 = vector.broadcast %c3_i32 : i32 to vector<8x128xi32>
    %79 = arith.cmpi slt, %77, %78 : vector<8x128xi32>
    %cst_50 = arith.constant 1.000000e+00 : f32
    %80 = vector.broadcast %cst_50 : f32 to vector<8x128xf32>
    %81 = arith.addf %80, %76 : vector<8x128xf32>
    %cst_51 = arith.constant 1.000000e+00 : f32
    %82 = vector.broadcast %cst_51 : f32 to vector<8x128xf32>
    %83 = arith.divf %82, %81 : vector<8x128xf32>
    %cst_52 = arith.constant 0.000000e+00 : f32
    %84 = vector.broadcast %cst_52 : f32 to vector<8x128xf32>
    %85 = arith.select %79, %83, %84 : vector<8x128xi1>, vector<8x128xf32>
    %cst_53 = arith.constant dense<0.000000e+00> : vector<8xf32>
    %86 = vector.multi_reduction <add>, %85, %cst_53 [1] : vector<8x128xf32> to vector<8xf32>
    %87 = vector.shape_cast %86 : vector<8xf32> to vector<8x1xf32>
    %88 = vector.broadcast %87 : vector<8x1xf32> to vector<8x128xf32>
    %89 = arith.divf %85, %88 : vector<8x128xf32>
    %c0_54 = arith.constant 0 : index
    %c0_55 = arith.constant 0 : index
    %90 = vector.load %arg14[%c0_54, %c0_55] : memref<8x128xf32, #tpu.memory_space<vmem>>, vector<8x128xf32>
    tpu.vector_store %arg14[%c0_54, %c0_55], %89 {strides = array<i32>} : memref<8x128xf32, #tpu.memory_space<vmem>>, vector<8x128xf32>,
    return
  }
  func.func @transform_0(%arg0: i32) -> (i32, i32) {
    %c0_i32 = arith.constant 0 : i32
    %c0_i32_0 = arith.constant 0 : i32
    return %arg0, %c0_i32 : i32, i32
  }
  func.func @transform_1(%arg0: i32) -> (i32, i32) {
    %c0_i32 = arith.constant 0 : i32
    %c0_i32_0 = arith.constant 0 : i32
    %c0_i32_1 = arith.constant 0 : i32
    return %c0_i32, %c0_i32_0 : i32, i32
  }
  func.func @transform_2(%arg0: i32) -> (i32, i32) {
    %c0_i32 = arith.constant 0 : i32
    %c0_i32_0 = arith.constant 0 : i32
    %c0_i32_1 = arith.constant 0 : i32
    return %c0_i32, %c0_i32_0 : i32, i32
  }
  func.func @transform_3(%arg0: i32) -> (i32, i32) {
    %c0_i32 = arith.constant 0 : i32
    %c0_i32_0 = arith.constant 0 : i32
    %c0_i32_1 = arith.constant 0 : i32
    return %c0_i32, %c0_i32_0 : i32, i32
  }
  func.func @transform_4(%arg0: i32) -> (i32, i32) {
    %c0_i32 = arith.constant 0 : i32
    %c0_i32_0 = arith.constant 0 : i32
    %c0_i32_1 = arith.constant 0 : i32
    return %c0_i32, %c0_i32_0 : i32, i32
  }
  func.func @transform_5(%arg0: i32) -> (i32, i32) {
    %c0_i32 = arith.constant 0 : i32
    %c0_i32_0 = arith.constant 0 : i32
    %c0_i32_1 = arith.constant 0 : i32
    return %c0_i32, %c0_i32_0 : i32, i32
  }
  func.func @transform_6(%arg0: i32) -> (i32, i32) {
    %c0_i32 = arith.constant 0 : i32
    %c0_i32_0 = arith.constant 0 : i32
    %c0_i32_1 = arith.constant 0 : i32
    return %c0_i32, %c0_i32_0 : i32, i32
  }
  func.func @transform_7(%arg0: i32) -> (i32, i32) {
    %c0_i32 = arith.constant 0 : i32
    %c0_i32_0 = arith.constant 0 : i32
    %c0_i32_1 = arith.constant 0 : i32
    return %c0_i32, %c0_i32_0 : i32, i32
  }
  func.func @transform_8(%arg0: i32) -> (i32, i32) {
    %c0_i32 = arith.constant 0 : i32
    %c0_i32_0 = arith.constant 0 : i32
    %c0_i32_1 = arith.constant 0 : i32
    return %c0_i32, %c0_i32_0 : i32, i32
  }
  func.func @transform_9(%arg0: i32) -> (i32, i32) {
    %c0_i32 = arith.constant 0 : i32
    %c0_i32_0 = arith.constant 0 : i32
    %c0_i32_1 = arith.constant 0 : i32
    return %c0_i32, %c0_i32_0 : i32, i32
  }
  func.func @transform_10(%arg0: i32) -> (i32, i32) {
    %c0_i32 = arith.constant 0 : i32
    %c0_i32_0 = arith.constant 0 : i32
    %c0_i32_1 = arith.constant 0 : i32
    return %c0_i32, %c0_i32_0 : i32, i32
  }
  func.func @transform_11(%arg0: i32) -> (i32, i32) {
    %c0_i32 = arith.constant 0 : i32
    %c0_i32_0 = arith.constant 0 : i32
    return %arg0, %c0_i32 : i32, i32
  }
  func.func @transform_12(%arg0: i32) -> (i32, i32) {
    %c0_i32 = arith.constant 0 : i32
    %c0_i32_0 = arith.constant 0 : i32
    return %arg0, %c0_i32 : i32, i32
  }
  func.func @transform_13(%arg0: i32) -> (i32, i32) {
    %c0_i32 = arith.constant 0 : i32
    %c0_i32_0 = arith.constant 0 : i32
    return %arg0, %c0_i32 : i32, i32
  }
}

</mosaic_0001>

<llo_original>
// kernel: tpu_custom_call.1
$region0: #{tpu_custom_call.1}
  #allocation0 [shape = 'u32[]', space=smem, size = 0x4, offset = 0x4, fixed_abs, tag = 'smem constant byte address 0x4 - core index']
  #allocation1 [shape = 'u32[144,128]{1,0:T(1,128)}', space=vmem, size = 0x12000, scoped, tag = 'internal scratch']
  %s0 = inlined_call_operand.hbm [shape: f32[8,128], index: 0, kind: input, shape index: {}]
  %s1 = inlined_call_operand.hbm [shape: bf16[128,512], index: 1, kind: input, shape index: {}]
  %s2 = inlined_call_operand.hbm [shape: bf16[512,512], index: 2, kind: input, shape index: {}]
  %s3 = inlined_call_operand.hbm [shape: bf16[512,2048], index: 3, kind: input, shape index: {}]
  %s4 = inlined_call_operand.hbm [shape: bf16[2048,128], index: 4, kind: input, shape index: {}]
  %s5 = inlined_call_operand.hbm [shape: bf16[128,2048], index: 5, kind: input, shape index: {}]
  %s6 = inlined_call_operand.hbm [shape: bf16[2048,512], index: 6, kind: input, shape index: {}]
  %s7 = inlined_call_operand.hbm [shape: bf16[512,512], index: 7, kind: input, shape index: {}]
  %s8 = inlined_call_operand.hbm [shape: bf16[512,128], index: 8, kind: input, shape index: {}]
  %s9 = inlined_call_operand.hbm [shape: f32[16,2048], index: 9, kind: input, shape index: {}]
  %s10 = inlined_call_operand.hbm [shape: f32[128,128], index: 10, kind: input, shape index: {}]
  %s11 = inlined_call_operand.hbm [shape: f32[8,128], index: 11, kind: output, shape index: {0}]
  %s12 = inlined_call_operand.hbm [shape: f32[8,128], index: 12, kind: output, shape index: {1}]
  %s13 = inlined_call_operand.hbm [shape: f32[8,128], index: 13, kind: output, shape index: {2}]
  %14 = xla_tuple %s11, %s12, %s13
  %s15 = sld [smem:[#allocation0]]
  $region114: #{tpu_custom_call.1} parent=0
    _
  %s17 = ssub.s32 1, %s15
  %s18 = scalar_select 0, %s17, %s15
  $region1: #{tpu_custom_call.1} parent=0
    #allocation2 [shape = 'u8[4096]{0}', space=vmem, size = 0x1000, scoped, tag = 'input window, operand 0, single buffered']
    #allocation3 [shape = 's32[1]{0}', space=sflag, size = 0x4, scoped, tag = 'scoped memory for tpu_custom_call.1']
    #allocation4 [shape = 's32[1]{0}', space=sflag, size = 0x4, scoped, tag = 'scoped memory for tpu_custom_call.1']
    #allocation5 [shape = 'u8[131072]{0}', space=vmem, size = 0x20000, scoped, tag = 'input window, operand 1, single buffered']
    #allocation6 [shape = 's32[1]{0}', space=sflag, size = 0x4, scoped, tag = 'scoped memory for tpu_custom_call.1']
    #allocation7 [shape = 'u8[524288]{0}', space=vmem, size = 0x80000, scoped, tag = 'input window, operand 2, single buffered']
    #allocation8 [shape = 'u8[2097152]{0}', space=vmem, size = 0x200000, scoped, tag = 'input window, operand 3, single buffered']
    #allocation9 [shape = 's32[1]{0}', space=sflag, size = 0x4, scoped, tag = 'scoped memory for tpu_custom_call.1']
    #allocation10 [shape = 'u8[524288]{0}', space=vmem, size = 0x80000, scoped, tag = 'input window, operand 4, single buffered']
    #allocation11 [shape = 'u8[524288]{0}', space=vmem, size = 0x80000, scoped, tag = 'input window, operand 5, single buffered']
    #allocation12 [shape = 's32[1]{0}', space=sflag, size = 0x4, scoped, tag = 'scoped memory for tpu_custom_call.1']
    #allocation13 [shape = 'u8[2097152]{0}', space=vmem, size = 0x200000, scoped, tag = 'input window, operand 6, single buffered']
    #allocation14 [shape = 'u8[524288]{0}', space=vmem, size = 0x80000, scoped, tag = 'input window, operand 7, single buffered']
    #allocation15 [shape = 's32[1]{0}', space=sflag, size = 0x4, scoped, tag = 'scoped memory for tpu_custom_call.1']
    #allocation16 [shape = 'u8[131072]{0}', space=vmem, size = 0x20000, scoped, tag = 'input window, operand 8, single buffered']
    #allocation17 [shape = 'u8[131072]{0}', space=vmem, size = 0x20000, scoped, tag = 'input window, operand 9, single buffered']
    #allocation18 [shape = 's32[1]{0}', space=sflag, size = 0x4, scoped, tag = 'scoped memory for tpu_custom_call.1']
    #allocation19 [shape = 'u8[65536]{0}', space=vmem, size = 0x10000, scoped, tag = 'input window, operand 10, single buffered']
    #allocation20 [shape = 'u8[4096]{0}', space=vmem, size = 0x1000, scoped, tag = 'output window, operand 0, single buffered']
    #allocation21 [shape = 'u8[4096]{0}', space=vmem, size = 0x1000, scoped, tag = 'output window, operand 1, single buffered']
    #allocation22 [shape = 's32[1]{0}', space=sflag, size = 0x4, scoped, tag = 'scoped memory for tpu_custom_call.1']
    #allocation23 [shape = 'u8[4096]{0}', space=vmem, size = 0x1000, scoped, tag = 'output window, operand 2, single buffered']
    %19 = vsyncpa [#allocation3], 0
    %20 = vsyncpa [#allocation6], 0
    %21 = vsyncpa [#allocation9], 0
    %22 = vsyncpa [#allocation12], 0
    %23 = vsyncpa [#allocation15], 0
    %24 = vsyncpa [#allocation18], 0
    %25 = vsyncpa [#allocation4], 0
    %26 = vsyncpa [#allocation22], 0
    // Predicated region
    $region2: #{tpu_custom_call.1} parent=1 // pred_check
      _
    $region3: #{tpu_custom_call.1} parent=1 // pred_check_branch
      %28 = sbr.rel (0) target = $region5
    $region4: #{tpu_custom_call.1} parent=1 // pred_region
      %s30 = ssub.s32 128, 128
      %31 = vsyncadd [#allocation3], %s30
      %s33 = sshll.u32 [#allocation2], 4
      %s34 = int_to_ptr.vmem [resolvable:$true] %s33
      %36 = dma.hbm_to_vmem [thread:$0]  %s0, 128, %s34, [#allocation3]
    $region5: #{tpu_custom_call.1} parent=1 // pred_fallthru
      _
    // Predicated region
    $region6: #{tpu_custom_call.1} parent=1 // pred_check
      _
    $region7: #{tpu_custom_call.1} parent=1 // pred_check_branch
      %38 = sbr.rel (0) target = $region9
    $region8: #{tpu_custom_call.1} parent=1 // pred_region
      %s40 = ssub.s32 4096, 4096
      %41 = vsyncadd [#allocation6], %s40
      %s42 = sshll.u32 [#allocation5], 4
      %s43 = int_to_ptr.vmem [resolvable:$true] %s42
      %48 = dma.hbm_to_vmem [thread:$0]  %s1, 4096, %s43, [#allocation6], 256, 256, 16
    $region9: #{tpu_custom_call.1} parent=1 // pred_fallthru
      _
    // Predicated region
    $region10: #{tpu_custom_call.1} parent=1 // pred_check
      _
    $region11: #{tpu_custom_call.1} parent=1 // pred_check_branch
      %50 = sbr.rel (0) target = $region13
    $region12: #{tpu_custom_call.1} parent=1 // pred_region
      %s52 = ssub.s32 16384, 16384
      %53 = vsyncadd [#allocation6], %s52
      %s54 = sshll.u32 [#allocation7], 4
      %s55 = int_to_ptr.vmem [resolvable:$true] %s54
      %60 = dma.hbm_to_vmem [thread:$0]  %s2, 16384, %s55, [#allocation6], 256, 256, 16
    $region13: #{tpu_custom_call.1} parent=1 // pred_fallthru
      _
    // Predicated region
    $region14: #{tpu_custom_call.1} parent=1 // pred_check
      _
    $region15: #{tpu_custom_call.1} parent=1 // pred_check_branch
      %62 = sbr.rel (0) target = $region17
    $region16: #{tpu_custom_call.1} parent=1 // pred_region
      %s64 = ssub.s32 65536, 65536
      %65 = vsyncadd [#allocation9], %s64
      %s66 = sshll.u32 [#allocation8], 4
      %s67 = int_to_ptr.vmem [resolvable:$true] %s66
      %72 = dma.hbm_to_vmem [thread:$0]  %s3, 65536, %s67, [#allocation9], 1024, 1024, 64
    $region17: #{tpu_custom_call.1} parent=1 // pred_fallthru
      _
    // Predicated region
    $region18: #{tpu_custom_call.1} parent=1 // pred_check
      _
    $region19: #{tpu_custom_call.1} parent=1 // pred_check_branch
      %74 = sbr.rel (0) target = $region21
    $region20: #{tpu_custom_call.1} parent=1 // pred_region
      %s76 = ssub.s32 16384, 16384
      %77 = vsyncadd [#allocation9], %s76
      %s78 = sshll.u32 [#allocation10], 4
      %s79 = int_to_ptr.vmem [resolvable:$true] %s78
      %84 = dma.hbm_to_vmem [thread:$0]  %s4, 16384, %s79, [#allocation9], 64, 64, 4
    $region21: #{tpu_custom_call.1} parent=1 // pred_fallthru
      _
    // Predicated region
    $region22: #{tpu_custom_call.1} parent=1 // pred_check
      _
    $region23: #{tpu_custom_call.1} parent=1 // pred_check_branch
      %86 = sbr.rel (0) target = $region25
    $region24: #{tpu_custom_call.1} parent=1 // pred_region
      %s88 = ssub.s32 16384, 16384
      %89 = vsyncadd [#allocation12], %s88
      %s90 = sshll.u32 [#allocation11], 4
      %s91 = int_to_ptr.vmem [resolvable:$true] %s90
      %96 = dma.hbm_to_vmem [thread:$0]  %s5, 16384, %s91, [#allocation12], 1024, 1024, 64
    $region25: #{tpu_custom_call.1} parent=1 // pred_fallthru
      _
    // Predicated region
    $region26: #{tpu_custom_call.1} parent=1 // pred_check
      _
    $region27: #{tpu_custom_call.1} parent=1 // pred_check_branch
      %98 = sbr.rel (0) target = $region29
    $region28: #{tpu_custom_call.1} parent=1 // pred_region
      %s100 = ssub.s32 65536, 65536
      %101 = vsyncadd [#allocation12], %s100
      %s102 = sshll.u32 [#allocation13], 4
      %s103 = int_to_ptr.vmem [resolvable:$true] %s102
      %108 = dma.hbm_to_vmem [thread:$0]  %s6, 65536, %s103, [#allocation12], 256, 256, 16
    $region29: #{tpu_custom_call.1} parent=1 // pred_fallthru
      _
    // Predicated region
    $region30: #{tpu_custom_call.1} parent=1 // pred_check
      _
    $region31: #{tpu_custom_call.1} parent=1 // pred_check_branch
      %110 = sbr.rel (0) target = $region33
    $region32: #{tpu_custom_call.1} parent=1 // pred_region
      %s112 = ssub.s32 16384, 16384
      %113 = vsyncadd [#allocation15], %s112
      %s114 = sshll.u32 [#allocation14], 4
      %s115 = int_to_ptr.vmem [resolvable:$true] %s114
      %120 = dma.hbm_to_vmem [thread:$0]  %s7, 16384, %s115, [#allocation15], 256, 256, 16
    $region33: #{tpu_custom_call.1} parent=1 // pred_fallthru
      _
    // Predicated region
    $region34: #{tpu_custom_call.1} parent=1 // pred_check
      _
    $region35: #{tpu_custom_call.1} parent=1 // pred_check_branch
      %122 = sbr.rel (0) target = $region37
    $region36: #{tpu_custom_call.1} parent=1 // pred_region
      %s124 = ssub.s32 4096, 4096
      %125 = vsyncadd [#allocation15], %s124
      %s126 = sshll.u32 [#allocation16], 4
      %s127 = int_to_ptr.vmem [resolvable:$true] %s126
      %132 = dma.hbm_to_vmem [thread:$0]  %s8, 4096, %s127, [#allocation15], 64, 64, 4
    $region37: #{tpu_custom_call.1} parent=1 // pred_fallthru
      _
    // Predicated region
    $region38: #{tpu_custom_call.1} parent=1 // pred_check
      _
    $region39: #{tpu_custom_call.1} parent=1 // pred_check_branch
      %134 = sbr.rel (0) target = $region41
    $region40: #{tpu_custom_call.1} parent=1 // pred_region
      %s136 = ssub.s32 4096, 4096
      %137 = vsyncadd [#allocation18], %s136
      %s138 = sshll.u32 [#allocation17], 4
      %s139 = int_to_ptr.vmem [resolvable:$true] %s138
      %144 = dma.hbm_to_vmem [thread:$0]  %s9, 4096, %s139, [#allocation18], 2048, 2048, 128
    $region41: #{tpu_custom_call.1} parent=1 // pred_fallthru
      _
    // Predicated region
    $region42: #{tpu_custom_call.1} parent=1 // pred_check
      _
    $region43: #{tpu_custom_call.1} parent=1 // pred_check_branch
      %146 = sbr.rel (0) target = $region45
    $region44: #{tpu_custom_call.1} parent=1 // pred_region
      %s148 = ssub.s32 2048, 2048
      %149 = vsyncadd [#allocation18], %s148
      %s150 = sshll.u32 [#allocation19], 4
      %s151 = int_to_ptr.vmem [resolvable:$true] %s150
      %156 = dma.hbm_to_vmem [thread:$0]  %s10, 2048, %s151, [#allocation18], 128, 128, 8
    $region45: #{tpu_custom_call.1} parent=1 // pred_fallthru
      _
    // Predicated region
    $region46: #{tpu_custom_call.1} parent=1 // pred_check
      _
    $region47: #{tpu_custom_call.1} parent=1 // pred_check_branch
      %158 = sbr.rel (0) target = $region49
    $region48: #{tpu_custom_call.1} parent=1 // pred_region
      %159 = dma.done [#allocation3], 128
    $region49: #{tpu_custom_call.1} parent=1 // pred_fallthru
      _
    // Predicated region
    $region50: #{tpu_custom_call.1} parent=1 // pred_check
      _
    $region51: #{tpu_custom_call.1} parent=1 // pred_check_branch
      %161 = sbr.rel (0) target = $region53
    $region52: #{tpu_custom_call.1} parent=1 // pred_region
      %162 = dma.done [#allocation6], 4096
    $region53: #{tpu_custom_call.1} parent=1 // pred_fallthru
      _
    // Predicated region
    $region54: #{tpu_custom_call.1} parent=1 // pred_check
      _
    $region55: #{tpu_custom_call.1} parent=1 // pred_check_branch
      %164 = sbr.rel (0) target = $region57
    $region56: #{tpu_custom_call.1} parent=1 // pred_region
      %165 = dma.done [#allocation6], 16384
    $region57: #{tpu_custom_call.1} parent=1 // pred_fallthru
      _
    // Predicated region
    $region58: #{tpu_custom_call.1} parent=1 // pred_check
      _
    $region59: #{tpu_custom_call.1} parent=1 // pred_check_branch
      %167 = sbr.rel (0) target = $region61
    $region60: #{tpu_custom_call.1} parent=1 // pred_region
      %168 = dma.done [#allocation9], 65536
    $region61: #{tpu_custom_call.1} parent=1 // pred_fallthru
      _
    // Predicated region
    $region62: #{tpu_custom_call.1} parent=1 // pred_check
      _
    $region63: #{tpu_custom_call.1} parent=1 // pred_check_branch
      %170 = sbr.rel (0) target = $region65
    $region64: #{tpu_custom_call.1} parent=1 // pred_region
      %171 = dma.done [#allocation9], 16384
    $region65: #{tpu_custom_call.1} parent=1 // pred_fallthru
      _
    // Predicated region
    $region66: #{tpu_custom_call.1} parent=1 // pred_check
      _
    $region67: #{tpu_custom_call.1} parent=1 // pred_check_branch
      %173 = sbr.rel (0) target = $region69
    $region68: #{tpu_custom_call.1} parent=1 // pred_region
      %174 = dma.done [#allocation12], 16384
    $region69: #{tpu_custom_call.1} parent=1 // pred_fallthru
      _
    // Predicated region
    $region70: #{tpu_custom_call.1} parent=1 // pred_check
      _
    $region71: #{tpu_custom_call.1} parent=1 // pred_check_branch
      %176 = sbr.rel (0) target = $region73
    $region72: #{tpu_custom_call.1} parent=1 // pred_region
      %177 = dma.done [#allocation12], 65536
    $region73: #{tpu_custom_call.1} parent=1 // pred_fallthru
      _
    // Predicated region
    $region74: #{tpu_custom_call.1} parent=1 // pred_check
      _
    $region75: #{tpu_custom_call.1} parent=1 // pred_check_branch
      %179 = sbr.rel (0) target = $region77
    $region76: #{tpu_custom_call.1} parent=1 // pred_region
      %180 = dma.done [#allocation15], 16384
    $region77: #{tpu_custom_call.1} parent=1 // pred_fallthru
      _
    // Predicated region
    $region78: #{tpu_custom_call.1} parent=1 // pred_check
      _
    $region79: #{tpu_custom_call.1} parent=1 // pred_check_branch
      %182 = sbr.rel (0) target = $region81
    $region80: #{tpu_custom_call.1} parent=1 // pred_region
      %183 = dma.done [#allocation15], 4096
    $region81: #{tpu_custom_call.1} parent=1 // pred_fallthru
      _
    // Predicated region
    $region82: #{tpu_custom_call.1} parent=1 // pred_check
      _
    $region83: #{tpu_custom_call.1} parent=1 // pred_check_branch
      %185 = sbr.rel (0) target = $region85
    $region84: #{tpu_custom_call.1} parent=1 // pred_region
      %186 = dma.done [#allocation18], 4096
    $region85: #{tpu_custom_call.1} parent=1 // pred_fallthru
      _
    // Predicated region
    $region86: #{tpu_custom_call.1} parent=1 // pred_check
      _
    $region87: #{tpu_custom_call.1} parent=1 // pred_check_branch
      %188 = sbr.rel (0) target = $region89
    $region88: #{tpu_custom_call.1} parent=1 // pred_region
      %189 = dma.done [#allocation18], 2048
    $region89: #{tpu_custom_call.1} parent=1 // pred_fallthru
      _
    %v191 = vld [vmem:[#allocation2] sm:$0xff]
    %v192 = vld [vmem:[#allocation5] sm:$0xff]
    %v193 = vld [vmem:[#allocation5 + $0x8] sm:$0xff]
    %v194 = vld [vmem:[#allocation5 + $0x10] sm:$0xff]
    %v195 = vld [vmem:[#allocation5 + $0x18] sm:$0xff]
    %v196 = vld [vmem:[#allocation5 + $0x20] sm:$0xff]
    %v197 = vld [vmem:[#allocation5 + $0x28] sm:$0xff]
    %v198 = vld [vmem:[#allocation5 + $0x30] sm:$0xff]
    %v199 = vld [vmem:[#allocation5 + $0x38] sm:$0xff]
    %v200 = vld [vmem:[#allocation5 + $0x40] sm:$0xff]
    %v201 = vld [vmem:[#allocation5 + $0x48] sm:$0xff]
    %v202 = vld [vmem:[#allocation5 + $0x50] sm:$0xff]
    %v203 = vld [vmem:[#allocation5 + $0x58] sm:$0xff]
    %v204 = vld [vmem:[#allocation5 + $0x60] sm:$0xff]
    %v205 = vld [vmem:[#allocation5 + $0x68] sm:$0xff]
    %v206 = vld [vmem:[#allocation5 + $0x70] sm:$0xff]
    %v207 = vld [vmem:[#allocation5 + $0x78] sm:$0xff]
    %v208 = vld [vmem:[#allocation5 + $0x80] sm:$0xff]
    %v209 = vld [vmem:[#allocation5 + $0x88] sm:$0xff]
    %v210 = vld [vmem:[#allocation5 + $0x90] sm:$0xff]
    %v211 = vld [vmem:[#allocation5 + $0x98] sm:$0xff]
    %v212 = vld [vmem:[#allocation5 + $0xa0] sm:$0xff]
    %v213 = vld [vmem:[#allocation5 + $0xa8] sm:$0xff]
    %v214 = vld [vmem:[#allocation5 + $0xb0] sm:$0xff]
    %v215 = vld [vmem:[#allocation5 + $0xb8] sm:$0xff]
    %v216 = vld [vmem:[#allocation5 + $0xc0] sm:$0xff]
    %v217 = vld [vmem:[#allocation5 + $0xc8] sm:$0xff]
    %v218 = vld [vmem:[#allocation5 + $0xd0] sm:$0xff]
    %v219 = vld [vmem:[#allocation5 + $0xd8] sm:$0xff]
    %v220 = vld [vmem:[#allocation5 + $0xe0] sm:$0xff]
    %v221 = vld [vmem:[#allocation5 + $0xe8] sm:$0xff]
    %v222 = vld [vmem:[#allocation5 + $0xf0] sm:$0xff]
    %v223 = vld [vmem:[#allocation5 + $0xf8] sm:$0xff]
    %v224 = vpack.c.bf16 %v191, %v191
    %v225 = vld [vmem:[#allocation17] ss:$8 sm:$0xf]
    %v227 = vlaneseq
    %v228 = vshrl.u32 %v227, 7
    %v229 = vsub.s32 0, %v228
    %v230 = vrot.slane %v225, %v229
    %v231 = vlaneseq
    %v232 = vshrl.u32 %v231, 7
    %v233 = vsub.s32 1, %v232
    %v234 = vrot.slane %v225, %v233
    %v235 = vlaneseq
    %v236 = vshrl.u32 %v235, 7
    %v237 = vsub.s32 2, %v236
    %v238 = vrot.slane %v225, %v237
    %v239 = vlaneseq
    %v240 = vshrl.u32 %v239, 7
    %v241 = vsub.s32 3, %v240
    %v242 = vrot.slane %v225, %v241
    %v279 = vunpack.c.l.b16 %v192
    %v280 = vunpack.c.h.b16 %v192
    %v281 = vunpack.c.l.b16 %v193
    %v282 = vunpack.c.h.b16 %v193
    %v283 = vunpack.c.l.b16 %v194
    %v284 = vunpack.c.h.b16 %v194
    %v285 = vunpack.c.l.b16 %v195
    %v286 = vunpack.c.h.b16 %v195
    %v287 = vunpack.c.l.b16 %v196
    %v288 = vunpack.c.h.b16 %v196
    %v289 = vunpack.c.l.b16 %v197
    %v290 = vunpack.c.h.b16 %v197
    %v291 = vunpack.c.l.b16 %v198
    %v292 = vunpack.c.h.b16 %v198
    %v293 = vunpack.c.l.b16 %v199
    %v294 = vunpack.c.h.b16 %v199
    %v295 = vunpack.c.l.b16 %v200
    %v296 = vunpack.c.h.b16 %v200
    %v297 = vunpack.c.l.b16 %v201
    %v298 = vunpack.c.h.b16 %v201
    %v299 = vunpack.c.l.b16 %v202
    %v300 = vunpack.c.h.b16 %v202
    %v301 = vunpack.c.l.b16 %v203
    %v302 = vunpack.c.h.b16 %v203
    %v303 = vunpack.c.l.b16 %v204
    %v304 = vunpack.c.h.b16 %v204
    %v305 = vunpack.c.l.b16 %v205
    %v306 = vunpack.c.h.b16 %v205
    %v307 = vunpack.c.l.b16 %v206
    %v308 = vunpack.c.h.b16 %v206
    %v309 = vunpack.c.l.b16 %v207
    %v310 = vunpack.c.h.b16 %v207
    %v311 = vunpack.c.l.b16 %v208
    %v312 = vunpack.c.h.b16 %v208
    %v313 = vunpack.c.l.b16 %v209
    %v314 = vunpack.c.h.b16 %v209
    %v315 = vunpack.c.l.b16 %v210
    %v316 = vunpack.c.h.b16 %v210
    %v317 = vunpack.c.l.b16 %v211
    %v318 = vunpack.c.h.b16 %v211
    %v319 = vunpack.c.l.b16 %v212
    %v320 = vunpack.c.h.b16 %v212
    %v321 = vunpack.c.l.b16 %v213
    %v322 = vunpack.c.h.b16 %v213
    %v323 = vunpack.c.l.b16 %v214
    %v324 = vunpack.c.h.b16 %v214
    %v325 = vunpack.c.l.b16 %v215
    %v326 = vunpack.c.h.b16 %v215
    %v327 = vunpack.c.l.b16 %v216
    %v328 = vunpack.c.h.b16 %v216
    %v329 = vunpack.c.l.b16 %v217
    %v330 = vunpack.c.h.b16 %v217
    %v331 = vunpack.c.l.b16 %v218
    %v332 = vunpack.c.h.b16 %v218
    %v333 = vunpack.c.l.b16 %v219
    %v334 = vunpack.c.h.b16 %v219
    %v335 = vunpack.c.l.b16 %v220
    %v336 = vunpack.c.h.b16 %v220
    %v337 = vunpack.c.l.b16 %v221
    %v338 = vunpack.c.h.b16 %v221
    %v339 = vunpack.c.l.b16 %v222
    %v340 = vunpack.c.h.b16 %v222
    %v341 = vunpack.c.l.b16 %v223
    %v342 = vunpack.c.h.b16 %v223
    %v343 = vpack.c.b16 %v283, %v279
    %v344 = vpack.c.b16 %v284, %v280
    %v345 = vpack.c.b16 %v285, %v281
    %v346 = vpack.c.b16 %v286, %v282
    %v347 = vpack.c.b16 %v291, %v287
    %v348 = vpack.c.b16 %v292, %v288
    %v349 = vpack.c.b16 %v293, %v289
    %v350 = vpack.c.b16 %v294, %v290
    %v351 = vpack.c.b16 %v299, %v295
    %v352 = vpack.c.b16 %v300, %v296
    %v353 = vpack.c.b16 %v301, %v297
    %v354 = vpack.c.b16 %v302, %v298
    %v355 = vpack.c.b16 %v307, %v303
    %v356 = vpack.c.b16 %v308, %v304
    %v357 = vpack.c.b16 %v309, %v305
    %v358 = vpack.c.b16 %v310, %v306
    %v359 = vpack.c.b16 %v315, %v311
    %v360 = vpack.c.b16 %v316, %v312
    %v361 = vpack.c.b16 %v317, %v313
    %v362 = vpack.c.b16 %v318, %v314
    %v363 = vpack.c.b16 %v323, %v319
    %v364 = vpack.c.b16 %v324, %v320
    %v365 = vpack.c.b16 %v325, %v321
    %v366 = vpack.c.b16 %v326, %v322
    %v367 = vpack.c.b16 %v331, %v327
    %v368 = vpack.c.b16 %v332, %v328
    %v369 = vpack.c.b16 %v333, %v329
    %v370 = vpack.c.b16 %v334, %v330
    %v371 = vpack.c.b16 %v339, %v335
    %v372 = vpack.c.b16 %v340, %v336
    %v373 = vpack.c.b16 %v341, %v337
    %v374 = vpack.c.b16 %v342, %v338
    %407 = vmatprep.subr.bf16.mxu0 %v372
    %408 = vmatpush1.bf16.msra.mxu0 %v371
    %409 = vmatprep.subr.bf16.mxu0 %v368
    %410 = vmatpush1.bf16.msra.mxu0 %v367
    %411 = vmatprep.subr.bf16.mxu0 %v364
    %412 = vmatpush1.bf16.msra.mxu0 %v363
    %413 = vmatprep.subr.bf16.mxu0 %v360
    %414 = vmatpush1.bf16.msra.mxu0 %v359
    %415 = vmatprep.subr.bf16.mxu0 %v356
    %416 = vmatpush1.bf16.msra.mxu0 %v355
    %417 = vmatprep.subr.bf16.mxu0 %v352
    %418 = vmatpush1.bf16.msra.mxu0 %v351
    %419 = vmatprep.subr.bf16.mxu0 %v348
    %420 = vmatpush1.bf16.msra.mxu0 %v347
    %421 = vmatprep.subr.bf16.mxu0 %v344
    %422 = vmatpush1.bf16.msra.mxu0 %v343
    %423 = vmatprep.subr.bf16.mxu0 0
    %424 = vmatpush2.bf16.msra.mxu0 0
    %425 = vmatprep.subr.bf16.mxu0 0
    %426 = vmatpush2.bf16.msra.mxu0 0
    %427 = vmatprep.subr.bf16.mxu0 0
    %428 = vmatpush2.bf16.msra.mxu0 0
    %429 = vmatprep.subr.bf16.mxu0 0
    %430 = vmatpush2.bf16.msra.mxu0 0
    %431 = vmatprep.subr.bf16.mxu0 0
    %432 = vmatpush2.bf16.msra.mxu0 0
    %433 = vmatprep.subr.bf16.mxu0 0
    %434 = vmatpush2.bf16.msra.mxu0 0
    %435 = vmatprep.subr.bf16.mxu0 0
    %436 = vmatpush2.bf16.msra.mxu0 0
    %437 = vmatprep.subr.bf16.mxu0 0
    %438 = vmatpush2.bf16.msra.mxu0 0
    %439 = vmatprep.mubr.bf16.mxu0 0
    %440 = vmatmul.mubr.bf16.gmra.mxu0 %v224
    %v441 = vpop.f32.mrf.mxu0
    %v442 = vadd.f32 %v230, %v441
    %v443 = vpop.f32.mrf.mxu0
    %v444 = vadd.f32 %v234, %v443
    %v445 = vpop.f32.mrf.mxu0
    %v446 = vpop.f32.mrf.mxu0
    %447 = vdwg.mxu0
    %448 = vmatprep.subr.bf16.mxu0 %v374
    %449 = vmatpush1.bf16.msra.mxu0 %v373
    %450 = vmatprep.subr.bf16.mxu0 %v370
    %451 = vmatpush1.bf16.msra.mxu0 %v369
    %452 = vmatprep.subr.bf16.mxu0 %v366
    %453 = vmatpush1.bf16.msra.mxu0 %v365
    %454 = vmatprep.subr.bf16.mxu0 %v362
    %455 = vmatpush1.bf16.msra.mxu0 %v361
    %456 = vmatprep.subr.bf16.mxu0 %v358
    %457 = vmatpush1.bf16.msra.mxu0 %v357
    %458 = vmatprep.subr.bf16.mxu0 %v354
    %459 = vmatpush1.bf16.msra.mxu0 %v353
    %460 = vmatprep.subr.bf16.mxu0 %v350
    %461 = vmatpush1.bf16.msra.mxu0 %v349
    %462 = vmatprep.subr.bf16.mxu0 %v346
    %463 = vmatpush1.bf16.msra.mxu0 %v345
    %464 = vmatprep.subr.bf16.mxu0 0
    %465 = vmatpush2.bf16.msra.mxu0 0
    %466 = vmatprep.subr.bf16.mxu0 0
    %467 = vmatpush2.bf16.msra.mxu0 0
    %468 = vmatprep.subr.bf16.mxu0 0
    %469 = vmatpush2.bf16.msra.mxu0 0
    %470 = vmatprep.subr.bf16.mxu0 0
    %471 = vmatpush2.bf16.msra.mxu0 0
    %472 = vmatprep.subr.bf16.mxu0 0
    %473 = vmatpush2.bf16.msra.mxu0 0
    %474 = vmatprep.subr.bf16.mxu0 0
    %475 = vmatpush2.bf16.msra.mxu0 0
    %476 = vmatprep.subr.bf16.mxu0 0
    %477 = vmatpush2.bf16.msra.mxu0 0
    %478 = vmatprep.subr.bf16.mxu0 0
    %479 = vmatpush2.bf16.msra.mxu0 0
    %480 = vmatprep.mubr.bf16.mxu0 0
    %481 = vmatmul.mubr.bf16.gmra.mxu0 %v224
    %v482 = vpop.f32.mrf.mxu0
    %v483 = vadd.f32 %v238, %v482
    %v484 = vpop.f32.mrf.mxu0
    %v485 = vadd.f32 %v242, %v484
    %v486 = vpop.f32.mrf.mxu0
    %v487 = vpop.f32.mrf.mxu0
    %488 = vdwg.mxu0
    %v489 = vmax.f32 %v442, 0.0
    %v490 = vmax.f32 %v444, 0.0
    %v491 = vmax.f32 %v483, 0.0
    %v492 = vmax.f32 %v485, 0.0
    %v493 = vld [vmem:[#allocation7] sm:$0xff]
    %v494 = vld [vmem:[#allocation7 + $0x8] sm:$0xff]
    %v495 = vld [vmem:[#allocation7 + $0x10] sm:$0xff]
    %v496 = vld [vmem:[#allocation7 + $0x18] sm:$0xff]
    %v497 = vld [vmem:[#allocation7 + $0x20] sm:$0xff]
    %v498 = vld [vmem:[#allocation7 + $0x28] sm:$0xff]
    %v499 = vld [vmem:[#allocation7 + $0x30] sm:$0xff]
    %v500 = vld [vmem:[#allocation7 + $0x38] sm:$0xff]
    %v501 = vld [vmem:[#allocation7 + $0x40] sm:$0xff]
    %v502 = vld [vmem:[#allocation7 + $0x48] sm:$0xff]
    %v503 = vld [vmem:[#allocation7 + $0x50] sm:$0xff]
    %v504 = vld [vmem:[#allocation7 + $0x58] sm:$0xff]
    %v505 = vld [vmem:[#allocation7 + $0x60] sm:$0xff]
    %v506 = vld [vmem:[#allocation7 + $0x68] sm:$0xff]
    %v507 = vld [vmem:[#allocation7 + $0x70] sm:$0xff]
    %v508 = vld [vmem:[#allocation7 + $0x78] sm:$0xff]
    %v509 = vld [vmem:[#allocation7 + $0x80] sm:$0xff]
    %v510 = vld [vmem:[#allocation7 + $0x88] sm:$0xff]
    %v511 = vld [vmem:[#allocation7 + $0x90] sm:$0xff]
    %v512 = vld [vmem:[#allocation7 + $0x98] sm:$0xff]
    %v513 = vld [vmem:[#allocation7 + $0xa0] sm:$0xff]
    %v514 = vld [vmem:[#allocation7 + $0xa8] sm:$0xff]
    %v515 = vld [vmem:[#allocation7 + $0xb0] sm:$0xff]
    %v516 = vld [vmem:[#allocation7 + $0xb8] sm:$0xff]
    %v517 = vld [vmem:[#allocation7 + $0xc0] sm:$0xff]
    %v518 = vld [vmem:[#allocation7 + $0xc8] sm:$0xff]
    %v519 = vld [vmem:[#allocation7 + $0xd0] sm:$0xff]
    %v520 = vld [vmem:[#allocation7 + $0xd8] sm:$0xff]
    %v521 = vld [vmem:[#allocation7 + $0xe0] sm:$0xff]
    %v522 = vld [vmem:[#allocation7 + $0xe8] sm:$0xff]
    %v523 = vld [vmem:[#allocation7 + $0xf0] sm:$0xff]
    %v524 = vld [vmem:[#allocation7 + $0xf8] sm:$0xff]
    %v525 = vld [vmem:[#allocation7 + $0x100] sm:$0xff]
    %v526 = vld [vmem:[#allocation7 + $0x108] sm:$0xff]
    %v527 = vld [vmem:[#allocation7 + $0x110] sm:$0xff]
    %v528 = vld [vmem:[#allocation7 + $0x118] sm:$0xff]
    %v529 = vld [vmem:[#allocation7 + $0x120] sm:$0xff]
    %v530 = vld [vmem:[#allocation7 + $0x128] sm:$0xff]
    %v531 = vld [vmem:[#allocation7 + $0x130] sm:$0xff]
    %v532 = vld [vmem:[#allocation7 + $0x138] sm:$0xff]
    %v533 = vld [vmem:[#allocation7 + $0x140] sm:$0xff]
    %v534 = vld [vmem:[#allocation7 + $0x148] sm:$0xff]
    %v535 = vld [vmem:[#allocation7 + $0x150] sm:$0xff]
    %v536 = vld [vmem:[#allocation7 + $0x158] sm:$0xff]
    %v537 = vld [vmem:[#allocation7 + $0x160] sm:$0xff]
    %v538 = vld [vmem:[#allocation7 + $0x168] sm:$0xff]
    %v539 = vld [vmem:[#allocation7 + $0x170] sm:$0xff]
    %v540 = vld [vmem:[#allocation7 + $0x178] sm:$0xff]
    %v541 = vld [vmem:[#allocation7 + $0x180] sm:$0xff]
    %v542 = vld [vmem:[#allocation7 + $0x188] sm:$0xff]
    %v543 = vld [vmem:[#allocation7 + $0x190] sm:$0xff]
    %v544 = vld [vmem:[#allocation7 + $0x198] sm:$0xff]
    %v545 = vld [vmem:[#allocation7 + $0x1a0] sm:$0xff]
    %v546 = vld [vmem:[#allocation7 + $0x1a8] sm:$0xff]
    %v547 = vld [vmem:[#allocation7 + $0x1b0] sm:$0xff]
    %v548 = vld [vmem:[#allocation7 + $0x1b8] sm:$0xff]
    %v549 = vld [vmem:[#allocation7 + $0x1c0] sm:$0xff]
    %v550 = vld [vmem:[#allocation7 + $0x1c8] sm:$0xff]
    %v551 = vld [vmem:[#allocation7 + $0x1d0] sm:$0xff]
    %v552 = vld [vmem:[#allocation7 + $0x1d8] sm:$0xff]
    %v553 = vld [vmem:[#allocation7 + $0x1e0] sm:$0xff]
    %v554 = vld [vmem:[#allocation7 + $0x1e8] sm:$0xff]
    %v555 = vld [vmem:[#allocation7 + $0x1f0] sm:$0xff]
    %v556 = vld [vmem:[#allocation7 + $0x1f8] sm:$0xff]
    %v557 = vld [vmem:[#allocation7 + $0x200] sm:$0xff]
    %v558 = vld [vmem:[#allocation7 + $0x208] sm:$0xff]
    %v559 = vld [vmem:[#allocation7 + $0x210] sm:$0xff]
    %v560 = vld [vmem:[#allocation7 + $0x218] sm:$0xff]
    %v561 = vld [vmem:[#allocation7 + $0x220] sm:$0xff]
    %v562 = vld [vmem:[#allocation7 + $0x228] sm:$0xff]
    %v563 = vld [vmem:[#allocation7 + $0x230] sm:$0xff]
    %v564 = vld [vmem:[#allocation7 + $0x238] sm:$0xff]
    %v565 = vld [vmem:[#allocation7 + $0x240] sm:$0xff]
    %v566 = vld [vmem:[#allocation7 + $0x248] sm:$0xff]
    %v567 = vld [vmem:[#allocation7 + $0x250] sm:$0xff]
    %v568 = vld [vmem:[#allocation7 + $0x258] sm:$0xff]
    %v569 = vld [vmem:[#allocation7 + $0x260] sm:$0xff]
    %v570 = vld [vmem:[#allocation7 + $0x268] sm:$0xff]
    %v571 = vld [vmem:[#allocation7 + $0x270] sm:$0xff]
    %v572 = vld [vmem:[#allocation7 + $0x278] sm:$0xff]
    %v573 = vld [vmem:[#allocation7 + $0x280] sm:$0xff]
    %v574 = vld [vmem:[#allocation7 + $0x288] sm:$0xff]
    %v575 = vld [vmem:[#allocation7 + $0x290] sm:$0xff]
    %v576 = vld [vmem:[#allocation7 + $0x298] sm:$0xff]
    %v577 = vld [vmem:[#allocation7 + $0x2a0] sm:$0xff]
    %v578 = vld [vmem:[#allocation7 + $0x2a8] sm:$0xff]
    %v579 = vld [vmem:[#allocation7 + $0x2b0] sm:$0xff]
    %v580 = vld [vmem:[#allocation7 + $0x2b8] sm:$0xff]
    %v581 = vld [vmem:[#allocation7 + $0x2c0] sm:$0xff]
    %v582 = vld [vmem:[#allocation7 + $0x2c8] sm:$0xff]
    %v583 = vld [vmem:[#allocation7 + $0x2d0] sm:$0xff]
    %v584 = vld [vmem:[#allocation7 + $0x2d8] sm:$0xff]
    %v585 = vld [vmem:[#allocation7 + $0x2e0] sm:$0xff]
    %v586 = vld [vmem:[#allocation7 + $0x2e8] sm:$0xff]
    %v587 = vld [vmem:[#allocation7 + $0x2f0] sm:$0xff]
    %v588 = vld [vmem:[#allocation7 + $0x2f8] sm:$0xff]
    %v589 = vld [vmem:[#allocation7 + $0x300] sm:$0xff]
    %v590 = vld [vmem:[#allocation7 + $0x308] sm:$0xff]
    %v591 = vld [vmem:[#allocation7 + $0x310] sm:$0xff]
    %v592 = vld [vmem:[#allocation7 + $0x318] sm:$0xff]
    %v593 = vld [vmem:[#allocation7 + $0x320] sm:$0xff]
    %v594 = vld [vmem:[#allocation7 + $0x328] sm:$0xff]
    %v595 = vld [vmem:[#allocation7 + $0x330] sm:$0xff]
    %v596 = vld [vmem:[#allocation7 + $0x338] sm:$0xff]
    %v597 = vld [vmem:[#allocation7 + $0x340] sm:$0xff]
    %v598 = vld [vmem:[#allocation7 + $0x348] sm:$0xff]
    %v599 = vld [vmem:[#allocation7 + $0x350] sm:$0xff]
    %v600 = vld [vmem:[#allocation7 + $0x358] sm:$0xff]
    %v601 = vld [vmem:[#allocation7 + $0x360] sm:$0xff]
    %v602 = vld [vmem:[#allocation7 + $0x368] sm:$0xff]
    %v603 = vld [vmem:[#allocation7 + $0x370] sm:$0xff]
    %v604 = vld [vmem:[#allocation7 + $0x378] sm:$0xff]
    %v605 = vld [vmem:[#allocation7 + $0x380] sm:$0xff]
    %v606 = vld [vmem:[#allocation7 + $0x388] sm:$0xff]
    %v607 = vld [vmem:[#allocation7 + $0x390] sm:$0xff]
    %v608 = vld [vmem:[#allocation7 + $0x398] sm:$0xff]
    %v609 = vld [vmem:[#allocation7 + $0x3a0] sm:$0xff]
    %v610 = vld [vmem:[#allocation7 + $0x3a8] sm:$0xff]
    %v611 = vld [vmem:[#allocation7 + $0x3b0] sm:$0xff]
    %v612 = vld [vmem:[#allocation7 + $0x3b8] sm:$0xff]
    %v613 = vld [vmem:[#allocation7 + $0x3c0] sm:$0xff]
    %v614 = vld [vmem:[#allocation7 + $0x3c8] sm:$0xff]
    %v615 = vld [vmem:[#allocation7 + $0x3d0] sm:$0xff]
    %v616 = vld [vmem:[#allocation7 + $0x3d8] sm:$0xff]
    %v617 = vld [vmem:[#allocation7 + $0x3e0] sm:$0xff]
    %v618 = vld [vmem:[#allocation7 + $0x3e8] sm:$0xff]
    %v619 = vld [vmem:[#allocation7 + $0x3f0] sm:$0xff]
    %v620 = vld [vmem:[#allocation7 + $0x3f8] sm:$0xff]
    %v621 = vpack.c.bf16 %v489, %v489
    %v622 = vpack.c.bf16 %v490, %v490
    %v623 = vpack.c.bf16 %v491, %v491
    %v624 = vpack.c.bf16 %v492, %v492
    %s625 = scalar_lea.vmem [#allocation17], 1
    %v626 = vld [vmem:[%s625] ss:$8 sm:$0xf]
    %v628 = vlaneseq
    %v629 = vshrl.u32 %v628, 7
    %v630 = vsub.s32 0, %v629
    %v631 = vrot.slane %v626, %v630
    %v632 = vlaneseq
    %v633 = vshrl.u32 %v632, 7
    %v634 = vsub.s32 1, %v633
    %v635 = vrot.slane %v626, %v634
    %v636 = vlaneseq
    %v637 = vshrl.u32 %v636, 7
    %v638 = vsub.s32 2, %v637
    %v639 = vrot.slane %v626, %v638
    %v640 = vlaneseq
    %v641 = vshrl.u32 %v640, 7
    %v642 = vsub.s32 3, %v641
    %v643 = vrot.slane %v626, %v642
    %v776 = vunpack.c.l.b16 %v493
    %v777 = vunpack.c.h.b16 %v493
    %v778 = vunpack.c.l.b16 %v494
    %v779 = vunpack.c.h.b16 %v494
    %v780 = vunpack.c.l.b16 %v495
    %v781 = vunpack.c.h.b16 %v495
    %v782 = vunpack.c.l.b16 %v496
    %v783 = vunpack.c.h.b16 %v496
    %v784 = vunpack.c.l.b16 %v497
    %v785 = vunpack.c.h.b16 %v497
    %v786 = vunpack.c.l.b16 %v498
    %v787 = vunpack.c.h.b16 %v498
    %v788 = vunpack.c.l.b16 %v499
    %v789 = vunpack.c.h.b16 %v499
    %v790 = vunpack.c.l.b16 %v500
    %v791 = vunpack.c.h.b16 %v500
    %v792 = vunpack.c.l.b16 %v501
    %v793 = vunpack.c.h.b16 %v501
    %v794 = vunpack.c.l.b16 %v502
    %v795 = vunpack.c.h.b16 %v502
    %v796 = vunpack.c.l.b16 %v503
    %v797 = vunpack.c.h.b16 %v503
    %v798 = vunpack.c.l.b16 %v504
    %v799 = vunpack.c.h.b16 %v504
    %v800 = vunpack.c.l.b16 %v505
    %v801 = vunpack.c.h.b16 %v505
    %v802 = vunpack.c.l.b16 %v506
    %v803 = vunpack.c.h.b16 %v506
    %v804 = vunpack.c.l.b16 %v507
    %v805 = vunpack.c.h.b16 %v507
    %v806 = vunpack.c.l.b16 %v508
    %v807 = vunpack.c.h.b16 %v508
    %v808 = vunpack.c.l.b16 %v509
    %v809 = vunpack.c.h.b16 %v509
    %v810 = vunpack.c.l.b16 %v510
    %v811 = vunpack.c.h.b16 %v510
    %v812 = vunpack.c.l.b16 %v511
    %v813 = vunpack.c.h.b16 %v511
    %v814 = vunpack.c.l.b16 %v512
    %v815 = vunpack.c.h.b16 %v512
    %v816 = vunpack.c.l.b16 %v513
    %v817 = vunpack.c.h.b16 %v513
    %v818 = vunpack.c.l.b16 %v514
    %v819 = vunpack.c.h.b16 %v514
    %v820 = vunpack.c.l.b16 %v515
    %v821 = vunpack.c.h.b16 %v515
    %v822 = vunpack.c.l.b16 %v516
    %v823 = vunpack.c.h.b16 %v516
    %v824 = vunpack.c.l.b16 %v517
    %v825 = vunpack.c.h.b16 %v517
    %v826 = vunpack.c.l.b16 %v518
    %v827 = vunpack.c.h.b16 %v518
    %v828 = vunpack.c.l.b16 %v519
    %v829 = vunpack.c.h.b16 %v519
    %v830 = vunpack.c.l.b16 %v520
    %v831 = vunpack.c.h.b16 %v520
    %v832 = vunpack.c.l.b16 %v521
    %v833 = vunpack.c.h.b16 %v521
    %v834 = vunpack.c.l.b16 %v522
    %v835 = vunpack.c.h.b16 %v522
    %v836 = vunpack.c.l.b16 %v523
    %v837 = vunpack.c.h.b16 %v523
    %v838 = vunpack.c.l.b16 %v524
    %v839 = vunpack.c.h.b16 %v524
    %v840 = vunpack.c.l.b16 %v525
    %v841 = vunpack.c.h.b16 %v525
    %v842 = vunpack.c.l.b16 %v526
    %v843 = vunpack.c.h.b16 %v526
    %v844 = vunpack.c.l.b16 %v527
    %v845 = vunpack.c.h.b16 %v527
    %v846 = vunpack.c.l.b16 %v528
    %v847 = vunpack.c.h.b16 %v528
    %v848 = vunpack.c.l.b16 %v529
    %v849 = vunpack.c.h.b16 %v529
    %v850 = vunpack.c.l.b16 %v530
    %v851 = vunpack.c.h.b16 %v530
    %v852 = vunpack.c.l.b16 %v531
    %v853 = vunpack.c.h.b16 %v531
    %v854 = vunpack.c.l.b16 %v532
    %v855 = vunpack.c.h.b16 %v532
    %v856 = vunpack.c.l.b16 %v533
    %v857 = vunpack.c.h.b16 %v533
    %v858 = vunpack.c.l.b16 %v534
    %v859 = vunpack.c.h.b16 %v534
    %v860 = vunpack.c.l.b16 %v535
    %v861 = vunpack.c.h.b16 %v535
    %v862 = vunpack.c.l.b16 %v536
    %v863 = vunpack.c.h.b16 %v536
    %v864 = vunpack.c.l.b16 %v537
    %v865 = vunpack.c.h.b16 %v537
    %v866 = vunpack.c.l.b16 %v538
    %v867 = vunpack.c.h.b16 %v538
    %v868 = vunpack.c.l.b16 %v539
    %v869 = vunpack.c.h.b16 %v539
    %v870 = vunpack.c.l.b16 %v540
    %v871 = vunpack.c.h.b16 %v540
    %v872 = vunpack.c.l.b16 %v541
    %v873 = vunpack.c.h.b16 %v541
    %v874 = vunpack.c.l.b16 %v542
    %v875 = vunpack.c.h.b16 %v542
    %v876 = vunpack.c.l.b16 %v543
    %v877 = vunpack.c.h.b16 %v543
    %v878 = vunpack.c.l.b16 %v544
    %v879 = vunpack.c.h.b16 %v544
    %v880 = vunpack.c.l.b16 %v545
    %v881 = vunpack.c.h.b16 %v545
    %v882 = vunpack.c.l.b16 %v546
    %v883 = vunpack.c.h.b16 %v546
    %v884 = vunpack.c.l.b16 %v547
    %v885 = vunpack.c.h.b16 %v547
    %v886 = vunpack.c.l.b16 %v548
    %v887 = vunpack.c.h.b16 %v548
    %v888 = vunpack.c.l.b16 %v549
    %v889 = vunpack.c.h.b16 %v549
    %v890 = vunpack.c.l.b16 %v550
    %v891 = vunpack.c.h.b16 %v550
    %v892 = vunpack.c.l.b16 %v551
    %v893 = vunpack.c.h.b16 %v551
    %v894 = vunpack.c.l.b16 %v552
    %v895 = vunpack.c.h.b16 %v552
    %v896 = vunpack.c.l.b16 %v553
    %v897 = vunpack.c.h.b16 %v553
    %v898 = vunpack.c.l.b16 %v554
    %v899 = vunpack.c.h.b16 %v554
    %v900 = vunpack.c.l.b16 %v555
    %v901 = vunpack.c.h.b16 %v555
    %v902 = vunpack.c.l.b16 %v556
    %v903 = vunpack.c.h.b16 %v556
    %v904 = vunpack.c.l.b16 %v557
    %v905 = vunpack.c.h.b16 %v557
    %v906 = vunpack.c.l.b16 %v558
    %v907 = vunpack.c.h.b16 %v558
    %v908 = vunpack.c.l.b16 %v559
    %v909 = vunpack.c.h.b16 %v559
    %v910 = vunpack.c.l.b16 %v560
    %v911 = vunpack.c.h.b16 %v560
    %v912 = vunpack.c.l.b16 %v561
    %v913 = vunpack.c.h.b16 %v561
    %v914 = vunpack.c.l.b16 %v562
    %v915 = vunpack.c.h.b16 %v562
    %v916 = vunpack.c.l.b16 %v563
    %v917 = vunpack.c.h.b16 %v563
    %v918 = vunpack.c.l.b16 %v564
    %v919 = vunpack.c.h.b16 %v564
    %v920 = vunpack.c.l.b16 %v565
    %v921 = vunpack.c.h.b16 %v565
    %v922 = vunpack.c.l.b16 %v566
    %v923 = vunpack.c.h.b16 %v566
    %v924 = vunpack.c.l.b16 %v567
    %v925 = vunpack.c.h.b16 %v567
    %v926 = vunpack.c.l.b16 %v568
    %v927 = vunpack.c.h.b16 %v568
    %v928 = vunpack.c.l.b16 %v569
    %v929 = vunpack.c.h.b16 %v569
    %v930 = vunpack.c.l.b16 %v570
    %v931 = vunpack.c.h.b16 %v570
    %v932 = vunpack.c.l.b16 %v571
    %v933 = vunpack.c.h.b16 %v571
    %v934 = vunpack.c.l.b16 %v572
    %v935 = vunpack.c.h.b16 %v572
    %v936 = vunpack.c.l.b16 %v573
    %v937 = vunpack.c.h.b16 %v573
    %v938 = vunpack.c.l.b16 %v574
    %v939 = vunpack.c.h.b16 %v574
    %v940 = vunpack.c.l.b16 %v575
    %v941 = vunpack.c.h.b16 %v575
    %v942 = vunpack.c.l.b16 %v576
    %v943 = vunpack.c.h.b16 %v576
    %v944 = vunpack.c.l.b16 %v577
    %v945 = vunpack.c.h.b16 %v577
    %v946 = vunpack.c.l.b16 %v578
    %v947 = vunpack.c.h.b16 %v578
    %v948 = vunpack.c.l.b16 %v579
    %v949 = vunpack.c.h.b16 %v579
    %v950 = vunpack.c.l.b16 %v580
    %v951 = vunpack.c.h.b16 %v580
    %v952 = vunpack.c.l.b16 %v581
    %v953 = vunpack.c.h.b16 %v581
    %v954 = vunpack.c.l.b16 %v582
    %v955 = vunpack.c.h.b16 %v582
    %v956 = vunpack.c.l.b16 %v583
    %v957 = vunpack.c.h.b16 %v583
    %v958 = vunpack.c.l.b16 %v584
    %v959 = vunpack.c.h.b16 %v584
    %v960 = vunpack.c.l.b16 %v585
    %v961 = vunpack.c.h.b16 %v585
    %v962 = vunpack.c.l.b16 %v586
    %v963 = vunpack.c.h.b16 %v586
    %v964 = vunpack.c.l.b16 %v587
    %v965 = vunpack.c.h.b16 %v587
    %v966 = vunpack.c.l.b16 %v588
    %v967 = vunpack.c.h.b16 %v588
    %v968 = vunpack.c.l.b16 %v589
    %v969 = vunpack.c.h.b16 %v589
    %v970 = vunpack.c.l.b16 %v590
    %v971 = vunpack.c.h.b16 %v590
    %v972 = vunpack.c.l.b16 %v591
    %v973 = vunpack.c.h.b16 %v591
    %v974 = vunpack.c.l.b16 %v592
    %v975 = vunpack.c.h.b16 %v592
    %v976 = vunpack.c.l.b16 %v593
    %v977 = vunpack.c.h.b16 %v593
    %v978 = vunpack.c.l.b16 %v594
    %v979 = vunpack.c.h.b16 %v594
    %v980 = vunpack.c.l.b16 %v595
    %v981 = vunpack.c.h.b16 %v595
    %v982 = vunpack.c.l.b16 %v596
    %v983 = vunpack.c.h.b16 %v596
    %v984 = vunpack.c.l.b16 %v597
    %v985 = vunpack.c.h.b16 %v597
    %v986 = vunpack.c.l.b16 %v598
    %v987 = vunpack.c.h.b16 %v598
    %v988 = vunpack.c.l.b16 %v599
    %v989 = vunpack.c.h.b16 %v599
    %v990 = vunpack.c.l.b16 %v600
    %v991 = vunpack.c.h.b16 %v600
    %v992 = vunpack.c.l.b16 %v601
    %v993 = vunpack.c.h.b16 %v601
    %v994 = vunpack.c.l.b16 %v602
    %v995 = vunpack.c.h.b16 %v602
    %v996 = vunpack.c.l.b16 %v603
    %v997 = vunpack.c.h.b16 %v603
    %v998 = vunpack.c.l.b16 %v604
    %v999 = vunpack.c.h.b16 %v604
    %v1000 = vunpack.c.l.b16 %v605
    %v1001 = vunpack.c.h.b16 %v605
    %v1002 = vunpack.c.l.b16 %v606
    %v1003 = vunpack.c.h.b16 %v606
    %v1004 = vunpack.c.l.b16 %v607
    %v1005 = vunpack.c.h.b16 %v607
    %v1006 = vunpack.c.l.b16 %v608
    %v1007 = vunpack.c.h.b16 %v608
    %v1008 = vunpack.c.l.b16 %v609
    %v1009 = vunpack.c.h.b16 %v609
    %v1010 = vunpack.c.l.b16 %v610
    %v1011 = vunpack.c.h.b16 %v610
    %v1012 = vunpack.c.l.b16 %v611
    %v1013 = vunpack.c.h.b16 %v611
    %v1014 = vunpack.c.l.b16 %v612
    %v1015 = vunpack.c.h.b16 %v612
    %v1016 = vunpack.c.l.b16 %v613
    %v1017 = vunpack.c.h.b16 %v613
    %v1018 = vunpack.c.l.b16 %v614
    %v1019 = vunpack.c.h.b16 %v614
    %v1020 = vunpack.c.l.b16 %v615
    %v1021 = vunpack.c.h.b16 %v615
    %v1022 = vunpack.c.l.b16 %v616
    %v1023 = vunpack.c.h.b16 %v616
    %v1024 = vunpack.c.l.b16 %v617
    %v1025 = vunpack.c.h.b16 %v617
    %v1026 = vunpack.c.l.b16 %v618
    %v1027 = vunpack.c.h.b16 %v618
    %v1028 = vunpack.c.l.b16 %v619
    %v1029 = vunpack.c.h.b16 %v619
    %v1030 = vunpack.c.l.b16 %v620
    %v1031 = vunpack.c.h.b16 %v620
    %v1032 = vpack.c.b16 %v780, %v776
    %v1033 = vpack.c.b16 %v781, %v777
    %v1034 = vpack.c.b16 %v782, %v778
    %v1035 = vpack.c.b16 %v783, %v779
    %v1036 = vpack.c.b16 %v788, %v784
    %v1037 = vpack.c.b16 %v789, %v785
    %v1038 = vpack.c.b16 %v790, %v786
    %v1039 = vpack.c.b16 %v791, %v787
    %v1040 = vpack.c.b16 %v796, %v792
    %v1041 = vpack.c.b16 %v797, %v793
    %v1042 = vpack.c.b16 %v798, %v794
    %v1043 = vpack.c.b16 %v799, %v795
    %v1044 = vpack.c.b16 %v804, %v800
    %v1045 = vpack.c.b16 %v805, %v801
    %v1046 = vpack.c.b16 %v806, %v802
    %v1047 = vpack.c.b16 %v807, %v803
    %v1048 = vpack.c.b16 %v812, %v808
    %v1049 = vpack.c.b16 %v813, %v809
    %v1050 = vpack.c.b16 %v814, %v810
    %v1051 = vpack.c.b16 %v815, %v811
    %v1052 = vpack.c.b16 %v820, %v816
    %v1053 = vpack.c.b16 %v821, %v817
    %v1054 = vpack.c.b16 %v822, %v818
    %v1055 = vpack.c.b16 %v823, %v819
    %v1056 = vpack.c.b16 %v828, %v824
    %v1057 = vpack.c.b16 %v829, %v825
    %v1058 = vpack.c.b16 %v830, %v826
    %v1059 = vpack.c.b16 %v831, %v827
    %v1060 = vpack.c.b16 %v836, %v832
    %v1061 = vpack.c.b16 %v837, %v833
    %v1062 = vpack.c.b16 %v838, %v834
    %v1063 = vpack.c.b16 %v839, %v835
    %v1064 = vpack.c.b16 %v844, %v840
    %v1065 = vpack.c.b16 %v845, %v841
    %v1066 = vpack.c.b16 %v846, %v842
    %v1067 = vpack.c.b16 %v847, %v843
    %v1068 = vpack.c.b16 %v852, %v848
    %v1069 = vpack.c.b16 %v853, %v849
    %v1070 = vpack.c.b16 %v854, %v850
    %v1071 = vpack.c.b16 %v855, %v851
    %v1072 = vpack.c.b16 %v860, %v856
    %v1073 = vpack.c.b16 %v861, %v857
    %v1074 = vpack.c.b16 %v862, %v858
    %v1075 = vpack.c.b16 %v863, %v859
    %v1076 = vpack.c.b16 %v868, %v864
    %v1077 = vpack.c.b16 %v869, %v865
    %v1078 = vpack.c.b16 %v870, %v866
    %v1079 = vpack.c.b16 %v871, %v867
    %v1080 = vpack.c.b16 %v876, %v872
    %v1081 = vpack.c.b16 %v877, %v873
    %v1082 = vpack.c.b16 %v878, %v874
    %v1083 = vpack.c.b16 %v879, %v875
    %v1084 = vpack.c.b16 %v884, %v880
    %v1085 = vpack.c.b16 %v885, %v881
    %v1086 = vpack.c.b16 %v886, %v882
    %v1087 = vpack.c.b16 %v887, %v883
    %v1088 = vpack.c.b16 %v892, %v888
    %v1089 = vpack.c.b16 %v893, %v889
    %v1090 = vpack.c.b16 %v894, %v890
    %v1091 = vpack.c.b16 %v895, %v891
    %v1092 = vpack.c.b16 %v900, %v896
    %v1093 = vpack.c.b16 %v901, %v897
    %v1094 = vpack.c.b16 %v902, %v898
    %v1095 = vpack.c.b16 %v903, %v899
    %v1096 = vpack.c.b16 %v908, %v904
    %v1097 = vpack.c.b16 %v909, %v905
    %v1098 = vpack.c.b16 %v910, %v906
    %v1099 = vpack.c.b16 %v911, %v907
    %v1100 = vpack.c.b16 %v916, %v912
    %v1101 = vpack.c.b16 %v917, %v913
    %v1102 = vpack.c.b16 %v918, %v914
    %v1103 = vpack.c.b16 %v919, %v915
    %v1104 = vpack.c.b16 %v924, %v920
    %v1105 = vpack.c.b16 %v925, %v921
    %v1106 = vpack.c.b16 %v926, %v922
    %v1107 = vpack.c.b16 %v927, %v923
    %v1108 = vpack.c.b16 %v932, %v928
    %v1109 = vpack.c.b16 %v933, %v929
    %v1110 = vpack.c.b16 %v934, %v930
    %v1111 = vpack.c.b16 %v935, %v931
    %v1112 = vpack.c.b16 %v940, %v936
    %v1113 = vpack.c.b16 %v941, %v937
    %v1114 = vpack.c.b16 %v942, %v938
    %v1115 = vpack.c.b16 %v943, %v939
    %v1116 = vpack.c.b16 %v948, %v944
    %v1117 = vpack.c.b16 %v949, %v945
    %v1118 = vpack.c.b16 %v950, %v946
    %v1119 = vpack.c.b16 %v951, %v947
    %v1120 = vpack.c.b16 %v956, %v952
    %v1121 = vpack.c.b16 %v957, %v953
    %v1122 = vpack.c.b16 %v958, %v954
    %v1123 = vpack.c.b16 %v959, %v955
    %v1124 = vpack.c.b16 %v964, %v960
    %v1125 = vpack.c.b16 %v965, %v961
    %v1126 = vpack.c.b16 %v966, %v962
    %v1127 = vpack.c.b16 %v967, %v963
    %v1128 = vpack.c.b16 %v972, %v968
    %v1129 = vpack.c.b16 %v973, %v969
    %v1130 = vpack.c.b16 %v974, %v970
    %v1131 = vpack.c.b16 %v975, %v971
    %v1132 = vpack.c.b16 %v980, %v976
    %v1133 = vpack.c.b16 %v981, %v977
    %v1134 = vpack.c.b16 %v982, %v978
    %v1135 = vpack.c.b16 %v983, %v979
    %v1136 = vpack.c.b16 %v988, %v984
    %v1137 = vpack.c.b16 %v989, %v985
    %v1138 = vpack.c.b16 %v990, %v986
    %v1139 = vpack.c.b16 %v991, %v987
    %v1140 = vpack.c.b16 %v996, %v992
    %v1141 = vpack.c.b16 %v997, %v993
    %v1142 = vpack.c.b16 %v998, %v994
    %v1143 = vpack.c.b16 %v999, %v995
    %v1144 = vpack.c.b16 %v1004, %v1000
    %v1145 = vpack.c.b16 %v1005, %v1001
    %v1146 = vpack.c.b16 %v1006, %v1002
    %v1147 = vpack.c.b16 %v1007, %v1003
    %v1148 = vpack.c.b16 %v1012, %v1008
    %v1149 = vpack.c.b16 %v1013, %v1009
    %v1150 = vpack.c.b16 %v1014, %v1010
    %v1151 = vpack.c.b16 %v1015, %v1011
    %v1152 = vpack.c.b16 %v1020, %v1016
    %v1153 = vpack.c.b16 %v1021, %v1017
    %v1154 = vpack.c.b16 %v1022, %v1018
    %v1155 = vpack.c.b16 %v1023, %v1019
    %v1156 = vpack.c.b16 %v1028, %v1024
    %v1157 = vpack.c.b16 %v1029, %v1025
    %v1158 = vpack.c.b16 %v1030, %v1026
    %v1159 = vpack.c.b16 %v1031, %v1027
    %1288 = vmatprep.subr.bf16.mxu0 %v1061
    %1289 = vmatpush1.bf16.msra.mxu0 %v1060
    %1290 = vmatprep.subr.bf16.mxu0 %v1057
    %1291 = vmatpush1.bf16.msra.mxu0 %v1056
    %1292 = vmatprep.subr.bf16.mxu0 %v1053
    %1293 = vmatpush1.bf16.msra.mxu0 %v1052
    %1294 = vmatprep.subr.bf16.mxu0 %v1049
    %1295 = vmatpush1.bf16.msra.mxu0 %v1048
    %1296 = vmatprep.subr.bf16.mxu0 %v1045
    %1297 = vmatpush1.bf16.msra.mxu0 %v1044
    %1298 = vmatprep.subr.bf16.mxu0 %v1041
    %1299 = vmatpush1.bf16.msra.mxu0 %v1040
    %1300 = vmatprep.subr.bf16.mxu0 %v1037
    %1301 = vmatpush1.bf16.msra.mxu0 %v1036
    %1302 = vmatprep.subr.bf16.mxu0 %v1033
    %1303 = vmatpush1.bf16.msra.mxu0 %v1032
    %1304 = vmatprep.subr.bf16.mxu0 %v1093
    %1305 = vmatpush2.bf16.msra.mxu0 %v1092
    %1306 = vmatprep.subr.bf16.mxu0 %v1089
    %1307 = vmatpush2.bf16.msra.mxu0 %v1088
    %1308 = vmatprep.subr.bf16.mxu0 %v1085
    %1309 = vmatpush2.bf16.msra.mxu0 %v1084
    %1310 = vmatprep.subr.bf16.mxu0 %v1081
    %1311 = vmatpush2.bf16.msra.mxu0 %v1080
    %1312 = vmatprep.subr.bf16.mxu0 %v1077
    %1313 = vmatpush2.bf16.msra.mxu0 %v1076
    %1314 = vmatprep.subr.bf16.mxu0 %v1073
    %1315 = vmatpush2.bf16.msra.mxu0 %v1072
    %1316 = vmatprep.subr.bf16.mxu0 %v1069
    %1317 = vmatpush2.bf16.msra.mxu0 %v1068
    %1318 = vmatprep.subr.bf16.mxu0 %v1065
    %1319 = vmatpush2.bf16.msra.mxu0 %v1064
    %1320 = vmatprep.mubr.bf16.mxu0 %v622
    %1321 = vmatmul.mubr.bf16.gmra.mxu0 %v621
    %v1322 = vpop.f32.mrf.mxu0
    %v1323 = vadd.f32 %v631, %v1322
    %v1324 = vpop.f32.mrf.mxu0
    %v1325 = vadd.f32 %v635, %v1324
    %v1326 = vpop.f32.mrf.mxu0
    %v1327 = vpop.f32.mrf.mxu0
    %1328 = vdwg.mxu0
    %1329 = vmatprep.subr.bf16.mxu0 %v1125
    %1330 = vmatpush1.bf16.msra.mxu0 %v1124
    %1331 = vmatprep.subr.bf16.mxu0 %v1121
    %1332 = vmatpush1.bf16.msra.mxu0 %v1120
    %1333 = vmatprep.subr.bf16.mxu0 %v1117
    %1334 = vmatpush1.bf16.msra.mxu0 %v1116
    %1335 = vmatprep.subr.bf16.mxu0 %v1113
    %1336 = vmatpush1.bf16.msra.mxu0 %v1112
    %1337 = vmatprep.subr.bf16.mxu0 %v1109
    %1338 = vmatpush1.bf16.msra.mxu0 %v1108
    %1339 = vmatprep.subr.bf16.mxu0 %v1105
    %1340 = vmatpush1.bf16.msra.mxu0 %v1104
    %1341 = vmatprep.subr.bf16.mxu0 %v1101
    %1342 = vmatpush1.bf16.msra.mxu0 %v1100
    %1343 = vmatprep.subr.bf16.mxu0 %v1097
    %1344 = vmatpush1.bf16.msra.mxu0 %v1096
    %1345 = vmatprep.subr.bf16.mxu0 %v1157
    %1346 = vmatpush2.bf16.msra.mxu0 %v1156
    %1347 = vmatprep.subr.bf16.mxu0 %v1153
    %1348 = vmatpush2.bf16.msra.mxu0 %v1152
    %1349 = vmatprep.subr.bf16.mxu0 %v1149
    %1350 = vmatpush2.bf16.msra.mxu0 %v1148
    %1351 = vmatprep.subr.bf16.mxu0 %v1145
    %1352 = vmatpush2.bf16.msra.mxu0 %v1144
    %1353 = vmatprep.subr.bf16.mxu0 %v1141
    %1354 = vmatpush2.bf16.msra.mxu0 %v1140
    %1355 = vmatprep.subr.bf16.mxu0 %v1137
    %1356 = vmatpush2.bf16.msra.mxu0 %v1136
    %1357 = vmatprep.subr.bf16.mxu0 %v1133
    %1358 = vmatpush2.bf16.msra.mxu0 %v1132
    %1359 = vmatprep.subr.bf16.mxu0 %v1129
    %1360 = vmatpush2.bf16.msra.mxu0 %v1128
    %1361 = vmatprep.mubr.bf16.mxu0 %v624
    %1362 = vmatmul.mubr.bf16.gmra.mxu0 %v623
    %v1363 = vpop.f32.mrf.mxu0
    %v1364 = vadd.f32 %v1323, %v1363
    %v1365 = vpop.f32.mrf.mxu0
    %v1366 = vadd.f32 %v1325, %v1365
    %v1367 = vpop.f32.mrf.mxu0
    %v1368 = vpop.f32.mrf.mxu0
    %1369 = vdwg.mxu0
    %1370 = vmatprep.subr.bf16.mxu0 %v1063
    %1371 = vmatpush1.bf16.msra.mxu0 %v1062
    %1372 = vmatprep.subr.bf16.mxu0 %v1059
    %1373 = vmatpush1.bf16.msra.mxu0 %v1058
    %1374 = vmatprep.subr.bf16.mxu0 %v1055
    %1375 = vmatpush1.bf16.msra.mxu0 %v1054
    %1376 = vmatprep.subr.bf16.mxu0 %v1051
    %1377 = vmatpush1.bf16.msra.mxu0 %v1050
    %1378 = vmatprep.subr.bf16.mxu0 %v1047
    %1379 = vmatpush1.bf16.msra.mxu0 %v1046
    %1380 = vmatprep.subr.bf16.mxu0 %v1043
    %1381 = vmatpush1.bf16.msra.mxu0 %v1042
    %1382 = vmatprep.subr.bf16.mxu0 %v1039
    %1383 = vmatpush1.bf16.msra.mxu0 %v1038
    %1384 = vmatprep.subr.bf16.mxu0 %v1035
    %1385 = vmatpush1.bf16.msra.mxu0 %v1034
    %1386 = vmatprep.subr.bf16.mxu0 %v1095
    %1387 = vmatpush2.bf16.msra.mxu0 %v1094
    %1388 = vmatprep.subr.bf16.mxu0 %v1091
    %1389 = vmatpush2.bf16.msra.mxu0 %v1090
    %1390 = vmatprep.subr.bf16.mxu0 %v1087
    %1391 = vmatpush2.bf16.msra.mxu0 %v1086
    %1392 = vmatprep.subr.bf16.mxu0 %v1083
    %1393 = vmatpush2.bf16.msra.mxu0 %v1082
    %1394 = vmatprep.subr.bf16.mxu0 %v1079
    %1395 = vmatpush2.bf16.msra.mxu0 %v1078
    %1396 = vmatprep.subr.bf16.mxu0 %v1075
    %1397 = vmatpush2.bf16.msra.mxu0 %v1074
    %1398 = vmatprep.subr.bf16.mxu0 %v1071
    %1399 = vmatpush2.bf16.msra.mxu0 %v1070
    %1400 = vmatprep.subr.bf16.mxu0 %v1067
    %1401 = vmatpush2.bf16.msra.mxu0 %v1066
    %1402 = vmatprep.mubr.bf16.mxu0 %v622
    %1403 = vmatmul.mubr.bf16.gmra.mxu0 %v621
    %v1404 = vpop.f32.mrf.mxu0
    %v1405 = vadd.f32 %v639, %v1404
    %v1406 = vpop.f32.mrf.mxu0
    %v1407 = vadd.f32 %v643, %v1406
    %v1408 = vpop.f32.mrf.mxu0
    %v1409 = vpop.f32.mrf.mxu0
    %1410 = vdwg.mxu0
    %1411 = vmatprep.subr.bf16.mxu0 %v1127
    %1412 = vmatpush1.bf16.msra.mxu0 %v1126
    %1413 = vmatprep.subr.bf16.mxu0 %v1123
    %1414 = vmatpush1.bf16.msra.mxu0 %v1122
    %1415 = vmatprep.subr.bf16.mxu0 %v1119
    %1416 = vmatpush1.bf16.msra.mxu0 %v1118
    %1417 = vmatprep.subr.bf16.mxu0 %v1115
    %1418 = vmatpush1.bf16.msra.mxu0 %v1114
    %1419 = vmatprep.subr.bf16.mxu0 %v1111
    %1420 = vmatpush1.bf16.msra.mxu0 %v1110
    %1421 = vmatprep.subr.bf16.mxu0 %v1107
    %1422 = vmatpush1.bf16.msra.mxu0 %v1106
    %1423 = vmatprep.subr.bf16.mxu0 %v1103
    %1424 = vmatpush1.bf16.msra.mxu0 %v1102
    %1425 = vmatprep.subr.bf16.mxu0 %v1099
    %1426 = vmatpush1.bf16.msra.mxu0 %v1098
    %1427 = vmatprep.subr.bf16.mxu0 %v1159
    %1428 = vmatpush2.bf16.msra.mxu0 %v1158
    %1429 = vmatprep.subr.bf16.mxu0 %v1155
    %1430 = vmatpush2.bf16.msra.mxu0 %v1154
    %1431 = vmatprep.subr.bf16.mxu0 %v1151
    %1432 = vmatpush2.bf16.msra.mxu0 %v1150
    %1433 = vmatprep.subr.bf16.mxu0 %v1147
    %1434 = vmatpush2.bf16.msra.mxu0 %v1146
    %1435 = vmatprep.subr.bf16.mxu0 %v1143
    %1436 = vmatpush2.bf16.msra.mxu0 %v1142
    %1437 = vmatprep.subr.bf16.mxu0 %v1139
    %1438 = vmatpush2.bf16.msra.mxu0 %v1138
    %1439 = vmatprep.subr.bf16.mxu0 %v1135
    %1440 = vmatpush2.bf16.msra.mxu0 %v1134
    %1441 = vmatprep.subr.bf16.mxu0 %v1131
    %1442 = vmatpush2.bf16.msra.mxu0 %v1130
    %1443 = vmatprep.mubr.bf16.mxu0 %v624
    %1444 = vmatmul.mubr.bf16.gmra.mxu0 %v623
    %v1445 = vpop.f32.mrf.mxu0
    %v1446 = vadd.f32 %v1405, %v1445
    %v1447 = vpop.f32.mrf.mxu0
    %v1448 = vadd.f32 %v1407, %v1447
    %v1449 = vpop.f32.mrf.mxu0
    %v1450 = vpop.f32.mrf.mxu0
    %1451 = vdwg.mxu0
    %v1452 = vmax.f32 %v1364, 0.0
    %v1453 = vmax.f32 %v1366, 0.0
    %v1454 = vmax.f32 %v1446, 0.0
    %v1455 = vmax.f32 %v1448, 0.0
    %v1456 = vld [vmem:[#allocation8] sm:$0xff]
    %v1457 = vld [vmem:[#allocation8 + $0x8] sm:$0xff]
    %v1458 = vld [vmem:[#allocation8 + $0x10] sm:$0xff]
    %v1459 = vld [vmem:[#allocation8 + $0x18] sm:$0xff]
    %v1460 = vld [vmem:[#allocation8 + $0x20] sm:$0xff]
    %v1461 = vld [vmem:[#allocation8 + $0x28] sm:$0xff]
    %v1462 = vld [vmem:[#allocation8 + $0x30] sm:$0xff]
    %v1463 = vld [vmem:[#allocation8 + $0x38] sm:$0xff]
    %v1464 = vld [vmem:[#allocation8 + $0x40] sm:$0xff]
    %v1465 = vld [vmem:[#allocation8 + $0x48] sm:$0xff]
    %v1466 = vld [vmem:[#allocation8 + $0x50] sm:$0xff]
    %v1467 = vld [vmem:[#allocation8 + $0x58] sm:$0xff]
    %v1468 = vld [vmem:[#allocation8 + $0x60] sm:$0xff]
    %v1469 = vld [vmem:[#allocation8 + $0x68] sm:$0xff]
    %v1470 = vld [vmem:[#allocation8 + $0x70] sm:$0xff]
    %v1471 = vld [vmem:[#allocation8 + $0x78] sm:$0xff]
    %v1472 = vld [vmem:[#allocation8 + $0x80] sm:$0xff]
    %v1473 = vld [vmem:[#allocation8 + $0x88] sm:$0xff]
    %v1474 = vld [vmem:[#allocation8 + $0x90] sm:$0xff]
    %v1475 = vld [vmem:[#allocation8 + $0x98] sm:$0xff]
    %v1476 = vld [vmem:[#allocation8 + $0xa0] sm:$0xff]
    %v1477 = vld [vmem:[#allocation8 + $0xa8] sm:$0xff]
    %v1478 = vld [vmem:[#allocation8 + $0xb0] sm:$0xff]
    %v1479 = vld [vmem:[#allocation8 + $0xb8] sm:$0xff]
    %v1480 = vld [vmem:[#allocation8 + $0xc0] sm:$0xff]
    %v1481 = vld [vmem:[#allocation8 + $0xc8] sm:$0xff]
    %v1482 = vld [vmem:[#allocation8 + $0xd0] sm:$0xff]
    %v1483 = vld [vmem:[#allocation8 + $0xd8] sm:$0xff]
    %v1484 = vld [vmem:[#allocation8 + $0xe0] sm:$0xff]
    %v1485 = vld [vmem:[#allocation8 + $0xe8] sm:$0xff]
    %v1486 = vld [vmem:[#allocation8 + $0xf0] sm:$0xff]
    %v1487 = vld [vmem:[#allocation8 + $0xf8] sm:$0xff]
    %v1488 = vld [vmem:[#allocation8 + $0x100] sm:$0xff]
    %v1489 = vld [vmem:[#allocation8 + $0x108] sm:$0xff]
    %v1490 = vld [vmem:[#allocation8 + $0x110] sm:$0xff]
    %v1491 = vld [vmem:[#allocation8 + $0x118] sm:$0xff]
    %v1492 = vld [vmem:[#allocation8 + $0x120] sm:$0xff]
    %v1493 = vld [vmem:[#allocation8 + $0x128] sm:$0xff]
    %v1494 = vld [vmem:[#allocation8 + $0x130] sm:$0xff]
    %v1495 = vld [vmem:[#allocation8 + $0x138] sm:$0xff]
    %v1496 = vld [vmem:[#allocation8 + $0x140] sm:$0xff]
    %v1497 = vld [vmem:[#allocation8 + $0x148] sm:$0xff]
    %v1498 = vld [vmem:[#allocation8 + $0x150] sm:$0xff]
    %v1499 = vld [vmem:[#allocation8 + $0x158] sm:$0xff]
    %v1500 = vld [vmem:[#allocation8 + $0x160] sm:$0xff]
    %v1501 = vld [vmem:[#allocation8 + $0x168] sm:$0xff]
    %v1502 = vld [vmem:[#allocation8 + $0x170] sm:$0xff]
    %v1503 = vld [vmem:[#allocation8 + $0x178] sm:$0xff]
    %v1504 = vld [vmem:[#allocation8 + $0x180] sm:$0xff]
    %v1505 = vld [vmem:[#allocation8 + $0x188] sm:$0xff]
    %v1506 = vld [vmem:[#allocation8 + $0x190] sm:$0xff]
    %v1507 = vld [vmem:[#allocation8 + $0x198] sm:$0xff]
    %v1508 = vld [vmem:[#allocation8 + $0x1a0] sm:$0xff]
    %v1509 = vld [vmem:[#allocation8 + $0x1a8] sm:$0xff]
    %v1510 = vld [vmem:[#allocation8 + $0x1b0] sm:$0xff]
    %v1511 = vld [vmem:[#allocation8 + $0x1b8] sm:$0xff]
    %v1512 = vld [vmem:[#allocation8 + $0x1c0] sm:$0xff]
    %v1513 = vld [vmem:[#allocation8 + $0x1c8] sm:$0xff]
    %v1514 = vld [vmem:[#allocation8 + $0x1d0] sm:$0xff]
    %v1515 = vld [vmem:[#allocation8 + $0x1d8] sm:$0xff]
    %v1516 = vld [vmem:[#allocation8 + $0x1e0] sm:$0xff]
    %v1517 = vld [vmem:[#allocation8 + $0x1e8] sm:$0xff]
    %v1518 = vld [vmem:[#allocation8 + $0x1f0] sm:$0xff]
    %v1519 = vld [vmem:[#allocation8 + $0x1f8] sm:$0xff]
    %v1520 = vld [vmem:[#allocation8 + $0x200] sm:$0xff]
    %v1521 = vld [vmem:[#allocation8 + $0x208] sm:$0xff]
    %v1522 = vld [vmem:[#allocation8 + $0x210] sm:$0xff]
    %v1523 = vld [vmem:[#allocation8 + $0x218] sm:$0xff]
    %v1524 = vld [vmem:[#allocation8 + $0x220] sm:$0xff]
    %v1525 = vld [vmem:[#allocation8 + $0x228] sm:$0xff]
    %v1526 = vld [vmem:[#allocation8 + $0x230] sm:$0xff]
    %v1527 = vld [vmem:[#allocation8 + $0x238] sm:$0xff]
    %v1528 = vld [vmem:[#allocation8 + $0x240] sm:$0xff]
    %v1529 = vld [vmem:[#allocation8 + $0x248] sm:$0xff]
    %v1530 = vld [vmem:[#allocation8 + $0x250] sm:$0xff]
    %v1531 = vld [vmem:[#allocation8 + $0x258] sm:$0xff]
    %v1532 = vld [vmem:[#allocation8 + $0x260] sm:$0xff]
    %v1533 = vld [vmem:[#allocation8 + $0x268] sm:$0xff]
    %v1534 = vld [vmem:[#allocation8 + $0x270] sm:$0xff]
    %v1535 = vld [vmem:[#allocation8 + $0x278] sm:$0xff]
    %v1536 = vld [vmem:[#allocation8 + $0x280] sm:$0xff]
    %v1537 = vld [vmem:[#allocation8 + $0x288] sm:$0xff]
    %v1538 = vld [vmem:[#allocation8 + $0x290] sm:$0xff]
    %v1539 = vld [vmem:[#allocation8 + $0x298] sm:$0xff]
    %v1540 = vld [vmem:[#allocation8 + $0x2a0] sm:$0xff]
    %v1541 = vld [vmem:[#allocation8 + $0x2a8] sm:$0xff]
    %v1542 = vld [vmem:[#allocation8 + $0x2b0] sm:$0xff]
    %v1543 = vld [vmem:[#allocation8 + $0x2b8] sm:$0xff]
    %v1544 = vld [vmem:[#allocation8 + $0x2c0] sm:$0xff]
    %v1545 = vld [vmem:[#allocation8 + $0x2c8] sm:$0xff]
    %v1546 = vld [vmem:[#allocation8 + $0x2d0] sm:$0xff]
    %v1547 = vld [vmem:[#allocation8 + $0x2d8] sm:$0xff]
    %v1548 = vld [vmem:[#allocation8 + $0x2e0] sm:$0xff]
    %v1549 = vld [vmem:[#allocation8 + $0x2e8] sm:$0xff]
    %v1550 = vld [vmem:[#allocation8 + $0x2f0] sm:$0xff]
    %v1551 = vld [vmem:[#allocation8 + $0x2f8] sm:$0xff]
    %v1552 = vld [vmem:[#allocation8 + $0x300] sm:$0xff]
    %v1553 = vld [vmem:[#allocation8 + $0x308] sm:$0xff]
    %v1554 = vld [vmem:[#allocation8 + $0x310] sm:$0xff]
    %v1555 = vld [vmem:[#allocation8 + $0x318] sm:$0xff]
    %v1556 = vld [vmem:[#allocation8 + $0x320] sm:$0xff]
    %v1557 = vld [vmem:[#allocation8 + $0x328] sm:$0xff]
    %v1558 = vld [vmem:[#allocation8 + $0x330] sm:$0xff]
    %v1559 = vld [vmem:[#allocation8 + $0x338] sm:$0xff]
    %v1560 = vld [vmem:[#allocation8 + $0x340] sm:$0xff]
    %v1561 = vld [vmem:[#allocation8 + $0x348] sm:$0xff]
    %v1562 = vld [vmem:[#allocation8 + $0x350] sm:$0xff]
    %v1563 = vld [vmem:[#allocation8 + $0x358] sm:$0xff]
    %v1564 = vld [vmem:[#allocation8 + $0x360] sm:$0xff]
    %v1565 = vld [vmem:[#allocation8 + $0x368] sm:$0xff]
    %v1566 = vld [vmem:[#allocation8 + $0x370] sm:$0xff]
    %v1567 = vld [vmem:[#allocation8 + $0x378] sm:$0xff]
    %v1568 = vld [vmem:[#allocation8 + $0x380] sm:$0xff]
    %v1569 = vld [vmem:[#allocation8 + $0x388] sm:$0xff]
    %v1570 = vld [vmem:[#allocation8 + $0x390] sm:$0xff]
    %v1571 = vld [vmem:[#allocation8 + $0x398] sm:$0xff]
    %v1572 = vld [vmem:[#allocation8 + $0x3a0] sm:$0xff]
    %v1573 = vld [vmem:[#allocation8 + $0x3a8] sm:$0xff]
    %v1574 = vld [vmem:[#allocation8 + $0x3b0] sm:$0xff]
    %v1575 = vld [vmem:[#allocation8 + $0x3b8] sm:$0xff]
    %v1576 = vld [vmem:[#allocation8 + $0x3c0] sm:$0xff]
    %v1577 = vld [vmem:[#allocation8 + $0x3c8] sm:$0xff]
    %v1578 = vld [vmem:[#allocation8 + $0x3d0] sm:$0xff]
    %v1579 = vld [vmem:[#allocation8 + $0x3d8] sm:$0xff]
    %v1580 = vld [vmem:[#allocation8 + $0x3e0] sm:$0xff]
    %v1581 = vld [vmem:[#allocation8 + $0x3e8] sm:$0xff]
    %v1582 = vld [vmem:[#allocation8 + $0x3f0] sm:$0xff]
    %v1583 = vld [vmem:[#allocation8 + $0x3f8] sm:$0xff]
    %v1584 = vld [vmem:[#allocation8 + $0x400] sm:$0xff]
    %v1585 = vld [vmem:[#allocation8 + $0x408] sm:$0xff]
    %v1586 = vld [vmem:[#allocation8 + $0x410] sm:$0xff]
    %v1587 = vld [vmem:[#allocation8 + $0x418] sm:$0xff]
    %v1588 = vld [vmem:[#allocation8 + $0x420] sm:$0xff]
    %v1589 = vld [vmem:[#allocation8 + $0x428] sm:$0xff]
    %v1590 = vld [vmem:[#allocation8 + $0x430] sm:$0xff]
    %v1591 = vld [vmem:[#allocation8 + $0x438] sm:$0xff]
    %v1592 = vld [vmem:[#allocation8 + $0x440] sm:$0xff]
    %v1593 = vld [vmem:[#allocation8 + $0x448] sm:$0xff]
    %v1594 = vld [vmem:[#allocation8 + $0x450] sm:$0xff]
    %v1595 = vld [vmem:[#allocation8 + $0x458] sm:$0xff]
    %v1596 = vld [vmem:[#allocation8 + $0x460] sm:$0xff]
    %v1597 = vld [vmem:[#allocation8 + $0x468] sm:$0xff]
    %v1598 = vld [vmem:[#allocation8 + $0x470] sm:$0xff]
    %v1599 = vld [vmem:[#allocation8 + $0x478] sm:$0xff]
    %v1600 = vld [vmem:[#allocation8 + $0x480] sm:$0xff]
    %v1601 = vld [vmem:[#allocation8 + $0x488] sm:$0xff]
    %v1602 = vld [vmem:[#allocation8 + $0x490] sm:$0xff]
    %v1603 = vld [vmem:[#allocation8 + $0x498] sm:$0xff]
    %v1604 = vld [vmem:[#allocation8 + $0x4a0] sm:$0xff]
    %v1605 = vld [vmem:[#allocation8 + $0x4a8] sm:$0xff]
    %v1606 = vld [vmem:[#allocation8 + $0x4b0] sm:$0xff]
    %v1607 = vld [vmem:[#allocation8 + $0x4b8] sm:$0xff]
    %v1608 = vld [vmem:[#allocation8 + $0x4c0] sm:$0xff]
    %v1609 = vld [vmem:[#allocation8 + $0x4c8] sm:$0xff]
    %v1610 = vld [vmem:[#allocation8 + $0x4d0] sm:$0xff]
    %v1611 = vld [vmem:[#allocation8 + $0x4d8] sm:$0xff]
    %v1612 = vld [vmem:[#allocation8 + $0x4e0] sm:$0xff]
    %v1613 = vld [vmem:[#allocation8 + $0x4e8] sm:$0xff]
    %v1614 = vld [vmem:[#allocation8 + $0x4f0] sm:$0xff]
    %v1615 = vld [vmem:[#allocation8 + $0x4f8] sm:$0xff]
    %v1616 = vld [vmem:[#allocation8 + $0x500] sm:$0xff]
    %v1617 = vld [vmem:[#allocation8 + $0x508] sm:$0xff]
    %v1618 = vld [vmem:[#allocation8 + $0x510] sm:$0xff]
    %v1619 = vld [vmem:[#allocation8 + $0x518] sm:$0xff]
    %v1620 = vld [vmem:[#allocation8 + $0x520] sm:$0xff]
    %v1621 = vld [vmem:[#allocation8 + $0x528] sm:$0xff]
    %v1622 = vld [vmem:[#allocation8 + $0x530] sm:$0xff]
    %v1623 = vld [vmem:[#allocation8 + $0x538] sm:$0xff]
    %v1624 = vld [vmem:[#allocation8 + $0x540] sm:$0xff]
    %v1625 = vld [vmem:[#allocation8 + $0x548] sm:$0xff]
    %v1626 = vld [vmem:[#allocation8 + $0x550] sm:$0xff]
    %v1627 = vld [vmem:[#allocation8 + $0x558] sm:$0xff]
    %v1628 = vld [vmem:[#allocation8 + $0x560] sm:$0xff]
    %v1629 = vld [vmem:[#allocation8 + $0x568] sm:$0xff]
    %v1630 = vld [vmem:[#allocation8 + $0x570] sm:$0xff]
    %v1631 = vld [vmem:[#allocation8 + $0x578] sm:$0xff]
    %v1632 = vld [vmem:[#allocation8 + $0x580] sm:$0xff]
    %v1633 = vld [vmem:[#allocation8 + $0x588] sm:$0xff]
    %v1634 = vld [vmem:[#allocation8 + $0x590] sm:$0xff]
    %v1635 = vld [vmem:[#allocation8 + $0x598] sm:$0xff]
    %v1636 = vld [vmem:[#allocation8 + $0x5a0] sm:$0xff]
    %v1637 = vld [vmem:[#allocation8 + $0x5a8] sm:$0xff]
    %v1638 = vld [vmem:[#allocation8 + $0x5b0] sm:$0xff]
    %v1639 = vld [vmem:[#allocation8 + $0x5b8] sm:$0xff]
    %v1640 = vld [vmem:[#allocation8 + $0x5c0] sm:$0xff]
    %v1641 = vld [vmem:[#allocation8 + $0x5c8] sm:$0xff]
    %v1642 = vld [vmem:[#allocation8 + $0x5d0] sm:$0xff]
    %v1643 = vld [vmem:[#allocation8 + $0x5d8] sm:$0xff]
    %v1644 = vld [vmem:[#allocation8 + $0x5e0] sm:$0xff]
    %v1645 = vld [vmem:[#allocation8 + $0x5e8] sm:$0xff]
    %v1646 = vld [vmem:[#allocation8 + $0x5f0] sm:$0xff]
    %v1647 = vld [vmem:[#allocation8 + $0x5f8] sm:$0xff]
    %v1648 = vld [vmem:[#allocation8 + $0x600] sm:$0xff]
    %v1649 = vld [vmem:[#allocation8 + $0x608] sm:$0xff]
    %v1650 = vld [vmem:[#allocation8 + $0x610] sm:$0xff]
    %v1651 = vld [vmem:[#allocation8 + $0x618] sm:$0xff]
    %v1652 = vld [vmem:[#allocation8 + $0x620] sm:$0xff]
    %v1653 = vld [vmem:[#allocation8 + $0x628] sm:$0xff]
    %v1654 = vld [vmem:[#allocation8 + $0x630] sm:$0xff]
    %v1655 = vld [vmem:[#allocation8 + $0x638] sm:$0xff]
    %v1656 = vld [vmem:[#allocation8 + $0x640] sm:$0xff]
    %v1657 = vld [vmem:[#allocation8 + $0x648] sm:$0xff]
    %v1658 = vld [vmem:[#allocation8 + $0x650] sm:$0xff]
    %v1659 = vld [vmem:[#allocation8 + $0x658] sm:$0xff]
    %v1660 = vld [vmem:[#allocation8 + $0x660] sm:$0xff]
    %v1661 = vld [vmem:[#allocation8 + $0x668] sm:$0xff]
    %v1662 = vld [vmem:[#allocation8 + $0x670] sm:$0xff]
    %v1663 = vld [vmem:[#allocation8 + $0x678] sm:$0xff]
    %v1664 = vld [vmem:[#allocation8 + $0x680] sm:$0xff]
    %v1665 = vld [vmem:[#allocation8 + $0x688] sm:$0xff]
    %v1666 = vld [vmem:[#allocation8 + $0x690] sm:$0xff]
    %v1667 = vld [vmem:[#allocation8 + $0x698] sm:$0xff]
    %v1668 = vld [vmem:[#allocation8 + $0x6a0] sm:$0xff]
    %v1669 = vld [vmem:[#allocation8 + $0x6a8] sm:$0xff]
    %v1670 = vld [vmem:[#allocation8 + $0x6b0] sm:$0xff]
    %v1671 = vld [vmem:[#allocation8 + $0x6b8] sm:$0xff]
    %v1672 = vld [vmem:[#allocation8 + $0x6c0] sm:$0xff]
    %v1673 = vld [vmem:[#allocation8 + $0x6c8] sm:$0xff]
    %v1674 = vld [vmem:[#allocation8 + $0x6d0] sm:$0xff]
    %v1675 = vld [vmem:[#allocation8 + $0x6d8] sm:$0xff]
    %v1676 = vld [vmem:[#allocation8 + $0x6e0] sm:$0xff]
    %v1677 = vld [vmem:[#allocation8 + $0x6e8] sm:$0xff]
    %v1678 = vld [vmem:[#allocation8 + $0x6f0] sm:$0xff]
    %v1679 = vld [vmem:[#allocation8 + $0x6f8] sm:$0xff]
    %v1680 = vld [vmem:[#allocation8 + $0x700] sm:$0xff]
    %v1681 = vld [vmem:[#allocation8 + $0x708] sm:$0xff]
    %v1682 = vld [vmem:[#allocation8 + $0x710] sm:$0xff]
    %v1683 = vld [vmem:[#allocation8 + $0x718] sm:$0xff]
    %v1684 = vld [vmem:[#allocation8 + $0x720] sm:$0xff]
    %v1685 = vld [vmem:[#allocation8 + $0x728] sm:$0xff]
    %v1686 = vld [vmem:[#allocation8 + $0x730] sm:$0xff]
    %v1687 = vld [vmem:[#allocation8 + $0x738] sm:$0xff]
    %v1688 = vld [vmem:[#allocation8 + $0x740] sm:$0xff]
    %v1689 = vld [vmem:[#allocation8 + $0x748] sm:$0xff]
    %v1690 = vld [vmem:[#allocation8 + $0x750] sm:$0xff]
    %v1691 = vld [vmem:[#allocation8 + $0x758] sm:$0xff]
    %v1692 = vld [vmem:[#allocation8 + $0x760] sm:$0xff]
    %v1693 = vld [vmem:[#allocation8 + $0x768] sm:$0xff]
    %v1694 = vld [vmem:[#allocation8 + $0x770] sm:$0xff]
    %v1695 = vld [vmem:[#allocation8 + $0x778] sm:$0xff]
    %v1696 = vld [vmem:[#allocation8 + $0x780] sm:$0xff]
    %v1697 = vld [vmem:[#allocation8 + $0x788] sm:$0xff]
    %v1698 = vld [vmem:[#allocation8 + $0x790] sm:$0xff]
    %v1699 = vld [vmem:[#allocation8 + $0x798] sm:$0xff]
    %v1700 = vld [vmem:[#allocation8 + $0x7a0] sm:$0xff]
    %v1701 = vld [vmem:[#allocation8 + $0x7a8] sm:$0xff]
    %v1702 = vld [vmem:[#allocation8 + $0x7b0] sm:$0xff]
    %v1703 = vld [vmem:[#allocation8 + $0x7b8] sm:$0xff]
    %v1704 = vld [vmem:[#allocation8 + $0x7c0] sm:$0xff]
    %v1705 = vld [vmem:[#allocation8 + $0x7c8] sm:$0xff]
    %v1706 = vld [vmem:[#allocation8 + $0x7d0] sm:$0xff]
    %v1707 = vld [vmem:[#allocation8 + $0x7d8] sm:$0xff]
    %v1708 = vld [vmem:[#allocation8 + $0x7e0] sm:$0xff]
    %v1709 = vld [vmem:[#allocation8 + $0x7e8] sm:$0xff]
    %v1710 = vld [vmem:[#allocation8 + $0x7f0] sm:$0xff]
    %v1711 = vld [vmem:[#allocation8 + $0x7f8] sm:$0xff]
    %v1712 = vld [vmem:[#allocation8 + $0x800] sm:$0xff]
    %v1713 = vld [vmem:[#allocation8 + $0x808] sm:$0xff]
    %v1714 = vld [vmem:[#allocation8 + $0x810] sm:$0xff]
    %v1715 = vld [vmem:[#allocation8 + $0x818] sm:$0xff]
    %v1716 = vld [vmem:[#allocation8 + $0x820] sm:$0xff]
    %v1717 = vld [vmem:[#allocation8 + $0x828] sm:$0xff]
    %v1718 = vld [vmem:[#allocation8 + $0x830] sm:$0xff]
    %v1719 = vld [vmem:[#allocation8 + $0x838] sm:$0xff]
    %v1720 = vld [vmem:[#allocation8 + $0x840] sm:$0xff]
    %v1721 = vld [vmem:[#allocation8 + $0x848] sm:$0xff]
    %v1722 = vld [vmem:[#allocation8 + $0x850] sm:$0xff]
    %v1723 = vld [vmem:[#allocation8 + $0x858] sm:$0xff]
    %v1724 = vld [vmem:[#allocation8 + $0x860] sm:$0xff]
    %v1725 = vld [vmem:[#allocation8 + $0x868] sm:$0xff]
    %v1726 = vld [vmem:[#allocation8 + $0x870] sm:$0xff]
    %v1727 = vld [vmem:[#allocation8 + $0x878] sm:$0xff]
    %v1728 = vld [vmem:[#allocation8 + $0x880] sm:$0xff]
    %v1729 = vld [vmem:[#allocation8 + $0x888] sm:$0xff]
    %v1730 = vld [vmem:[#allocation8 + $0x890] sm:$0xff]
    %v1731 = vld [vmem:[#allocation8 + $0x898] sm:$0xff]
    %v1732 = vld [vmem:[#allocation8 + $0x8a0] sm:$0xff]
    %v1733 = vld [vmem:[#allocation8 + $0x8a8] sm:$0xff]
    %v1734 = vld [vmem:[#allocation8 + $0x8b0] sm:$0xff]
    %v1735 = vld [vmem:[#allocation8 + $0x8b8] sm:$0xff]
    %v1736 = vld [vmem:[#allocation8 + $0x8c0] sm:$0xff]
    %v1737 = vld [vmem:[#allocation8 + $0x8c8] sm:$0xff]
    %v1738 = vld [vmem:[#allocation8 + $0x8d0] sm:$0xff]
    %v1739 = vld [vmem:[#allocation8 + $0x8d8] sm:$0xff]
    %v1740 = vld [vmem:[#allocation8 + $0x8e0] sm:$0xff]
    %v1741 = vld [vmem:[#allocation8 + $0x8e8] sm:$0xff]
    %v1742 = vld [vmem:[#allocation8 + $0x8f0] sm:$0xff]
    %v1743 = vld [vmem:[#allocation8 + $0x8f8] sm:$0xff]
    %v1744 = vld [vmem:[#allocation8 + $0x900] sm:$0xff]
    %v1745 = vld [vmem:[#allocation8 + $0x908] sm:$0xff]
    %v1746 = vld [vmem:[#allocation8 + $0x910] sm:$0xff]
    %v1747 = vld [vmem:[#allocation8 + $0x918] sm:$0xff]
    %v1748 = vld [vmem:[#allocation8 + $0x920] sm:$0xff]
    %v1749 = vld [vmem:[#allocation8 + $0x928] sm:$0xff]
    %v1750 = vld [vmem:[#allocation8 + $0x930] sm:$0xff]
    %v1751 = vld [vmem:[#allocation8 + $0x938] sm:$0xff]
    %v1752 = vld [vmem:[#allocation8 + $0x940] sm:$0xff]
    %v1753 = vld [vmem:[#allocation8 + $0x948] sm:$0xff]
    %v1754 = vld [vmem:[#allocation8 + $0x950] sm:$0xff]
    %v1755 = vld [vmem:[#allocation8 + $0x958] sm:$0xff]
    %v1756 = vld [vmem:[#allocation8 + $0x960] sm:$0xff]
    %v1757 = vld [vmem:[#allocation8 + $0x968] sm:$0xff]
    %v1758 = vld [vmem:[#allocation8 + $0x970] sm:$0xff]
    %v1759 = vld [vmem:[#allocation8 + $0x978] sm:$0xff]
    %v1760 = vld [vmem:[#allocation8 + $0x980] sm:$0xff]
    %v1761 = vld [vmem:[#allocation8 + $0x988] sm:$0xff]
    %v1762 = vld [vmem:[#allocation8 + $0x990] sm:$0xff]
    %v1763 = vld [vmem:[#allocation8 + $0x998] sm:$0xff]
    %v1764 = vld [vmem:[#allocation8 + $0x9a0] sm:$0xff]
    %v1765 = vld [vmem:[#allocation8 + $0x9a8] sm:$0xff]
    %v1766 = vld [vmem:[#allocation8 + $0x9b0] sm:$0xff]
    %v1767 = vld [vmem:[#allocation8 + $0x9b8] sm:$0xff]
    %v1768 = vld [vmem:[#allocation8 + $0x9c0] sm:$0xff]
    %v1769 = vld [vmem:[#allocation8 + $0x9c8] sm:$0xff]
    %v1770 = vld [vmem:[#allocation8 + $0x9d0] sm:$0xff]
    %v1771 = vld [vmem:[#allocation8 + $0x9d8] sm:$0xff]
    %v1772 = vld [vmem:[#allocation8 + $0x9e0] sm:$0xff]
    %v1773 = vld [vmem:[#allocation8 + $0x9e8] sm:$0xff]
    %v1774 = vld [vmem:[#allocation8 + $0x9f0] sm:$0xff]
    %v1775 = vld [vmem:[#allocation8 + $0x9f8] sm:$0xff]
    %v1776 = vld [vmem:[#allocation8 + $0xa00] sm:$0xff]
    %v1777 = vld [vmem:[#allocation8 + $0xa08] sm:$0xff]
    %v1778 = vld [vmem:[#allocation8 + $0xa10] sm:$0xff]
    %v1779 = vld [vmem:[#allocation8 + $0xa18] sm:$0xff]
    %v1780 = vld [vmem:[#allocation8 + $0xa20] sm:$0xff]
    %v1781 = vld [vmem:[#allocation8 + $0xa28] sm:$0xff]
    %v1782 = vld [vmem:[#allocation8 + $0xa30] sm:$0xff]
    %v1783 = vld [vmem:[#allocation8 + $0xa38] sm:$0xff]
    %v1784 = vld [vmem:[#allocation8 + $0xa40] sm:$0xff]
    %v1785 = vld [vmem:[#allocation8 + $0xa48] sm:$0xff]
    %v1786 = vld [vmem:[#allocation8 + $0xa50] sm:$0xff]
    %v1787 = vld [vmem:[#allocation8 + $0xa58] sm:$0xff]
    %v1788 = vld [vmem:[#allocation8 + $0xa60] sm:$0xff]
    %v1789 = vld [vmem:[#allocation8 + $0xa68] sm:$0xff]
    %v1790 = vld [vmem:[#allocation8 + $0xa70] sm:$0xff]
    %v1791 = vld [vmem:[#allocation8 + $0xa78] sm:$0xff]
    %v1792 = vld [vmem:[#allocation8 + $0xa80] sm:$0xff]
    %v1793 = vld [vmem:[#allocation8 + $0xa88] sm:$0xff]
    %v1794 = vld [vmem:[#allocation8 + $0xa90] sm:$0xff]
    %v1795 = vld [vmem:[#allocation8 + $0xa98] sm:$0xff]
    %v1796 = vld [vmem:[#allocation8 + $0xaa0] sm:$0xff]
    %v1797 = vld [vmem:[#allocation8 + $0xaa8] sm:$0xff]
    %v1798 = vld [vmem:[#allocation8 + $0xab0] sm:$0xff]
    %v1799 = vld [vmem:[#allocation8 + $0xab8] sm:$0xff]
    %v1800 = vld [vmem:[#allocation8 + $0xac0] sm:$0xff]
    %v1801 = vld [vmem:[#allocation8 + $0xac8] sm:$0xff]
    %v1802 = vld [vmem:[#allocation8 + $0xad0] sm:$0xff]
    %v1803 = vld [vmem:[#allocation8 + $0xad8] sm:$0xff]
    %v1804 = vld [vmem:[#allocation8 + $0xae0] sm:$0xff]
    %v1805 = vld [vmem:[#allocation8 + $0xae8] sm:$0xff]
    %v1806 = vld [vmem:[#allocation8 + $0xaf0] sm:$0xff]
    %v1807 = vld [vmem:[#allocation8 + $0xaf8] sm:$0xff]
    %v1808 = vld [vmem:[#allocation8 + $0xb00] sm:$0xff]
    %v1809 = vld [vmem:[#allocation8 + $0xb08] sm:$0xff]
    %v1810 = vld [vmem:[#allocation8 + $0xb10] sm:$0xff]
    %v1811 = vld [vmem:[#allocation8 + $0xb18] sm:$0xff]
    %v1812 = vld [vmem:[#allocation8 + $0xb20] sm:$0xff]
    %v1813 = vld [vmem:[#allocation8 + $0xb28] sm:$0xff]
    %v1814 = vld [vmem:[#allocation8 + $0xb30] sm:$0xff]
    %v1815 = vld [vmem:[#allocation8 + $0xb38] sm:$0xff]
    %v1816 = vld [vmem:[#allocation8 + $0xb40] sm:$0xff]
    %v1817 = vld [vmem:[#allocation8 + $0xb48] sm:$0xff]
    %v1818 = vld [vmem:[#allocation8 + $0xb50] sm:$0xff]
    %v1819 = vld [vmem:[#allocation8 + $0xb58] sm:$0xff]
    %v1820 = vld [vmem:[#allocation8 + $0xb60] sm:$0xff]
    %v1821 = vld [vmem:[#allocation8 + $0xb68] sm:$0xff]
    %v1822 = vld [vmem:[#allocation8 + $0xb70] sm:$0xff]
    %v1823 = vld [vmem:[#allocation8 + $0xb78] sm:$0xff]
    %v1824 = vld [vmem:[#allocation8 + $0xb80] sm:$0xff]
    %v1825 = vld [vmem:[#allocation8 + $0xb88] sm:$0xff]
    %v1826 = vld [vmem:[#allocation8 + $0xb90] sm:$0xff]
    %v1827 = vld [vmem:[#allocation8 + $0xb98] sm:$0xff]
    %v1828 = vld [vmem:[#allocation8 + $0xba0] sm:$0xff]
    %v1829 = vld [vmem:[#allocation8 + $0xba8] sm:$0xff]
    %v1830 = vld [vmem:[#allocation8 + $0xbb0] sm:$0xff]
    %v1831 = vld [vmem:[#allocation8 + $0xbb8] sm:$0xff]
    %v1832 = vld [vmem:[#allocation8 + $0xbc0] sm:$0xff]
    %v1833 = vld [vmem:[#allocation8 + $0xbc8] sm:$0xff]
    %v1834 = vld [vmem:[#allocation8 + $0xbd0] sm:$0xff]
    %v1835 = vld [vmem:[#allocation8 + $0xbd8] sm:$0xff]
    %v1836 = vld [vmem:[#allocation8 + $0xbe0] sm:$0xff]
    %v1837 = vld [vmem:[#allocation8 + $0xbe8] sm:$0xff]
    %v1838 = vld [vmem:[#allocation8 + $0xbf0] sm:$0xff]
    %v1839 = vld [vmem:[#allocation8 + $0xbf8] sm:$0xff]
    %v1840 = vld [vmem:[#allocation8 + $0xc00] sm:$0xff]
    %v1841 = vld [vmem:[#allocation8 + $0xc08] sm:$0xff]
    %v1842 = vld [vmem:[#allocation8 + $0xc10] sm:$0xff]
    %v1843 = vld [vmem:[#allocation8 + $0xc18] sm:$0xff]
    %v1844 = vld [vmem:[#allocation8 + $0xc20] sm:$0xff]
    %v1845 = vld [vmem:[#allocation8 + $0xc28] sm:$0xff]
    %v1846 = vld [vmem:[#allocation8 + $0xc30] sm:$0xff]
    %v1847 = vld [vmem:[#allocation8 + $0xc38] sm:$0xff]
    %v1848 = vld [vmem:[#allocation8 + $0xc40] sm:$0xff]
    %v1849 = vld [vmem:[#allocation8 + $0xc48] sm:$0xff]
    %v1850 = vld [vmem:[#allocation8 + $0xc50] sm:$0xff]
    %v1851 = vld [vmem:[#allocation8 + $0xc58] sm:$0xff]
    %v1852 = vld [vmem:[#allocation8 + $0xc60] sm:$0xff]
    %v1853 = vld [vmem:[#allocation8 + $0xc68] sm:$0xff]
    %v1854 = vld [vmem:[#allocation8 + $0xc70] sm:$0xff]
    %v1855 = vld [vmem:[#allocation8 + $0xc78] sm:$0xff]
    %v1856 = vld [vmem:[#allocation8 + $0xc80] sm:$0xff]
    %v1857 = vld [vmem:[#allocation8 + $0xc88] sm:$0xff]
    %v1858 = vld [vmem:[#allocation8 + $0xc90] sm:$0xff]
    %v1859 = vld [vmem:[#allocation8 + $0xc98] sm:$0xff]
    %v1860 = vld [vmem:[#allocation8 + $0xca0] sm:$0xff]
    %v1861 = vld [vmem:[#allocation8 + $0xca8] sm:$0xff]
    %v1862 = vld [vmem:[#allocation8 + $0xcb0] sm:$0xff]
    %v1863 = vld [vmem:[#allocation8 + $0xcb8] sm:$0xff]
    %v1864 = vld [vmem:[#allocation8 + $0xcc0] sm:$0xff]
    %v1865 = vld [vmem:[#allocation8 + $0xcc8] sm:$0xff]
    %v1866 = vld [vmem:[#allocation8 + $0xcd0] sm:$0xff]
    %v1867 = vld [vmem:[#allocation8 + $0xcd8] sm:$0xff]
    %v1868 = vld [vmem:[#allocation8 + $0xce0] sm:$0xff]
    %v1869 = vld [vmem:[#allocation8 + $0xce8] sm:$0xff]
    %v1870 = vld [vmem:[#allocation8 + $0xcf0] sm:$0xff]
    %v1871 = vld [vmem:[#allocation8 + $0xcf8] sm:$0xff]
    %v1872 = vld [vmem:[#allocation8 + $0xd00] sm:$0xff]
    %v1873 = vld [vmem:[#allocation8 + $0xd08] sm:$0xff]
    %v1874 = vld [vmem:[#allocation8 + $0xd10] sm:$0xff]
    %v1875 = vld [vmem:[#allocation8 + $0xd18] sm:$0xff]
    %v1876 = vld [vmem:[#allocation8 + $0xd20] sm:$0xff]
    %v1877 = vld [vmem:[#allocation8 + $0xd28] sm:$0xff]
    %v1878 = vld [vmem:[#allocation8 + $0xd30] sm:$0xff]
    %v1879 = vld [vmem:[#allocation8 + $0xd38] sm:$0xff]
    %v1880 = vld [vmem:[#allocation8 + $0xd40] sm:$0xff]
    %v1881 = vld [vmem:[#allocation8 + $0xd48] sm:$0xff]
    %v1882 = vld [vmem:[#allocation8 + $0xd50] sm:$0xff]
    %v1883 = vld [vmem:[#allocation8 + $0xd58] sm:$0xff]
    %v1884 = vld [vmem:[#allocation8 + $0xd60] sm:$0xff]
    %v1885 = vld [vmem:[#allocation8 + $0xd68] sm:$0xff]
    %v1886 = vld [vmem:[#allocation8 + $0xd70] sm:$0xff]
    %v1887 = vld [vmem:[#allocation8 + $0xd78] sm:$0xff]
    %v1888 = vld [vmem:[#allocation8 + $0xd80] sm:$0xff]
    %v1889 = vld [vmem:[#allocation8 + $0xd88] sm:$0xff]
    %v1890 = vld [vmem:[#allocation8 + $0xd90] sm:$0xff]
    %v1891 = vld [vmem:[#allocation8 + $0xd98] sm:$0xff]
    %v1892 = vld [vmem:[#allocation8 + $0xda0] sm:$0xff]
    %v1893 = vld [vmem:[#allocation8 + $0xda8] sm:$0xff]
    %v1894 = vld [vmem:[#allocation8 + $0xdb0] sm:$0xff]
    %v1895 = vld [vmem:[#allocation8 + $0xdb8] sm:$0xff]
    %v1896 = vld [vmem:[#allocation8 + $0xdc0] sm:$0xff]
    %v1897 = vld [vmem:[#allocation8 + $0xdc8] sm:$0xff]
    %v1898 = vld [vmem:[#allocation8 + $0xdd0] sm:$0xff]
    %v1899 = vld [vmem:[#allocation8 + $0xdd8] sm:$0xff]
    %v1900 = vld [vmem:[#allocation8 + $0xde0] sm:$0xff]
    %v1901 = vld [vmem:[#allocation8 + $0xde8] sm:$0xff]
    %v1902 = vld [vmem:[#allocation8 + $0xdf0] sm:$0xff]
    %v1903 = vld [vmem:[#allocation8 + $0xdf8] sm:$0xff]
    %v1904 = vld [vmem:[#allocation8 + $0xe00] sm:$0xff]
    %v1905 = vld [vmem:[#allocation8 + $0xe08] sm:$0xff]
    %v1906 = vld [vmem:[#allocation8 + $0xe10] sm:$0xff]
    %v1907 = vld [vmem:[#allocation8 + $0xe18] sm:$0xff]
    %v1908 = vld [vmem:[#allocation8 + $0xe20] sm:$0xff]
    %v1909 = vld [vmem:[#allocation8 + $0xe28] sm:$0xff]
    %v1910 = vld [vmem:[#allocation8 + $0xe30] sm:$0xff]
    %v1911 = vld [vmem:[#allocation8 + $0xe38] sm:$0xff]
    %v1912 = vld [vmem:[#allocation8 + $0xe40] sm:$0xff]
    %v1913 = vld [vmem:[#allocation8 + $0xe48] sm:$0xff]
    %v1914 = vld [vmem:[#allocation8 + $0xe50] sm:$0xff]
    %v1915 = vld [vmem:[#allocation8 + $0xe58] sm:$0xff]
    %v1916 = vld [vmem:[#allocation8 + $0xe60] sm:$0xff]
    %v1917 = vld [vmem:[#allocation8 + $0xe68] sm:$0xff]
    %v1918 = vld [vmem:[#allocation8 + $0xe70] sm:$0xff]
    %v1919 = vld [vmem:[#allocation8 + $0xe78] sm:$0xff]
    %v1920 = vld [vmem:[#allocation8 + $0xe80] sm:$0xff]
    %v1921 = vld [vmem:[#allocation8 + $0xe88] sm:$0xff]
    %v1922 = vld [vmem:[#allocation8 + $0xe90] sm:$0xff]
    %v1923 = vld [vmem:[#allocation8 + $0xe98] sm:$0xff]
    %v1924 = vld [vmem:[#allocation8 + $0xea0] sm:$0xff]
    %v1925 = vld [vmem:[#allocation8 + $0xea8] sm:$0xff]
    %v1926 = vld [vmem:[#allocation8 + $0xeb0] sm:$0xff]
    %v1927 = vld [vmem:[#allocation8 + $0xeb8] sm:$0xff]
    %v1928 = vld [vmem:[#allocation8 + $0xec0] sm:$0xff]
    %v1929 = vld [vmem:[#allocation8 + $0xec8] sm:$0xff]
    %v1930 = vld [vmem:[#allocation8 + $0xed0] sm:$0xff]
    %v1931 = vld [vmem:[#allocation8 + $0xed8] sm:$0xff]
    %v1932 = vld [vmem:[#allocation8 + $0xee0] sm:$0xff]
    %v1933 = vld [vmem:[#allocation8 + $0xee8] sm:$0xff]
    %v1934 = vld [vmem:[#allocation8 + $0xef0] sm:$0xff]
    %v1935 = vld [vmem:[#allocation8 + $0xef8] sm:$0xff]
    %v1936 = vld [vmem:[#allocation8 + $0xf00] sm:$0xff]
    %v1937 = vld [vmem:[#allocation8 + $0xf08] sm:$0xff]
    %v1938 = vld [vmem:[#allocation8 + $0xf10] sm:$0xff]
    %v1939 = vld [vmem:[#allocation8 + $0xf18] sm:$0xff]
    %v1940 = vld [vmem:[#allocation8 + $0xf20] sm:$0xff]
    %v1941 = vld [vmem:[#allocation8 + $0xf28] sm:$0xff]
    %v1942 = vld [vmem:[#allocation8 + $0xf30] sm:$0xff]
    %v1943 = vld [vmem:[#allocation8 + $0xf38] sm:$0xff]
    %v1944 = vld [vmem:[#allocation8 + $0xf40] sm:$0xff]
    %v1945 = vld [vmem:[#allocation8 + $0xf48] sm:$0xff]
    %v1946 = vld [vmem:[#allocation8 + $0xf50] sm:$0xff]
    %v1947 = vld [vmem:[#allocation8 + $0xf58] sm:$0xff]
    %v1948 = vld [vmem:[#allocation8 + $0xf60] sm:$0xff]
    %v1949 = vld [vmem:[#allocation8 + $0xf68] sm:$0xff]
    %v1950 = vld [vmem:[#allocation8 + $0xf70] sm:$0xff]
    %v1951 = vld [vmem:[#allocation8 + $0xf78] sm:$0xff]
    %v1952 = vld [vmem:[#allocation8 + $0xf80] sm:$0xff]
    %v1953 = vld [vmem:[#allocation8 + $0xf88] sm:$0xff]
    %v1954 = vld [vmem:[#allocation8 + $0xf90] sm:$0xff]
    %v1955 = vld [vmem:[#allocation8 + $0xf98] sm:$0xff]
    %v1956 = vld [vmem:[#allocation8 + $0xfa0] sm:$0xff]
    %v1957 = vld [vmem:[#allocation8 + $0xfa8] sm:$0xff]
    %v1958 = vld [vmem:[#allocation8 + $0xfb0] sm:$0xff]
    %v1959 = vld [vmem:[#allocation8 + $0xfb8] sm:$0xff]
    %v1960 = vld [vmem:[#allocation8 + $0xfc0] sm:$0xff]
    %v1961 = vld [vmem:[#allocation8 + $0xfc8] sm:$0xff]
    %v1962 = vld [vmem:[#allocation8 + $0xfd0] sm:$0xff]
    %v1963 = vld [vmem:[#allocation8 + $0xfd8] sm:$0xff]
    %v1964 = vld [vmem:[#allocation8 + $0xfe0] sm:$0xff]
    %v1965 = vld [vmem:[#allocation8 + $0xfe8] sm:$0xff]
    %v1966 = vld [vmem:[#allocation8 + $0xff0] sm:$0xff]
    %v1967 = vld [vmem:[#allocation8 + $0xff8] sm:$0xff]
    %v1968 = vpack.c.bf16 %v1452, %v1452
    %v1969 = vpack.c.bf16 %v1453, %v1453
    %v1970 = vpack.c.bf16 %v1454, %v1454
    %v1971 = vpack.c.bf16 %v1455, %v1455
    %s1972 = scalar_lea.vmem [#allocation17], 2
    %v1973 = vld [vmem:[%s1972] ss:$8 sm:$0xf]
    %v1974 = vld [vmem:[%s1972] ss:$8 sm:$0xf0]
    %v1975 = vor.u32 %v1973, %v1974
    %s1976 = scalar_lea.vmem [#allocation17], 66
    %v1977 = vld [vmem:[%s1976] ss:$8 sm:$0xf]
    %v1978 = vld [vmem:[%s1976] ss:$8 sm:$0xf0]
    %v1979 = vor.u32 %v1977, %v1978
    %v1982 = vlaneseq
    %v1983 = vshrl.u32 %v1982, 7
    %v1984 = vsub.s32 0, %v1983
    %v1985 = vrot.slane %v1975, %v1984
    %v1986 = vlaneseq
    %v1987 = vshrl.u32 %v1986, 7
    %v1988 = vsub.s32 1, %v1987
    %v1989 = vrot.slane %v1975, %v1988
    %v1990 = vlaneseq
    %v1991 = vshrl.u32 %v1990, 7
    %v1992 = vsub.s32 2, %v1991
    %v1993 = vrot.slane %v1975, %v1992
    %v1994 = vlaneseq
    %v1995 = vshrl.u32 %v1994, 7
    %v1996 = vsub.s32 3, %v1995
    %v1997 = vrot.slane %v1975, %v1996
    %v1998 = vlaneseq
    %v1999 = vshrl.u32 %v1998, 7
    %v2000 = vsub.s32 4, %v1999
    %v2001 = vrot.slane %v1975, %v2000
    %v2002 = vlaneseq
    %v2003 = vshrl.u32 %v2002, 7
    %v2004 = vsub.s32 5, %v2003
    %v2005 = vrot.slane %v1975, %v2004
    %v2006 = vlaneseq
    %v2007 = vshrl.u32 %v2006, 7
    %v2008 = vsub.s32 6, %v2007
    %v2009 = vrot.slane %v1975, %v2008
    %v2010 = vlaneseq
    %v2011 = vshrl.u32 %v2010, 7
    %v2012 = vsub.s32 7, %v2011
    %v2013 = vrot.slane %v1975, %v2012
    %v2014 = vlaneseq
    %v2015 = vshrl.u32 %v2014, 7
    %v2016 = vsub.s32 0, %v2015
    %v2017 = vrot.slane %v1979, %v2016
    %v2018 = vlaneseq
    %v2019 = vshrl.u32 %v2018, 7
    %v2020 = vsub.s32 1, %v2019
    %v2021 = vrot.slane %v1979, %v2020
    %v2022 = vlaneseq
    %v2023 = vshrl.u32 %v2022, 7
    %v2024 = vsub.s32 2, %v2023
    %v2025 = vrot.slane %v1979, %v2024
    %v2026 = vlaneseq
    %v2027 = vshrl.u32 %v2026, 7
    %v2028 = vsub.s32 3, %v2027
    %v2029 = vrot.slane %v1979, %v2028
    %v2030 = vlaneseq
    %v2031 = vshrl.u32 %v2030, 7
    %v2032 = vsub.s32 4, %v2031
    %v2033 = vrot.slane %v1979, %v2032
    %v2034 = vlaneseq
    %v2035 = vshrl.u32 %v2034, 7
    %v2036 = vsub.s32 5, %v2035
    %v2037 = vrot.slane %v1979, %v2036
    %v2038 = vlaneseq
    %v2039 = vshrl.u32 %v2038, 7
    %v2040 = vsub.s32 6, %v2039
    %v2041 = vrot.slane %v1979, %v2040
    %v2042 = vlaneseq
    %v2043 = vshrl.u32 %v2042, 7
    %v2044 = vsub.s32 7, %v2043
    %v2045 = vrot.slane %v1979, %v2044
    %v2574 = vunpack.c.l.b16 %v1456
    %v2575 = vunpack.c.h.b16 %v1456
    %v2576 = vunpack.c.l.b16 %v1457
    %v2577 = vunpack.c.h.b16 %v1457
    %v2578 = vunpack.c.l.b16 %v1458
    %v2579 = vunpack.c.h.b16 %v1458
    %v2580 = vunpack.c.l.b16 %v1459
    %v2581 = vunpack.c.h.b16 %v1459
    %v2582 = vunpack.c.l.b16 %v1460
    %v2583 = vunpack.c.h.b16 %v1460
    %v2584 = vunpack.c.l.b16 %v1461
    %v2585 = vunpack.c.h.b16 %v1461
    %v2586 = vunpack.c.l.b16 %v1462
    %v2587 = vunpack.c.h.b16 %v1462
    %v2588 = vunpack.c.l.b16 %v1463
    %v2589 = vunpack.c.h.b16 %v1463
    %v2590 = vunpack.c.l.b16 %v1464
    %v2591 = vunpack.c.h.b16 %v1464
    %v2592 = vunpack.c.l.b16 %v1465
    %v2593 = vunpack.c.h.b16 %v1465
    %v2594 = vunpack.c.l.b16 %v1466
    %v2595 = vunpack.c.h.b16 %v1466
    %v2596 = vunpack.c.l.b16 %v1467
    %v2597 = vunpack.c.h.b16 %v1467
    %v2598 = vunpack.c.l.b16 %v1468
    %v2599 = vunpack.c.h.b16 %v1468
    %v2600 = vunpack.c.l.b16 %v1469
    %v2601 = vunpack.c.h.b16 %v1469
    %v2602 = vunpack.c.l.b16 %v1470
    %v2603 = vunpack.c.h.b16 %v1470
    %v2604 = vunpack.c.l.b16 %v1471
    %v2605 = vunpack.c.h.b16 %v1471
    %v2606 = vunpack.c.l.b16 %v1472
    %v2607 = vunpack.c.h.b16 %v1472
    %v2608 = vunpack.c.l.b16 %v1473
    %v2609 = vunpack.c.h.b16 %v1473
    %v2610 = vunpack.c.l.b16 %v1474
    %v2611 = vunpack.c.h.b16 %v1474
    %v2612 = vunpack.c.l.b16 %v1475
    %v2613 = vunpack.c.h.b16 %v1475
    %v2614 = vunpack.c.l.b16 %v1476
    %v2615 = vunpack.c.h.b16 %v1476
    %v2616 = vunpack.c.l.b16 %v1477
    %v2617 = vunpack.c.h.b16 %v1477
    %v2618 = vunpack.c.l.b16 %v1478
    %v2619 = vunpack.c.h.b16 %v1478
    %v2620 = vunpack.c.l.b16 %v1479
    %v2621 = vunpack.c.h.b16 %v1479
    %v2622 = vunpack.c.l.b16 %v1480
    %v2623 = vunpack.c.h.b16 %v1480
    %v2624 = vunpack.c.l.b16 %v1481
    %v2625 = vunpack.c.h.b16 %v1481
    %v2626 = vunpack.c.l.b16 %v1482
    %v2627 = vunpack.c.h.b16 %v1482
    %v2628 = vunpack.c.l.b16 %v1483
    %v2629 = vunpack.c.h.b16 %v1483
    %v2630 = vunpack.c.l.b16 %v1484
    %v2631 = vunpack.c.h.b16 %v1484
    %v2632 = vunpack.c.l.b16 %v1485
    %v2633 = vunpack.c.h.b16 %v1485
    %v2634 = vunpack.c.l.b16 %v1486
    %v2635 = vunpack.c.h.b16 %v1486
    %v2636 = vunpack.c.l.b16 %v1487
    %v2637 = vunpack.c.h.b16 %v1487
    %v2638 = vunpack.c.l.b16 %v1488
    %v2639 = vunpack.c.h.b16 %v1488
    %v2640 = vunpack.c.l.b16 %v1489
    %v2641 = vunpack.c.h.b16 %v1489
    %v2642 = vunpack.c.l.b16 %v1490
    %v2643 = vunpack.c.h.b16 %v1490
    %v2644 = vunpack.c.l.b16 %v1491
    %v2645 = vunpack.c.h.b16 %v1491
    %v2646 = vunpack.c.l.b16 %v1492
    %v2647 = vunpack.c.h.b16 %v1492
    %v2648 = vunpack.c.l.b16 %v1493
    %v2649 = vunpack.c.h.b16 %v1493
    %v2650 = vunpack.c.l.b16 %v1494
    %v2651 = vunpack.c.h.b16 %v1494
    %v2652 = vunpack.c.l.b16 %v1495
    %v2653 = vunpack.c.h.b16 %v1495
    %v2654 = vunpack.c.l.b16 %v1496
    %v2655 = vunpack.c.h.b16 %v1496
    %v2656 = vunpack.c.l.b16 %v1497
    %v2657 = vunpack.c.h.b16 %v1497
    %v2658 = vunpack.c.l.b16 %v1498
    %v2659 = vunpack.c.h.b16 %v1498
    %v2660 = vunpack.c.l.b16 %v1499
    %v2661 = vunpack.c.h.b16 %v1499
    %v2662 = vunpack.c.l.b16 %v1500
    %v2663 = vunpack.c.h.b16 %v1500
    %v2664 = vunpack.c.l.b16 %v1501
    %v2665 = vunpack.c.h.b16 %v1501
    %v2666 = vunpack.c.l.b16 %v1502
    %v2667 = vunpack.c.h.b16 %v1502
    %v2668 = vunpack.c.l.b16 %v1503
    %v2669 = vunpack.c.h.b16 %v1503
    %v2670 = vunpack.c.l.b16 %v1504
    %v2671 = vunpack.c.h.b16 %v1504
    %v2672 = vunpack.c.l.b16 %v1505
    %v2673 = vunpack.c.h.b16 %v1505
    %v2674 = vunpack.c.l.b16 %v1506
    %v2675 = vunpack.c.h.b16 %v1506
    %v2676 = vunpack.c.l.b16 %v1507
    %v2677 = vunpack.c.h.b16 %v1507
    %v2678 = vunpack.c.l.b16 %v1508
    %v2679 = vunpack.c.h.b16 %v1508
    %v2680 = vunpack.c.l.b16 %v1509
    %v2681 = vunpack.c.h.b16 %v1509
    %v2682 = vunpack.c.l.b16 %v1510
    %v2683 = vunpack.c.h.b16 %v1510
    %v2684 = vunpack.c.l.b16 %v1511
    %v2685 = vunpack.c.h.b16 %v1511
    %v2686 = vunpack.c.l.b16 %v1512
    %v2687 = vunpack.c.h.b16 %v1512
    %v2688 = vunpack.c.l.b16 %v1513
    %v2689 = vunpack.c.h.b16 %v1513
    %v2690 = vunpack.c.l.b16 %v1514
    %v2691 = vunpack.c.h.b16 %v1514
    %v2692 = vunpack.c.l.b16 %v1515
    %v2693 = vunpack.c.h.b16 %v1515
    %v2694 = vunpack.c.l.b16 %v1516
    %v2695 = vunpack.c.h.b16 %v1516
    %v2696 = vunpack.c.l.b16 %v1517
    %v2697 = vunpack.c.h.b16 %v1517
    %v2698 = vunpack.c.l.b16 %v1518
    %v2699 = vunpack.c.h.b16 %v1518
    %v2700 = vunpack.c.l.b16 %v1519
    %v2701 = vunpack.c.h.b16 %v1519
    %v2702 = vunpack.c.l.b16 %v1520
    %v2703 = vunpack.c.h.b16 %v1520
    %v2704 = vunpack.c.l.b16 %v1521
    %v2705 = vunpack.c.h.b16 %v1521
    %v2706 = vunpack.c.l.b16 %v1522
    %v2707 = vunpack.c.h.b16 %v1522
    %v2708 = vunpack.c.l.b16 %v1523
    %v2709 = vunpack.c.h.b16 %v1523
    %v2710 = vunpack.c.l.b16 %v1524
    %v2711 = vunpack.c.h.b16 %v1524
    %v2712 = vunpack.c.l.b16 %v1525
    %v2713 = vunpack.c.h.b16 %v1525
    %v2714 = vunpack.c.l.b16 %v1526
    %v2715 = vunpack.c.h.b16 %v1526
    %v2716 = vunpack.c.l.b16 %v1527
    %v2717 = vunpack.c.h.b16 %v1527
    %v2718 = vunpack.c.l.b16 %v1528
    %v2719 = vunpack.c.h.b16 %v1528
    %v2720 = vunpack.c.l.b16 %v1529
    %v2721 = vunpack.c.h.b16 %v1529
    %v2722 = vunpack.c.l.b16 %v1530
    %v2723 = vunpack.c.h.b16 %v1530
    %v2724 = vunpack.c.l.b16 %v1531
    %v2725 = vunpack.c.h.b16 %v1531
    %v2726 = vunpack.c.l.b16 %v1532
    %v2727 = vunpack.c.h.b16 %v1532
    %v2728 = vunpack.c.l.b16 %v1533
    %v2729 = vunpack.c.h.b16 %v1533
    %v2730 = vunpack.c.l.b16 %v1534
    %v2731 = vunpack.c.h.b16 %v1534
    %v2732 = vunpack.c.l.b16 %v1535
    %v2733 = vunpack.c.h.b16 %v1535
    %v2734 = vunpack.c.l.b16 %v1536
    %v2735 = vunpack.c.h.b16 %v1536
    %v2736 = vunpack.c.l.b16 %v1537
    %v2737 = vunpack.c.h.b16 %v1537
    %v2738 = vunpack.c.l.b16 %v1538
    %v2739 = vunpack.c.h.b16 %v1538
    %v2740 = vunpack.c.l.b16 %v1539
    %v2741 = vunpack.c.h.b16 %v1539
    %v2742 = vunpack.c.l.b16 %v1540
    %v2743 = vunpack.c.h.b16 %v1540
    %v2744 = vunpack.c.l.b16 %v1541
    %v2745 = vunpack.c.h.b16 %v1541
    %v2746 = vunpack.c.l.b16 %v1542
    %v2747 = vunpack.c.h.b16 %v1542
    %v2748 = vunpack.c.l.b16 %v1543
    %v2749 = vunpack.c.h.b16 %v1543
    %v2750 = vunpack.c.l.b16 %v1544
    %v2751 = vunpack.c.h.b16 %v1544
    %v2752 = vunpack.c.l.b16 %v1545
    %v2753 = vunpack.c.h.b16 %v1545
    %v2754 = vunpack.c.l.b16 %v1546
    %v2755 = vunpack.c.h.b16 %v1546
    %v2756 = vunpack.c.l.b16 %v1547
    %v2757 = vunpack.c.h.b16 %v1547
    %v2758 = vunpack.c.l.b16 %v1548
    %v2759 = vunpack.c.h.b16 %v1548
    %v2760 = vunpack.c.l.b16 %v1549
    %v2761 = vunpack.c.h.b16 %v1549
    %v2762 = vunpack.c.l.b16 %v1550
    %v2763 = vunpack.c.h.b16 %v1550
    %v2764 = vunpack.c.l.b16 %v1551
    %v2765 = vunpack.c.h.b16 %v1551
    %v2766 = vunpack.c.l.b16 %v1552
    %v2767 = vunpack.c.h.b16 %v1552
    %v2768 = vunpack.c.l.b16 %v1553
    %v2769 = vunpack.c.h.b16 %v1553
    %v2770 = vunpack.c.l.b16 %v1554
    %v2771 = vunpack.c.h.b16 %v1554
    %v2772 = vunpack.c.l.b16 %v1555
    %v2773 = vunpack.c.h.b16 %v1555
    %v2774 = vunpack.c.l.b16 %v1556
    %v2775 = vunpack.c.h.b16 %v1556
    %v2776 = vunpack.c.l.b16 %v1557
    %v2777 = vunpack.c.h.b16 %v1557
    %v2778 = vunpack.c.l.b16 %v1558
    %v2779 = vunpack.c.h.b16 %v1558
    %v2780 = vunpack.c.l.b16 %v1559
    %v2781 = vunpack.c.h.b16 %v1559
    %v2782 = vunpack.c.l.b16 %v1560
    %v2783 = vunpack.c.h.b16 %v1560
    %v2784 = vunpack.c.l.b16 %v1561
    %v2785 = vunpack.c.h.b16 %v1561
    %v2786 = vunpack.c.l.b16 %v1562
    %v2787 = vunpack.c.h.b16 %v1562
    %v2788 = vunpack.c.l.b16 %v1563
    %v2789 = vunpack.c.h.b16 %v1563
    %v2790 = vunpack.c.l.b16 %v1564
    %v2791 = vunpack.c.h.b16 %v1564
    %v2792 = vunpack.c.l.b16 %v1565
    %v2793 = vunpack.c.h.b16 %v1565
    %v2794 = vunpack.c.l.b16 %v1566
    %v2795 = vunpack.c.h.b16 %v1566
    %v2796 = vunpack.c.l.b16 %v1567
    %v2797 = vunpack.c.h.b16 %v1567
    %v2798 = vunpack.c.l.b16 %v1568
    %v2799 = vunpack.c.h.b16 %v1568
    %v2800 = vunpack.c.l.b16 %v1569
    %v2801 = vunpack.c.h.b16 %v1569
    %v2802 = vunpack.c.l.b16 %v1570
    %v2803 = vunpack.c.h.b16 %v1570
    %v2804 = vunpack.c.l.b16 %v1571
    %v2805 = vunpack.c.h.b16 %v1571
    %v2806 = vunpack.c.l.b16 %v1572
    %v2807 = vunpack.c.h.b16 %v1572
    %v2808 = vunpack.c.l.b16 %v1573
    %v2809 = vunpack.c.h.b16 %v1573
    %v2810 = vunpack.c.l.b16 %v1574
    %v2811 = vunpack.c.h.b16 %v1574
    %v2812 = vunpack.c.l.b16 %v1575
    %v2813 = vunpack.c.h.b16 %v1575
    %v2814 = vunpack.c.l.b16 %v1576
    %v2815 = vunpack.c.h.b16 %v1576
    %v2816 = vunpack.c.l.b16 %v1577
    %v2817 = vunpack.c.h.b16 %v1577
    %v2818 = vunpack.c.l.b16 %v1578
    %v2819 = vunpack.c.h.b16 %v1578
    %v2820 = vunpack.c.l.b16 %v1579
    %v2821 = vunpack.c.h.b16 %v1579
    %v2822 = vunpack.c.l.b16 %v1580
    %v2823 = vunpack.c.h.b16 %v1580
    %v2824 = vunpack.c.l.b16 %v1581
    %v2825 = vunpack.c.h.b16 %v1581
    %v2826 = vunpack.c.l.b16 %v1582
    %v2827 = vunpack.c.h.b16 %v1582
    %v2828 = vunpack.c.l.b16 %v1583
    %v2829 = vunpack.c.h.b16 %v1583
    %v2830 = vunpack.c.l.b16 %v1584
    %v2831 = vunpack.c.h.b16 %v1584
    %v2832 = vunpack.c.l.b16 %v1585
    %v2833 = vunpack.c.h.b16 %v1585
    %v2834 = vunpack.c.l.b16 %v1586
    %v2835 = vunpack.c.h.b16 %v1586
    %v2836 = vunpack.c.l.b16 %v1587
    %v2837 = vunpack.c.h.b16 %v1587
    %v2838 = vunpack.c.l.b16 %v1588
    %v2839 = vunpack.c.h.b16 %v1588
    %v2840 = vunpack.c.l.b16 %v1589
    %v2841 = vunpack.c.h.b16 %v1589
    %v2842 = vunpack.c.l.b16 %v1590
    %v2843 = vunpack.c.h.b16 %v1590
    %v2844 = vunpack.c.l.b16 %v1591
    %v2845 = vunpack.c.h.b16 %v1591
    %v2846 = vunpack.c.l.b16 %v1592
    %v2847 = vunpack.c.h.b16 %v1592
    %v2848 = vunpack.c.l.b16 %v1593
    %v2849 = vunpack.c.h.b16 %v1593
    %v2850 = vunpack.c.l.b16 %v1594
    %v2851 = vunpack.c.h.b16 %v1594
    %v2852 = vunpack.c.l.b16 %v1595
    %v2853 = vunpack.c.h.b16 %v1595
    %v2854 = vunpack.c.l.b16 %v1596
    %v2855 = vunpack.c.h.b16 %v1596
    %v2856 = vunpack.c.l.b16 %v1597
    %v2857 = vunpack.c.h.b16 %v1597
    %v2858 = vunpack.c.l.b16 %v1598
    %v2859 = vunpack.c.h.b16 %v1598
    %v2860 = vunpack.c.l.b16 %v1599
    %v2861 = vunpack.c.h.b16 %v1599
    %v2862 = vunpack.c.l.b16 %v1600
    %v2863 = vunpack.c.h.b16 %v1600
    %v2864 = vunpack.c.l.b16 %v1601
    %v2865 = vunpack.c.h.b16 %v1601
    %v2866 = vunpack.c.l.b16 %v1602
    %v2867 = vunpack.c.h.b16 %v1602
    %v2868 = vunpack.c.l.b16 %v1603
    %v2869 = vunpack.c.h.b16 %v1603
    %v2870 = vunpack.c.l.b16 %v1604
    %v2871 = vunpack.c.h.b16 %v1604
    %v2872 = vunpack.c.l.b16 %v1605
    %v2873 = vunpack.c.h.b16 %v1605
    %v2874 = vunpack.c.l.b16 %v1606
    %v2875 = vunpack.c.h.b16 %v1606
    %v2876 = vunpack.c.l.b16 %v1607
    %v2877 = vunpack.c.h.b16 %v1607
    %v2878 = vunpack.c.l.b16 %v1608
    %v2879 = vunpack.c.h.b16 %v1608
    %v2880 = vunpack.c.l.b16 %v1609
    %v2881 = vunpack.c.h.b16 %v1609
    %v2882 = vunpack.c.l.b16 %v1610
    %v2883 = vunpack.c.h.b16 %v1610
    %v2884 = vunpack.c.l.b16 %v1611
    %v2885 = vunpack.c.h.b16 %v1611
    %v2886 = vunpack.c.l.b16 %v1612
    %v2887 = vunpack.c.h.b16 %v1612
    %v2888 = vunpack.c.l.b16 %v1613
    %v2889 = vunpack.c.h.b16 %v1613
    %v2890 = vunpack.c.l.b16 %v1614
    %v2891 = vunpack.c.h.b16 %v1614
    %v2892 = vunpack.c.l.b16 %v1615
    %v2893 = vunpack.c.h.b16 %v1615
    %v2894 = vunpack.c.l.b16 %v1616
    %v2895 = vunpack.c.h.b16 %v1616
    %v2896 = vunpack.c.l.b16 %v1617
    %v2897 = vunpack.c.h.b16 %v1617
    %v2898 = vunpack.c.l.b16 %v1618
    %v2899 = vunpack.c.h.b16 %v1618
    %v2900 = vunpack.c.l.b16 %v1619
    %v2901 = vunpack.c.h.b16 %v1619
    %v2902 = vunpack.c.l.b16 %v1620
    %v2903 = vunpack.c.h.b16 %v1620
    %v2904 = vunpack.c.l.b16 %v1621
    %v2905 = vunpack.c.h.b16 %v1621
    %v2906 = vunpack.c.l.b16 %v1622
    %v2907 = vunpack.c.h.b16 %v1622
    %v2908 = vunpack.c.l.b16 %v1623
    %v2909 = vunpack.c.h.b16 %v1623
    %v2910 = vunpack.c.l.b16 %v1624
    %v2911 = vunpack.c.h.b16 %v1624
    %v2912 = vunpack.c.l.b16 %v1625
    %v2913 = vunpack.c.h.b16 %v1625
    %v2914 = vunpack.c.l.b16 %v1626
    %v2915 = vunpack.c.h.b16 %v1626
    %v2916 = vunpack.c.l.b16 %v1627
    %v2917 = vunpack.c.h.b16 %v1627
    %v2918 = vunpack.c.l.b16 %v1628
    %v2919 = vunpack.c.h.b16 %v1628
    %v2920 = vunpack.c.l.b16 %v1629
    %v2921 = vunpack.c.h.b16 %v1629
    %v2922 = vunpack.c.l.b16 %v1630
    %v2923 = vunpack.c.h.b16 %v1630
    %v2924 = vunpack.c.l.b16 %v1631
    %v2925 = vunpack.c.h.b16 %v1631
    %v2926 = vunpack.c.l.b16 %v1632
    %v2927 = vunpack.c.h.b16 %v1632
    %v2928 = vunpack.c.l.b16 %v1633
    %v2929 = vunpack.c.h.b16 %v1633
    %v2930 = vunpack.c.l.b16 %v1634
    %v2931 = vunpack.c.h.b16 %v1634
    %v2932 = vunpack.c.l.b16 %v1635
    %v2933 = vunpack.c.h.b16 %v1635
    %v2934 = vunpack.c.l.b16 %v1636
    %v2935 = vunpack.c.h.b16 %v1636
    %v2936 = vunpack.c.l.b16 %v1637
    %v2937 = vunpack.c.h.b16 %v1637
    %v2938 = vunpack.c.l.b16 %v1638
    %v2939 = vunpack.c.h.b16 %v1638
    %v2940 = vunpack.c.l.b16 %v1639
    %v2941 = vunpack.c.h.b16 %v1639
    %v2942 = vunpack.c.l.b16 %v1640
    %v2943 = vunpack.c.h.b16 %v1640
    %v2944 = vunpack.c.l.b16 %v1641
    %v2945 = vunpack.c.h.b16 %v1641
    %v2946 = vunpack.c.l.b16 %v1642
    %v2947 = vunpack.c.h.b16 %v1642
    %v2948 = vunpack.c.l.b16 %v1643
    %v2949 = vunpack.c.h.b16 %v1643
    %v2950 = vunpack.c.l.b16 %v1644
    %v2951 = vunpack.c.h.b16 %v1644
    %v2952 = vunpack.c.l.b16 %v1645
    %v2953 = vunpack.c.h.b16 %v1645
    %v2954 = vunpack.c.l.b16 %v1646
    %v2955 = vunpack.c.h.b16 %v1646
    %v2956 = vunpack.c.l.b16 %v1647
    %v2957 = vunpack.c.h.b16 %v1647
    %v2958 = vunpack.c.l.b16 %v1648
    %v2959 = vunpack.c.h.b16 %v1648
    %v2960 = vunpack.c.l.b16 %v1649
    %v2961 = vunpack.c.h.b16 %v1649
    %v2962 = vunpack.c.l.b16 %v1650
    %v2963 = vunpack.c.h.b16 %v1650
    %v2964 = vunpack.c.l.b16 %v1651
    %v2965 = vunpack.c.h.b16 %v1651
    %v2966 = vunpack.c.l.b16 %v1652
    %v2967 = vunpack.c.h.b16 %v1652
    %v2968 = vunpack.c.l.b16 %v1653
    %v2969 = vunpack.c.h.b16 %v1653
    %v2970 = vunpack.c.l.b16 %v1654
    %v2971 = vunpack.c.h.b16 %v1654
    %v2972 = vunpack.c.l.b16 %v1655
    %v2973 = vunpack.c.h.b16 %v1655
    %v2974 = vunpack.c.l.b16 %v1656
    %v2975 = vunpack.c.h.b16 %v1656
    %v2976 = vunpack.c.l.b16 %v1657
    %v2977 = vunpack.c.h.b16 %v1657
    %v2978 = vunpack.c.l.b16 %v1658
    %v2979 = vunpack.c.h.b16 %v1658
    %v2980 = vunpack.c.l.b16 %v1659
    %v2981 = vunpack.c.h.b16 %v1659
    %v2982 = vunpack.c.l.b16 %v1660
    %v2983 = vunpack.c.h.b16 %v1660
    %v2984 = vunpack.c.l.b16 %v1661
    %v2985 = vunpack.c.h.b16 %v1661
    %v2986 = vunpack.c.l.b16 %v1662
    %v2987 = vunpack.c.h.b16 %v1662
    %v2988 = vunpack.c.l.b16 %v1663
    %v2989 = vunpack.c.h.b16 %v1663
    %v2990 = vunpack.c.l.b16 %v1664
    %v2991 = vunpack.c.h.b16 %v1664
    %v2992 = vunpack.c.l.b16 %v1665
    %v2993 = vunpack.c.h.b16 %v1665
    %v2994 = vunpack.c.l.b16 %v1666
    %v2995 = vunpack.c.h.b16 %v1666
    %v2996 = vunpack.c.l.b16 %v1667
    %v2997 = vunpack.c.h.b16 %v1667
    %v2998 = vunpack.c.l.b16 %v1668
    %v2999 = vunpack.c.h.b16 %v1668
    %v3000 = vunpack.c.l.b16 %v1669
    %v3001 = vunpack.c.h.b16 %v1669
    %v3002 = vunpack.c.l.b16 %v1670
    %v3003 = vunpack.c.h.b16 %v1670
    %v3004 = vunpack.c.l.b16 %v1671
    %v3005 = vunpack.c.h.b16 %v1671
    %v3006 = vunpack.c.l.b16 %v1672
    %v3007 = vunpack.c.h.b16 %v1672
    %v3008 = vunpack.c.l.b16 %v1673
    %v3009 = vunpack.c.h.b16 %v1673
    %v3010 = vunpack.c.l.b16 %v1674
    %v3011 = vunpack.c.h.b16 %v1674
    %v3012 = vunpack.c.l.b16 %v1675
    %v3013 = vunpack.c.h.b16 %v1675
    %v3014 = vunpack.c.l.b16 %v1676
    %v3015 = vunpack.c.h.b16 %v1676
    %v3016 = vunpack.c.l.b16 %v1677
    %v3017 = vunpack.c.h.b16 %v1677
    %v3018 = vunpack.c.l.b16 %v1678
    %v3019 = vunpack.c.h.b16 %v1678
    %v3020 = vunpack.c.l.b16 %v1679
    %v3021 = vunpack.c.h.b16 %v1679
    %v3022 = vunpack.c.l.b16 %v1680
    %v3023 = vunpack.c.h.b16 %v1680
    %v3024 = vunpack.c.l.b16 %v1681
    %v3025 = vunpack.c.h.b16 %v1681
    %v3026 = vunpack.c.l.b16 %v1682
    %v3027 = vunpack.c.h.b16 %v1682
    %v3028 = vunpack.c.l.b16 %v1683
    %v3029 = vunpack.c.h.b16 %v1683
    %v3030 = vunpack.c.l.b16 %v1684
    %v3031 = vunpack.c.h.b16 %v1684
    %v3032 = vunpack.c.l.b16 %v1685
    %v3033 = vunpack.c.h.b16 %v1685
    %v3034 = vunpack.c.l.b16 %v1686
    %v3035 = vunpack.c.h.b16 %v1686
    %v3036 = vunpack.c.l.b16 %v1687
    %v3037 = vunpack.c.h.b16 %v1687
    %v3038 = vunpack.c.l.b16 %v1688
    %v3039 = vunpack.c.h.b16 %v1688
    %v3040 = vunpack.c.l.b16 %v1689
    %v3041 = vunpack.c.h.b16 %v1689
    %v3042 = vunpack.c.l.b16 %v1690
    %v3043 = vunpack.c.h.b16 %v1690
    %v3044 = vunpack.c.l.b16 %v1691
    %v3045 = vunpack.c.h.b16 %v1691
    %v3046 = vunpack.c.l.b16 %v1692
    %v3047 = vunpack.c.h.b16 %v1692
    %v3048 = vunpack.c.l.b16 %v1693
    %v3049 = vunpack.c.h.b16 %v1693
    %v3050 = vunpack.c.l.b16 %v1694
    %v3051 = vunpack.c.h.b16 %v1694
    %v3052 = vunpack.c.l.b16 %v1695
    %v3053 = vunpack.c.h.b16 %v1695
    %v3054 = vunpack.c.l.b16 %v1696
    %v3055 = vunpack.c.h.b16 %v1696
    %v3056 = vunpack.c.l.b16 %v1697
    %v3057 = vunpack.c.h.b16 %v1697
    %v3058 = vunpack.c.l.b16 %v1698
    %v3059 = vunpack.c.h.b16 %v1698
    %v3060 = vunpack.c.l.b16 %v1699
    %v3061 = vunpack.c.h.b16 %v1699
    %v3062 = vunpack.c.l.b16 %v1700
    %v3063 = vunpack.c.h.b16 %v1700
    %v3064 = vunpack.c.l.b16 %v1701
    %v3065 = vunpack.c.h.b16 %v1701
    %v3066 = vunpack.c.l.b16 %v1702
    %v3067 = vunpack.c.h.b16 %v1702
    %v3068 = vunpack.c.l.b16 %v1703
    %v3069 = vunpack.c.h.b16 %v1703
    %v3070 = vunpack.c.l.b16 %v1704
    %v3071 = vunpack.c.h.b16 %v1704
    %v3072 = vunpack.c.l.b16 %v1705
    %v3073 = vunpack.c.h.b16 %v1705
    %v3074 = vunpack.c.l.b16 %v1706
    %v3075 = vunpack.c.h.b16 %v1706
    %v3076 = vunpack.c.l.b16 %v1707
    %v3077 = vunpack.c.h.b16 %v1707
    %v3078 = vunpack.c.l.b16 %v1708
    %v3079 = vunpack.c.h.b16 %v1708
    %v3080 = vunpack.c.l.b16 %v1709
    %v3081 = vunpack.c.h.b16 %v1709
    %v3082 = vunpack.c.l.b16 %v1710
    %v3083 = vunpack.c.h.b16 %v1710
    %v3084 = vunpack.c.l.b16 %v1711
    %v3085 = vunpack.c.h.b16 %v1711
    %v3086 = vunpack.c.l.b16 %v1712
    %v3087 = vunpack.c.h.b16 %v1712
    %v3088 = vunpack.c.l.b16 %v1713
    %v3089 = vunpack.c.h.b16 %v1713
    %v3090 = vunpack.c.l.b16 %v1714
    %v3091 = vunpack.c.h.b16 %v1714
    %v3092 = vunpack.c.l.b16 %v1715
    %v3093 = vunpack.c.h.b16 %v1715
    %v3094 = vunpack.c.l.b16 %v1716
    %v3095 = vunpack.c.h.b16 %v1716
    %v3096 = vunpack.c.l.b16 %v1717
    %v3097 = vunpack.c.h.b16 %v1717
    %v3098 = vunpack.c.l.b16 %v1718
    %v3099 = vunpack.c.h.b16 %v1718
    %v3100 = vunpack.c.l.b16 %v1719
    %v3101 = vunpack.c.h.b16 %v1719
    %v3102 = vunpack.c.l.b16 %v1720
    %v3103 = vunpack.c.h.b16 %v1720
    %v3104 = vunpack.c.l.b16 %v1721
    %v3105 = vunpack.c.h.b16 %v1721
    %v3106 = vunpack.c.l.b16 %v1722
    %v3107 = vunpack.c.h.b16 %v1722
    %v3108 = vunpack.c.l.b16 %v1723
    %v3109 = vunpack.c.h.b16 %v1723
    %v3110 = vunpack.c.l.b16 %v1724
    %v3111 = vunpack.c.h.b16 %v1724
    %v3112 = vunpack.c.l.b16 %v1725
    %v3113 = vunpack.c.h.b16 %v1725
    %v3114 = vunpack.c.l.b16 %v1726
    %v3115 = vunpack.c.h.b16 %v1726
    %v3116 = vunpack.c.l.b16 %v1727
    %v3117 = vunpack.c.h.b16 %v1727
    %v3118 = vunpack.c.l.b16 %v1728
    %v3119 = vunpack.c.h.b16 %v1728
    %v3120 = vunpack.c.l.b16 %v1729
    %v3121 = vunpack.c.h.b16 %v1729
    %v3122 = vunpack.c.l.b16 %v1730
    %v3123 = vunpack.c.h.b16 %v1730
    %v3124 = vunpack.c.l.b16 %v1731
    %v3125 = vunpack.c.h.b16 %v1731
    %v3126 = vunpack.c.l.b16 %v1732
    %v3127 = vunpack.c.h.b16 %v1732
    %v3128 = vunpack.c.l.b16 %v1733
    %v3129 = vunpack.c.h.b16 %v1733
    %v3130 = vunpack.c.l.b16 %v1734
    %v3131 = vunpack.c.h.b16 %v1734
    %v3132 = vunpack.c.l.b16 %v1735
    %v3133 = vunpack.c.h.b16 %v1735
    %v3134 = vunpack.c.l.b16 %v1736
    %v3135 = vunpack.c.h.b16 %v1736
    %v3136 = vunpack.c.l.b16 %v1737
    %v3137 = vunpack.c.h.b16 %v1737
    %v3138 = vunpack.c.l.b16 %v1738
    %v3139 = vunpack.c.h.b16 %v1738
    %v3140 = vunpack.c.l.b16 %v1739
    %v3141 = vunpack.c.h.b16 %v1739
    %v3142 = vunpack.c.l.b16 %v1740
    %v3143 = vunpack.c.h.b16 %v1740
    %v3144 = vunpack.c.l.b16 %v1741
    %v3145 = vunpack.c.h.b16 %v1741
    %v3146 = vunpack.c.l.b16 %v1742
    %v3147 = vunpack.c.h.b16 %v1742
    %v3148 = vunpack.c.l.b16 %v1743
    %v3149 = vunpack.c.h.b16 %v1743
    %v3150 = vunpack.c.l.b16 %v1744
    %v3151 = vunpack.c.h.b16 %v1744
    %v3152 = vunpack.c.l.b16 %v1745
    %v3153 = vunpack.c.h.b16 %v1745
    %v3154 = vunpack.c.l.b16 %v1746
    %v3155 = vunpack.c.h.b16 %v1746
    %v3156 = vunpack.c.l.b16 %v1747
    %v3157 = vunpack.c.h.b16 %v1747
    %v3158 = vunpack.c.l.b16 %v1748
    %v3159 = vunpack.c.h.b16 %v1748
    %v3160 = vunpack.c.l.b16 %v1749
    %v3161 = vunpack.c.h.b16 %v1749
    %v3162 = vunpack.c.l.b16 %v1750
    %v3163 = vunpack.c.h.b16 %v1750
    %v3164 = vunpack.c.l.b16 %v1751
    %v3165 = vunpack.c.h.b16 %v1751
    %v3166 = vunpack.c.l.b16 %v1752
    %v3167 = vunpack.c.h.b16 %v1752
    %v3168 = vunpack.c.l.b16 %v1753
    %v3169 = vunpack.c.h.b16 %v1753
    %v3170 = vunpack.c.l.b16 %v1754
    %v3171 = vunpack.c.h.b16 %v1754
    %v3172 = vunpack.c.l.b16 %v1755
    %v3173 = vunpack.c.h.b16 %v1755
    %v3174 = vunpack.c.l.b16 %v1756
    %v3175 = vunpack.c.h.b16 %v1756
    %v3176 = vunpack.c.l.b16 %v1757
    %v3177 = vunpack.c.h.b16 %v1757
    %v3178 = vunpack.c.l.b16 %v1758
    %v3179 = vunpack.c.h.b16 %v1758
    %v3180 = vunpack.c.l.b16 %v1759
    %v3181 = vunpack.c.h.b16 %v1759
    %v3182 = vunpack.c.l.b16 %v1760
    %v3183 = vunpack.c.h.b16 %v1760
    %v3184 = vunpack.c.l.b16 %v1761
    %v3185 = vunpack.c.h.b16 %v1761
    %v3186 = vunpack.c.l.b16 %v1762
    %v3187 = vunpack.c.h.b16 %v1762
    %v3188 = vunpack.c.l.b16 %v1763
    %v3189 = vunpack.c.h.b16 %v1763
    %v3190 = vunpack.c.l.b16 %v1764
    %v3191 = vunpack.c.h.b16 %v1764
    %v3192 = vunpack.c.l.b16 %v1765
    %v3193 = vunpack.c.h.b16 %v1765
    %v3194 = vunpack.c.l.b16 %v1766
    %v3195 = vunpack.c.h.b16 %v1766
    %v3196 = vunpack.c.l.b16 %v1767
    %v3197 = vunpack.c.h.b16 %v1767
    %v3198 = vunpack.c.l.b16 %v1768
    %v3199 = vunpack.c.h.b16 %v1768
    %v3200 = vunpack.c.l.b16 %v1769
    %v3201 = vunpack.c.h.b16 %v1769
    %v3202 = vunpack.c.l.b16 %v1770
    %v3203 = vunpack.c.h.b16 %v1770
    %v3204 = vunpack.c.l.b16 %v1771
    %v3205 = vunpack.c.h.b16 %v1771
    %v3206 = vunpack.c.l.b16 %v1772
    %v3207 = vunpack.c.h.b16 %v1772
    %v3208 = vunpack.c.l.b16 %v1773
    %v3209 = vunpack.c.h.b16 %v1773
    %v3210 = vunpack.c.l.b16 %v1774
    %v3211 = vunpack.c.h.b16 %v1774
    %v3212 = vunpack.c.l.b16 %v1775
    %v3213 = vunpack.c.h.b16 %v1775
    %v3214 = vunpack.c.l.b16 %v1776
    %v3215 = vunpack.c.h.b16 %v1776
    %v3216 = vunpack.c.l.b16 %v1777
    %v3217 = vunpack.c.h.b16 %v1777
    %v3218 = vunpack.c.l.b16 %v1778
    %v3219 = vunpack.c.h.b16 %v1778
    %v3220 = vunpack.c.l.b16 %v1779
    %v3221 = vunpack.c.h.b16 %v1779
    %v3222 = vunpack.c.l.b16 %v1780
    %v3223 = vunpack.c.h.b16 %v1780
    %v3224 = vunpack.c.l.b16 %v1781
    %v3225 = vunpack.c.h.b16 %v1781
    %v3226 = vunpack.c.l.b16 %v1782
    %v3227 = vunpack.c.h.b16 %v1782
    %v3228 = vunpack.c.l.b16 %v1783
    %v3229 = vunpack.c.h.b16 %v1783
    %v3230 = vunpack.c.l.b16 %v1784
    %v3231 = vunpack.c.h.b16 %v1784
    %v3232 = vunpack.c.l.b16 %v1785
    %v3233 = vunpack.c.h.b16 %v1785
    %v3234 = vunpack.c.l.b16 %v1786
    %v3235 = vunpack.c.h.b16 %v1786
    %v3236 = vunpack.c.l.b16 %v1787
    %v3237 = vunpack.c.h.b16 %v1787
    %v3238 = vunpack.c.l.b16 %v1788
    %v3239 = vunpack.c.h.b16 %v1788
    %v3240 = vunpack.c.l.b16 %v1789
    %v3241 = vunpack.c.h.b16 %v1789
    %v3242 = vunpack.c.l.b16 %v1790
    %v3243 = vunpack.c.h.b16 %v1790
    %v3244 = vunpack.c.l.b16 %v1791
    %v3245 = vunpack.c.h.b16 %v1791
    %v3246 = vunpack.c.l.b16 %v1792
    %v3247 = vunpack.c.h.b16 %v1792
    %v3248 = vunpack.c.l.b16 %v1793
    %v3249 = vunpack.c.h.b16 %v1793
    %v3250 = vunpack.c.l.b16 %v1794
    %v3251 = vunpack.c.h.b16 %v1794
    %v3252 = vunpack.c.l.b16 %v1795
    %v3253 = vunpack.c.h.b16 %v1795
    %v3254 = vunpack.c.l.b16 %v1796
    %v3255 = vunpack.c.h.b16 %v1796
    %v3256 = vunpack.c.l.b16 %v1797
    %v3257 = vunpack.c.h.b16 %v1797
    %v3258 = vunpack.c.l.b16 %v1798
    %v3259 = vunpack.c.h.b16 %v1798
    %v3260 = vunpack.c.l.b16 %v1799
    %v3261 = vunpack.c.h.b16 %v1799
    %v3262 = vunpack.c.l.b16 %v1800
    %v3263 = vunpack.c.h.b16 %v1800
    %v3264 = vunpack.c.l.b16 %v1801
    %v3265 = vunpack.c.h.b16 %v1801
    %v3266 = vunpack.c.l.b16 %v1802
    %v3267 = vunpack.c.h.b16 %v1802
    %v3268 = vunpack.c.l.b16 %v1803
    %v3269 = vunpack.c.h.b16 %v1803
    %v3270 = vunpack.c.l.b16 %v1804
    %v3271 = vunpack.c.h.b16 %v1804
    %v3272 = vunpack.c.l.b16 %v1805
    %v3273 = vunpack.c.h.b16 %v1805
    %v3274 = vunpack.c.l.b16 %v1806
    %v3275 = vunpack.c.h.b16 %v1806
    %v3276 = vunpack.c.l.b16 %v1807
    %v3277 = vunpack.c.h.b16 %v1807
    %v3278 = vunpack.c.l.b16 %v1808
    %v3279 = vunpack.c.h.b16 %v1808
    %v3280 = vunpack.c.l.b16 %v1809
    %v3281 = vunpack.c.h.b16 %v1809
    %v3282 = vunpack.c.l.b16 %v1810
    %v3283 = vunpack.c.h.b16 %v1810
    %v3284 = vunpack.c.l.b16 %v1811
    %v3285 = vunpack.c.h.b16 %v1811
    %v3286 = vunpack.c.l.b16 %v1812
    %v3287 = vunpack.c.h.b16 %v1812
    %v3288 = vunpack.c.l.b16 %v1813
    %v3289 = vunpack.c.h.b16 %v1813
    %v3290 = vunpack.c.l.b16 %v1814
    %v3291 = vunpack.c.h.b16 %v1814
    %v3292 = vunpack.c.l.b16 %v1815
    %v3293 = vunpack.c.h.b16 %v1815
    %v3294 = vunpack.c.l.b16 %v1816
    %v3295 = vunpack.c.h.b16 %v1816
    %v3296 = vunpack.c.l.b16 %v1817
    %v3297 = vunpack.c.h.b16 %v1817
    %v3298 = vunpack.c.l.b16 %v1818
    %v3299 = vunpack.c.h.b16 %v1818
    %v3300 = vunpack.c.l.b16 %v1819
    %v3301 = vunpack.c.h.b16 %v1819
    %v3302 = vunpack.c.l.b16 %v1820
    %v3303 = vunpack.c.h.b16 %v1820
    %v3304 = vunpack.c.l.b16 %v1821
    %v3305 = vunpack.c.h.b16 %v1821
    %v3306 = vunpack.c.l.b16 %v1822
    %v3307 = vunpack.c.h.b16 %v1822
    %v3308 = vunpack.c.l.b16 %v1823
    %v3309 = vunpack.c.h.b16 %v1823
    %v3310 = vunpack.c.l.b16 %v1824
    %v3311 = vunpack.c.h.b16 %v1824
    %v3312 = vunpack.c.l.b16 %v1825
    %v3313 = vunpack.c.h.b16 %v1825
    %v3314 = vunpack.c.l.b16 %v1826
    %v3315 = vunpack.c.h.b16 %v1826
    %v3316 = vunpack.c.l.b16 %v1827
    %v3317 = vunpack.c.h.b16 %v1827
    %v3318 = vunpack.c.l.b16 %v1828
    %v3319 = vunpack.c.h.b16 %v1828
    %v3320 = vunpack.c.l.b16 %v1829
    %v3321 = vunpack.c.h.b16 %v1829
    %v3322 = vunpack.c.l.b16 %v1830
    %v3323 = vunpack.c.h.b16 %v1830
    %v3324 = vunpack.c.l.b16 %v1831
    %v3325 = vunpack.c.h.b16 %v1831
    %v3326 = vunpack.c.l.b16 %v1832
    %v3327 = vunpack.c.h.b16 %v1832
    %v3328 = vunpack.c.l.b16 %v1833
    %v3329 = vunpack.c.h.b16 %v1833
    %v3330 = vunpack.c.l.b16 %v1834
    %v3331 = vunpack.c.h.b16 %v1834
    %v3332 = vunpack.c.l.b16 %v1835
    %v3333 = vunpack.c.h.b16 %v1835
    %v3334 = vunpack.c.l.b16 %v1836
    %v3335 = vunpack.c.h.b16 %v1836
    %v3336 = vunpack.c.l.b16 %v1837
    %v3337 = vunpack.c.h.b16 %v1837
    %v3338 = vunpack.c.l.b16 %v1838
    %v3339 = vunpack.c.h.b16 %v1838
    %v3340 = vunpack.c.l.b16 %v1839
    %v3341 = vunpack.c.h.b16 %v1839
    %v3342 = vunpack.c.l.b16 %v1840
    %v3343 = vunpack.c.h.b16 %v1840
    %v3344 = vunpack.c.l.b16 %v1841
    %v3345 = vunpack.c.h.b16 %v1841
    %v3346 = vunpack.c.l.b16 %v1842
    %v3347 = vunpack.c.h.b16 %v1842
    %v3348 = vunpack.c.l.b16 %v1843
    %v3349 = vunpack.c.h.b16 %v1843
    %v3350 = vunpack.c.l.b16 %v1844
    %v3351 = vunpack.c.h.b16 %v1844
    %v3352 = vunpack.c.l.b16 %v1845
    %v3353 = vunpack.c.h.b16 %v1845
    %v3354 = vunpack.c.l.b16 %v1846
    %v3355 = vunpack.c.h.b16 %v1846
    %v3356 = vunpack.c.l.b16 %v1847
    %v3357 = vunpack.c.h.b16 %v1847
    %v3358 = vunpack.c.l.b16 %v1848
    %v3359 = vunpack.c.h.b16 %v1848
    %v3360 = vunpack.c.l.b16 %v1849
    %v3361 = vunpack.c.h.b16 %v1849
    %v3362 = vunpack.c.l.b16 %v1850
    %v3363 = vunpack.c.h.b16 %v1850
    %v3364 = vunpack.c.l.b16 %v1851
    %v3365 = vunpack.c.h.b16 %v1851
    %v3366 = vunpack.c.l.b16 %v1852
    %v3367 = vunpack.c.h.b16 %v1852
    %v3368 = vunpack.c.l.b16 %v1853
    %v3369 = vunpack.c.h.b16 %v1853
    %v3370 = vunpack.c.l.b16 %v1854
    %v3371 = vunpack.c.h.b16 %v1854
    %v3372 = vunpack.c.l.b16 %v1855
    %v3373 = vunpack.c.h.b16 %v1855
    %v3374 = vunpack.c.l.b16 %v1856
    %v3375 = vunpack.c.h.b16 %v1856
    %v3376 = vunpack.c.l.b16 %v1857
    %v3377 = vunpack.c.h.b16 %v1857
    %v3378 = vunpack.c.l.b16 %v1858
    %v3379 = vunpack.c.h.b16 %v1858
    %v3380 = vunpack.c.l.b16 %v1859
    %v3381 = vunpack.c.h.b16 %v1859
    %v3382 = vunpack.c.l.b16 %v1860
    %v3383 = vunpack.c.h.b16 %v1860
    %v3384 = vunpack.c.l.b16 %v1861
    %v3385 = vunpack.c.h.b16 %v1861
    %v3386 = vunpack.c.l.b16 %v1862
    %v3387 = vunpack.c.h.b16 %v1862
    %v3388 = vunpack.c.l.b16 %v1863
    %v3389 = vunpack.c.h.b16 %v1863
    %v3390 = vunpack.c.l.b16 %v1864
    %v3391 = vunpack.c.h.b16 %v1864
    %v3392 = vunpack.c.l.b16 %v1865
    %v3393 = vunpack.c.h.b16 %v1865
    %v3394 = vunpack.c.l.b16 %v1866
    %v3395 = vunpack.c.h.b16 %v1866
    %v3396 = vunpack.c.l.b16 %v1867
    %v3397 = vunpack.c.h.b16 %v1867
    %v3398 = vunpack.c.l.b16 %v1868
    %v3399 = vunpack.c.h.b16 %v1868
    %v3400 = vunpack.c.l.b16 %v1869
    %v3401 = vunpack.c.h.b16 %v1869
    %v3402 = vunpack.c.l.b16 %v1870
    %v3403 = vunpack.c.h.b16 %v1870
    %v3404 = vunpack.c.l.b16 %v1871
    %v3405 = vunpack.c.h.b16 %v1871
    %v3406 = vunpack.c.l.b16 %v1872
    %v3407 = vunpack.c.h.b16 %v1872
    %v3408 = vunpack.c.l.b16 %v1873
    %v3409 = vunpack.c.h.b16 %v1873
    %v3410 = vunpack.c.l.b16 %v1874
    %v3411 = vunpack.c.h.b16 %v1874
    %v3412 = vunpack.c.l.b16 %v1875
    %v3413 = vunpack.c.h.b16 %v1875
    %v3414 = vunpack.c.l.b16 %v1876
    %v3415 = vunpack.c.h.b16 %v1876
    %v3416 = vunpack.c.l.b16 %v1877
    %v3417 = vunpack.c.h.b16 %v1877
    %v3418 = vunpack.c.l.b16 %v1878
    %v3419 = vunpack.c.h.b16 %v1878
    %v3420 = vunpack.c.l.b16 %v1879
    %v3421 = vunpack.c.h.b16 %v1879
    %v3422 = vunpack.c.l.b16 %v1880
    %v3423 = vunpack.c.h.b16 %v1880
    %v3424 = vunpack.c.l.b16 %v1881
    %v3425 = vunpack.c.h.b16 %v1881
    %v3426 = vunpack.c.l.b16 %v1882
    %v3427 = vunpack.c.h.b16 %v1882
    %v3428 = vunpack.c.l.b16 %v1883
    %v3429 = vunpack.c.h.b16 %v1883
    %v3430 = vunpack.c.l.b16 %v1884
    %v3431 = vunpack.c.h.b16 %v1884
    %v3432 = vunpack.c.l.b16 %v1885
    %v3433 = vunpack.c.h.b16 %v1885
    %v3434 = vunpack.c.l.b16 %v1886
    %v3435 = vunpack.c.h.b16 %v1886
    %v3436 = vunpack.c.l.b16 %v1887
    %v3437 = vunpack.c.h.b16 %v1887
    %v3438 = vunpack.c.l.b16 %v1888
    %v3439 = vunpack.c.h.b16 %v1888
    %v3440 = vunpack.c.l.b16 %v1889
    %v3441 = vunpack.c.h.b16 %v1889
    %v3442 = vunpack.c.l.b16 %v1890
    %v3443 = vunpack.c.h.b16 %v1890
    %v3444 = vunpack.c.l.b16 %v1891
    %v3445 = vunpack.c.h.b16 %v1891
    %v3446 = vunpack.c.l.b16 %v1892
    %v3447 = vunpack.c.h.b16 %v1892
    %v3448 = vunpack.c.l.b16 %v1893
    %v3449 = vunpack.c.h.b16 %v1893
    %v3450 = vunpack.c.l.b16 %v1894
    %v3451 = vunpack.c.h.b16 %v1894
    %v3452 = vunpack.c.l.b16 %v1895
    %v3453 = vunpack.c.h.b16 %v1895
    %v3454 = vunpack.c.l.b16 %v1896
    %v3455 = vunpack.c.h.b16 %v1896
    %v3456 = vunpack.c.l.b16 %v1897
    %v3457 = vunpack.c.h.b16 %v1897
    %v3458 = vunpack.c.l.b16 %v1898
    %v3459 = vunpack.c.h.b16 %v1898
    %v3460 = vunpack.c.l.b16 %v1899
    %v3461 = vunpack.c.h.b16 %v1899
    %v3462 = vunpack.c.l.b16 %v1900
    %v3463 = vunpack.c.h.b16 %v1900
    %v3464 = vunpack.c.l.b16 %v1901
    %v3465 = vunpack.c.h.b16 %v1901
    %v3466 = vunpack.c.l.b16 %v1902
    %v3467 = vunpack.c.h.b16 %v1902
    %v3468 = vunpack.c.l.b16 %v1903
    %v3469 = vunpack.c.h.b16 %v1903
    %v3470 = vunpack.c.l.b16 %v1904
    %v3471 = vunpack.c.h.b16 %v1904
    %v3472 = vunpack.c.l.b16 %v1905
    %v3473 = vunpack.c.h.b16 %v1905
    %v3474 = vunpack.c.l.b16 %v1906
    %v3475 = vunpack.c.h.b16 %v1906
    %v3476 = vunpack.c.l.b16 %v1907
    %v3477 = vunpack.c.h.b16 %v1907
    %v3478 = vunpack.c.l.b16 %v1908
    %v3479 = vunpack.c.h.b16 %v1908
    %v3480 = vunpack.c.l.b16 %v1909
    %v3481 = vunpack.c.h.b16 %v1909
    %v3482 = vunpack.c.l.b16 %v1910
    %v3483 = vunpack.c.h.b16 %v1910
    %v3484 = vunpack.c.l.b16 %v1911
    %v3485 = vunpack.c.h.b16 %v1911
    %v3486 = vunpack.c.l.b16 %v1912
    %v3487 = vunpack.c.h.b16 %v1912
    %v3488 = vunpack.c.l.b16 %v1913
    %v3489 = vunpack.c.h.b16 %v1913
    %v3490 = vunpack.c.l.b16 %v1914
    %v3491 = vunpack.c.h.b16 %v1914
    %v3492 = vunpack.c.l.b16 %v1915
    %v3493 = vunpack.c.h.b16 %v1915
    %v3494 = vunpack.c.l.b16 %v1916
    %v3495 = vunpack.c.h.b16 %v1916
    %v3496 = vunpack.c.l.b16 %v1917
    %v3497 = vunpack.c.h.b16 %v1917
    %v3498 = vunpack.c.l.b16 %v1918
    %v3499 = vunpack.c.h.b16 %v1918
    %v3500 = vunpack.c.l.b16 %v1919
    %v3501 = vunpack.c.h.b16 %v1919
    %v3502 = vunpack.c.l.b16 %v1920
    %v3503 = vunpack.c.h.b16 %v1920
    %v3504 = vunpack.c.l.b16 %v1921
    %v3505 = vunpack.c.h.b16 %v1921
    %v3506 = vunpack.c.l.b16 %v1922
    %v3507 = vunpack.c.h.b16 %v1922
    %v3508 = vunpack.c.l.b16 %v1923
    %v3509 = vunpack.c.h.b16 %v1923
    %v3510 = vunpack.c.l.b16 %v1924
    %v3511 = vunpack.c.h.b16 %v1924
    %v3512 = vunpack.c.l.b16 %v1925
    %v3513 = vunpack.c.h.b16 %v1925
    %v3514 = vunpack.c.l.b16 %v1926
    %v3515 = vunpack.c.h.b16 %v1926
    %v3516 = vunpack.c.l.b16 %v1927
    %v3517 = vunpack.c.h.b16 %v1927
    %v3518 = vunpack.c.l.b16 %v1928
    %v3519 = vunpack.c.h.b16 %v1928
    %v3520 = vunpack.c.l.b16 %v1929
    %v3521 = vunpack.c.h.b16 %v1929
    %v3522 = vunpack.c.l.b16 %v1930
    %v3523 = vunpack.c.h.b16 %v1930
    %v3524 = vunpack.c.l.b16 %v1931
    %v3525 = vunpack.c.h.b16 %v1931
    %v3526 = vunpack.c.l.b16 %v1932
    %v3527 = vunpack.c.h.b16 %v1932
    %v3528 = vunpack.c.l.b16 %v1933
    %v3529 = vunpack.c.h.b16 %v1933
    %v3530 = vunpack.c.l.b16 %v1934
    %v3531 = vunpack.c.h.b16 %v1934
    %v3532 = vunpack.c.l.b16 %v1935
    %v3533 = vunpack.c.h.b16 %v1935
    %v3534 = vunpack.c.l.b16 %v1936
    %v3535 = vunpack.c.h.b16 %v1936
    %v3536 = vunpack.c.l.b16 %v1937
    %v3537 = vunpack.c.h.b16 %v1937
    %v3538 = vunpack.c.l.b16 %v1938
    %v3539 = vunpack.c.h.b16 %v1938
    %v3540 = vunpack.c.l.b16 %v1939
    %v3541 = vunpack.c.h.b16 %v1939
    %v3542 = vunpack.c.l.b16 %v1940
    %v3543 = vunpack.c.h.b16 %v1940
    %v3544 = vunpack.c.l.b16 %v1941
    %v3545 = vunpack.c.h.b16 %v1941
    %v3546 = vunpack.c.l.b16 %v1942
    %v3547 = vunpack.c.h.b16 %v1942
    %v3548 = vunpack.c.l.b16 %v1943
    %v3549 = vunpack.c.h.b16 %v1943
    %v3550 = vunpack.c.l.b16 %v1944
    %v3551 = vunpack.c.h.b16 %v1944
    %v3552 = vunpack.c.l.b16 %v1945
    %v3553 = vunpack.c.h.b16 %v1945
    %v3554 = vunpack.c.l.b16 %v1946
    %v3555 = vunpack.c.h.b16 %v1946
    %v3556 = vunpack.c.l.b16 %v1947
    %v3557 = vunpack.c.h.b16 %v1947
    %v3558 = vunpack.c.l.b16 %v1948
    %v3559 = vunpack.c.h.b16 %v1948
    %v3560 = vunpack.c.l.b16 %v1949
    %v3561 = vunpack.c.h.b16 %v1949
    %v3562 = vunpack.c.l.b16 %v1950
    %v3563 = vunpack.c.h.b16 %v1950
    %v3564 = vunpack.c.l.b16 %v1951
    %v3565 = vunpack.c.h.b16 %v1951
    %v3566 = vunpack.c.l.b16 %v1952
    %v3567 = vunpack.c.h.b16 %v1952
    %v3568 = vunpack.c.l.b16 %v1953
    %v3569 = vunpack.c.h.b16 %v1953
    %v3570 = vunpack.c.l.b16 %v1954
    %v3571 = vunpack.c.h.b16 %v1954
    %v3572 = vunpack.c.l.b16 %v1955
    %v3573 = vunpack.c.h.b16 %v1955
    %v3574 = vunpack.c.l.b16 %v1956
    %v3575 = vunpack.c.h.b16 %v1956
    %v3576 = vunpack.c.l.b16 %v1957
    %v3577 = vunpack.c.h.b16 %v1957
    %v3578 = vunpack.c.l.b16 %v1958
    %v3579 = vunpack.c.h.b16 %v1958
    %v3580 = vunpack.c.l.b16 %v1959
    %v3581 = vunpack.c.h.b16 %v1959
    %v3582 = vunpack.c.l.b16 %v1960
    %v3583 = vunpack.c.h.b16 %v1960
    %v3584 = vunpack.c.l.b16 %v1961
    %v3585 = vunpack.c.h.b16 %v1961
    %v3586 = vunpack.c.l.b16 %v1962
    %v3587 = vunpack.c.h.b16 %v1962
    %v3588 = vunpack.c.l.b16 %v1963
    %v3589 = vunpack.c.h.b16 %v1963
    %v3590 = vunpack.c.l.b16 %v1964
    %v3591 = vunpack.c.h.b16 %v1964
    %v3592 = vunpack.c.l.b16 %v1965
    %v3593 = vunpack.c.h.b16 %v1965
    %v3594 = vunpack.c.l.b16 %v1966
    %v3595 = vunpack.c.h.b16 %v1966
    %v3596 = vunpack.c.l.b16 %v1967
    %v3597 = vunpack.c.h.b16 %v1967
    %v3598 = vpack.c.b16 %v2590, %v2574
    %v3599 = vpack.c.b16 %v2591, %v2575
    %v3600 = vpack.c.b16 %v2592, %v2576
    %v3601 = vpack.c.b16 %v2593, %v2577
    %v3602 = vpack.c.b16 %v2594, %v2578
    %v3603 = vpack.c.b16 %v2595, %v2579
    %v3604 = vpack.c.b16 %v2596, %v2580
    %v3605 = vpack.c.b16 %v2597, %v2581
    %v3606 = vpack.c.b16 %v2598, %v2582
    %v3607 = vpack.c.b16 %v2599, %v2583
    %v3608 = vpack.c.b16 %v2600, %v2584
    %v3609 = vpack.c.b16 %v2601, %v2585
    %v3610 = vpack.c.b16 %v2602, %v2586
    %v3611 = vpack.c.b16 %v2603, %v2587
    %v3612 = vpack.c.b16 %v2604, %v2588
    %v3613 = vpack.c.b16 %v2605, %v2589
    %v3614 = vpack.c.b16 %v2622, %v2606
    %v3615 = vpack.c.b16 %v2623, %v2607
    %v3616 = vpack.c.b16 %v2624, %v2608
    %v3617 = vpack.c.b16 %v2625, %v2609
    %v3618 = vpack.c.b16 %v2626, %v2610
    %v3619 = vpack.c.b16 %v2627, %v2611
    %v3620 = vpack.c.b16 %v2628, %v2612
    %v3621 = vpack.c.b16 %v2629, %v2613
    %v3622 = vpack.c.b16 %v2630, %v2614
    %v3623 = vpack.c.b16 %v2631, %v2615
    %v3624 = vpack.c.b16 %v2632, %v2616
    %v3625 = vpack.c.b16 %v2633, %v2617
    %v3626 = vpack.c.b16 %v2634, %v2618
    %v3627 = vpack.c.b16 %v2635, %v2619
    %v3628 = vpack.c.b16 %v2636, %v2620
    %v3629 = vpack.c.b16 %v2637, %v2621
    %v3630 = vpack.c.b16 %v2654, %v2638
    %v3631 = vpack.c.b16 %v2655, %v2639
    %v3632 = vpack.c.b16 %v2656, %v2640
    %v3633 = vpack.c.b16 %v2657, %v2641
    %v3634 = vpack.c.b16 %v2658, %v2642
    %v3635 = vpack.c.b16 %v2659, %v2643
    %v3636 = vpack.c.b16 %v2660, %v2644
    %v3637 = vpack.c.b16 %v2661, %v2645
    %v3638 = vpack.c.b16 %v2662, %v2646
    %v3639 = vpack.c.b16 %v2663, %v2647
    %v3640 = vpack.c.b16 %v2664, %v2648
    %v3641 = vpack.c.b16 %v2665, %v2649
    %v3642 = vpack.c.b16 %v2666, %v2650
    %v3643 = vpack.c.b16 %v2667, %v2651
    %v3644 = vpack.c.b16 %v2668, %v2652
    %v3645 = vpack.c.b16 %v2669, %v2653
    %v3646 = vpack.c.b16 %v2686, %v2670
    %v3647 = vpack.c.b16 %v2687, %v2671
    %v3648 = vpack.c.b16 %v2688, %v2672
    %v3649 = vpack.c.b16 %v2689, %v2673
    %v3650 = vpack.c.b16 %v2690, %v2674
    %v3651 = vpack.c.b16 %v2691, %v2675
    %v3652 = vpack.c.b16 %v2692, %v2676
    %v3653 = vpack.c.b16 %v2693, %v2677
    %v3654 = vpack.c.b16 %v2694, %v2678
    %v3655 = vpack.c.b16 %v2695, %v2679
    %v3656 = vpack.c.b16 %v2696, %v2680
    %v3657 = vpack.c.b16 %v2697, %v2681
    %v3658 = vpack.c.b16 %v2698, %v2682
    %v3659 = vpack.c.b16 %v2699, %v2683
    %v3660 = vpack.c.b16 %v2700, %v2684
    %v3661 = vpack.c.b16 %v2701, %v2685
    %v3662 = vpack.c.b16 %v2718, %v2702
    %v3663 = vpack.c.b16 %v2719, %v2703
    %v3664 = vpack.c.b16 %v2720, %v2704
    %v3665 = vpack.c.b16 %v2721, %v2705
    %v3666 = vpack.c.b16 %v2722, %v2706
    %v3667 = vpack.c.b16 %v2723, %v2707
    %v3668 = vpack.c.b16 %v2724, %v2708
    %v3669 = vpack.c.b16 %v2725, %v2709
    %v3670 = vpack.c.b16 %v2726, %v2710
    %v3671 = vpack.c.b16 %v2727, %v2711
    %v3672 = vpack.c.b16 %v2728, %v2712
    %v3673 = vpack.c.b16 %v2729, %v2713
    %v3674 = vpack.c.b16 %v2730, %v2714
    %v3675 = vpack.c.b16 %v2731, %v2715
    %v3676 = vpack.c.b16 %v2732, %v2716
    %v3677 = vpack.c.b16 %v2733, %v2717
    %v3678 = vpack.c.b16 %v2750, %v2734
    %v3679 = vpack.c.b16 %v2751, %v2735
    %v3680 = vpack.c.b16 %v2752, %v2736
    %v3681 = vpack.c.b16 %v2753, %v2737
    %v3682 = vpack.c.b16 %v2754, %v2738
    %v3683 = vpack.c.b16 %v2755, %v2739
    %v3684 = vpack.c.b16 %v2756, %v2740
    %v3685 = vpack.c.b16 %v2757, %v2741
    %v3686 = vpack.c.b16 %v2758, %v2742
    %v3687 = vpack.c.b16 %v2759, %v2743
    %v3688 = vpack.c.b16 %v2760, %v2744
    %v3689 = vpack.c.b16 %v2761, %v2745
    %v3690 = vpack.c.b16 %v2762, %v2746
    %v3691 = vpack.c.b16 %v2763, %v2747
    %v3692 = vpack.c.b16 %v2764, %v2748
    %v3693 = vpack.c.b16 %v2765, %v2749
    %v3694 = vpack.c.b16 %v2782, %v2766
    %v3695 = vpack.c.b16 %v2783, %v2767
    %v3696 = vpack.c.b16 %v2784, %v2768
    %v3697 = vpack.c.b16 %v2785, %v2769
    %v3698 = vpack.c.b16 %v2786, %v2770
    %v3699 = vpack.c.b16 %v2787, %v2771
    %v3700 = vpack.c.b16 %v2788, %v2772
    %v3701 = vpack.c.b16 %v2789, %v2773
    %v3702 = vpack.c.b16 %v2790, %v2774
    %v3703 = vpack.c.b16 %v2791, %v2775
    %v3704 = vpack.c.b16 %v2792, %v2776
    %v3705 = vpack.c.b16 %v2793, %v2777
    %v3706 = vpack.c.b16 %v2794, %v2778
    %v3707 = vpack.c.b16 %v2795, %v2779
    %v3708 = vpack.c.b16 %v2796, %v2780
    %v3709 = vpack.c.b16 %v2797, %v2781
    %v3710 = vpack.c.b16 %v2814, %v2798
    %v3711 = vpack.c.b16 %v2815, %v2799
    %v3712 = vpack.c.b16 %v2816, %v2800
    %v3713 = vpack.c.b16 %v2817, %v2801
    %v3714 = vpack.c.b16 %v2818, %v2802
    %v3715 = vpack.c.b16 %v2819, %v2803
    %v3716 = vpack.c.b16 %v2820, %v2804
    %v3717 = vpack.c.b16 %v2821, %v2805
    %v3718 = vpack.c.b16 %v2822, %v2806
    %v3719 = vpack.c.b16 %v2823, %v2807
    %v3720 = vpack.c.b16 %v2824, %v2808
    %v3721 = vpack.c.b16 %v2825, %v2809
    %v3722 = vpack.c.b16 %v2826, %v2810
    %v3723 = vpack.c.b16 %v2827, %v2811
    %v3724 = vpack.c.b16 %v2828, %v2812
    %v3725 = vpack.c.b16 %v2829, %v2813
    %v3726 = vpack.c.b16 %v2846, %v2830
    %v3727 = vpack.c.b16 %v2847, %v2831
    %v3728 = vpack.c.b16 %v2848, %v2832
    %v3729 = vpack.c.b16 %v2849, %v2833
    %v3730 = vpack.c.b16 %v2850, %v2834
    %v3731 = vpack.c.b16 %v2851, %v2835
    %v3732 = vpack.c.b16 %v2852, %v2836
    %v3733 = vpack.c.b16 %v2853, %v2837
    %v3734 = vpack.c.b16 %v2854, %v2838
    %v3735 = vpack.c.b16 %v2855, %v2839
    %v3736 = vpack.c.b16 %v2856, %v2840
    %v3737 = vpack.c.b16 %v2857, %v2841
    %v3738 = vpack.c.b16 %v2858, %v2842
    %v3739 = vpack.c.b16 %v2859, %v2843
    %v3740 = vpack.c.b16 %v2860, %v2844
    %v3741 = vpack.c.b16 %v2861, %v2845
    %v3742 = vpack.c.b16 %v2878, %v2862
    %v3743 = vpack.c.b16 %v2879, %v2863
    %v3744 = vpack.c.b16 %v2880, %v2864
    %v3745 = vpack.c.b16 %v2881, %v2865
    %v3746 = vpack.c.b16 %v2882, %v2866
    %v3747 = vpack.c.b16 %v2883, %v2867
    %v3748 = vpack.c.b16 %v2884, %v2868
    %v3749 = vpack.c.b16 %v2885, %v2869
    %v3750 = vpack.c.b16 %v2886, %v2870
    %v3751 = vpack.c.b16 %v2887, %v2871
    %v3752 = vpack.c.b16 %v2888, %v2872
    %v3753 = vpack.c.b16 %v2889, %v2873
    %v3754 = vpack.c.b16 %v2890, %v2874
    %v3755 = vpack.c.b16 %v2891, %v2875
    %v3756 = vpack.c.b16 %v2892, %v2876
    %v3757 = vpack.c.b16 %v2893, %v2877
    %v3758 = vpack.c.b16 %v2910, %v2894
    %v3759 = vpack.c.b16 %v2911, %v2895
    %v3760 = vpack.c.b16 %v2912, %v2896
    %v3761 = vpack.c.b16 %v2913, %v2897
    %v3762 = vpack.c.b16 %v2914, %v2898
    %v3763 = vpack.c.b16 %v2915, %v2899
    %v3764 = vpack.c.b16 %v2916, %v2900
    %v3765 = vpack.c.b16 %v2917, %v2901
    %v3766 = vpack.c.b16 %v2918, %v2902
    %v3767 = vpack.c.b16 %v2919, %v2903
    %v3768 = vpack.c.b16 %v2920, %v2904
    %v3769 = vpack.c.b16 %v2921, %v2905
    %v3770 = vpack.c.b16 %v2922, %v2906
    %v3771 = vpack.c.b16 %v2923, %v2907
    %v3772 = vpack.c.b16 %v2924, %v2908
    %v3773 = vpack.c.b16 %v2925, %v2909
    %v3774 = vpack.c.b16 %v2942, %v2926
    %v3775 = vpack.c.b16 %v2943, %v2927
    %v3776 = vpack.c.b16 %v2944, %v2928
    %v3777 = vpack.c.b16 %v2945, %v2929
    %v3778 = vpack.c.b16 %v2946, %v2930
    %v3779 = vpack.c.b16 %v2947, %v2931
    %v3780 = vpack.c.b16 %v2948, %v2932
    %v3781 = vpack.c.b16 %v2949, %v2933
    %v3782 = vpack.c.b16 %v2950, %v2934
    %v3783 = vpack.c.b16 %v2951, %v2935
    %v3784 = vpack.c.b16 %v2952, %v2936
    %v3785 = vpack.c.b16 %v2953, %v2937
    %v3786 = vpack.c.b16 %v2954, %v2938
    %v3787 = vpack.c.b16 %v2955, %v2939
    %v3788 = vpack.c.b16 %v2956, %v2940
    %v3789 = vpack.c.b16 %v2957, %v2941
    %v3790 = vpack.c.b16 %v2974, %v2958
    %v3791 = vpack.c.b16 %v2975, %v2959
    %v3792 = vpack.c.b16 %v2976, %v2960
    %v3793 = vpack.c.b16 %v2977, %v2961
    %v3794 = vpack.c.b16 %v2978, %v2962
    %v3795 = vpack.c.b16 %v2979, %v2963
    %v3796 = vpack.c.b16 %v2980, %v2964
    %v3797 = vpack.c.b16 %v2981, %v2965
    %v3798 = vpack.c.b16 %v2982, %v2966
    %v3799 = vpack.c.b16 %v2983, %v2967
    %v3800 = vpack.c.b16 %v2984, %v2968
    %v3801 = vpack.c.b16 %v2985, %v2969
    %v3802 = vpack.c.b16 %v2986, %v2970
    %v3803 = vpack.c.b16 %v2987, %v2971
    %v3804 = vpack.c.b16 %v2988, %v2972
    %v3805 = vpack.c.b16 %v2989, %v2973
    %v3806 = vpack.c.b16 %v3006, %v2990
    %v3807 = vpack.c.b16 %v3007, %v2991
    %v3808 = vpack.c.b16 %v3008, %v2992
    %v3809 = vpack.c.b16 %v3009, %v2993
    %v3810 = vpack.c.b16 %v3010, %v2994
    %v3811 = vpack.c.b16 %v3011, %v2995
    %v3812 = vpack.c.b16 %v3012, %v2996
    %v3813 = vpack.c.b16 %v3013, %v2997
    %v3814 = vpack.c.b16 %v3014, %v2998
    %v3815 = vpack.c.b16 %v3015, %v2999
    %v3816 = vpack.c.b16 %v3016, %v3000
    %v3817 = vpack.c.b16 %v3017, %v3001
    %v3818 = vpack.c.b16 %v3018, %v3002
    %v3819 = vpack.c.b16 %v3019, %v3003
    %v3820 = vpack.c.b16 %v3020, %v3004
    %v3821 = vpack.c.b16 %v3021, %v3005
    %v3822 = vpack.c.b16 %v3038, %v3022
    %v3823 = vpack.c.b16 %v3039, %v3023
    %v3824 = vpack.c.b16 %v3040, %v3024
    %v3825 = vpack.c.b16 %v3041, %v3025
    %v3826 = vpack.c.b16 %v3042, %v3026
    %v3827 = vpack.c.b16 %v3043, %v3027
    %v3828 = vpack.c.b16 %v3044, %v3028
    %v3829 = vpack.c.b16 %v3045, %v3029
    %v3830 = vpack.c.b16 %v3046, %v3030
    %v3831 = vpack.c.b16 %v3047, %v3031
    %v3832 = vpack.c.b16 %v3048, %v3032
    %v3833 = vpack.c.b16 %v3049, %v3033
    %v3834 = vpack.c.b16 %v3050, %v3034
    %v3835 = vpack.c.b16 %v3051, %v3035
    %v3836 = vpack.c.b16 %v3052, %v3036
    %v3837 = vpack.c.b16 %v3053, %v3037
    %v3838 = vpack.c.b16 %v3070, %v3054
    %v3839 = vpack.c.b16 %v3071, %v3055
    %v3840 = vpack.c.b16 %v3072, %v3056
    %v3841 = vpack.c.b16 %v3073, %v3057
    %v3842 = vpack.c.b16 %v3074, %v3058
    %v3843 = vpack.c.b16 %v3075, %v3059
    %v3844 = vpack.c.b16 %v3076, %v3060
    %v3845 = vpack.c.b16 %v3077, %v3061
    %v3846 = vpack.c.b16 %v3078, %v3062
    %v3847 = vpack.c.b16 %v3079, %v3063
    %v3848 = vpack.c.b16 %v3080, %v3064
    %v3849 = vpack.c.b16 %v3081, %v3065
    %v3850 = vpack.c.b16 %v3082, %v3066
    %v3851 = vpack.c.b16 %v3083, %v3067
    %v3852 = vpack.c.b16 %v3084, %v3068
    %v3853 = vpack.c.b16 %v3085, %v3069
    %v3854 = vpack.c.b16 %v3102, %v3086
    %v3855 = vpack.c.b16 %v3103, %v3087
    %v3856 = vpack.c.b16 %v3104, %v3088
    %v3857 = vpack.c.b16 %v3105, %v3089
    %v3858 = vpack.c.b16 %v3106, %v3090
    %v3859 = vpack.c.b16 %v3107, %v3091
    %v3860 = vpack.c.b16 %v3108, %v3092
    %v3861 = vpack.c.b16 %v3109, %v3093
    %v3862 = vpack.c.b16 %v3110, %v3094
    %v3863 = vpack.c.b16 %v3111, %v3095
    %v3864 = vpack.c.b16 %v3112, %v3096
    %v3865 = vpack.c.b16 %v3113, %v3097
    %v3866 = vpack.c.b16 %v3114, %v3098
    %v3867 = vpack.c.b16 %v3115, %v3099
    %v3868 = vpack.c.b16 %v3116, %v3100
    %v3869 = vpack.c.b16 %v3117, %v3101
    %v3870 = vpack.c.b16 %v3134, %v3118
    %v3871 = vpack.c.b16 %v3135, %v3119
    %v3872 = vpack.c.b16 %v3136, %v3120
    %v3873 = vpack.c.b16 %v3137, %v3121
    %v3874 = vpack.c.b16 %v3138, %v3122
    %v3875 = vpack.c.b16 %v3139, %v3123
    %v3876 = vpack.c.b16 %v3140, %v3124
    %v3877 = vpack.c.b16 %v3141, %v3125
    %v3878 = vpack.c.b16 %v3142, %v3126
    %v3879 = vpack.c.b16 %v3143, %v3127
    %v3880 = vpack.c.b16 %v3144, %v3128
    %v3881 = vpack.c.b16 %v3145, %v3129
    %v3882 = vpack.c.b16 %v3146, %v3130
    %v3883 = vpack.c.b16 %v3147, %v3131
    %v3884 = vpack.c.b16 %v3148, %v3132
    %v3885 = vpack.c.b16 %v3149, %v3133
    %v3886 = vpack.c.b16 %v3166, %v3150
    %v3887 = vpack.c.b16 %v3167, %v3151
    %v3888 = vpack.c.b16 %v3168, %v3152
    %v3889 = vpack.c.b16 %v3169, %v3153
    %v3890 = vpack.c.b16 %v3170, %v3154
    %v3891 = vpack.c.b16 %v3171, %v3155
    %v3892 = vpack.c.b16 %v3172, %v3156
    %v3893 = vpack.c.b16 %v3173, %v3157
    %v3894 = vpack.c.b16 %v3174, %v3158
    %v3895 = vpack.c.b16 %v3175, %v3159
    %v3896 = vpack.c.b16 %v3176, %v3160
    %v3897 = vpack.c.b16 %v3177, %v3161
    %v3898 = vpack.c.b16 %v3178, %v3162
    %v3899 = vpack.c.b16 %v3179, %v3163
    %v3900 = vpack.c.b16 %v3180, %v3164
    %v3901 = vpack.c.b16 %v3181, %v3165
    %v3902 = vpack.c.b16 %v3198, %v3182
    %v3903 = vpack.c.b16 %v3199, %v3183
    %v3904 = vpack.c.b16 %v3200, %v3184
    %v3905 = vpack.c.b16 %v3201, %v3185
    %v3906 = vpack.c.b16 %v3202, %v3186
    %v3907 = vpack.c.b16 %v3203, %v3187
    %v3908 = vpack.c.b16 %v3204, %v3188
    %v3909 = vpack.c.b16 %v3205, %v3189
    %v3910 = vpack.c.b16 %v3206, %v3190
    %v3911 = vpack.c.b16 %v3207, %v3191
    %v3912 = vpack.c.b16 %v3208, %v3192
    %v3913 = vpack.c.b16 %v3209, %v3193
    %v3914 = vpack.c.b16 %v3210, %v3194
    %v3915 = vpack.c.b16 %v3211, %v3195
    %v3916 = vpack.c.b16 %v3212, %v3196
    %v3917 = vpack.c.b16 %v3213, %v3197
    %v3918 = vpack.c.b16 %v3230, %v3214
    %v3919 = vpack.c.b16 %v3231, %v3215
    %v3920 = vpack.c.b16 %v3232, %v3216
    %v3921 = vpack.c.b16 %v3233, %v3217
    %v3922 = vpack.c.b16 %v3234, %v3218
    %v3923 = vpack.c.b16 %v3235, %v3219
    %v3924 = vpack.c.b16 %v3236, %v3220
    %v3925 = vpack.c.b16 %v3237, %v3221
    %v3926 = vpack.c.b16 %v3238, %v3222
    %v3927 = vpack.c.b16 %v3239, %v3223
    %v3928 = vpack.c.b16 %v3240, %v3224
    %v3929 = vpack.c.b16 %v3241, %v3225
    %v3930 = vpack.c.b16 %v3242, %v3226
    %v3931 = vpack.c.b16 %v3243, %v3227
    %v3932 = vpack.c.b16 %v3244, %v3228
    %v3933 = vpack.c.b16 %v3245, %v3229
    %v3934 = vpack.c.b16 %v3262, %v3246
    %v3935 = vpack.c.b16 %v3263, %v3247
    %v3936 = vpack.c.b16 %v3264, %v3248
    %v3937 = vpack.c.b16 %v3265, %v3249
    %v3938 = vpack.c.b16 %v3266, %v3250
    %v3939 = vpack.c.b16 %v3267, %v3251
    %v3940 = vpack.c.b16 %v3268, %v3252
    %v3941 = vpack.c.b16 %v3269, %v3253
    %v3942 = vpack.c.b16 %v3270, %v3254
    %v3943 = vpack.c.b16 %v3271, %v3255
    %v3944 = vpack.c.b16 %v3272, %v3256
    %v3945 = vpack.c.b16 %v3273, %v3257
    %v3946 = vpack.c.b16 %v3274, %v3258
    %v3947 = vpack.c.b16 %v3275, %v3259
    %v3948 = vpack.c.b16 %v3276, %v3260
    %v3949 = vpack.c.b16 %v3277, %v3261
    %v3950 = vpack.c.b16 %v3294, %v3278
    %v3951 = vpack.c.b16 %v3295, %v3279
    %v3952 = vpack.c.b16 %v3296, %v3280
    %v3953 = vpack.c.b16 %v3297, %v3281
    %v3954 = vpack.c.b16 %v3298, %v3282
    %v3955 = vpack.c.b16 %v3299, %v3283
    %v3956 = vpack.c.b16 %v3300, %v3284
    %v3957 = vpack.c.b16 %v3301, %v3285
    %v3958 = vpack.c.b16 %v3302, %v3286
    %v3959 = vpack.c.b16 %v3303, %v3287
    %v3960 = vpack.c.b16 %v3304, %v3288
    %v3961 = vpack.c.b16 %v3305, %v3289
    %v3962 = vpack.c.b16 %v3306, %v3290
    %v3963 = vpack.c.b16 %v3307, %v3291
    %v3964 = vpack.c.b16 %v3308, %v3292
    %v3965 = vpack.c.b16 %v3309, %v3293
    %v3966 = vpack.c.b16 %v3326, %v3310
    %v3967 = vpack.c.b16 %v3327, %v3311
    %v3968 = vpack.c.b16 %v3328, %v3312
    %v3969 = vpack.c.b16 %v3329, %v3313
    %v3970 = vpack.c.b16 %v3330, %v3314
    %v3971 = vpack.c.b16 %v3331, %v3315
    %v3972 = vpack.c.b16 %v3332, %v3316
    %v3973 = vpack.c.b16 %v3333, %v3317
    %v3974 = vpack.c.b16 %v3334, %v3318
    %v3975 = vpack.c.b16 %v3335, %v3319
    %v3976 = vpack.c.b16 %v3336, %v3320
    %v3977 = vpack.c.b16 %v3337, %v3321
    %v3978 = vpack.c.b16 %v3338, %v3322
    %v3979 = vpack.c.b16 %v3339, %v3323
    %v3980 = vpack.c.b16 %v3340, %v3324
    %v3981 = vpack.c.b16 %v3341, %v3325
    %v3982 = vpack.c.b16 %v3358, %v3342
    %v3983 = vpack.c.b16 %v3359, %v3343
    %v3984 = vpack.c.b16 %v3360, %v3344
    %v3985 = vpack.c.b16 %v3361, %v3345
    %v3986 = vpack.c.b16 %v3362, %v3346
    %v3987 = vpack.c.b16 %v3363, %v3347
    %v3988 = vpack.c.b16 %v3364, %v3348
    %v3989 = vpack.c.b16 %v3365, %v3349
    %v3990 = vpack.c.b16 %v3366, %v3350
    %v3991 = vpack.c.b16 %v3367, %v3351
    %v3992 = vpack.c.b16 %v3368, %v3352
    %v3993 = vpack.c.b16 %v3369, %v3353
    %v3994 = vpack.c.b16 %v3370, %v3354
    %v3995 = vpack.c.b16 %v3371, %v3355
    %v3996 = vpack.c.b16 %v3372, %v3356
    %v3997 = vpack.c.b16 %v3373, %v3357
    %v3998 = vpack.c.b16 %v3390, %v3374
    %v3999 = vpack.c.b16 %v3391, %v3375
    %v4000 = vpack.c.b16 %v3392, %v3376
    %v4001 = vpack.c.b16 %v3393, %v3377
    %v4002 = vpack.c.b16 %v3394, %v3378
    %v4003 = vpack.c.b16 %v3395, %v3379
    %v4004 = vpack.c.b16 %v3396, %v3380
    %v4005 = vpack.c.b16 %v3397, %v3381
    %v4006 = vpack.c.b16 %v3398, %v3382
    %v4007 = vpack.c.b16 %v3399, %v3383
    %v4008 = vpack.c.b16 %v3400, %v3384
    %v4009 = vpack.c.b16 %v3401, %v3385
    %v4010 = vpack.c.b16 %v3402, %v3386
    %v4011 = vpack.c.b16 %v3403, %v3387
    %v4012 = vpack.c.b16 %v3404, %v3388
    %v4013 = vpack.c.b16 %v3405, %v3389
    %v4014 = vpack.c.b16 %v3422, %v3406
    %v4015 = vpack.c.b16 %v3423, %v3407
    %v4016 = vpack.c.b16 %v3424, %v3408
    %v4017 = vpack.c.b16 %v3425, %v3409
    %v4018 = vpack.c.b16 %v3426, %v3410
    %v4019 = vpack.c.b16 %v3427, %v3411
    %v4020 = vpack.c.b16 %v3428, %v3412
    %v4021 = vpack.c.b16 %v3429, %v3413
    %v4022 = vpack.c.b16 %v3430, %v3414
    %v4023 = vpack.c.b16 %v3431, %v3415
    %v4024 = vpack.c.b16 %v3432, %v3416
    %v4025 = vpack.c.b16 %v3433, %v3417
    %v4026 = vpack.c.b16 %v3434, %v3418
    %v4027 = vpack.c.b16 %v3435, %v3419
    %v4028 = vpack.c.b16 %v3436, %v3420
    %v4029 = vpack.c.b16 %v3437, %v3421
    %v4030 = vpack.c.b16 %v3454, %v3438
    %v4031 = vpack.c.b16 %v3455, %v3439
    %v4032 = vpack.c.b16 %v3456, %v3440
    %v4033 = vpack.c.b16 %v3457, %v3441
    %v4034 = vpack.c.b16 %v3458, %v3442
    %v4035 = vpack.c.b16 %v3459, %v3443
    %v4036 = vpack.c.b16 %v3460, %v3444
    %v4037 = vpack.c.b16 %v3461, %v3445
    %v4038 = vpack.c.b16 %v3462, %v3446
    %v4039 = vpack.c.b16 %v3463, %v3447
    %v4040 = vpack.c.b16 %v3464, %v3448
    %v4041 = vpack.c.b16 %v3465, %v3449
    %v4042 = vpack.c.b16 %v3466, %v3450
    %v4043 = vpack.c.b16 %v3467, %v3451
    %v4044 = vpack.c.b16 %v3468, %v3452
    %v4045 = vpack.c.b16 %v3469, %v3453
    %v4046 = vpack.c.b16 %v3486, %v3470
    %v4047 = vpack.c.b16 %v3487, %v3471
    %v4048 = vpack.c.b16 %v3488, %v3472
    %v4049 = vpack.c.b16 %v3489, %v3473
    %v4050 = vpack.c.b16 %v3490, %v3474
    %v4051 = vpack.c.b16 %v3491, %v3475
    %v4052 = vpack.c.b16 %v3492, %v3476
    %v4053 = vpack.c.b16 %v3493, %v3477
    %v4054 = vpack.c.b16 %v3494, %v3478
    %v4055 = vpack.c.b16 %v3495, %v3479
    %v4056 = vpack.c.b16 %v3496, %v3480
    %v4057 = vpack.c.b16 %v3497, %v3481
    %v4058 = vpack.c.b16 %v3498, %v3482
    %v4059 = vpack.c.b16 %v3499, %v3483
    %v4060 = vpack.c.b16 %v3500, %v3484
    %v4061 = vpack.c.b16 %v3501, %v3485
    %v4062 = vpack.c.b16 %v3518, %v3502
    %v4063 = vpack.c.b16 %v3519, %v3503
    %v4064 = vpack.c.b16 %v3520, %v3504
    %v4065 = vpack.c.b16 %v3521, %v3505
    %v4066 = vpack.c.b16 %v3522, %v3506
    %v4067 = vpack.c.b16 %v3523, %v3507
    %v4068 = vpack.c.b16 %v3524, %v3508
    %v4069 = vpack.c.b16 %v3525, %v3509
    %v4070 = vpack.c.b16 %v3526, %v3510
    %v4071 = vpack.c.b16 %v3527, %v3511
    %v4072 = vpack.c.b16 %v3528, %v3512
    %v4073 = vpack.c.b16 %v3529, %v3513
    %v4074 = vpack.c.b16 %v3530, %v3514
    %v4075 = vpack.c.b16 %v3531, %v3515
    %v4076 = vpack.c.b16 %v3532, %v3516
    %v4077 = vpack.c.b16 %v3533, %v3517
    %v4078 = vpack.c.b16 %v3550, %v3534
    %v4079 = vpack.c.b16 %v3551, %v3535
    %v4080 = vpack.c.b16 %v3552, %v3536
    %v4081 = vpack.c.b16 %v3553, %v3537
    %v4082 = vpack.c.b16 %v3554, %v3538
    %v4083 = vpack.c.b16 %v3555, %v3539
    %v4084 = vpack.c.b16 %v3556, %v3540
    %v4085 = vpack.c.b16 %v3557, %v3541
    %v4086 = vpack.c.b16 %v3558, %v3542
    %v4087 = vpack.c.b16 %v3559, %v3543
    %v4088 = vpack.c.b16 %v3560, %v3544
    %v4089 = vpack.c.b16 %v3561, %v3545
    %v4090 = vpack.c.b16 %v3562, %v3546
    %v4091 = vpack.c.b16 %v3563, %v3547
    %v4092 = vpack.c.b16 %v3564, %v3548
    %v4093 = vpack.c.b16 %v3565, %v3549
    %v4094 = vpack.c.b16 %v3582, %v3566
    %v4095 = vpack.c.b16 %v3583, %v3567
    %v4096 = vpack.c.b16 %v3584, %v3568
    %v4097 = vpack.c.b16 %v3585, %v3569
    %v4098 = vpack.c.b16 %v3586, %v3570
    %v4099 = vpack.c.b16 %v3587, %v3571
    %v4100 = vpack.c.b16 %v3588, %v3572
    %v4101 = vpack.c.b16 %v3589, %v3573
    %v4102 = vpack.c.b16 %v3590, %v3574
    %v4103 = vpack.c.b16 %v3591, %v3575
    %v4104 = vpack.c.b16 %v3592, %v3576
    %v4105 = vpack.c.b16 %v3593, %v3577
    %v4106 = vpack.c.b16 %v3594, %v3578
    %v4107 = vpack.c.b16 %v3595, %v3579
    %v4108 = vpack.c.b16 %v3596, %v3580
    %v4109 = vpack.c.b16 %v3597, %v3581
    %4622 = vmatprep.subr.bf16.mxu0 %v3711
    %4623 = vmatpush1.bf16.msra.mxu0 %v3710
    %4624 = vmatprep.subr.bf16.mxu0 %v3695
    %4625 = vmatpush1.bf16.msra.mxu0 %v3694
    %4626 = vmatprep.subr.bf16.mxu0 %v3679
    %4627 = vmatpush1.bf16.msra.mxu0 %v3678
    %4628 = vmatprep.subr.bf16.mxu0 %v3663
    %4629 = vmatpush1.bf16.msra.mxu0 %v3662
    %4630 = vmatprep.subr.bf16.mxu0 %v3647
    %4631 = vmatpush1.bf16.msra.mxu0 %v3646
    %4632 = vmatprep.subr.bf16.mxu0 %v3631
    %4633 = vmatpush1.bf16.msra.mxu0 %v3630
    %4634 = vmatprep.subr.bf16.mxu0 %v3615
    %4635 = vmatpush1.bf16.msra.mxu0 %v3614
    %4636 = vmatprep.subr.bf16.mxu0 %v3599
    %4637 = vmatpush1.bf16.msra.mxu0 %v3598
    %4638 = vmatprep.subr.bf16.mxu0 %v3839
    %4639 = vmatpush2.bf16.msra.mxu0 %v3838
    %4640 = vmatprep.subr.bf16.mxu0 %v3823
    %4641 = vmatpush2.bf16.msra.mxu0 %v3822
    %4642 = vmatprep.subr.bf16.mxu0 %v3807
    %4643 = vmatpush2.bf16.msra.mxu0 %v3806
    %4644 = vmatprep.subr.bf16.mxu0 %v3791
    %4645 = vmatpush2.bf16.msra.mxu0 %v3790
    %4646 = vmatprep.subr.bf16.mxu0 %v3775
    %4647 = vmatpush2.bf16.msra.mxu0 %v3774
    %4648 = vmatprep.subr.bf16.mxu0 %v3759
    %4649 = vmatpush2.bf16.msra.mxu0 %v3758
    %4650 = vmatprep.subr.bf16.mxu0 %v3743
    %4651 = vmatpush2.bf16.msra.mxu0 %v3742
    %4652 = vmatprep.subr.bf16.mxu0 %v3727
    %4653 = vmatpush2.bf16.msra.mxu0 %v3726
    %4654 = vmatprep.mubr.bf16.mxu0 %v1969
    %4655 = vmatmul.mubr.bf16.gmra.mxu0 %v1968
    %v4656 = vpop.f32.mrf.mxu0
    %v4657 = vadd.f32 %v1985, %v4656
    %v4658 = vpop.f32.mrf.mxu0
    %v4659 = vadd.f32 %v1989, %v4658
    %v4660 = vpop.f32.mrf.mxu0
    %v4661 = vpop.f32.mrf.mxu0
    %4662 = vdwg.mxu0
    %4663 = vmatprep.subr.bf16.mxu0 %v3967
    %4664 = vmatpush1.bf16.msra.mxu0 %v3966
    %4665 = vmatprep.subr.bf16.mxu0 %v3951
    %4666 = vmatpush1.bf16.msra.mxu0 %v3950
    %4667 = vmatprep.subr.bf16.mxu0 %v3935
    %4668 = vmatpush1.bf16.msra.mxu0 %v3934
    %4669 = vmatprep.subr.bf16.mxu0 %v3919
    %4670 = vmatpush1.bf16.msra.mxu0 %v3918
    %4671 = vmatprep.subr.bf16.mxu0 %v3903
    %4672 = vmatpush1.bf16.msra.mxu0 %v3902
    %4673 = vmatprep.subr.bf16.mxu0 %v3887
    %4674 = vmatpush1.bf16.msra.mxu0 %v3886
    %4675 = vmatprep.subr.bf16.mxu0 %v3871
    %4676 = vmatpush1.bf16.msra.mxu0 %v3870
    %4677 = vmatprep.subr.bf16.mxu0 %v3855
    %4678 = vmatpush1.bf16.msra.mxu0 %v3854
    %4679 = vmatprep.subr.bf16.mxu0 %v4095
    %4680 = vmatpush2.bf16.msra.mxu0 %v4094
    %4681 = vmatprep.subr.bf16.mxu0 %v4079
    %4682 = vmatpush2.bf16.msra.mxu0 %v4078
    %4683 = vmatprep.subr.bf16.mxu0 %v4063
    %4684 = vmatpush2.bf16.msra.mxu0 %v4062
    %4685 = vmatprep.subr.bf16.mxu0 %v4047
    %4686 = vmatpush2.bf16.msra.mxu0 %v4046
    %4687 = vmatprep.subr.bf16.mxu0 %v4031
    %4688 = vmatpush2.bf16.msra.mxu0 %v4030
    %4689 = vmatprep.subr.bf16.mxu0 %v4015
    %4690 = vmatpush2.bf16.msra.mxu0 %v4014
    %4691 = vmatprep.subr.bf16.mxu0 %v3999
    %4692 = vmatpush2.bf16.msra.mxu0 %v3998
    %4693 = vmatprep.subr.bf16.mxu0 %v3983
    %4694 = vmatpush2.bf16.msra.mxu0 %v3982
    %4695 = vmatprep.mubr.bf16.mxu0 %v1971
    %4696 = vmatmul.mubr.bf16.gmra.mxu0 %v1970
    %v4697 = vpop.f32.mrf.mxu0
    %v4698 = vadd.f32 %v4657, %v4697
    %v4699 = vpop.f32.mrf.mxu0
    %v4700 = vadd.f32 %v4659, %v4699
    %v4701 = vpop.f32.mrf.mxu0
    %v4702 = vpop.f32.mrf.mxu0
    %4703 = vdwg.mxu0
    %4704 = vmatprep.subr.bf16.mxu0 %v3713
    %4705 = vmatpush1.bf16.msra.mxu0 %v3712
    %4706 = vmatprep.subr.bf16.mxu0 %v3697
    %4707 = vmatpush1.bf16.msra.mxu0 %v3696
    %4708 = vmatprep.subr.bf16.mxu0 %v3681
    %4709 = vmatpush1.bf16.msra.mxu0 %v3680
    %4710 = vmatprep.subr.bf16.mxu0 %v3665
    %4711 = vmatpush1.bf16.msra.mxu0 %v3664
    %4712 = vmatprep.subr.bf16.mxu0 %v3649
    %4713 = vmatpush1.bf16.msra.mxu0 %v3648
    %4714 = vmatprep.subr.bf16.mxu0 %v3633
    %4715 = vmatpush1.bf16.msra.mxu0 %v3632
    %4716 = vmatprep.subr.bf16.mxu0 %v3617
    %4717 = vmatpush1.bf16.msra.mxu0 %v3616
    %4718 = vmatprep.subr.bf16.mxu0 %v3601
    %4719 = vmatpush1.bf16.msra.mxu0 %v3600
    %4720 = vmatprep.subr.bf16.mxu0 %v3841
    %4721 = vmatpush2.bf16.msra.mxu0 %v3840
    %4722 = vmatprep.subr.bf16.mxu0 %v3825
    %4723 = vmatpush2.bf16.msra.mxu0 %v3824
    %4724 = vmatprep.subr.bf16.mxu0 %v3809
    %4725 = vmatpush2.bf16.msra.mxu0 %v3808
    %4726 = vmatprep.subr.bf16.mxu0 %v3793
    %4727 = vmatpush2.bf16.msra.mxu0 %v3792
    %4728 = vmatprep.subr.bf16.mxu0 %v3777
    %4729 = vmatpush2.bf16.msra.mxu0 %v3776
    %4730 = vmatprep.subr.bf16.mxu0 %v3761
    %4731 = vmatpush2.bf16.msra.mxu0 %v3760
    %4732 = vmatprep.subr.bf16.mxu0 %v3745
    %4733 = vmatpush2.bf16.msra.mxu0 %v3744
    %4734 = vmatprep.subr.bf16.mxu0 %v3729
    %4735 = vmatpush2.bf16.msra.mxu0 %v3728
    %4736 = vmatprep.mubr.bf16.mxu0 %v1969
    %4737 = vmatmul.mubr.bf16.gmra.mxu0 %v1968
    %v4738 = vpop.f32.mrf.mxu0
    %v4739 = vadd.f32 %v1993, %v4738
    %v4740 = vpop.f32.mrf.mxu0
    %v4741 = vadd.f32 %v1997, %v4740
    %v4742 = vpop.f32.mrf.mxu0
    %v4743 = vpop.f32.mrf.mxu0
    %4744 = vdwg.mxu0
    %4745 = vmatprep.subr.bf16.mxu0 %v3969
    %4746 = vmatpush1.bf16.msra.mxu0 %v3968
    %4747 = vmatprep.subr.bf16.mxu0 %v3953
    %4748 = vmatpush1.bf16.msra.mxu0 %v3952
    %4749 = vmatprep.subr.bf16.mxu0 %v3937
    %4750 = vmatpush1.bf16.msra.mxu0 %v3936
    %4751 = vmatprep.subr.bf16.mxu0 %v3921
    %4752 = vmatpush1.bf16.msra.mxu0 %v3920
    %4753 = vmatprep.subr.bf16.mxu0 %v3905
    %4754 = vmatpush1.bf16.msra.mxu0 %v3904
    %4755 = vmatprep.subr.bf16.mxu0 %v3889
    %4756 = vmatpush1.bf16.msra.mxu0 %v3888
    %4757 = vmatprep.subr.bf16.mxu0 %v3873
    %4758 = vmatpush1.bf16.msra.mxu0 %v3872
    %4759 = vmatprep.subr.bf16.mxu0 %v3857
    %4760 = vmatpush1.bf16.msra.mxu0 %v3856
    %4761 = vmatprep.subr.bf16.mxu0 %v4097
    %4762 = vmatpush2.bf16.msra.mxu0 %v4096
    %4763 = vmatprep.subr.bf16.mxu0 %v4081
    %4764 = vmatpush2.bf16.msra.mxu0 %v4080
    %4765 = vmatprep.subr.bf16.mxu0 %v4065
    %4766 = vmatpush2.bf16.msra.mxu0 %v4064
    %4767 = vmatprep.subr.bf16.mxu0 %v4049
    %4768 = vmatpush2.bf16.msra.mxu0 %v4048
    %4769 = vmatprep.subr.bf16.mxu0 %v4033
    %4770 = vmatpush2.bf16.msra.mxu0 %v4032
    %4771 = vmatprep.subr.bf16.mxu0 %v4017
    %4772 = vmatpush2.bf16.msra.mxu0 %v4016
    %4773 = vmatprep.subr.bf16.mxu0 %v4001
    %4774 = vmatpush2.bf16.msra.mxu0 %v4000
    %4775 = vmatprep.subr.bf16.mxu0 %v3985
    %4776 = vmatpush2.bf16.msra.mxu0 %v3984
    %4777 = vmatprep.mubr.bf16.mxu0 %v1971
    %4778 = vmatmul.mubr.bf16.gmra.mxu0 %v1970
    %v4779 = vpop.f32.mrf.mxu0
    %v4780 = vadd.f32 %v4739, %v4779
    %v4781 = vpop.f32.mrf.mxu0
    %v4782 = vadd.f32 %v4741, %v4781
    %v4783 = vpop.f32.mrf.mxu0
    %v4784 = vpop.f32.mrf.mxu0
    %4785 = vdwg.mxu0
    %4786 = vmatprep.subr.bf16.mxu0 %v3715
    %4787 = vmatpush1.bf16.msra.mxu0 %v3714
    %4788 = vmatprep.subr.bf16.mxu0 %v3699
    %4789 = vmatpush1.bf16.msra.mxu0 %v3698
    %4790 = vmatprep.subr.bf16.mxu0 %v3683
    %4791 = vmatpush1.bf16.msra.mxu0 %v3682
    %4792 = vmatprep.subr.bf16.mxu0 %v3667
    %4793 = vmatpush1.bf16.msra.mxu0 %v3666
    %4794 = vmatprep.subr.bf16.mxu0 %v3651
    %4795 = vmatpush1.bf16.msra.mxu0 %v3650
    %4796 = vmatprep.subr.bf16.mxu0 %v3635
    %4797 = vmatpush1.bf16.msra.mxu0 %v3634
    %4798 = vmatprep.subr.bf16.mxu0 %v3619
    %4799 = vmatpush1.bf16.msra.mxu0 %v3618
    %4800 = vmatprep.subr.bf16.mxu0 %v3603
    %4801 = vmatpush1.bf16.msra.mxu0 %v3602
    %4802 = vmatprep.subr.bf16.mxu0 %v3843
    %4803 = vmatpush2.bf16.msra.mxu0 %v3842
    %4804 = vmatprep.subr.bf16.mxu0 %v3827
    %4805 = vmatpush2.bf16.msra.mxu0 %v3826
    %4806 = vmatprep.subr.bf16.mxu0 %v3811
    %4807 = vmatpush2.bf16.msra.mxu0 %v3810
    %4808 = vmatprep.subr.bf16.mxu0 %v3795
    %4809 = vmatpush2.bf16.msra.mxu0 %v3794
    %4810 = vmatprep.subr.bf16.mxu0 %v3779
    %4811 = vmatpush2.bf16.msra.mxu0 %v3778
    %4812 = vmatprep.subr.bf16.mxu0 %v3763
    %4813 = vmatpush2.bf16.msra.mxu0 %v3762
    %4814 = vmatprep.subr.bf16.mxu0 %v3747
    %4815 = vmatpush2.bf16.msra.mxu0 %v3746
    %4816 = vmatprep.subr.bf16.mxu0 %v3731
    %4817 = vmatpush2.bf16.msra.mxu0 %v3730
    %4818 = vmatprep.mubr.bf16.mxu0 %v1969
    %4819 = vmatmul.mubr.bf16.gmra.mxu0 %v1968
    %v4820 = vpop.f32.mrf.mxu0
    %v4821 = vadd.f32 %v2001, %v4820
    %v4822 = vpop.f32.mrf.mxu0
    %v4823 = vadd.f32 %v2005, %v4822
    %v4824 = vpop.f32.mrf.mxu0
    %v4825 = vpop.f32.mrf.mxu0
    %4826 = vdwg.mxu0
    %4827 = vmatprep.subr.bf16.mxu0 %v3971
    %4828 = vmatpush1.bf16.msra.mxu0 %v3970
    %4829 = vmatprep.subr.bf16.mxu0 %v3955
    %4830 = vmatpush1.bf16.msra.mxu0 %v3954
    %4831 = vmatprep.subr.bf16.mxu0 %v3939
    %4832 = vmatpush1.bf16.msra.mxu0 %v3938
    %4833 = vmatprep.subr.bf16.mxu0 %v3923
    %4834 = vmatpush1.bf16.msra.mxu0 %v3922
    %4835 = vmatprep.subr.bf16.mxu0 %v3907
    %4836 = vmatpush1.bf16.msra.mxu0 %v3906
    %4837 = vmatprep.subr.bf16.mxu0 %v3891
    %4838 = vmatpush1.bf16.msra.mxu0 %v3890
    %4839 = vmatprep.subr.bf16.mxu0 %v3875
    %4840 = vmatpush1.bf16.msra.mxu0 %v3874
    %4841 = vmatprep.subr.bf16.mxu0 %v3859
    %4842 = vmatpush1.bf16.msra.mxu0 %v3858
    %4843 = vmatprep.subr.bf16.mxu0 %v4099
    %4844 = vmatpush2.bf16.msra.mxu0 %v4098
    %4845 = vmatprep.subr.bf16.mxu0 %v4083
    %4846 = vmatpush2.bf16.msra.mxu0 %v4082
    %4847 = vmatprep.subr.bf16.mxu0 %v4067
    %4848 = vmatpush2.bf16.msra.mxu0 %v4066
    %4849 = vmatprep.subr.bf16.mxu0 %v4051
    %4850 = vmatpush2.bf16.msra.mxu0 %v4050
    %4851 = vmatprep.subr.bf16.mxu0 %v4035
    %4852 = vmatpush2.bf16.msra.mxu0 %v4034
    %4853 = vmatprep.subr.bf16.mxu0 %v4019
    %4854 = vmatpush2.bf16.msra.mxu0 %v4018
    %4855 = vmatprep.subr.bf16.mxu0 %v4003
    %4856 = vmatpush2.bf16.msra.mxu0 %v4002
    %4857 = vmatprep.subr.bf16.mxu0 %v3987
    %4858 = vmatpush2.bf16.msra.mxu0 %v3986
    %4859 = vmatprep.mubr.bf16.mxu0 %v1971
    %4860 = vmatmul.mubr.bf16.gmra.mxu0 %v1970
    %v4861 = vpop.f32.mrf.mxu0
    %v4862 = vadd.f32 %v4821, %v4861
    %v4863 = vpop.f32.mrf.mxu0
    %v4864 = vadd.f32 %v4823, %v4863
    %v4865 = vpop.f32.mrf.mxu0
    %v4866 = vpop.f32.mrf.mxu0
    %4867 = vdwg.mxu0
    %4868 = vmatprep.subr.bf16.mxu0 %v3717
    %4869 = vmatpush1.bf16.msra.mxu0 %v3716
    %4870 = vmatprep.subr.bf16.mxu0 %v3701
    %4871 = vmatpush1.bf16.msra.mxu0 %v3700
    %4872 = vmatprep.subr.bf16.mxu0 %v3685
    %4873 = vmatpush1.bf16.msra.mxu0 %v3684
    %4874 = vmatprep.subr.bf16.mxu0 %v3669
    %4875 = vmatpush1.bf16.msra.mxu0 %v3668
    %4876 = vmatprep.subr.bf16.mxu0 %v3653
    %4877 = vmatpush1.bf16.msra.mxu0 %v3652
    %4878 = vmatprep.subr.bf16.mxu0 %v3637
    %4879 = vmatpush1.bf16.msra.mxu0 %v3636
    %4880 = vmatprep.subr.bf16.mxu0 %v3621
    %4881 = vmatpush1.bf16.msra.mxu0 %v3620
    %4882 = vmatprep.subr.bf16.mxu0 %v3605
    %4883 = vmatpush1.bf16.msra.mxu0 %v3604
    %4884 = vmatprep.subr.bf16.mxu0 %v3845
    %4885 = vmatpush2.bf16.msra.mxu0 %v3844
    %4886 = vmatprep.subr.bf16.mxu0 %v3829
    %4887 = vmatpush2.bf16.msra.mxu0 %v3828
    %4888 = vmatprep.subr.bf16.mxu0 %v3813
    %4889 = vmatpush2.bf16.msra.mxu0 %v3812
    %4890 = vmatprep.subr.bf16.mxu0 %v3797
    %4891 = vmatpush2.bf16.msra.mxu0 %v3796
    %4892 = vmatprep.subr.bf16.mxu0 %v3781
    %4893 = vmatpush2.bf16.msra.mxu0 %v3780
    %4894 = vmatprep.subr.bf16.mxu0 %v3765
    %4895 = vmatpush2.bf16.msra.mxu0 %v3764
    %4896 = vmatprep.subr.bf16.mxu0 %v3749
    %4897 = vmatpush2.bf16.msra.mxu0 %v3748
    %4898 = vmatprep.subr.bf16.mxu0 %v3733
    %4899 = vmatpush2.bf16.msra.mxu0 %v3732
    %4900 = vmatprep.mubr.bf16.mxu0 %v1969
    %4901 = vmatmul.mubr.bf16.gmra.mxu0 %v1968
    %v4902 = vpop.f32.mrf.mxu0
    %v4903 = vadd.f32 %v2009, %v4902
    %v4904 = vpop.f32.mrf.mxu0
    %v4905 = vadd.f32 %v2013, %v4904
    %v4906 = vpop.f32.mrf.mxu0
    %v4907 = vpop.f32.mrf.mxu0
    %4908 = vdwg.mxu0
    %4909 = vmatprep.subr.bf16.mxu0 %v3973
    %4910 = vmatpush1.bf16.msra.mxu0 %v3972
    %4911 = vmatprep.subr.bf16.mxu0 %v3957
    %4912 = vmatpush1.bf16.msra.mxu0 %v3956
    %4913 = vmatprep.subr.bf16.mxu0 %v3941
    %4914 = vmatpush1.bf16.msra.mxu0 %v3940
    %4915 = vmatprep.subr.bf16.mxu0 %v3925
    %4916 = vmatpush1.bf16.msra.mxu0 %v3924
    %4917 = vmatprep.subr.bf16.mxu0 %v3909
    %4918 = vmatpush1.bf16.msra.mxu0 %v3908
    %4919 = vmatprep.subr.bf16.mxu0 %v3893
    %4920 = vmatpush1.bf16.msra.mxu0 %v3892
    %4921 = vmatprep.subr.bf16.mxu0 %v3877
    %4922 = vmatpush1.bf16.msra.mxu0 %v3876
    %4923 = vmatprep.subr.bf16.mxu0 %v3861
    %4924 = vmatpush1.bf16.msra.mxu0 %v3860
    %4925 = vmatprep.subr.bf16.mxu0 %v4101
    %4926 = vmatpush2.bf16.msra.mxu0 %v4100
    %4927 = vmatprep.subr.bf16.mxu0 %v4085
    %4928 = vmatpush2.bf16.msra.mxu0 %v4084
    %4929 = vmatprep.subr.bf16.mxu0 %v4069
    %4930 = vmatpush2.bf16.msra.mxu0 %v4068
    %4931 = vmatprep.subr.bf16.mxu0 %v4053
    %4932 = vmatpush2.bf16.msra.mxu0 %v4052
    %4933 = vmatprep.subr.bf16.mxu0 %v4037
    %4934 = vmatpush2.bf16.msra.mxu0 %v4036
    %4935 = vmatprep.subr.bf16.mxu0 %v4021
    %4936 = vmatpush2.bf16.msra.mxu0 %v4020
    %4937 = vmatprep.subr.bf16.mxu0 %v4005
    %4938 = vmatpush2.bf16.msra.mxu0 %v4004
    %4939 = vmatprep.subr.bf16.mxu0 %v3989
    %4940 = vmatpush2.bf16.msra.mxu0 %v3988
    %4941 = vmatprep.mubr.bf16.mxu0 %v1971
    %4942 = vmatmul.mubr.bf16.gmra.mxu0 %v1970
    %v4943 = vpop.f32.mrf.mxu0
    %v4944 = vadd.f32 %v4903, %v4943
    %v4945 = vpop.f32.mrf.mxu0
    %v4946 = vadd.f32 %v4905, %v4945
    %v4947 = vpop.f32.mrf.mxu0
    %v4948 = vpop.f32.mrf.mxu0
    %4949 = vdwg.mxu0
    %4950 = vmatprep.subr.bf16.mxu0 %v3719
    %4951 = vmatpush1.bf16.msra.mxu0 %v3718
    %4952 = vmatprep.subr.bf16.mxu0 %v3703
    %4953 = vmatpush1.bf16.msra.mxu0 %v3702
    %4954 = vmatprep.subr.bf16.mxu0 %v3687
    %4955 = vmatpush1.bf16.msra.mxu0 %v3686
    %4956 = vmatprep.subr.bf16.mxu0 %v3671
    %4957 = vmatpush1.bf16.msra.mxu0 %v3670
    %4958 = vmatprep.subr.bf16.mxu0 %v3655
    %4959 = vmatpush1.bf16.msra.mxu0 %v3654
    %4960 = vmatprep.subr.bf16.mxu0 %v3639
    %4961 = vmatpush1.bf16.msra.mxu0 %v3638
    %4962 = vmatprep.subr.bf16.mxu0 %v3623
    %4963 = vmatpush1.bf16.msra.mxu0 %v3622
    %4964 = vmatprep.subr.bf16.mxu0 %v3607
    %4965 = vmatpush1.bf16.msra.mxu0 %v3606
    %4966 = vmatprep.subr.bf16.mxu0 %v3847
    %4967 = vmatpush2.bf16.msra.mxu0 %v3846
    %4968 = vmatprep.subr.bf16.mxu0 %v3831
    %4969 = vmatpush2.bf16.msra.mxu0 %v3830
    %4970 = vmatprep.subr.bf16.mxu0 %v3815
    %4971 = vmatpush2.bf16.msra.mxu0 %v3814
    %4972 = vmatprep.subr.bf16.mxu0 %v3799
    %4973 = vmatpush2.bf16.msra.mxu0 %v3798
    %4974 = vmatprep.subr.bf16.mxu0 %v3783
    %4975 = vmatpush2.bf16.msra.mxu0 %v3782
    %4976 = vmatprep.subr.bf16.mxu0 %v3767
    %4977 = vmatpush2.bf16.msra.mxu0 %v3766
    %4978 = vmatprep.subr.bf16.mxu0 %v3751
    %4979 = vmatpush2.bf16.msra.mxu0 %v3750
    %4980 = vmatprep.subr.bf16.mxu0 %v3735
    %4981 = vmatpush2.bf16.msra.mxu0 %v3734
    %4982 = vmatprep.mubr.bf16.mxu0 %v1969
    %4983 = vmatmul.mubr.bf16.gmra.mxu0 %v1968
    %v4984 = vpop.f32.mrf.mxu0
    %v4985 = vadd.f32 %v2017, %v4984
    %v4986 = vpop.f32.mrf.mxu0
    %v4987 = vadd.f32 %v2021, %v4986
    %v4988 = vpop.f32.mrf.mxu0
    %v4989 = vpop.f32.mrf.mxu0
    %4990 = vdwg.mxu0
    %4991 = vmatprep.subr.bf16.mxu0 %v3975
    %4992 = vmatpush1.bf16.msra.mxu0 %v3974
    %4993 = vmatprep.subr.bf16.mxu0 %v3959
    %4994 = vmatpush1.bf16.msra.mxu0 %v3958
    %4995 = vmatprep.subr.bf16.mxu0 %v3943
    %4996 = vmatpush1.bf16.msra.mxu0 %v3942
    %4997 = vmatprep.subr.bf16.mxu0 %v3927
    %4998 = vmatpush1.bf16.msra.mxu0 %v3926
    %4999 = vmatprep.subr.bf16.mxu0 %v3911
    %5000 = vmatpush1.bf16.msra.mxu0 %v3910
    %5001 = vmatprep.subr.bf16.mxu0 %v3895
    %5002 = vmatpush1.bf16.msra.mxu0 %v3894
    %5003 = vmatprep.subr.bf16.mxu0 %v3879
    %5004 = vmatpush1.bf16.msra.mxu0 %v3878
    %5005 = vmatprep.subr.bf16.mxu0 %v3863
    %5006 = vmatpush1.bf16.msra.mxu0 %v3862
    %5007 = vmatprep.subr.bf16.mxu0 %v4103
    %5008 = vmatpush2.bf16.msra.mxu0 %v4102
    %5009 = vmatprep.subr.bf16.mxu0 %v4087
    %5010 = vmatpush2.bf16.msra.mxu0 %v4086
    %5011 = vmatprep.subr.bf16.mxu0 %v4071
    %5012 = vmatpush2.bf16.msra.mxu0 %v4070
    %5013 = vmatprep.subr.bf16.mxu0 %v4055
    %5014 = vmatpush2.bf16.msra.mxu0 %v4054
    %5015 = vmatprep.subr.bf16.mxu0 %v4039
    %5016 = vmatpush2.bf16.msra.mxu0 %v4038
    %5017 = vmatprep.subr.bf16.mxu0 %v4023
    %5018 = vmatpush2.bf16.msra.mxu0 %v4022
    %5019 = vmatprep.subr.bf16.mxu0 %v4007
    %5020 = vmatpush2.bf16.msra.mxu0 %v4006
    %5021 = vmatprep.subr.bf16.mxu0 %v3991
    %5022 = vmatpush2.bf16.msra.mxu0 %v3990
    %5023 = vmatprep.mubr.bf16.mxu0 %v1971
    %5024 = vmatmul.mubr.bf16.gmra.mxu0 %v1970
    %v5025 = vpop.f32.mrf.mxu0
    %v5026 = vadd.f32 %v4985, %v5025
    %v5027 = vpop.f32.mrf.mxu0
    %v5028 = vadd.f32 %v4987, %v5027
    %v5029 = vpop.f32.mrf.mxu0
    %v5030 = vpop.f32.mrf.mxu0
    %5031 = vdwg.mxu0
    %5032 = vmatprep.subr.bf16.mxu0 %v3721
    %5033 = vmatpush1.bf16.msra.mxu0 %v3720
    %5034 = vmatprep.subr.bf16.mxu0 %v3705
    %5035 = vmatpush1.bf16.msra.mxu0 %v3704
    %5036 = vmatprep.subr.bf16.mxu0 %v3689
    %5037 = vmatpush1.bf16.msra.mxu0 %v3688
    %5038 = vmatprep.subr.bf16.mxu0 %v3673
    %5039 = vmatpush1.bf16.msra.mxu0 %v3672
    %5040 = vmatprep.subr.bf16.mxu0 %v3657
    %5041 = vmatpush1.bf16.msra.mxu0 %v3656
    %5042 = vmatprep.subr.bf16.mxu0 %v3641
    %5043 = vmatpush1.bf16.msra.mxu0 %v3640
    %5044 = vmatprep.subr.bf16.mxu0 %v3625
    %5045 = vmatpush1.bf16.msra.mxu0 %v3624
    %5046 = vmatprep.subr.bf16.mxu0 %v3609
    %5047 = vmatpush1.bf16.msra.mxu0 %v3608
    %5048 = vmatprep.subr.bf16.mxu0 %v3849
    %5049 = vmatpush2.bf16.msra.mxu0 %v3848
    %5050 = vmatprep.subr.bf16.mxu0 %v3833
    %5051 = vmatpush2.bf16.msra.mxu0 %v3832
    %5052 = vmatprep.subr.bf16.mxu0 %v3817
    %5053 = vmatpush2.bf16.msra.mxu0 %v3816
    %5054 = vmatprep.subr.bf16.mxu0 %v3801
    %5055 = vmatpush2.bf16.msra.mxu0 %v3800
    %5056 = vmatprep.subr.bf16.mxu0 %v3785
    %5057 = vmatpush2.bf16.msra.mxu0 %v3784
    %5058 = vmatprep.subr.bf16.mxu0 %v3769
    %5059 = vmatpush2.bf16.msra.mxu0 %v3768
    %5060 = vmatprep.subr.bf16.mxu0 %v3753
    %5061 = vmatpush2.bf16.msra.mxu0 %v3752
    %5062 = vmatprep.subr.bf16.mxu0 %v3737
    %5063 = vmatpush2.bf16.msra.mxu0 %v3736
    %5064 = vmatprep.mubr.bf16.mxu0 %v1969
    %5065 = vmatmul.mubr.bf16.gmra.mxu0 %v1968
    %v5066 = vpop.f32.mrf.mxu0
    %v5067 = vadd.f32 %v2025, %v5066
    %v5068 = vpop.f32.mrf.mxu0
    %v5069 = vadd.f32 %v2029, %v5068
    %v5070 = vpop.f32.mrf.mxu0
    %v5071 = vpop.f32.mrf.mxu0
    %5072 = vdwg.mxu0
    %5073 = vmatprep.subr.bf16.mxu0 %v3977
    %5074 = vmatpush1.bf16.msra.mxu0 %v3976
    %5075 = vmatprep.subr.bf16.mxu0 %v3961
    %5076 = vmatpush1.bf16.msra.mxu0 %v3960
    %5077 = vmatprep.subr.bf16.mxu0 %v3945
    %5078 = vmatpush1.bf16.msra.mxu0 %v3944
    %5079 = vmatprep.subr.bf16.mxu0 %v3929
    %5080 = vmatpush1.bf16.msra.mxu0 %v3928
    %5081 = vmatprep.subr.bf16.mxu0 %v3913
    %5082 = vmatpush1.bf16.msra.mxu0 %v3912
    %5083 = vmatprep.subr.bf16.mxu0 %v3897
    %5084 = vmatpush1.bf16.msra.mxu0 %v3896
    %5085 = vmatprep.subr.bf16.mxu0 %v3881
    %5086 = vmatpush1.bf16.msra.mxu0 %v3880
    %5087 = vmatprep.subr.bf16.mxu0 %v3865
    %5088 = vmatpush1.bf16.msra.mxu0 %v3864
    %5089 = vmatprep.subr.bf16.mxu0 %v4105
    %5090 = vmatpush2.bf16.msra.mxu0 %v4104
    %5091 = vmatprep.subr.bf16.mxu0 %v4089
    %5092 = vmatpush2.bf16.msra.mxu0 %v4088
    %5093 = vmatprep.subr.bf16.mxu0 %v4073
    %5094 = vmatpush2.bf16.msra.mxu0 %v4072
    %5095 = vmatprep.subr.bf16.mxu0 %v4057
    %5096 = vmatpush2.bf16.msra.mxu0 %v4056
    %5097 = vmatprep.subr.bf16.mxu0 %v4041
    %5098 = vmatpush2.bf16.msra.mxu0 %v4040
    %5099 = vmatprep.subr.bf16.mxu0 %v4025
    %5100 = vmatpush2.bf16.msra.mxu0 %v4024
    %5101 = vmatprep.subr.bf16.mxu0 %v4009
    %5102 = vmatpush2.bf16.msra.mxu0 %v4008
    %5103 = vmatprep.subr.bf16.mxu0 %v3993
    %5104 = vmatpush2.bf16.msra.mxu0 %v3992
    %5105 = vmatprep.mubr.bf16.mxu0 %v1971
    %5106 = vmatmul.mubr.bf16.gmra.mxu0 %v1970
    %v5107 = vpop.f32.mrf.mxu0
    %v5108 = vadd.f32 %v5067, %v5107
    %v5109 = vpop.f32.mrf.mxu0
    %v5110 = vadd.f32 %v5069, %v5109
    %v5111 = vpop.f32.mrf.mxu0
    %v5112 = vpop.f32.mrf.mxu0
    %5113 = vdwg.mxu0
    %5114 = vmatprep.subr.bf16.mxu0 %v3723
    %5115 = vmatpush1.bf16.msra.mxu0 %v3722
    %5116 = vmatprep.subr.bf16.mxu0 %v3707
    %5117 = vmatpush1.bf16.msra.mxu0 %v3706
    %5118 = vmatprep.subr.bf16.mxu0 %v3691
    %5119 = vmatpush1.bf16.msra.mxu0 %v3690
    %5120 = vmatprep.subr.bf16.mxu0 %v3675
    %5121 = vmatpush1.bf16.msra.mxu0 %v3674
    %5122 = vmatprep.subr.bf16.mxu0 %v3659
    %5123 = vmatpush1.bf16.msra.mxu0 %v3658
    %5124 = vmatprep.subr.bf16.mxu0 %v3643
    %5125 = vmatpush1.bf16.msra.mxu0 %v3642
    %5126 = vmatprep.subr.bf16.mxu0 %v3627
    %5127 = vmatpush1.bf16.msra.mxu0 %v3626
    %5128 = vmatprep.subr.bf16.mxu0 %v3611
    %5129 = vmatpush1.bf16.msra.mxu0 %v3610
    %5130 = vmatprep.subr.bf16.mxu0 %v3851
    %5131 = vmatpush2.bf16.msra.mxu0 %v3850
    %5132 = vmatprep.subr.bf16.mxu0 %v3835
    %5133 = vmatpush2.bf16.msra.mxu0 %v3834
    %5134 = vmatprep.subr.bf16.mxu0 %v3819
    %5135 = vmatpush2.bf16.msra.mxu0 %v3818
    %5136 = vmatprep.subr.bf16.mxu0 %v3803
    %5137 = vmatpush2.bf16.msra.mxu0 %v3802
    %5138 = vmatprep.subr.bf16.mxu0 %v3787
    %5139 = vmatpush2.bf16.msra.mxu0 %v3786
    %5140 = vmatprep.subr.bf16.mxu0 %v3771
    %5141 = vmatpush2.bf16.msra.mxu0 %v3770
    %5142 = vmatprep.subr.bf16.mxu0 %v3755
    %5143 = vmatpush2.bf16.msra.mxu0 %v3754
    %5144 = vmatprep.subr.bf16.mxu0 %v3739
    %5145 = vmatpush2.bf16.msra.mxu0 %v3738
    %5146 = vmatprep.mubr.bf16.mxu0 %v1969
    %5147 = vmatmul.mubr.bf16.gmra.mxu0 %v1968
    %v5148 = vpop.f32.mrf.mxu0
    %v5149 = vadd.f32 %v2033, %v5148
    %v5150 = vpop.f32.mrf.mxu0
    %v5151 = vadd.f32 %v2037, %v5150
    %v5152 = vpop.f32.mrf.mxu0
    %v5153 = vpop.f32.mrf.mxu0
    %5154 = vdwg.mxu0
    %5155 = vmatprep.subr.bf16.mxu0 %v3979
    %5156 = vmatpush1.bf16.msra.mxu0 %v3978
    %5157 = vmatprep.subr.bf16.mxu0 %v3963
    %5158 = vmatpush1.bf16.msra.mxu0 %v3962
    %5159 = vmatprep.subr.bf16.mxu0 %v3947
    %5160 = vmatpush1.bf16.msra.mxu0 %v3946
    %5161 = vmatprep.subr.bf16.mxu0 %v3931
    %5162 = vmatpush1.bf16.msra.mxu0 %v3930
    %5163 = vmatprep.subr.bf16.mxu0 %v3915
    %5164 = vmatpush1.bf16.msra.mxu0 %v3914
    %5165 = vmatprep.subr.bf16.mxu0 %v3899
    %5166 = vmatpush1.bf16.msra.mxu0 %v3898
    %5167 = vmatprep.subr.bf16.mxu0 %v3883
    %5168 = vmatpush1.bf16.msra.mxu0 %v3882
    %5169 = vmatprep.subr.bf16.mxu0 %v3867
    %5170 = vmatpush1.bf16.msra.mxu0 %v3866
    %5171 = vmatprep.subr.bf16.mxu0 %v4107
    %5172 = vmatpush2.bf16.msra.mxu0 %v4106
    %5173 = vmatprep.subr.bf16.mxu0 %v4091
    %5174 = vmatpush2.bf16.msra.mxu0 %v4090
    %5175 = vmatprep.subr.bf16.mxu0 %v4075
    %5176 = vmatpush2.bf16.msra.mxu0 %v4074
    %5177 = vmatprep.subr.bf16.mxu0 %v4059
    %5178 = vmatpush2.bf16.msra.mxu0 %v4058
    %5179 = vmatprep.subr.bf16.mxu0 %v4043
    %5180 = vmatpush2.bf16.msra.mxu0 %v4042
    %5181 = vmatprep.subr.bf16.mxu0 %v4027
    %5182 = vmatpush2.bf16.msra.mxu0 %v4026
    %5183 = vmatprep.subr.bf16.mxu0 %v4011
    %5184 = vmatpush2.bf16.msra.mxu0 %v4010
    %5185 = vmatprep.subr.bf16.mxu0 %v3995
    %5186 = vmatpush2.bf16.msra.mxu0 %v3994
    %5187 = vmatprep.mubr.bf16.mxu0 %v1971
    %5188 = vmatmul.mubr.bf16.gmra.mxu0 %v1970
    %v5189 = vpop.f32.mrf.mxu0
    %v5190 = vadd.f32 %v5149, %v5189
    %v5191 = vpop.f32.mrf.mxu0
    %v5192 = vadd.f32 %v5151, %v5191
    %v5193 = vpop.f32.mrf.mxu0
    %v5194 = vpop.f32.mrf.mxu0
    %5195 = vdwg.mxu0
    %5196 = vmatprep.subr.bf16.mxu0 %v3725
    %5197 = vmatpush1.bf16.msra.mxu0 %v3724
    %5198 = vmatprep.subr.bf16.mxu0 %v3709
    %5199 = vmatpush1.bf16.msra.mxu0 %v3708
    %5200 = vmatprep.subr.bf16.mxu0 %v3693
    %5201 = vmatpush1.bf16.msra.mxu0 %v3692
    %5202 = vmatprep.subr.bf16.mxu0 %v3677
    %5203 = vmatpush1.bf16.msra.mxu0 %v3676
    %5204 = vmatprep.subr.bf16.mxu0 %v3661
    %5205 = vmatpush1.bf16.msra.mxu0 %v3660
    %5206 = vmatprep.subr.bf16.mxu0 %v3645
    %5207 = vmatpush1.bf16.msra.mxu0 %v3644
    %5208 = vmatprep.subr.bf16.mxu0 %v3629
    %5209 = vmatpush1.bf16.msra.mxu0 %v3628
    %5210 = vmatprep.subr.bf16.mxu0 %v3613
    %5211 = vmatpush1.bf16.msra.mxu0 %v3612
    %5212 = vmatprep.subr.bf16.mxu0 %v3853
    %5213 = vmatpush2.bf16.msra.mxu0 %v3852
    %5214 = vmatprep.subr.bf16.mxu0 %v3837
    %5215 = vmatpush2.bf16.msra.mxu0 %v3836
    %5216 = vmatprep.subr.bf16.mxu0 %v3821
    %5217 = vmatpush2.bf16.msra.mxu0 %v3820
    %5218 = vmatprep.subr.bf16.mxu0 %v3805
    %5219 = vmatpush2.bf16.msra.mxu0 %v3804
    %5220 = vmatprep.subr.bf16.mxu0 %v3789
    %5221 = vmatpush2.bf16.msra.mxu0 %v3788
    %5222 = vmatprep.subr.bf16.mxu0 %v3773
    %5223 = vmatpush2.bf16.msra.mxu0 %v3772
    %5224 = vmatprep.subr.bf16.mxu0 %v3757
    %5225 = vmatpush2.bf16.msra.mxu0 %v3756
    %5226 = vmatprep.subr.bf16.mxu0 %v3741
    %5227 = vmatpush2.bf16.msra.mxu0 %v3740
    %5228 = vmatprep.mubr.bf16.mxu0 %v1969
    %5229 = vmatmul.mubr.bf16.gmra.mxu0 %v1968
    %v5230 = vpop.f32.mrf.mxu0
    %v5231 = vadd.f32 %v2041, %v5230
    %v5232 = vpop.f32.mrf.mxu0
    %v5233 = vadd.f32 %v2045, %v5232
    %v5234 = vpop.f32.mrf.mxu0
    %v5235 = vpop.f32.mrf.mxu0
    %5236 = vdwg.mxu0
    %5237 = vmatprep.subr.bf16.mxu0 %v3981
    %5238 = vmatpush1.bf16.msra.mxu0 %v3980
    %5239 = vmatprep.subr.bf16.mxu0 %v3965
    %5240 = vmatpush1.bf16.msra.mxu0 %v3964
    %5241 = vmatprep.subr.bf16.mxu0 %v3949
    %5242 = vmatpush1.bf16.msra.mxu0 %v3948
    %5243 = vmatprep.subr.bf16.mxu0 %v3933
    %5244 = vmatpush1.bf16.msra.mxu0 %v3932
    %5245 = vmatprep.subr.bf16.mxu0 %v3917
    %5246 = vmatpush1.bf16.msra.mxu0 %v3916
    %5247 = vmatprep.subr.bf16.mxu0 %v3901
    %5248 = vmatpush1.bf16.msra.mxu0 %v3900
    %5249 = vmatprep.subr.bf16.mxu0 %v3885
    %5250 = vmatpush1.bf16.msra.mxu0 %v3884
    %5251 = vmatprep.subr.bf16.mxu0 %v3869
    %5252 = vmatpush1.bf16.msra.mxu0 %v3868
    %5253 = vmatprep.subr.bf16.mxu0 %v4109
    %5254 = vmatpush2.bf16.msra.mxu0 %v4108
    %5255 = vmatprep.subr.bf16.mxu0 %v4093
    %5256 = vmatpush2.bf16.msra.mxu0 %v4092
    %5257 = vmatprep.subr.bf16.mxu0 %v4077
    %5258 = vmatpush2.bf16.msra.mxu0 %v4076
    %5259 = vmatprep.subr.bf16.mxu0 %v4061
    %5260 = vmatpush2.bf16.msra.mxu0 %v4060
    %5261 = vmatprep.subr.bf16.mxu0 %v4045
    %5262 = vmatpush2.bf16.msra.mxu0 %v4044
    %5263 = vmatprep.subr.bf16.mxu0 %v4029
    %5264 = vmatpush2.bf16.msra.mxu0 %v4028
    %5265 = vmatprep.subr.bf16.mxu0 %v4013
    %5266 = vmatpush2.bf16.msra.mxu0 %v4012
    %5267 = vmatprep.subr.bf16.mxu0 %v3997
    %5268 = vmatpush2.bf16.msra.mxu0 %v3996
    %5269 = vmatprep.mubr.bf16.mxu0 %v1971
    %5270 = vmatmul.mubr.bf16.gmra.mxu0 %v1970
    %v5271 = vpop.f32.mrf.mxu0
    %v5272 = vadd.f32 %v5231, %v5271
    %v5273 = vpop.f32.mrf.mxu0
    %v5274 = vadd.f32 %v5233, %v5273
    %v5275 = vpop.f32.mrf.mxu0
    %v5276 = vpop.f32.mrf.mxu0
    %5277 = vdwg.mxu0
    %v5278 = vmax.f32 %v4698, 0.0
    %v5279 = vmax.f32 %v4700, 0.0
    %v5280 = vmax.f32 %v4780, 0.0
    %v5281 = vmax.f32 %v4782, 0.0
    %v5282 = vmax.f32 %v4862, 0.0
    %v5283 = vmax.f32 %v4864, 0.0
    %v5284 = vmax.f32 %v4944, 0.0
    %v5285 = vmax.f32 %v4946, 0.0
    %v5286 = vmax.f32 %v5026, 0.0
    %v5287 = vmax.f32 %v5028, 0.0
    %v5288 = vmax.f32 %v5108, 0.0
    %v5289 = vmax.f32 %v5110, 0.0
    %v5290 = vmax.f32 %v5190, 0.0
    %v5291 = vmax.f32 %v5192, 0.0
    %v5292 = vmax.f32 %v5272, 0.0
    %v5293 = vmax.f32 %v5274, 0.0
    %v5294 = vld [vmem:[#allocation10] sm:$0xf]
    %v5295 = vld [vmem:[#allocation10 + $0x4] sm:$0xf]
    %v5296 = vld [vmem:[#allocation10 + $0x8] sm:$0xf]
    %v5297 = vld [vmem:[#allocation10 + $0xc] sm:$0xf]
    %v5298 = vld [vmem:[#allocation10 + $0x10] sm:$0xf]
    %v5299 = vld [vmem:[#allocation10 + $0x14] sm:$0xf]
    %v5300 = vld [vmem:[#allocation10 + $0x18] sm:$0xf]
    %v5301 = vld [vmem:[#allocation10 + $0x1c] sm:$0xf]
    %v5302 = vld [vmem:[#allocation10 + $0x20] sm:$0xf]
    %v5303 = vld [vmem:[#allocation10 + $0x24] sm:$0xf]
    %v5304 = vld [vmem:[#allocation10 + $0x28] sm:$0xf]
    %v5305 = vld [vmem:[#allocation10 + $0x2c] sm:$0xf]
    %v5306 = vld [vmem:[#allocation10 + $0x30] sm:$0xf]
    %v5307 = vld [vmem:[#allocation10 + $0x34] sm:$0xf]
    %v5308 = vld [vmem:[#allocation10 + $0x38] sm:$0xf]
    %v5309 = vld [vmem:[#allocation10 + $0x3c] sm:$0xf]
    %v5310 = vld [vmem:[#allocation10 + $0x40] sm:$0xf]
    %v5311 = vld [vmem:[#allocation10 + $0x44] sm:$0xf]
    %v5312 = vld [vmem:[#allocation10 + $0x48] sm:$0xf]
    %v5313 = vld [vmem:[#allocation10 + $0x4c] sm:$0xf]
    %v5314 = vld [vmem:[#allocation10 + $0x50] sm:$0xf]
    %v5315 = vld [vmem:[#allocation10 + $0x54] sm:$0xf]
    %v5316 = vld [vmem:[#allocation10 + $0x58] sm:$0xf]
    %v5317 = vld [vmem:[#allocation10 + $0x5c] sm:$0xf]
    %v5318 = vld [vmem:[#allocation10 + $0x60] sm:$0xf]
    %v5319 = vld [vmem:[#allocation10 + $0x64] sm:$0xf]
    %v5320 = vld [vmem:[#allocation10 + $0x68] sm:$0xf]
    %v5321 = vld [vmem:[#allocation10 + $0x6c] sm:$0xf]
    %v5322 = vld [vmem:[#allocation10 + $0x70] sm:$0xf]
    %v5323 = vld [vmem:[#allocation10 + $0x74] sm:$0xf]
    %v5324 = vld [vmem:[#allocation10 + $0x78] sm:$0xf]
    %v5325 = vld [vmem:[#allocation10 + $0x7c] sm:$0xf]
    %v5326 = vld [vmem:[#allocation10 + $0x80] sm:$0xf]
    %v5327 = vld [vmem:[#allocation10 + $0x84] sm:$0xf]
    %v5328 = vld [vmem:[#allocation10 + $0x88] sm:$0xf]
    %v5329 = vld [vmem:[#allocation10 + $0x8c] sm:$0xf]
    %v5330 = vld [vmem:[#allocation10 + $0x90] sm:$0xf]
    %v5331 = vld [vmem:[#allocation10 + $0x94] sm:$0xf]
    %v5332 = vld [vmem:[#allocation10 + $0x98] sm:$0xf]
    %v5333 = vld [vmem:[#allocation10 + $0x9c] sm:$0xf]
    %v5334 = vld [vmem:[#allocation10 + $0xa0] sm:$0xf]
    %v5335 = vld [vmem:[#allocation10 + $0xa4] sm:$0xf]
    %v5336 = vld [vmem:[#allocation10 + $0xa8] sm:$0xf]
    %v5337 = vld [vmem:[#allocation10 + $0xac] sm:$0xf]
    %v5338 = vld [vmem:[#allocation10 + $0xb0] sm:$0xf]
    %v5339 = vld [vmem:[#allocation10 + $0xb4] sm:$0xf]
    %v5340 = vld [vmem:[#allocation10 + $0xb8] sm:$0xf]
    %v5341 = vld [vmem:[#allocation10 + $0xbc] sm:$0xf]
    %v5342 = vld [vmem:[#allocation10 + $0xc0] sm:$0xf]
    %v5343 = vld [vmem:[#allocation10 + $0xc4] sm:$0xf]
    %v5344 = vld [vmem:[#allocation10 + $0xc8] sm:$0xf]
    %v5345 = vld [vmem:[#allocation10 + $0xcc] sm:$0xf]
    %v5346 = vld [vmem:[#allocation10 + $0xd0] sm:$0xf]
    %v5347 = vld [vmem:[#allocation10 + $0xd4] sm:$0xf]
    %v5348 = vld [vmem:[#allocation10 + $0xd8] sm:$0xf]
    %v5349 = vld [vmem:[#allocation10 + $0xdc] sm:$0xf]
    %v5350 = vld [vmem:[#allocation10 + $0xe0] sm:$0xf]
    %v5351 = vld [vmem:[#allocation10 + $0xe4] sm:$0xf]
    %v5352 = vld [vmem:[#allocation10 + $0xe8] sm:$0xf]
    %v5353 = vld [vmem:[#allocation10 + $0xec] sm:$0xf]
    %v5354 = vld [vmem:[#allocation10 + $0xf0] sm:$0xf]
    %v5355 = vld [vmem:[#allocation10 + $0xf4] sm:$0xf]
    %v5356 = vld [vmem:[#allocation10 + $0xf8] sm:$0xf]
    %v5357 = vld [vmem:[#allocation10 + $0xfc] sm:$0xf]
    %v5358 = vld [vmem:[#allocation10 + $0x100] sm:$0xf]
    %v5359 = vld [vmem:[#allocation10 + $0x104] sm:$0xf]
    %v5360 = vld [vmem:[#allocation10 + $0x108] sm:$0xf]
    %v5361 = vld [vmem:[#allocation10 + $0x10c] sm:$0xf]
    %v5362 = vld [vmem:[#allocation10 + $0x110] sm:$0xf]
    %v5363 = vld [vmem:[#allocation10 + $0x114] sm:$0xf]
    %v5364 = vld [vmem:[#allocation10 + $0x118] sm:$0xf]
    %v5365 = vld [vmem:[#allocation10 + $0x11c] sm:$0xf]
    %v5366 = vld [vmem:[#allocation10 + $0x120] sm:$0xf]
    %v5367 = vld [vmem:[#allocation10 + $0x124] sm:$0xf]
    %v5368 = vld [vmem:[#allocation10 + $0x128] sm:$0xf]
    %v5369 = vld [vmem:[#allocation10 + $0x12c] sm:$0xf]
    %v5370 = vld [vmem:[#allocation10 + $0x130] sm:$0xf]
    %v5371 = vld [vmem:[#allocation10 + $0x134] sm:$0xf]
    %v5372 = vld [vmem:[#allocation10 + $0x138] sm:$0xf]
    %v5373 = vld [vmem:[#allocation10 + $0x13c] sm:$0xf]
    %v5374 = vld [vmem:[#allocation10 + $0x140] sm:$0xf]
    %v5375 = vld [vmem:[#allocation10 + $0x144] sm:$0xf]
    %v5376 = vld [vmem:[#allocation10 + $0x148] sm:$0xf]
    %v5377 = vld [vmem:[#allocation10 + $0x14c] sm:$0xf]
    %v5378 = vld [vmem:[#allocation10 + $0x150] sm:$0xf]
    %v5379 = vld [vmem:[#allocation10 + $0x154] sm:$0xf]
    %v5380 = vld [vmem:[#allocation10 + $0x158] sm:$0xf]
    %v5381 = vld [vmem:[#allocation10 + $0x15c] sm:$0xf]
    %v5382 = vld [vmem:[#allocation10 + $0x160] sm:$0xf]
    %v5383 = vld [vmem:[#allocation10 + $0x164] sm:$0xf]
    %v5384 = vld [vmem:[#allocation10 + $0x168] sm:$0xf]
    %v5385 = vld [vmem:[#allocation10 + $0x16c] sm:$0xf]
    %v5386 = vld [vmem:[#allocation10 + $0x170] sm:$0xf]
    %v5387 = vld [vmem:[#allocation10 + $0x174] sm:$0xf]
    %v5388 = vld [vmem:[#allocation10 + $0x178] sm:$0xf]
    %v5389 = vld [vmem:[#allocation10 + $0x17c] sm:$0xf]
    %v5390 = vld [vmem:[#allocation10 + $0x180] sm:$0xf]
    %v5391 = vld [vmem:[#allocation10 + $0x184] sm:$0xf]
    %v5392 = vld [vmem:[#allocation10 + $0x188] sm:$0xf]
    %v5393 = vld [vmem:[#allocation10 + $0x18c] sm:$0xf]
    %v5394 = vld [vmem:[#allocation10 + $0x190] sm:$0xf]
    %v5395 = vld [vmem:[#allocation10 + $0x194] sm:$0xf]
    %v5396 = vld [vmem:[#allocation10 + $0x198] sm:$0xf]
    %v5397 = vld [vmem:[#allocation10 + $0x19c] sm:$0xf]
    %v5398 = vld [vmem:[#allocation10 + $0x1a0] sm:$0xf]
    %v5399 = vld [vmem:[#allocation10 + $0x1a4] sm:$0xf]
    %v5400 = vld [vmem:[#allocation10 + $0x1a8] sm:$0xf]
    %v5401 = vld [vmem:[#allocation10 + $0x1ac] sm:$0xf]
    %v5402 = vld [vmem:[#allocation10 + $0x1b0] sm:$0xf]
    %v5403 = vld [vmem:[#allocation10 + $0x1b4] sm:$0xf]
    %v5404 = vld [vmem:[#allocation10 + $0x1b8] sm:$0xf]
    %v5405 = vld [vmem:[#allocation10 + $0x1bc] sm:$0xf]
    %v5406 = vld [vmem:[#allocation10 + $0x1c0] sm:$0xf]
    %v5407 = vld [vmem:[#allocation10 + $0x1c4] sm:$0xf]
    %v5408 = vld [vmem:[#allocation10 + $0x1c8] sm:$0xf]
    %v5409 = vld [vmem:[#allocation10 + $0x1cc] sm:$0xf]
    %v5410 = vld [vmem:[#allocation10 + $0x1d0] sm:$0xf]
    %v5411 = vld [vmem:[#allocation10 + $0x1d4] sm:$0xf]
    %v5412 = vld [vmem:[#allocation10 + $0x1d8] sm:$0xf]
    %v5413 = vld [vmem:[#allocation10 + $0x1dc] sm:$0xf]
    %v5414 = vld [vmem:[#allocation10 + $0x1e0] sm:$0xf]
    %v5415 = vld [vmem:[#allocation10 + $0x1e4] sm:$0xf]
    %v5416 = vld [vmem:[#allocation10 + $0x1e8] sm:$0xf]
    %v5417 = vld [vmem:[#allocation10 + $0x1ec] sm:$0xf]
    %v5418 = vld [vmem:[#allocation10 + $0x1f0] sm:$0xf]
    %v5419 = vld [vmem:[#allocation10 + $0x1f4] sm:$0xf]
    %v5420 = vld [vmem:[#allocation10 + $0x1f8] sm:$0xf]
    %v5421 = vld [vmem:[#allocation10 + $0x1fc] sm:$0xf]
    %v5422 = vld [vmem:[#allocation10 + $0x200] sm:$0xf]
    %v5423 = vld [vmem:[#allocation10 + $0x204] sm:$0xf]
    %v5424 = vld [vmem:[#allocation10 + $0x208] sm:$0xf]
    %v5425 = vld [vmem:[#allocation10 + $0x20c] sm:$0xf]
    %v5426 = vld [vmem:[#allocation10 + $0x210] sm:$0xf]
    %v5427 = vld [vmem:[#allocation10 + $0x214] sm:$0xf]
    %v5428 = vld [vmem:[#allocation10 + $0x218] sm:$0xf]
    %v5429 = vld [vmem:[#allocation10 + $0x21c] sm:$0xf]
    %v5430 = vld [vmem:[#allocation10 + $0x220] sm:$0xf]
    %v5431 = vld [vmem:[#allocation10 + $0x224] sm:$0xf]
    %v5432 = vld [vmem:[#allocation10 + $0x228] sm:$0xf]
    %v5433 = vld [vmem:[#allocation10 + $0x22c] sm:$0xf]
    %v5434 = vld [vmem:[#allocation10 + $0x230] sm:$0xf]
    %v5435 = vld [vmem:[#allocation10 + $0x234] sm:$0xf]
    %v5436 = vld [vmem:[#allocation10 + $0x238] sm:$0xf]
    %v5437 = vld [vmem:[#allocation10 + $0x23c] sm:$0xf]
    %v5438 = vld [vmem:[#allocation10 + $0x240] sm:$0xf]
    %v5439 = vld [vmem:[#allocation10 + $0x244] sm:$0xf]
    %v5440 = vld [vmem:[#allocation10 + $0x248] sm:$0xf]
    %v5441 = vld [vmem:[#allocation10 + $0x24c] sm:$0xf]
    %v5442 = vld [vmem:[#allocation10 + $0x250] sm:$0xf]
    %v5443 = vld [vmem:[#allocation10 + $0x254] sm:$0xf]
    %v5444 = vld [vmem:[#allocation10 + $0x258] sm:$0xf]
    %v5445 = vld [vmem:[#allocation10 + $0x25c] sm:$0xf]
    %v5446 = vld [vmem:[#allocation10 + $0x260] sm:$0xf]
    %v5447 = vld [vmem:[#allocation10 + $0x264] sm:$0xf]
    %v5448 = vld [vmem:[#allocation10 + $0x268] sm:$0xf]
    %v5449 = vld [vmem:[#allocation10 + $0x26c] sm:$0xf]
    %v5450 = vld [vmem:[#allocation10 + $0x270] sm:$0xf]
    %v5451 = vld [vmem:[#allocation10 + $0x274] sm:$0xf]
    %v5452 = vld [vmem:[#allocation10 + $0x278] sm:$0xf]
    %v5453 = vld [vmem:[#allocation10 + $0x27c] sm:$0xf]
    %v5454 = vld [vmem:[#allocation10 + $0x280] sm:$0xf]
    %v5455 = vld [vmem:[#allocation10 + $0x284] sm:$0xf]
    %v5456 = vld [vmem:[#allocation10 + $0x288] sm:$0xf]
    %v5457 = vld [vmem:[#allocation10 + $0x28c] sm:$0xf]
    %v5458 = vld [vmem:[#allocation10 + $0x290] sm:$0xf]
    %v5459 = vld [vmem:[#allocation10 + $0x294] sm:$0xf]
    %v5460 = vld [vmem:[#allocation10 + $0x298] sm:$0xf]
    %v5461 = vld [vmem:[#allocation10 + $0x29c] sm:$0xf]
    %v5462 = vld [vmem:[#allocation10 + $0x2a0] sm:$0xf]
    %v5463 = vld [vmem:[#allocation10 + $0x2a4] sm:$0xf]
    %v5464 = vld [vmem:[#allocation10 + $0x2a8] sm:$0xf]
    %v5465 = vld [vmem:[#allocation10 + $0x2ac] sm:$0xf]
    %v5466 = vld [vmem:[#allocation10 + $0x2b0] sm:$0xf]
    %v5467 = vld [vmem:[#allocation10 + $0x2b4] sm:$0xf]
    %v5468 = vld [vmem:[#allocation10 + $0x2b8] sm:$0xf]
    %v5469 = vld [vmem:[#allocation10 + $0x2bc] sm:$0xf]
    %v5470 = vld [vmem:[#allocation10 + $0x2c0] sm:$0xf]
    %v5471 = vld [vmem:[#allocation10 + $0x2c4] sm:$0xf]
    %v5472 = vld [vmem:[#allocation10 + $0x2c8] sm:$0xf]
    %v5473 = vld [vmem:[#allocation10 + $0x2cc] sm:$0xf]
    %v5474 = vld [vmem:[#allocation10 + $0x2d0] sm:$0xf]
    %v5475 = vld [vmem:[#allocation10 + $0x2d4] sm:$0xf]
    %v5476 = vld [vmem:[#allocation10 + $0x2d8] sm:$0xf]
    %v5477 = vld [vmem:[#allocation10 + $0x2dc] sm:$0xf]
    %v5478 = vld [vmem:[#allocation10 + $0x2e0] sm:$0xf]
    %v5479 = vld [vmem:[#allocation10 + $0x2e4] sm:$0xf]
    %v5480 = vld [vmem:[#allocation10 + $0x2e8] sm:$0xf]
    %v5481 = vld [vmem:[#allocation10 + $0x2ec] sm:$0xf]
    %v5482 = vld [vmem:[#allocation10 + $0x2f0] sm:$0xf]
    %v5483 = vld [vmem:[#allocation10 + $0x2f4] sm:$0xf]
    %v5484 = vld [vmem:[#allocation10 + $0x2f8] sm:$0xf]
    %v5485 = vld [vmem:[#allocation10 + $0x2fc] sm:$0xf]
    %v5486 = vld [vmem:[#allocation10 + $0x300] sm:$0xf]
    %v5487 = vld [vmem:[#allocation10 + $0x304] sm:$0xf]
    %v5488 = vld [vmem:[#allocation10 + $0x308] sm:$0xf]
    %v5489 = vld [vmem:[#allocation10 + $0x30c] sm:$0xf]
    %v5490 = vld [vmem:[#allocation10 + $0x310] sm:$0xf]
    %v5491 = vld [vmem:[#allocation10 + $0x314] sm:$0xf]
    %v5492 = vld [vmem:[#allocation10 + $0x318] sm:$0xf]
    %v5493 = vld [vmem:[#allocation10 + $0x31c] sm:$0xf]
    %v5494 = vld [vmem:[#allocation10 + $0x320] sm:$0xf]
    %v5495 = vld [vmem:[#allocation10 + $0x324] sm:$0xf]
    %v5496 = vld [vmem:[#allocation10 + $0x328] sm:$0xf]
    %v5497 = vld [vmem:[#allocation10 + $0x32c] sm:$0xf]
    %v5498 = vld [vmem:[#allocation10 + $0x330] sm:$0xf]
    %v5499 = vld [vmem:[#allocation10 + $0x334] sm:$0xf]
    %v5500 = vld [vmem:[#allocation10 + $0x338] sm:$0xf]
    %v5501 = vld [vmem:[#allocation10 + $0x33c] sm:$0xf]
    %v5502 = vld [vmem:[#allocation10 + $0x340] sm:$0xf]
    %v5503 = vld [vmem:[#allocation10 + $0x344] sm:$0xf]
    %v5504 = vld [vmem:[#allocation10 + $0x348] sm:$0xf]
    %v5505 = vld [vmem:[#allocation10 + $0x34c] sm:$0xf]
    %v5506 = vld [vmem:[#allocation10 + $0x350] sm:$0xf]
    %v5507 = vld [vmem:[#allocation10 + $0x354] sm:$0xf]
    %v5508 = vld [vmem:[#allocation10 + $0x358] sm:$0xf]
    %v5509 = vld [vmem:[#allocation10 + $0x35c] sm:$0xf]
    %v5510 = vld [vmem:[#allocation10 + $0x360] sm:$0xf]
    %v5511 = vld [vmem:[#allocation10 + $0x364] sm:$0xf]
    %v5512 = vld [vmem:[#allocation10 + $0x368] sm:$0xf]
    %v5513 = vld [vmem:[#allocation10 + $0x36c] sm:$0xf]
    %v5514 = vld [vmem:[#allocation10 + $0x370] sm:$0xf]
    %v5515 = vld [vmem:[#allocation10 + $0x374] sm:$0xf]
    %v5516 = vld [vmem:[#allocation10 + $0x378] sm:$0xf]
    %v5517 = vld [vmem:[#allocation10 + $0x37c] sm:$0xf]
    %v5518 = vld [vmem:[#allocation10 + $0x380] sm:$0xf]
    %v5519 = vld [vmem:[#allocation10 + $0x384] sm:$0xf]
    %v5520 = vld [vmem:[#allocation10 + $0x388] sm:$0xf]
    %v5521 = vld [vmem:[#allocation10 + $0x38c] sm:$0xf]
    %v5522 = vld [vmem:[#allocation10 + $0x390] sm:$0xf]
    %v5523 = vld [vmem:[#allocation10 + $0x394] sm:$0xf]
    %v5524 = vld [vmem:[#allocation10 + $0x398] sm:$0xf]
    %v5525 = vld [vmem:[#allocation10 + $0x39c] sm:$0xf]
    %v5526 = vld [vmem:[#allocation10 + $0x3a0] sm:$0xf]
    %v5527 = vld [vmem:[#allocation10 + $0x3a4] sm:$0xf]
    %v5528 = vld [vmem:[#allocation10 + $0x3a8] sm:$0xf]
    %v5529 = vld [vmem:[#allocation10 + $0x3ac] sm:$0xf]
    %v5530 = vld [vmem:[#allocation10 + $0x3b0] sm:$0xf]
    %v5531 = vld [vmem:[#allocation10 + $0x3b4] sm:$0xf]
    %v5532 = vld [vmem:[#allocation10 + $0x3b8] sm:$0xf]
    %v5533 = vld [vmem:[#allocation10 + $0x3bc] sm:$0xf]
    %v5534 = vld [vmem:[#allocation10 + $0x3c0] sm:$0xf]
    %v5535 = vld [vmem:[#allocation10 + $0x3c4] sm:$0xf]
    %v5536 = vld [vmem:[#allocation10 + $0x3c8] sm:$0xf]
    %v5537 = vld [vmem:[#allocation10 + $0x3cc] sm:$0xf]
    %v5538 = vld [vmem:[#allocation10 + $0x3d0] sm:$0xf]
    %v5539 = vld [vmem:[#allocation10 + $0x3d4] sm:$0xf]
    %v5540 = vld [vmem:[#allocation10 + $0x3d8] sm:$0xf]
    %v5541 = vld [vmem:[#allocation10 + $0x3dc] sm:$0xf]
    %v5542 = vld [vmem:[#allocation10 + $0x3e0] sm:$0xf]
    %v5543 = vld [vmem:[#allocation10 + $0x3e4] sm:$0xf]
    %v5544 = vld [vmem:[#allocation10 + $0x3e8] sm:$0xf]
    %v5545 = vld [vmem:[#allocation10 + $0x3ec] sm:$0xf]
    %v5546 = vld [vmem:[#allocation10 + $0x3f0] sm:$0xf]
    %v5547 = vld [vmem:[#allocation10 + $0x3f4] sm:$0xf]
    %v5548 = vld [vmem:[#allocation10 + $0x3f8] sm:$0xf]
    %v5549 = vld [vmem:[#allocation10 + $0x3fc] sm:$0xf]
    %v5550 = vpack.c.bf16 %v5278, %v5278
    %v5551 = vpack.c.bf16 %v5279, %v5279
    %v5552 = vpack.c.bf16 %v5280, %v5280
    %v5553 = vpack.c.bf16 %v5281, %v5281
    %v5554 = vpack.c.bf16 %v5282, %v5282
    %v5555 = vpack.c.bf16 %v5283, %v5283
    %v5556 = vpack.c.bf16 %v5284, %v5284
    %v5557 = vpack.c.bf16 %v5285, %v5285
    %v5558 = vpack.c.bf16 %v5286, %v5286
    %v5559 = vpack.c.bf16 %v5287, %v5287
    %v5560 = vpack.c.bf16 %v5288, %v5288
    %v5561 = vpack.c.bf16 %v5289, %v5289
    %v5562 = vpack.c.bf16 %v5290, %v5290
    %v5563 = vpack.c.bf16 %v5291, %v5291
    %v5564 = vpack.c.bf16 %v5292, %v5292
    %v5565 = vpack.c.bf16 %v5293, %v5293
    %v5566 = vld [vmem:[#allocation17 + $0x3] ss:$0 sm:$0xff]
    %v5823 = vunpack.c.l.b16 %v5294
    %v5824 = vunpack.c.l.b16 %v5295
    %v5825 = vunpack.c.l.b16 %v5296
    %v5826 = vunpack.c.l.b16 %v5297
    %v5827 = vunpack.c.l.b16 %v5298
    %v5828 = vunpack.c.l.b16 %v5299
    %v5829 = vunpack.c.l.b16 %v5300
    %v5830 = vunpack.c.l.b16 %v5301
    %v5831 = vunpack.c.l.b16 %v5302
    %v5832 = vunpack.c.l.b16 %v5303
    %v5833 = vunpack.c.l.b16 %v5304
    %v5834 = vunpack.c.l.b16 %v5305
    %v5835 = vunpack.c.l.b16 %v5306
    %v5836 = vunpack.c.l.b16 %v5307
    %v5837 = vunpack.c.l.b16 %v5308
    %v5838 = vunpack.c.l.b16 %v5309
    %v5839 = vunpack.c.l.b16 %v5310
    %v5840 = vunpack.c.l.b16 %v5311
    %v5841 = vunpack.c.l.b16 %v5312
    %v5842 = vunpack.c.l.b16 %v5313
    %v5843 = vunpack.c.l.b16 %v5314
    %v5844 = vunpack.c.l.b16 %v5315
    %v5845 = vunpack.c.l.b16 %v5316
    %v5846 = vunpack.c.l.b16 %v5317
    %v5847 = vunpack.c.l.b16 %v5318
    %v5848 = vunpack.c.l.b16 %v5319
    %v5849 = vunpack.c.l.b16 %v5320
    %v5850 = vunpack.c.l.b16 %v5321
    %v5851 = vunpack.c.l.b16 %v5322
    %v5852 = vunpack.c.l.b16 %v5323
    %v5853 = vunpack.c.l.b16 %v5324
    %v5854 = vunpack.c.l.b16 %v5325
    %v5855 = vunpack.c.l.b16 %v5326
    %v5856 = vunpack.c.l.b16 %v5327
    %v5857 = vunpack.c.l.b16 %v5328
    %v5858 = vunpack.c.l.b16 %v5329
    %v5859 = vunpack.c.l.b16 %v5330
    %v5860 = vunpack.c.l.b16 %v5331
    %v5861 = vunpack.c.l.b16 %v5332
    %v5862 = vunpack.c.l.b16 %v5333
    %v5863 = vunpack.c.l.b16 %v5334
    %v5864 = vunpack.c.l.b16 %v5335
    %v5865 = vunpack.c.l.b16 %v5336
    %v5866 = vunpack.c.l.b16 %v5337
    %v5867 = vunpack.c.l.b16 %v5338
    %v5868 = vunpack.c.l.b16 %v5339
    %v5869 = vunpack.c.l.b16 %v5340
    %v5870 = vunpack.c.l.b16 %v5341
    %v5871 = vunpack.c.l.b16 %v5342
    %v5872 = vunpack.c.l.b16 %v5343
    %v5873 = vunpack.c.l.b16 %v5344
    %v5874 = vunpack.c.l.b16 %v5345
    %v5875 = vunpack.c.l.b16 %v5346
    %v5876 = vunpack.c.l.b16 %v5347
    %v5877 = vunpack.c.l.b16 %v5348
    %v5878 = vunpack.c.l.b16 %v5349
    %v5879 = vunpack.c.l.b16 %v5350
    %v5880 = vunpack.c.l.b16 %v5351
    %v5881 = vunpack.c.l.b16 %v5352
    %v5882 = vunpack.c.l.b16 %v5353
    %v5883 = vunpack.c.l.b16 %v5354
    %v5884 = vunpack.c.l.b16 %v5355
    %v5885 = vunpack.c.l.b16 %v5356
    %v5886 = vunpack.c.l.b16 %v5357
    %v5887 = vunpack.c.l.b16 %v5358
    %v5888 = vunpack.c.l.b16 %v5359
    %v5889 = vunpack.c.l.b16 %v5360
    %v5890 = vunpack.c.l.b16 %v5361
    %v5891 = vunpack.c.l.b16 %v5362
    %v5892 = vunpack.c.l.b16 %v5363
    %v5893 = vunpack.c.l.b16 %v5364
    %v5894 = vunpack.c.l.b16 %v5365
    %v5895 = vunpack.c.l.b16 %v5366
    %v5896 = vunpack.c.l.b16 %v5367
    %v5897 = vunpack.c.l.b16 %v5368
    %v5898 = vunpack.c.l.b16 %v5369
    %v5899 = vunpack.c.l.b16 %v5370
    %v5900 = vunpack.c.l.b16 %v5371
    %v5901 = vunpack.c.l.b16 %v5372
    %v5902 = vunpack.c.l.b16 %v5373
    %v5903 = vunpack.c.l.b16 %v5374
    %v5904 = vunpack.c.l.b16 %v5375
    %v5905 = vunpack.c.l.b16 %v5376
    %v5906 = vunpack.c.l.b16 %v5377
    %v5907 = vunpack.c.l.b16 %v5378
    %v5908 = vunpack.c.l.b16 %v5379
    %v5909 = vunpack.c.l.b16 %v5380
    %v5910 = vunpack.c.l.b16 %v5381
    %v5911 = vunpack.c.l.b16 %v5382
    %v5912 = vunpack.c.l.b16 %v5383
    %v5913 = vunpack.c.l.b16 %v5384
    %v5914 = vunpack.c.l.b16 %v5385
    %v5915 = vunpack.c.l.b16 %v5386
    %v5916 = vunpack.c.l.b16 %v5387
    %v5917 = vunpack.c.l.b16 %v5388
    %v5918 = vunpack.c.l.b16 %v5389
    %v5919 = vunpack.c.l.b16 %v5390
    %v5920 = vunpack.c.l.b16 %v5391
    %v5921 = vunpack.c.l.b16 %v5392
    %v5922 = vunpack.c.l.b16 %v5393
    %v5923 = vunpack.c.l.b16 %v5394
    %v5924 = vunpack.c.l.b16 %v5395
    %v5925 = vunpack.c.l.b16 %v5396
    %v5926 = vunpack.c.l.b16 %v5397
    %v5927 = vunpack.c.l.b16 %v5398
    %v5928 = vunpack.c.l.b16 %v5399
    %v5929 = vunpack.c.l.b16 %v5400
    %v5930 = vunpack.c.l.b16 %v5401
    %v5931 = vunpack.c.l.b16 %v5402
    %v5932 = vunpack.c.l.b16 %v5403
    %v5933 = vunpack.c.l.b16 %v5404
    %v5934 = vunpack.c.l.b16 %v5405
    %v5935 = vunpack.c.l.b16 %v5406
    %v5936 = vunpack.c.l.b16 %v5407
    %v5937 = vunpack.c.l.b16 %v5408
    %v5938 = vunpack.c.l.b16 %v5409
    %v5939 = vunpack.c.l.b16 %v5410
    %v5940 = vunpack.c.l.b16 %v5411
    %v5941 = vunpack.c.l.b16 %v5412
    %v5942 = vunpack.c.l.b16 %v5413
    %v5943 = vunpack.c.l.b16 %v5414
    %v5944 = vunpack.c.l.b16 %v5415
    %v5945 = vunpack.c.l.b16 %v5416
    %v5946 = vunpack.c.l.b16 %v5417
    %v5947 = vunpack.c.l.b16 %v5418
    %v5948 = vunpack.c.l.b16 %v5419
    %v5949 = vunpack.c.l.b16 %v5420
    %v5950 = vunpack.c.l.b16 %v5421
    %v5951 = vunpack.c.l.b16 %v5422
    %v5952 = vunpack.c.l.b16 %v5423
    %v5953 = vunpack.c.l.b16 %v5424
    %v5954 = vunpack.c.l.b16 %v5425
    %v5955 = vunpack.c.l.b16 %v5426
    %v5956 = vunpack.c.l.b16 %v5427
    %v5957 = vunpack.c.l.b16 %v5428
    %v5958 = vunpack.c.l.b16 %v5429
    %v5959 = vunpack.c.l.b16 %v5430
    %v5960 = vunpack.c.l.b16 %v5431
    %v5961 = vunpack.c.l.b16 %v5432
    %v5962 = vunpack.c.l.b16 %v5433
    %v5963 = vunpack.c.l.b16 %v5434
    %v5964 = vunpack.c.l.b16 %v5435
    %v5965 = vunpack.c.l.b16 %v5436
    %v5966 = vunpack.c.l.b16 %v5437
    %v5967 = vunpack.c.l.b16 %v5438
    %v5968 = vunpack.c.l.b16 %v5439
    %v5969 = vunpack.c.l.b16 %v5440
    %v5970 = vunpack.c.l.b16 %v5441
    %v5971 = vunpack.c.l.b16 %v5442
    %v5972 = vunpack.c.l.b16 %v5443
    %v5973 = vunpack.c.l.b16 %v5444
    %v5974 = vunpack.c.l.b16 %v5445
    %v5975 = vunpack.c.l.b16 %v5446
    %v5976 = vunpack.c.l.b16 %v5447
    %v5977 = vunpack.c.l.b16 %v5448
    %v5978 = vunpack.c.l.b16 %v5449
    %v5979 = vunpack.c.l.b16 %v5450
    %v5980 = vunpack.c.l.b16 %v5451
    %v5981 = vunpack.c.l.b16 %v5452
    %v5982 = vunpack.c.l.b16 %v5453
    %v5983 = vunpack.c.l.b16 %v5454
    %v5984 = vunpack.c.l.b16 %v5455
    %v5985 = vunpack.c.l.b16 %v5456
    %v5986 = vunpack.c.l.b16 %v5457
    %v5987 = vunpack.c.l.b16 %v5458
    %v5988 = vunpack.c.l.b16 %v5459
    %v5989 = vunpack.c.l.b16 %v5460
    %v5990 = vunpack.c.l.b16 %v5461
    %v5991 = vunpack.c.l.b16 %v5462
    %v5992 = vunpack.c.l.b16 %v5463
    %v5993 = vunpack.c.l.b16 %v5464
    %v5994 = vunpack.c.l.b16 %v5465
    %v5995 = vunpack.c.l.b16 %v5466
    %v5996 = vunpack.c.l.b16 %v5467
    %v5997 = vunpack.c.l.b16 %v5468
    %v5998 = vunpack.c.l.b16 %v5469
    %v5999 = vunpack.c.l.b16 %v5470
    %v6000 = vunpack.c.l.b16 %v5471
    %v6001 = vunpack.c.l.b16 %v5472
    %v6002 = vunpack.c.l.b16 %v5473
    %v6003 = vunpack.c.l.b16 %v5474
    %v6004 = vunpack.c.l.b16 %v5475
    %v6005 = vunpack.c.l.b16 %v5476
    %v6006 = vunpack.c.l.b16 %v5477
    %v6007 = vunpack.c.l.b16 %v5478
    %v6008 = vunpack.c.l.b16 %v5479
    %v6009 = vunpack.c.l.b16 %v5480
    %v6010 = vunpack.c.l.b16 %v5481
    %v6011 = vunpack.c.l.b16 %v5482
    %v6012 = vunpack.c.l.b16 %v5483
    %v6013 = vunpack.c.l.b16 %v5484
    %v6014 = vunpack.c.l.b16 %v5485
    %v6015 = vunpack.c.l.b16 %v5486
    %v6016 = vunpack.c.l.b16 %v5487
    %v6017 = vunpack.c.l.b16 %v5488
    %v6018 = vunpack.c.l.b16 %v5489
    %v6019 = vunpack.c.l.b16 %v5490
    %v6020 = vunpack.c.l.b16 %v5491
    %v6021 = vunpack.c.l.b16 %v5492
    %v6022 = vunpack.c.l.b16 %v5493
    %v6023 = vunpack.c.l.b16 %v5494
    %v6024 = vunpack.c.l.b16 %v5495
    %v6025 = vunpack.c.l.b16 %v5496
    %v6026 = vunpack.c.l.b16 %v5497
    %v6027 = vunpack.c.l.b16 %v5498
    %v6028 = vunpack.c.l.b16 %v5499
    %v6029 = vunpack.c.l.b16 %v5500
    %v6030 = vunpack.c.l.b16 %v5501
    %v6031 = vunpack.c.l.b16 %v5502
    %v6032 = vunpack.c.l.b16 %v5503
    %v6033 = vunpack.c.l.b16 %v5504
    %v6034 = vunpack.c.l.b16 %v5505
    %v6035 = vunpack.c.l.b16 %v5506
    %v6036 = vunpack.c.l.b16 %v5507
    %v6037 = vunpack.c.l.b16 %v5508
    %v6038 = vunpack.c.l.b16 %v5509
    %v6039 = vunpack.c.l.b16 %v5510
    %v6040 = vunpack.c.l.b16 %v5511
    %v6041 = vunpack.c.l.b16 %v5512
    %v6042 = vunpack.c.l.b16 %v5513
    %v6043 = vunpack.c.l.b16 %v5514
    %v6044 = vunpack.c.l.b16 %v5515
    %v6045 = vunpack.c.l.b16 %v5516
    %v6046 = vunpack.c.l.b16 %v5517
    %v6047 = vunpack.c.l.b16 %v5518
    %v6048 = vunpack.c.l.b16 %v5519
    %v6049 = vunpack.c.l.b16 %v5520
    %v6050 = vunpack.c.l.b16 %v5521
    %v6051 = vunpack.c.l.b16 %v5522
    %v6052 = vunpack.c.l.b16 %v5523
    %v6053 = vunpack.c.l.b16 %v5524
    %v6054 = vunpack.c.l.b16 %v5525
    %v6055 = vunpack.c.l.b16 %v5526
    %v6056 = vunpack.c.l.b16 %v5527
    %v6057 = vunpack.c.l.b16 %v5528
    %v6058 = vunpack.c.l.b16 %v5529
    %v6059 = vunpack.c.l.b16 %v5530
    %v6060 = vunpack.c.l.b16 %v5531
    %v6061 = vunpack.c.l.b16 %v5532
    %v6062 = vunpack.c.l.b16 %v5533
    %v6063 = vunpack.c.l.b16 %v5534
    %v6064 = vunpack.c.l.b16 %v5535
    %v6065 = vunpack.c.l.b16 %v5536
    %v6066 = vunpack.c.l.b16 %v5537
    %v6067 = vunpack.c.l.b16 %v5538
    %v6068 = vunpack.c.l.b16 %v5539
    %v6069 = vunpack.c.l.b16 %v5540
    %v6070 = vunpack.c.l.b16 %v5541
    %v6071 = vunpack.c.l.b16 %v5542
    %v6072 = vunpack.c.l.b16 %v5543
    %v6073 = vunpack.c.l.b16 %v5544
    %v6074 = vunpack.c.l.b16 %v5545
    %v6075 = vunpack.c.l.b16 %v5546
    %v6076 = vunpack.c.l.b16 %v5547
    %v6077 = vunpack.c.l.b16 %v5548
    %v6078 = vunpack.c.l.b16 %v5549
    %v6079 = vpack.c.b16 %v5824, %v5823
    %v6080 = vpack.c.b16 %v5826, %v5825
    %v6081 = vpack.c.b16 %v5828, %v5827
    %v6082 = vpack.c.b16 %v5830, %v5829
    %v6083 = vpack.c.b16 %v5832, %v5831
    %v6084 = vpack.c.b16 %v5834, %v5833
    %v6085 = vpack.c.b16 %v5836, %v5835
    %v6086 = vpack.c.b16 %v5838, %v5837
    %v6087 = vpack.c.b16 %v5840, %v5839
    %v6088 = vpack.c.b16 %v5842, %v5841
    %v6089 = vpack.c.b16 %v5844, %v5843
    %v6090 = vpack.c.b16 %v5846, %v5845
    %v6091 = vpack.c.b16 %v5848, %v5847
    %v6092 = vpack.c.b16 %v5850, %v5849
    %v6093 = vpack.c.b16 %v5852, %v5851
    %v6094 = vpack.c.b16 %v5854, %v5853
    %v6095 = vpack.c.b16 %v5856, %v5855
    %v6096 = vpack.c.b16 %v5858, %v5857
    %v6097 = vpack.c.b16 %v5860, %v5859
    %v6098 = vpack.c.b16 %v5862, %v5861
    %v6099 = vpack.c.b16 %v5864, %v5863
    %v6100 = vpack.c.b16 %v5866, %v5865
    %v6101 = vpack.c.b16 %v5868, %v5867
    %v6102 = vpack.c.b16 %v5870, %v5869
    %v6103 = vpack.c.b16 %v5872, %v5871
    %v6104 = vpack.c.b16 %v5874, %v5873
    %v6105 = vpack.c.b16 %v5876, %v5875
    %v6106 = vpack.c.b16 %v5878, %v5877
    %v6107 = vpack.c.b16 %v5880, %v5879
    %v6108 = vpack.c.b16 %v5882, %v5881
    %v6109 = vpack.c.b16 %v5884, %v5883
    %v6110 = vpack.c.b16 %v5886, %v5885
    %v6111 = vpack.c.b16 %v5888, %v5887
    %v6112 = vpack.c.b16 %v5890, %v5889
    %v6113 = vpack.c.b16 %v5892, %v5891
    %v6114 = vpack.c.b16 %v5894, %v5893
    %v6115 = vpack.c.b16 %v5896, %v5895
    %v6116 = vpack.c.b16 %v5898, %v5897
    %v6117 = vpack.c.b16 %v5900, %v5899
    %v6118 = vpack.c.b16 %v5902, %v5901
    %v6119 = vpack.c.b16 %v5904, %v5903
    %v6120 = vpack.c.b16 %v5906, %v5905
    %v6121 = vpack.c.b16 %v5908, %v5907
    %v6122 = vpack.c.b16 %v5910, %v5909
    %v6123 = vpack.c.b16 %v5912, %v5911
    %v6124 = vpack.c.b16 %v5914, %v5913
    %v6125 = vpack.c.b16 %v5916, %v5915
    %v6126 = vpack.c.b16 %v5918, %v5917
    %v6127 = vpack.c.b16 %v5920, %v5919
    %v6128 = vpack.c.b16 %v5922, %v5921
    %v6129 = vpack.c.b16 %v5924, %v5923
    %v6130 = vpack.c.b16 %v5926, %v5925
    %v6131 = vpack.c.b16 %v5928, %v5927
    %v6132 = vpack.c.b16 %v5930, %v5929
    %v6133 = vpack.c.b16 %v5932, %v5931
    %v6134 = vpack.c.b16 %v5934, %v5933
    %v6135 = vpack.c.b16 %v5936, %v5935
    %v6136 = vpack.c.b16 %v5938, %v5937
    %v6137 = vpack.c.b16 %v5940, %v5939
    %v6138 = vpack.c.b16 %v5942, %v5941
    %v6139 = vpack.c.b16 %v5944, %v5943
    %v6140 = vpack.c.b16 %v5946, %v5945
    %v6141 = vpack.c.b16 %v5948, %v5947
    %v6142 = vpack.c.b16 %v5950, %v5949
    %v6143 = vpack.c.b16 %v5952, %v5951
    %v6144 = vpack.c.b16 %v5954, %v5953
    %v6145 = vpack.c.b16 %v5956, %v5955
    %v6146 = vpack.c.b16 %v5958, %v5957
    %v6147 = vpack.c.b16 %v5960, %v5959
    %v6148 = vpack.c.b16 %v5962, %v5961
    %v6149 = vpack.c.b16 %v5964, %v5963
    %v6150 = vpack.c.b16 %v5966, %v5965
    %v6151 = vpack.c.b16 %v5968, %v5967
    %v6152 = vpack.c.b16 %v5970, %v5969
    %v6153 = vpack.c.b16 %v5972, %v5971
    %v6154 = vpack.c.b16 %v5974, %v5973
    %v6155 = vpack.c.b16 %v5976, %v5975
    %v6156 = vpack.c.b16 %v5978, %v5977
    %v6157 = vpack.c.b16 %v5980, %v5979
    %v6158 = vpack.c.b16 %v5982, %v5981
    %v6159 = vpack.c.b16 %v5984, %v5983
    %v6160 = vpack.c.b16 %v5986, %v5985
    %v6161 = vpack.c.b16 %v5988, %v5987
    %v6162 = vpack.c.b16 %v5990, %v5989
    %v6163 = vpack.c.b16 %v5992, %v5991
    %v6164 = vpack.c.b16 %v5994, %v5993
    %v6165 = vpack.c.b16 %v5996, %v5995
    %v6166 = vpack.c.b16 %v5998, %v5997
    %v6167 = vpack.c.b16 %v6000, %v5999
    %v6168 = vpack.c.b16 %v6002, %v6001
    %v6169 = vpack.c.b16 %v6004, %v6003
    %v6170 = vpack.c.b16 %v6006, %v6005
    %v6171 = vpack.c.b16 %v6008, %v6007
    %v6172 = vpack.c.b16 %v6010, %v6009
    %v6173 = vpack.c.b16 %v6012, %v6011
    %v6174 = vpack.c.b16 %v6014, %v6013
    %v6175 = vpack.c.b16 %v6016, %v6015
    %v6176 = vpack.c.b16 %v6018, %v6017
    %v6177 = vpack.c.b16 %v6020, %v6019
    %v6178 = vpack.c.b16 %v6022, %v6021
    %v6179 = vpack.c.b16 %v6024, %v6023
    %v6180 = vpack.c.b16 %v6026, %v6025
    %v6181 = vpack.c.b16 %v6028, %v6027
    %v6182 = vpack.c.b16 %v6030, %v6029
    %v6183 = vpack.c.b16 %v6032, %v6031
    %v6184 = vpack.c.b16 %v6034, %v6033
    %v6185 = vpack.c.b16 %v6036, %v6035
    %v6186 = vpack.c.b16 %v6038, %v6037
    %v6187 = vpack.c.b16 %v6040, %v6039
    %v6188 = vpack.c.b16 %v6042, %v6041
    %v6189 = vpack.c.b16 %v6044, %v6043
    %v6190 = vpack.c.b16 %v6046, %v6045
    %v6191 = vpack.c.b16 %v6048, %v6047
    %v6192 = vpack.c.b16 %v6050, %v6049
    %v6193 = vpack.c.b16 %v6052, %v6051
    %v6194 = vpack.c.b16 %v6054, %v6053
    %v6195 = vpack.c.b16 %v6056, %v6055
    %v6196 = vpack.c.b16 %v6058, %v6057
    %v6197 = vpack.c.b16 %v6060, %v6059
    %v6198 = vpack.c.b16 %v6062, %v6061
    %v6199 = vpack.c.b16 %v6064, %v6063
    %v6200 = vpack.c.b16 %v6066, %v6065
    %v6201 = vpack.c.b16 %v6068, %v6067
    %v6202 = vpack.c.b16 %v6070, %v6069
    %v6203 = vpack.c.b16 %v6072, %v6071
    %v6204 = vpack.c.b16 %v6074, %v6073
    %v6205 = vpack.c.b16 %v6076, %v6075
    %v6206 = vpack.c.b16 %v6078, %v6077
    %6335 = vmatprep.subr.bf16.mxu0 0
    %6336 = vmatpush1.bf16.msra.mxu0 %v6086
    %6337 = vmatprep.subr.bf16.mxu0 0
    %6338 = vmatpush1.bf16.msra.mxu0 %v6085
    %6339 = vmatprep.subr.bf16.mxu0 0
    %6340 = vmatpush1.bf16.msra.mxu0 %v6084
    %6341 = vmatprep.subr.bf16.mxu0 0
    %6342 = vmatpush1.bf16.msra.mxu0 %v6083
    %6343 = vmatprep.subr.bf16.mxu0 0
    %6344 = vmatpush1.bf16.msra.mxu0 %v6082
    %6345 = vmatprep.subr.bf16.mxu0 0
    %6346 = vmatpush1.bf16.msra.mxu0 %v6081
    %6347 = vmatprep.subr.bf16.mxu0 0
    %6348 = vmatpush1.bf16.msra.mxu0 %v6080
    %6349 = vmatprep.subr.bf16.mxu0 0
    %6350 = vmatpush1.bf16.msra.mxu0 %v6079
    %6351 = vmatprep.subr.bf16.mxu0 0
    %6352 = vmatpush2.bf16.msra.mxu0 %v6094
    %6353 = vmatprep.subr.bf16.mxu0 0
    %6354 = vmatpush2.bf16.msra.mxu0 %v6093
    %6355 = vmatprep.subr.bf16.mxu0 0
    %6356 = vmatpush2.bf16.msra.mxu0 %v6092
    %6357 = vmatprep.subr.bf16.mxu0 0
    %6358 = vmatpush2.bf16.msra.mxu0 %v6091
    %6359 = vmatprep.subr.bf16.mxu0 0
    %6360 = vmatpush2.bf16.msra.mxu0 %v6090
    %6361 = vmatprep.subr.bf16.mxu0 0
    %6362 = vmatpush2.bf16.msra.mxu0 %v6089
    %6363 = vmatprep.subr.bf16.mxu0 0
    %6364 = vmatpush2.bf16.msra.mxu0 %v6088
    %6365 = vmatprep.subr.bf16.mxu0 0
    %6366 = vmatpush2.bf16.msra.mxu0 %v6087
    %6367 = vmatprep.mubr.bf16.mxu0 %v5551
    %6368 = vmatmul.mubr.bf16.gmra.mxu0 %v5550
    %v6369 = vpop.f32.mrf.mxu0
    %v6370 = vadd.f32 %v5566, %v6369
    %v6371 = vpop.f32.mrf.mxu0
    %v6372 = vpop.f32.mrf.mxu0
    %v6373 = vpop.f32.mrf.mxu0
    %6374 = vdwg.mxu0
    %6375 = vmatprep.subr.bf16.mxu0 0
    %6376 = vmatpush1.bf16.msra.mxu0 %v6102
    %6377 = vmatprep.subr.bf16.mxu0 0
    %6378 = vmatpush1.bf16.msra.mxu0 %v6101
    %6379 = vmatprep.subr.bf16.mxu0 0
    %6380 = vmatpush1.bf16.msra.mxu0 %v6100
    %6381 = vmatprep.subr.bf16.mxu0 0
    %6382 = vmatpush1.bf16.msra.mxu0 %v6099
    %6383 = vmatprep.subr.bf16.mxu0 0
    %6384 = vmatpush1.bf16.msra.mxu0 %v6098
    %6385 = vmatprep.subr.bf16.mxu0 0
    %6386 = vmatpush1.bf16.msra.mxu0 %v6097
    %6387 = vmatprep.subr.bf16.mxu0 0
    %6388 = vmatpush1.bf16.msra.mxu0 %v6096
    %6389 = vmatprep.subr.bf16.mxu0 0
    %6390 = vmatpush1.bf16.msra.mxu0 %v6095
    %6391 = vmatprep.subr.bf16.mxu0 0
    %6392 = vmatpush2.bf16.msra.mxu0 %v6110
    %6393 = vmatprep.subr.bf16.mxu0 0
    %6394 = vmatpush2.bf16.msra.mxu0 %v6109
    %6395 = vmatprep.subr.bf16.mxu0 0
    %6396 = vmatpush2.bf16.msra.mxu0 %v6108
    %6397 = vmatprep.subr.bf16.mxu0 0
    %6398 = vmatpush2.bf16.msra.mxu0 %v6107
    %6399 = vmatprep.subr.bf16.mxu0 0
    %6400 = vmatpush2.bf16.msra.mxu0 %v6106
    %6401 = vmatprep.subr.bf16.mxu0 0
    %6402 = vmatpush2.bf16.msra.mxu0 %v6105
    %6403 = vmatprep.subr.bf16.mxu0 0
    %6404 = vmatpush2.bf16.msra.mxu0 %v6104
    %6405 = vmatprep.subr.bf16.mxu0 0
    %6406 = vmatpush2.bf16.msra.mxu0 %v6103
    %6407 = vmatprep.mubr.bf16.mxu0 %v5553
    %6408 = vmatmul.mubr.bf16.gmra.mxu0 %v5552
    %v6409 = vpop.f32.mrf.mxu0
    %v6410 = vadd.f32 %v6370, %v6409
    %v6411 = vpop.f32.mrf.mxu0
    %v6412 = vpop.f32.mrf.mxu0
    %v6413 = vpop.f32.mrf.mxu0
    %6414 = vdwg.mxu0
    %6415 = vmatprep.subr.bf16.mxu0 0
    %6416 = vmatpush1.bf16.msra.mxu0 %v6118
    %6417 = vmatprep.subr.bf16.mxu0 0
    %6418 = vmatpush1.bf16.msra.mxu0 %v6117
    %6419 = vmatprep.subr.bf16.mxu0 0
    %6420 = vmatpush1.bf16.msra.mxu0 %v6116
    %6421 = vmatprep.subr.bf16.mxu0 0
    %6422 = vmatpush1.bf16.msra.mxu0 %v6115
    %6423 = vmatprep.subr.bf16.mxu0 0
    %6424 = vmatpush1.bf16.msra.mxu0 %v6114
    %6425 = vmatprep.subr.bf16.mxu0 0
    %6426 = vmatpush1.bf16.msra.mxu0 %v6113
    %6427 = vmatprep.subr.bf16.mxu0 0
    %6428 = vmatpush1.bf16.msra.mxu0 %v6112
    %6429 = vmatprep.subr.bf16.mxu0 0
    %6430 = vmatpush1.bf16.msra.mxu0 %v6111
    %6431 = vmatprep.subr.bf16.mxu0 0
    %6432 = vmatpush2.bf16.msra.mxu0 %v6126
    %6433 = vmatprep.subr.bf16.mxu0 0
    %6434 = vmatpush2.bf16.msra.mxu0 %v6125
    %6435 = vmatprep.subr.bf16.mxu0 0
    %6436 = vmatpush2.bf16.msra.mxu0 %v6124
    %6437 = vmatprep.subr.bf16.mxu0 0
    %6438 = vmatpush2.bf16.msra.mxu0 %v6123
    %6439 = vmatprep.subr.bf16.mxu0 0
    %6440 = vmatpush2.bf16.msra.mxu0 %v6122
    %6441 = vmatprep.subr.bf16.mxu0 0
    %6442 = vmatpush2.bf16.msra.mxu0 %v6121
    %6443 = vmatprep.subr.bf16.mxu0 0
    %6444 = vmatpush2.bf16.msra.mxu0 %v6120
    %6445 = vmatprep.subr.bf16.mxu0 0
    %6446 = vmatpush2.bf16.msra.mxu0 %v6119
    %6447 = vmatprep.mubr.bf16.mxu0 %v5555
    %6448 = vmatmul.mubr.bf16.gmra.mxu0 %v5554
    %v6449 = vpop.f32.mrf.mxu0
    %v6450 = vadd.f32 %v6410, %v6449
    %v6451 = vpop.f32.mrf.mxu0
    %v6452 = vpop.f32.mrf.mxu0
    %v6453 = vpop.f32.mrf.mxu0
    %6454 = vdwg.mxu0
    %6455 = vmatprep.subr.bf16.mxu0 0
    %6456 = vmatpush1.bf16.msra.mxu0 %v6134
    %6457 = vmatprep.subr.bf16.mxu0 0
    %6458 = vmatpush1.bf16.msra.mxu0 %v6133
    %6459 = vmatprep.subr.bf16.mxu0 0
    %6460 = vmatpush1.bf16.msra.mxu0 %v6132
    %6461 = vmatprep.subr.bf16.mxu0 0
    %6462 = vmatpush1.bf16.msra.mxu0 %v6131
    %6463 = vmatprep.subr.bf16.mxu0 0
    %6464 = vmatpush1.bf16.msra.mxu0 %v6130
    %6465 = vmatprep.subr.bf16.mxu0 0
    %6466 = vmatpush1.bf16.msra.mxu0 %v6129
    %6467 = vmatprep.subr.bf16.mxu0 0
    %6468 = vmatpush1.bf16.msra.mxu0 %v6128
    %6469 = vmatprep.subr.bf16.mxu0 0
    %6470 = vmatpush1.bf16.msra.mxu0 %v6127
    %6471 = vmatprep.subr.bf16.mxu0 0
    %6472 = vmatpush2.bf16.msra.mxu0 %v6142
    %6473 = vmatprep.subr.bf16.mxu0 0
    %6474 = vmatpush2.bf16.msra.mxu0 %v6141
    %6475 = vmatprep.subr.bf16.mxu0 0
    %6476 = vmatpush2.bf16.msra.mxu0 %v6140
    %6477 = vmatprep.subr.bf16.mxu0 0
    %6478 = vmatpush2.bf16.msra.mxu0 %v6139
    %6479 = vmatprep.subr.bf16.mxu0 0
    %6480 = vmatpush2.bf16.msra.mxu0 %v6138
    %6481 = vmatprep.subr.bf16.mxu0 0
    %6482 = vmatpush2.bf16.msra.mxu0 %v6137
    %6483 = vmatprep.subr.bf16.mxu0 0
    %6484 = vmatpush2.bf16.msra.mxu0 %v6136
    %6485 = vmatprep.subr.bf16.mxu0 0
    %6486 = vmatpush2.bf16.msra.mxu0 %v6135
    %6487 = vmatprep.mubr.bf16.mxu0 %v5557
    %6488 = vmatmul.mubr.bf16.gmra.mxu0 %v5556
    %v6489 = vpop.f32.mrf.mxu0
    %v6490 = vadd.f32 %v6450, %v6489
    %v6491 = vpop.f32.mrf.mxu0
    %v6492 = vpop.f32.mrf.mxu0
    %v6493 = vpop.f32.mrf.mxu0
    %6494 = vdwg.mxu0
    %6495 = vmatprep.subr.bf16.mxu0 0
    %6496 = vmatpush1.bf16.msra.mxu0 %v6150
    %6497 = vmatprep.subr.bf16.mxu0 0
    %6498 = vmatpush1.bf16.msra.mxu0 %v6149
    %6499 = vmatprep.subr.bf16.mxu0 0
    %6500 = vmatpush1.bf16.msra.mxu0 %v6148
    %6501 = vmatprep.subr.bf16.mxu0 0
    %6502 = vmatpush1.bf16.msra.mxu0 %v6147
    %6503 = vmatprep.subr.bf16.mxu0 0
    %6504 = vmatpush1.bf16.msra.mxu0 %v6146
    %6505 = vmatprep.subr.bf16.mxu0 0
    %6506 = vmatpush1.bf16.msra.mxu0 %v6145
    %6507 = vmatprep.subr.bf16.mxu0 0
    %6508 = vmatpush1.bf16.msra.mxu0 %v6144
    %6509 = vmatprep.subr.bf16.mxu0 0
    %6510 = vmatpush1.bf16.msra.mxu0 %v6143
    %6511 = vmatprep.subr.bf16.mxu0 0
    %6512 = vmatpush2.bf16.msra.mxu0 %v6158
    %6513 = vmatprep.subr.bf16.mxu0 0
    %6514 = vmatpush2.bf16.msra.mxu0 %v6157
    %6515 = vmatprep.subr.bf16.mxu0 0
    %6516 = vmatpush2.bf16.msra.mxu0 %v6156
    %6517 = vmatprep.subr.bf16.mxu0 0
    %6518 = vmatpush2.bf16.msra.mxu0 %v6155
    %6519 = vmatprep.subr.bf16.mxu0 0
    %6520 = vmatpush2.bf16.msra.mxu0 %v6154
    %6521 = vmatprep.subr.bf16.mxu0 0
    %6522 = vmatpush2.bf16.msra.mxu0 %v6153
    %6523 = vmatprep.subr.bf16.mxu0 0
    %6524 = vmatpush2.bf16.msra.mxu0 %v6152
    %6525 = vmatprep.subr.bf16.mxu0 0
    %6526 = vmatpush2.bf16.msra.mxu0 %v6151
    %6527 = vmatprep.mubr.bf16.mxu0 %v5559
    %6528 = vmatmul.mubr.bf16.gmra.mxu0 %v5558
    %v6529 = vpop.f32.mrf.mxu0
    %v6530 = vadd.f32 %v6490, %v6529
    %v6531 = vpop.f32.mrf.mxu0
    %v6532 = vpop.f32.mrf.mxu0
    %v6533 = vpop.f32.mrf.mxu0
    %6534 = vdwg.mxu0
    %6535 = vmatprep.subr.bf16.mxu0 0
    %6536 = vmatpush1.bf16.msra.mxu0 %v6166
    %6537 = vmatprep.subr.bf16.mxu0 0
    %6538 = vmatpush1.bf16.msra.mxu0 %v6165
    %6539 = vmatprep.subr.bf16.mxu0 0
    %6540 = vmatpush1.bf16.msra.mxu0 %v6164
    %6541 = vmatprep.subr.bf16.mxu0 0
    %6542 = vmatpush1.bf16.msra.mxu0 %v6163
    %6543 = vmatprep.subr.bf16.mxu0 0
    %6544 = vmatpush1.bf16.msra.mxu0 %v6162
    %6545 = vmatprep.subr.bf16.mxu0 0
    %6546 = vmatpush1.bf16.msra.mxu0 %v6161
    %6547 = vmatprep.subr.bf16.mxu0 0
    %6548 = vmatpush1.bf16.msra.mxu0 %v6160
    %6549 = vmatprep.subr.bf16.mxu0 0
    %6550 = vmatpush1.bf16.msra.mxu0 %v6159
    %6551 = vmatprep.subr.bf16.mxu0 0
    %6552 = vmatpush2.bf16.msra.mxu0 %v6174
    %6553 = vmatprep.subr.bf16.mxu0 0
    %6554 = vmatpush2.bf16.msra.mxu0 %v6173
    %6555 = vmatprep.subr.bf16.mxu0 0
    %6556 = vmatpush2.bf16.msra.mxu0 %v6172
    %6557 = vmatprep.subr.bf16.mxu0 0
    %6558 = vmatpush2.bf16.msra.mxu0 %v6171
    %6559 = vmatprep.subr.bf16.mxu0 0
    %6560 = vmatpush2.bf16.msra.mxu0 %v6170
    %6561 = vmatprep.subr.bf16.mxu0 0
    %6562 = vmatpush2.bf16.msra.mxu0 %v6169
    %6563 = vmatprep.subr.bf16.mxu0 0
    %6564 = vmatpush2.bf16.msra.mxu0 %v6168
    %6565 = vmatprep.subr.bf16.mxu0 0
    %6566 = vmatpush2.bf16.msra.mxu0 %v6167
    %6567 = vmatprep.mubr.bf16.mxu0 %v5561
    %6568 = vmatmul.mubr.bf16.gmra.mxu0 %v5560
    %v6569 = vpop.f32.mrf.mxu0
    %v6570 = vadd.f32 %v6530, %v6569
    %v6571 = vpop.f32.mrf.mxu0
    %v6572 = vpop.f32.mrf.mxu0
    %v6573 = vpop.f32.mrf.mxu0
    %6574 = vdwg.mxu0
    %6575 = vmatprep.subr.bf16.mxu0 0
    %6576 = vmatpush1.bf16.msra.mxu0 %v6182
    %6577 = vmatprep.subr.bf16.mxu0 0
    %6578 = vmatpush1.bf16.msra.mxu0 %v6181
    %6579 = vmatprep.subr.bf16.mxu0 0
    %6580 = vmatpush1.bf16.msra.mxu0 %v6180
    %6581 = vmatprep.subr.bf16.mxu0 0
    %6582 = vmatpush1.bf16.msra.mxu0 %v6179
    %6583 = vmatprep.subr.bf16.mxu0 0
    %6584 = vmatpush1.bf16.msra.mxu0 %v6178
    %6585 = vmatprep.subr.bf16.mxu0 0
    %6586 = vmatpush1.bf16.msra.mxu0 %v6177
    %6587 = vmatprep.subr.bf16.mxu0 0
    %6588 = vmatpush1.bf16.msra.mxu0 %v6176
    %6589 = vmatprep.subr.bf16.mxu0 0
    %6590 = vmatpush1.bf16.msra.mxu0 %v6175
    %6591 = vmatprep.subr.bf16.mxu0 0
    %6592 = vmatpush2.bf16.msra.mxu0 %v6190
    %6593 = vmatprep.subr.bf16.mxu0 0
    %6594 = vmatpush2.bf16.msra.mxu0 %v6189
    %6595 = vmatprep.subr.bf16.mxu0 0
    %6596 = vmatpush2.bf16.msra.mxu0 %v6188
    %6597 = vmatprep.subr.bf16.mxu0 0
    %6598 = vmatpush2.bf16.msra.mxu0 %v6187
    %6599 = vmatprep.subr.bf16.mxu0 0
    %6600 = vmatpush2.bf16.msra.mxu0 %v6186
    %6601 = vmatprep.subr.bf16.mxu0 0
    %6602 = vmatpush2.bf16.msra.mxu0 %v6185
    %6603 = vmatprep.subr.bf16.mxu0 0
    %6604 = vmatpush2.bf16.msra.mxu0 %v6184
    %6605 = vmatprep.subr.bf16.mxu0 0
    %6606 = vmatpush2.bf16.msra.mxu0 %v6183
    %6607 = vmatprep.mubr.bf16.mxu0 %v5563
    %6608 = vmatmul.mubr.bf16.gmra.mxu0 %v5562
    %v6609 = vpop.f32.mrf.mxu0
    %v6610 = vadd.f32 %v6570, %v6609
    %v6611 = vpop.f32.mrf.mxu0
    %v6612 = vpop.f32.mrf.mxu0
    %v6613 = vpop.f32.mrf.mxu0
    %6614 = vdwg.mxu0
    %6615 = vmatprep.subr.bf16.mxu0 0
    %6616 = vmatpush1.bf16.msra.mxu0 %v6198
    %6617 = vmatprep.subr.bf16.mxu0 0
    %6618 = vmatpush1.bf16.msra.mxu0 %v6197
    %6619 = vmatprep.subr.bf16.mxu0 0
    %6620 = vmatpush1.bf16.msra.mxu0 %v6196
    %6621 = vmatprep.subr.bf16.mxu0 0
    %6622 = vmatpush1.bf16.msra.mxu0 %v6195
    %6623 = vmatprep.subr.bf16.mxu0 0
    %6624 = vmatpush1.bf16.msra.mxu0 %v6194
    %6625 = vmatprep.subr.bf16.mxu0 0
    %6626 = vmatpush1.bf16.msra.mxu0 %v6193
    %6627 = vmatprep.subr.bf16.mxu0 0
    %6628 = vmatpush1.bf16.msra.mxu0 %v6192
    %6629 = vmatprep.subr.bf16.mxu0 0
    %6630 = vmatpush1.bf16.msra.mxu0 %v6191
    %6631 = vmatprep.subr.bf16.mxu0 0
    %6632 = vmatpush2.bf16.msra.mxu0 %v6206
    %6633 = vmatprep.subr.bf16.mxu0 0
    %6634 = vmatpush2.bf16.msra.mxu0 %v6205
    %6635 = vmatprep.subr.bf16.mxu0 0
    %6636 = vmatpush2.bf16.msra.mxu0 %v6204
    %6637 = vmatprep.subr.bf16.mxu0 0
    %6638 = vmatpush2.bf16.msra.mxu0 %v6203
    %6639 = vmatprep.subr.bf16.mxu0 0
    %6640 = vmatpush2.bf16.msra.mxu0 %v6202
    %6641 = vmatprep.subr.bf16.mxu0 0
    %6642 = vmatpush2.bf16.msra.mxu0 %v6201
    %6643 = vmatprep.subr.bf16.mxu0 0
    %6644 = vmatpush2.bf16.msra.mxu0 %v6200
    %6645 = vmatprep.subr.bf16.mxu0 0
    %6646 = vmatpush2.bf16.msra.mxu0 %v6199
    %6647 = vmatprep.mubr.bf16.mxu0 %v5565
    %6648 = vmatmul.mubr.bf16.gmra.mxu0 %v5564
    %v6649 = vpop.f32.mrf.mxu0
    %v6650 = vadd.f32 %v6610, %v6649
    %v6651 = vpop.f32.mrf.mxu0
    %v6652 = vpop.f32.mrf.mxu0
    %v6653 = vpop.f32.mrf.mxu0
    %6654 = vdwg.mxu0
    %6655 = vst [vmem:[#allocation20] sm:$0xff] %v6650
    %v6656 = vld [vmem:[#allocation11] sm:$0xff]
    %v6657 = vld [vmem:[#allocation11 + $0x8] sm:$0xff]
    %v6658 = vld [vmem:[#allocation11 + $0x10] sm:$0xff]
    %v6659 = vld [vmem:[#allocation11 + $0x18] sm:$0xff]
    %v6660 = vld [vmem:[#allocation11 + $0x20] sm:$0xff]
    %v6661 = vld [vmem:[#allocation11 + $0x28] sm:$0xff]
    %v6662 = vld [vmem:[#allocation11 + $0x30] sm:$0xff]
    %v6663 = vld [vmem:[#allocation11 + $0x38] sm:$0xff]
    %v6664 = vld [vmem:[#allocation11 + $0x40] sm:$0xff]
    %v6665 = vld [vmem:[#allocation11 + $0x48] sm:$0xff]
    %v6666 = vld [vmem:[#allocation11 + $0x50] sm:$0xff]
    %v6667 = vld [vmem:[#allocation11 + $0x58] sm:$0xff]
    %v6668 = vld [vmem:[#allocation11 + $0x60] sm:$0xff]
    %v6669 = vld [vmem:[#allocation11 + $0x68] sm:$0xff]
    %v6670 = vld [vmem:[#allocation11 + $0x70] sm:$0xff]
    %v6671 = vld [vmem:[#allocation11 + $0x78] sm:$0xff]
    %v6672 = vld [vmem:[#allocation11 + $0x80] sm:$0xff]
    %v6673 = vld [vmem:[#allocation11 + $0x88] sm:$0xff]
    %v6674 = vld [vmem:[#allocation11 + $0x90] sm:$0xff]
    %v6675 = vld [vmem:[#allocation11 + $0x98] sm:$0xff]
    %v6676 = vld [vmem:[#allocation11 + $0xa0] sm:$0xff]
    %v6677 = vld [vmem:[#allocation11 + $0xa8] sm:$0xff]
    %v6678 = vld [vmem:[#allocation11 + $0xb0] sm:$0xff]
    %v6679 = vld [vmem:[#allocation11 + $0xb8] sm:$0xff]
    %v6680 = vld [vmem:[#allocation11 + $0xc0] sm:$0xff]
    %v6681 = vld [vmem:[#allocation11 + $0xc8] sm:$0xff]
    %v6682 = vld [vmem:[#allocation11 + $0xd0] sm:$0xff]
    %v6683 = vld [vmem:[#allocation11 + $0xd8] sm:$0xff]
    %v6684 = vld [vmem:[#allocation11 + $0xe0] sm:$0xff]
    %v6685 = vld [vmem:[#allocation11 + $0xe8] sm:$0xff]
    %v6686 = vld [vmem:[#allocation11 + $0xf0] sm:$0xff]
    %v6687 = vld [vmem:[#allocation11 + $0xf8] sm:$0xff]
    %v6688 = vld [vmem:[#allocation11 + $0x100] sm:$0xff]
    %v6689 = vld [vmem:[#allocation11 + $0x108] sm:$0xff]
    %v6690 = vld [vmem:[#allocation11 + $0x110] sm:$0xff]
    %v6691 = vld [vmem:[#allocation11 + $0x118] sm:$0xff]
    %v6692 = vld [vmem:[#allocation11 + $0x120] sm:$0xff]
    %v6693 = vld [vmem:[#allocation11 + $0x128] sm:$0xff]
    %v6694 = vld [vmem:[#allocation11 + $0x130] sm:$0xff]
    %v6695 = vld [vmem:[#allocation11 + $0x138] sm:$0xff]
    %v6696 = vld [vmem:[#allocation11 + $0x140] sm:$0xff]
    %v6697 = vld [vmem:[#allocation11 + $0x148] sm:$0xff]
    %v6698 = vld [vmem:[#allocation11 + $0x150] sm:$0xff]
    %v6699 = vld [vmem:[#allocation11 + $0x158] sm:$0xff]
    %v6700 = vld [vmem:[#allocation11 + $0x160] sm:$0xff]
    %v6701 = vld [vmem:[#allocation11 + $0x168] sm:$0xff]
    %v6702 = vld [vmem:[#allocation11 + $0x170] sm:$0xff]
    %v6703 = vld [vmem:[#allocation11 + $0x178] sm:$0xff]
    %v6704 = vld [vmem:[#allocation11 + $0x180] sm:$0xff]
    %v6705 = vld [vmem:[#allocation11 + $0x188] sm:$0xff]
    %v6706 = vld [vmem:[#allocation11 + $0x190] sm:$0xff]
    %v6707 = vld [vmem:[#allocation11 + $0x198] sm:$0xff]
    %v6708 = vld [vmem:[#allocation11 + $0x1a0] sm:$0xff]
    %v6709 = vld [vmem:[#allocation11 + $0x1a8] sm:$0xff]
    %v6710 = vld [vmem:[#allocation11 + $0x1b0] sm:$0xff]
    %v6711 = vld [vmem:[#allocation11 + $0x1b8] sm:$0xff]
    %v6712 = vld [vmem:[#allocation11 + $0x1c0] sm:$0xff]
    %v6713 = vld [vmem:[#allocation11 + $0x1c8] sm:$0xff]
    %v6714 = vld [vmem:[#allocation11 + $0x1d0] sm:$0xff]
    %v6715 = vld [vmem:[#allocation11 + $0x1d8] sm:$0xff]
    %v6716 = vld [vmem:[#allocation11 + $0x1e0] sm:$0xff]
    %v6717 = vld [vmem:[#allocation11 + $0x1e8] sm:$0xff]
    %v6718 = vld [vmem:[#allocation11 + $0x1f0] sm:$0xff]
    %v6719 = vld [vmem:[#allocation11 + $0x1f8] sm:$0xff]
    %v6720 = vld [vmem:[#allocation11 + $0x200] sm:$0xff]
    %v6721 = vld [vmem:[#allocation11 + $0x208] sm:$0xff]
    %v6722 = vld [vmem:[#allocation11 + $0x210] sm:$0xff]
    %v6723 = vld [vmem:[#allocation11 + $0x218] sm:$0xff]
    %v6724 = vld [vmem:[#allocation11 + $0x220] sm:$0xff]
    %v6725 = vld [vmem:[#allocation11 + $0x228] sm:$0xff]
    %v6726 = vld [vmem:[#allocation11 + $0x230] sm:$0xff]
    %v6727 = vld [vmem:[#allocation11 + $0x238] sm:$0xff]
    %v6728 = vld [vmem:[#allocation11 + $0x240] sm:$0xff]
    %v6729 = vld [vmem:[#allocation11 + $0x248] sm:$0xff]
    %v6730 = vld [vmem:[#allocation11 + $0x250] sm:$0xff]
    %v6731 = vld [vmem:[#allocation11 + $0x258] sm:$0xff]
    %v6732 = vld [vmem:[#allocation11 + $0x260] sm:$0xff]
    %v6733 = vld [vmem:[#allocation11 + $0x268] sm:$0xff]
    %v6734 = vld [vmem:[#allocation11 + $0x270] sm:$0xff]
    %v6735 = vld [vmem:[#allocation11 + $0x278] sm:$0xff]
    %v6736 = vld [vmem:[#allocation11 + $0x280] sm:$0xff]
    %v6737 = vld [vmem:[#allocation11 + $0x288] sm:$0xff]
    %v6738 = vld [vmem:[#allocation11 + $0x290] sm:$0xff]
    %v6739 = vld [vmem:[#allocation11 + $0x298] sm:$0xff]
    %v6740 = vld [vmem:[#allocation11 + $0x2a0] sm:$0xff]
    %v6741 = vld [vmem:[#allocation11 + $0x2a8] sm:$0xff]
    %v6742 = vld [vmem:[#allocation11 + $0x2b0] sm:$0xff]
    %v6743 = vld [vmem:[#allocation11 + $0x2b8] sm:$0xff]
    %v6744 = vld [vmem:[#allocation11 + $0x2c0] sm:$0xff]
    %v6745 = vld [vmem:[#allocation11 + $0x2c8] sm:$0xff]
    %v6746 = vld [vmem:[#allocation11 + $0x2d0] sm:$0xff]
    %v6747 = vld [vmem:[#allocation11 + $0x2d8] sm:$0xff]
    %v6748 = vld [vmem:[#allocation11 + $0x2e0] sm:$0xff]
    %v6749 = vld [vmem:[#allocation11 + $0x2e8] sm:$0xff]
    %v6750 = vld [vmem:[#allocation11 + $0x2f0] sm:$0xff]
    %v6751 = vld [vmem:[#allocation11 + $0x2f8] sm:$0xff]
    %v6752 = vld [vmem:[#allocation11 + $0x300] sm:$0xff]
    %v6753 = vld [vmem:[#allocation11 + $0x308] sm:$0xff]
    %v6754 = vld [vmem:[#allocation11 + $0x310] sm:$0xff]
    %v6755 = vld [vmem:[#allocation11 + $0x318] sm:$0xff]
    %v6756 = vld [vmem:[#allocation11 + $0x320] sm:$0xff]
    %v6757 = vld [vmem:[#allocation11 + $0x328] sm:$0xff]
    %v6758 = vld [vmem:[#allocation11 + $0x330] sm:$0xff]
    %v6759 = vld [vmem:[#allocation11 + $0x338] sm:$0xff]
    %v6760 = vld [vmem:[#allocation11 + $0x340] sm:$0xff]
    %v6761 = vld [vmem:[#allocation11 + $0x348] sm:$0xff]
    %v6762 = vld [vmem:[#allocation11 + $0x350] sm:$0xff]
    %v6763 = vld [vmem:[#allocation11 + $0x358] sm:$0xff]
    %v6764 = vld [vmem:[#allocation11 + $0x360] sm:$0xff]
    %v6765 = vld [vmem:[#allocation11 + $0x368] sm:$0xff]
    %v6766 = vld [vmem:[#allocation11 + $0x370] sm:$0xff]
    %v6767 = vld [vmem:[#allocation11 + $0x378] sm:$0xff]
    %v6768 = vld [vmem:[#allocation11 + $0x380] sm:$0xff]
    %v6769 = vld [vmem:[#allocation11 + $0x388] sm:$0xff]
    %v6770 = vld [vmem:[#allocation11 + $0x390] sm:$0xff]
    %v6771 = vld [vmem:[#allocation11 + $0x398] sm:$0xff]
    %v6772 = vld [vmem:[#allocation11 + $0x3a0] sm:$0xff]
    %v6773 = vld [vmem:[#allocation11 + $0x3a8] sm:$0xff]
    %v6774 = vld [vmem:[#allocation11 + $0x3b0] sm:$0xff]
    %v6775 = vld [vmem:[#allocation11 + $0x3b8] sm:$0xff]
    %v6776 = vld [vmem:[#allocation11 + $0x3c0] sm:$0xff]
    %v6777 = vld [vmem:[#allocation11 + $0x3c8] sm:$0xff]
    %v6778 = vld [vmem:[#allocation11 + $0x3d0] sm:$0xff]
    %v6779 = vld [vmem:[#allocation11 + $0x3d8] sm:$0xff]
    %v6780 = vld [vmem:[#allocation11 + $0x3e0] sm:$0xff]
    %v6781 = vld [vmem:[#allocation11 + $0x3e8] sm:$0xff]
    %v6782 = vld [vmem:[#allocation11 + $0x3f0] sm:$0xff]
    %v6783 = vld [vmem:[#allocation11 + $0x3f8] sm:$0xff]
    %v6784 = vpack.c.bf16 %v6650, %v6650
    %s6785 = scalar_lea.vmem [#allocation17], 4
    %v6786 = vld [vmem:[%s6785] ss:$8 sm:$0xf]
    %v6787 = vld [vmem:[%s6785] ss:$8 sm:$0xf0]
    %v6788 = vor.u32 %v6786, %v6787
    %s6789 = scalar_lea.vmem [#allocation17], 68
    %v6790 = vld [vmem:[%s6789] ss:$8 sm:$0xf]
    %v6791 = vld [vmem:[%s6789] ss:$8 sm:$0xf0]
    %v6792 = vor.u32 %v6790, %v6791
    %v6795 = vlaneseq
    %v6796 = vshrl.u32 %v6795, 7
    %v6797 = vsub.s32 0, %v6796
    %v6798 = vrot.slane %v6788, %v6797
    %v6799 = vlaneseq
    %v6800 = vshrl.u32 %v6799, 7
    %v6801 = vsub.s32 1, %v6800
    %v6802 = vrot.slane %v6788, %v6801
    %v6803 = vlaneseq
    %v6804 = vshrl.u32 %v6803, 7
    %v6805 = vsub.s32 2, %v6804
    %v6806 = vrot.slane %v6788, %v6805
    %v6807 = vlaneseq
    %v6808 = vshrl.u32 %v6807, 7
    %v6809 = vsub.s32 3, %v6808
    %v6810 = vrot.slane %v6788, %v6809
    %v6811 = vlaneseq
    %v6812 = vshrl.u32 %v6811, 7
    %v6813 = vsub.s32 4, %v6812
    %v6814 = vrot.slane %v6788, %v6813
    %v6815 = vlaneseq
    %v6816 = vshrl.u32 %v6815, 7
    %v6817 = vsub.s32 5, %v6816
    %v6818 = vrot.slane %v6788, %v6817
    %v6819 = vlaneseq
    %v6820 = vshrl.u32 %v6819, 7
    %v6821 = vsub.s32 6, %v6820
    %v6822 = vrot.slane %v6788, %v6821
    %v6823 = vlaneseq
    %v6824 = vshrl.u32 %v6823, 7
    %v6825 = vsub.s32 7, %v6824
    %v6826 = vrot.slane %v6788, %v6825
    %v6827 = vlaneseq
    %v6828 = vshrl.u32 %v6827, 7
    %v6829 = vsub.s32 0, %v6828
    %v6830 = vrot.slane %v6792, %v6829
    %v6831 = vlaneseq
    %v6832 = vshrl.u32 %v6831, 7
    %v6833 = vsub.s32 1, %v6832
    %v6834 = vrot.slane %v6792, %v6833
    %v6835 = vlaneseq
    %v6836 = vshrl.u32 %v6835, 7
    %v6837 = vsub.s32 2, %v6836
    %v6838 = vrot.slane %v6792, %v6837
    %v6839 = vlaneseq
    %v6840 = vshrl.u32 %v6839, 7
    %v6841 = vsub.s32 3, %v6840
    %v6842 = vrot.slane %v6792, %v6841
    %v6843 = vlaneseq
    %v6844 = vshrl.u32 %v6843, 7
    %v6845 = vsub.s32 4, %v6844
    %v6846 = vrot.slane %v6792, %v6845
    %v6847 = vlaneseq
    %v6848 = vshrl.u32 %v6847, 7
    %v6849 = vsub.s32 5, %v6848
    %v6850 = vrot.slane %v6792, %v6849
    %v6851 = vlaneseq
    %v6852 = vshrl.u32 %v6851, 7
    %v6853 = vsub.s32 6, %v6852
    %v6854 = vrot.slane %v6792, %v6853
    %v6855 = vlaneseq
    %v6856 = vshrl.u32 %v6855, 7
    %v6857 = vsub.s32 7, %v6856
    %v6858 = vrot.slane %v6792, %v6857
    %v7003 = vunpack.c.l.b16 %v6656
    %v7004 = vunpack.c.h.b16 %v6656
    %v7005 = vunpack.c.l.b16 %v6657
    %v7006 = vunpack.c.h.b16 %v6657
    %v7007 = vunpack.c.l.b16 %v6658
    %v7008 = vunpack.c.h.b16 %v6658
    %v7009 = vunpack.c.l.b16 %v6659
    %v7010 = vunpack.c.h.b16 %v6659
    %v7011 = vunpack.c.l.b16 %v6660
    %v7012 = vunpack.c.h.b16 %v6660
    %v7013 = vunpack.c.l.b16 %v6661
    %v7014 = vunpack.c.h.b16 %v6661
    %v7015 = vunpack.c.l.b16 %v6662
    %v7016 = vunpack.c.h.b16 %v6662
    %v7017 = vunpack.c.l.b16 %v6663
    %v7018 = vunpack.c.h.b16 %v6663
    %v7019 = vunpack.c.l.b16 %v6664
    %v7020 = vunpack.c.h.b16 %v6664
    %v7021 = vunpack.c.l.b16 %v6665
    %v7022 = vunpack.c.h.b16 %v6665
    %v7023 = vunpack.c.l.b16 %v6666
    %v7024 = vunpack.c.h.b16 %v6666
    %v7025 = vunpack.c.l.b16 %v6667
    %v7026 = vunpack.c.h.b16 %v6667
    %v7027 = vunpack.c.l.b16 %v6668
    %v7028 = vunpack.c.h.b16 %v6668
    %v7029 = vunpack.c.l.b16 %v6669
    %v7030 = vunpack.c.h.b16 %v6669
    %v7031 = vunpack.c.l.b16 %v6670
    %v7032 = vunpack.c.h.b16 %v6670
    %v7033 = vunpack.c.l.b16 %v6671
    %v7034 = vunpack.c.h.b16 %v6671
    %v7035 = vunpack.c.l.b16 %v6672
    %v7036 = vunpack.c.h.b16 %v6672
    %v7037 = vunpack.c.l.b16 %v6673
    %v7038 = vunpack.c.h.b16 %v6673
    %v7039 = vunpack.c.l.b16 %v6674
    %v7040 = vunpack.c.h.b16 %v6674
    %v7041 = vunpack.c.l.b16 %v6675
    %v7042 = vunpack.c.h.b16 %v6675
    %v7043 = vunpack.c.l.b16 %v6676
    %v7044 = vunpack.c.h.b16 %v6676
    %v7045 = vunpack.c.l.b16 %v6677
    %v7046 = vunpack.c.h.b16 %v6677
    %v7047 = vunpack.c.l.b16 %v6678
    %v7048 = vunpack.c.h.b16 %v6678
    %v7049 = vunpack.c.l.b16 %v6679
    %v7050 = vunpack.c.h.b16 %v6679
    %v7051 = vunpack.c.l.b16 %v6680
    %v7052 = vunpack.c.h.b16 %v6680
    %v7053 = vunpack.c.l.b16 %v6681
    %v7054 = vunpack.c.h.b16 %v6681
    %v7055 = vunpack.c.l.b16 %v6682
    %v7056 = vunpack.c.h.b16 %v6682
    %v7057 = vunpack.c.l.b16 %v6683
    %v7058 = vunpack.c.h.b16 %v6683
    %v7059 = vunpack.c.l.b16 %v6684
    %v7060 = vunpack.c.h.b16 %v6684
    %v7061 = vunpack.c.l.b16 %v6685
    %v7062 = vunpack.c.h.b16 %v6685
    %v7063 = vunpack.c.l.b16 %v6686
    %v7064 = vunpack.c.h.b16 %v6686
    %v7065 = vunpack.c.l.b16 %v6687
    %v7066 = vunpack.c.h.b16 %v6687
    %v7067 = vunpack.c.l.b16 %v6688
    %v7068 = vunpack.c.h.b16 %v6688
    %v7069 = vunpack.c.l.b16 %v6689
    %v7070 = vunpack.c.h.b16 %v6689
    %v7071 = vunpack.c.l.b16 %v6690
    %v7072 = vunpack.c.h.b16 %v6690
    %v7073 = vunpack.c.l.b16 %v6691
    %v7074 = vunpack.c.h.b16 %v6691
    %v7075 = vunpack.c.l.b16 %v6692
    %v7076 = vunpack.c.h.b16 %v6692
    %v7077 = vunpack.c.l.b16 %v6693
    %v7078 = vunpack.c.h.b16 %v6693
    %v7079 = vunpack.c.l.b16 %v6694
    %v7080 = vunpack.c.h.b16 %v6694
    %v7081 = vunpack.c.l.b16 %v6695
    %v7082 = vunpack.c.h.b16 %v6695
    %v7083 = vunpack.c.l.b16 %v6696
    %v7084 = vunpack.c.h.b16 %v6696
    %v7085 = vunpack.c.l.b16 %v6697
    %v7086 = vunpack.c.h.b16 %v6697
    %v7087 = vunpack.c.l.b16 %v6698
    %v7088 = vunpack.c.h.b16 %v6698
    %v7089 = vunpack.c.l.b16 %v6699
    %v7090 = vunpack.c.h.b16 %v6699
    %v7091 = vunpack.c.l.b16 %v6700
    %v7092 = vunpack.c.h.b16 %v6700
    %v7093 = vunpack.c.l.b16 %v6701
    %v7094 = vunpack.c.h.b16 %v6701
    %v7095 = vunpack.c.l.b16 %v6702
    %v7096 = vunpack.c.h.b16 %v6702
    %v7097 = vunpack.c.l.b16 %v6703
    %v7098 = vunpack.c.h.b16 %v6703
    %v7099 = vunpack.c.l.b16 %v6704
    %v7100 = vunpack.c.h.b16 %v6704
    %v7101 = vunpack.c.l.b16 %v6705
    %v7102 = vunpack.c.h.b16 %v6705
    %v7103 = vunpack.c.l.b16 %v6706
    %v7104 = vunpack.c.h.b16 %v6706
    %v7105 = vunpack.c.l.b16 %v6707
    %v7106 = vunpack.c.h.b16 %v6707
    %v7107 = vunpack.c.l.b16 %v6708
    %v7108 = vunpack.c.h.b16 %v6708
    %v7109 = vunpack.c.l.b16 %v6709
    %v7110 = vunpack.c.h.b16 %v6709
    %v7111 = vunpack.c.l.b16 %v6710
    %v7112 = vunpack.c.h.b16 %v6710
    %v7113 = vunpack.c.l.b16 %v6711
    %v7114 = vunpack.c.h.b16 %v6711
    %v7115 = vunpack.c.l.b16 %v6712
    %v7116 = vunpack.c.h.b16 %v6712
    %v7117 = vunpack.c.l.b16 %v6713
    %v7118 = vunpack.c.h.b16 %v6713
    %v7119 = vunpack.c.l.b16 %v6714
    %v7120 = vunpack.c.h.b16 %v6714
    %v7121 = vunpack.c.l.b16 %v6715
    %v7122 = vunpack.c.h.b16 %v6715
    %v7123 = vunpack.c.l.b16 %v6716
    %v7124 = vunpack.c.h.b16 %v6716
    %v7125 = vunpack.c.l.b16 %v6717
    %v7126 = vunpack.c.h.b16 %v6717
    %v7127 = vunpack.c.l.b16 %v6718
    %v7128 = vunpack.c.h.b16 %v6718
    %v7129 = vunpack.c.l.b16 %v6719
    %v7130 = vunpack.c.h.b16 %v6719
    %v7131 = vunpack.c.l.b16 %v6720
    %v7132 = vunpack.c.h.b16 %v6720
    %v7133 = vunpack.c.l.b16 %v6721
    %v7134 = vunpack.c.h.b16 %v6721
    %v7135 = vunpack.c.l.b16 %v6722
    %v7136 = vunpack.c.h.b16 %v6722
    %v7137 = vunpack.c.l.b16 %v6723
    %v7138 = vunpack.c.h.b16 %v6723
    %v7139 = vunpack.c.l.b16 %v6724
    %v7140 = vunpack.c.h.b16 %v6724
    %v7141 = vunpack.c.l.b16 %v6725
    %v7142 = vunpack.c.h.b16 %v6725
    %v7143 = vunpack.c.l.b16 %v6726
    %v7144 = vunpack.c.h.b16 %v6726
    %v7145 = vunpack.c.l.b16 %v6727
    %v7146 = vunpack.c.h.b16 %v6727
    %v7147 = vunpack.c.l.b16 %v6728
    %v7148 = vunpack.c.h.b16 %v6728
    %v7149 = vunpack.c.l.b16 %v6729
    %v7150 = vunpack.c.h.b16 %v6729
    %v7151 = vunpack.c.l.b16 %v6730
    %v7152 = vunpack.c.h.b16 %v6730
    %v7153 = vunpack.c.l.b16 %v6731
    %v7154 = vunpack.c.h.b16 %v6731
    %v7155 = vunpack.c.l.b16 %v6732
    %v7156 = vunpack.c.h.b16 %v6732
    %v7157 = vunpack.c.l.b16 %v6733
    %v7158 = vunpack.c.h.b16 %v6733
    %v7159 = vunpack.c.l.b16 %v6734
    %v7160 = vunpack.c.h.b16 %v6734
    %v7161 = vunpack.c.l.b16 %v6735
    %v7162 = vunpack.c.h.b16 %v6735
    %v7163 = vunpack.c.l.b16 %v6736
    %v7164 = vunpack.c.h.b16 %v6736
    %v7165 = vunpack.c.l.b16 %v6737
    %v7166 = vunpack.c.h.b16 %v6737
    %v7167 = vunpack.c.l.b16 %v6738
    %v7168 = vunpack.c.h.b16 %v6738
    %v7169 = vunpack.c.l.b16 %v6739
    %v7170 = vunpack.c.h.b16 %v6739
    %v7171 = vunpack.c.l.b16 %v6740
    %v7172 = vunpack.c.h.b16 %v6740
    %v7173 = vunpack.c.l.b16 %v6741
    %v7174 = vunpack.c.h.b16 %v6741
    %v7175 = vunpack.c.l.b16 %v6742
    %v7176 = vunpack.c.h.b16 %v6742
    %v7177 = vunpack.c.l.b16 %v6743
    %v7178 = vunpack.c.h.b16 %v6743
    %v7179 = vunpack.c.l.b16 %v6744
    %v7180 = vunpack.c.h.b16 %v6744
    %v7181 = vunpack.c.l.b16 %v6745
    %v7182 = vunpack.c.h.b16 %v6745
    %v7183 = vunpack.c.l.b16 %v6746
    %v7184 = vunpack.c.h.b16 %v6746
    %v7185 = vunpack.c.l.b16 %v6747
    %v7186 = vunpack.c.h.b16 %v6747
    %v7187 = vunpack.c.l.b16 %v6748
    %v7188 = vunpack.c.h.b16 %v6748
    %v7189 = vunpack.c.l.b16 %v6749
    %v7190 = vunpack.c.h.b16 %v6749
    %v7191 = vunpack.c.l.b16 %v6750
    %v7192 = vunpack.c.h.b16 %v6750
    %v7193 = vunpack.c.l.b16 %v6751
    %v7194 = vunpack.c.h.b16 %v6751
    %v7195 = vunpack.c.l.b16 %v6752
    %v7196 = vunpack.c.h.b16 %v6752
    %v7197 = vunpack.c.l.b16 %v6753
    %v7198 = vunpack.c.h.b16 %v6753
    %v7199 = vunpack.c.l.b16 %v6754
    %v7200 = vunpack.c.h.b16 %v6754
    %v7201 = vunpack.c.l.b16 %v6755
    %v7202 = vunpack.c.h.b16 %v6755
    %v7203 = vunpack.c.l.b16 %v6756
    %v7204 = vunpack.c.h.b16 %v6756
    %v7205 = vunpack.c.l.b16 %v6757
    %v7206 = vunpack.c.h.b16 %v6757
    %v7207 = vunpack.c.l.b16 %v6758
    %v7208 = vunpack.c.h.b16 %v6758
    %v7209 = vunpack.c.l.b16 %v6759
    %v7210 = vunpack.c.h.b16 %v6759
    %v7211 = vunpack.c.l.b16 %v6760
    %v7212 = vunpack.c.h.b16 %v6760
    %v7213 = vunpack.c.l.b16 %v6761
    %v7214 = vunpack.c.h.b16 %v6761
    %v7215 = vunpack.c.l.b16 %v6762
    %v7216 = vunpack.c.h.b16 %v6762
    %v7217 = vunpack.c.l.b16 %v6763
    %v7218 = vunpack.c.h.b16 %v6763
    %v7219 = vunpack.c.l.b16 %v6764
    %v7220 = vunpack.c.h.b16 %v6764
    %v7221 = vunpack.c.l.b16 %v6765
    %v7222 = vunpack.c.h.b16 %v6765
    %v7223 = vunpack.c.l.b16 %v6766
    %v7224 = vunpack.c.h.b16 %v6766
    %v7225 = vunpack.c.l.b16 %v6767
    %v7226 = vunpack.c.h.b16 %v6767
    %v7227 = vunpack.c.l.b16 %v6768
    %v7228 = vunpack.c.h.b16 %v6768
    %v7229 = vunpack.c.l.b16 %v6769
    %v7230 = vunpack.c.h.b16 %v6769
    %v7231 = vunpack.c.l.b16 %v6770
    %v7232 = vunpack.c.h.b16 %v6770
    %v7233 = vunpack.c.l.b16 %v6771
    %v7234 = vunpack.c.h.b16 %v6771
    %v7235 = vunpack.c.l.b16 %v6772
    %v7236 = vunpack.c.h.b16 %v6772
    %v7237 = vunpack.c.l.b16 %v6773
    %v7238 = vunpack.c.h.b16 %v6773
    %v7239 = vunpack.c.l.b16 %v6774
    %v7240 = vunpack.c.h.b16 %v6774
    %v7241 = vunpack.c.l.b16 %v6775
    %v7242 = vunpack.c.h.b16 %v6775
    %v7243 = vunpack.c.l.b16 %v6776
    %v7244 = vunpack.c.h.b16 %v6776
    %v7245 = vunpack.c.l.b16 %v6777
    %v7246 = vunpack.c.h.b16 %v6777
    %v7247 = vunpack.c.l.b16 %v6778
    %v7248 = vunpack.c.h.b16 %v6778
    %v7249 = vunpack.c.l.b16 %v6779
    %v7250 = vunpack.c.h.b16 %v6779
    %v7251 = vunpack.c.l.b16 %v6780
    %v7252 = vunpack.c.h.b16 %v6780
    %v7253 = vunpack.c.l.b16 %v6781
    %v7254 = vunpack.c.h.b16 %v6781
    %v7255 = vunpack.c.l.b16 %v6782
    %v7256 = vunpack.c.h.b16 %v6782
    %v7257 = vunpack.c.l.b16 %v6783
    %v7258 = vunpack.c.h.b16 %v6783
    %v7259 = vpack.c.b16 %v7019, %v7003
    %v7260 = vpack.c.b16 %v7020, %v7004
    %v7261 = vpack.c.b16 %v7021, %v7005
    %v7262 = vpack.c.b16 %v7022, %v7006
    %v7263 = vpack.c.b16 %v7023, %v7007
    %v7264 = vpack.c.b16 %v7024, %v7008
    %v7265 = vpack.c.b16 %v7025, %v7009
    %v7266 = vpack.c.b16 %v7026, %v7010
    %v7267 = vpack.c.b16 %v7027, %v7011
    %v7268 = vpack.c.b16 %v7028, %v7012
    %v7269 = vpack.c.b16 %v7029, %v7013
    %v7270 = vpack.c.b16 %v7030, %v7014
    %v7271 = vpack.c.b16 %v7031, %v7015
    %v7272 = vpack.c.b16 %v7032, %v7016
    %v7273 = vpack.c.b16 %v7033, %v7017
    %v7274 = vpack.c.b16 %v7034, %v7018
    %v7275 = vpack.c.b16 %v7051, %v7035
    %v7276 = vpack.c.b16 %v7052, %v7036
    %v7277 = vpack.c.b16 %v7053, %v7037
    %v7278 = vpack.c.b16 %v7054, %v7038
    %v7279 = vpack.c.b16 %v7055, %v7039
    %v7280 = vpack.c.b16 %v7056, %v7040
    %v7281 = vpack.c.b16 %v7057, %v7041
    %v7282 = vpack.c.b16 %v7058, %v7042
    %v7283 = vpack.c.b16 %v7059, %v7043
    %v7284 = vpack.c.b16 %v7060, %v7044
    %v7285 = vpack.c.b16 %v7061, %v7045
    %v7286 = vpack.c.b16 %v7062, %v7046
    %v7287 = vpack.c.b16 %v7063, %v7047
    %v7288 = vpack.c.b16 %v7064, %v7048
    %v7289 = vpack.c.b16 %v7065, %v7049
    %v7290 = vpack.c.b16 %v7066, %v7050
    %v7291 = vpack.c.b16 %v7083, %v7067
    %v7292 = vpack.c.b16 %v7084, %v7068
    %v7293 = vpack.c.b16 %v7085, %v7069
    %v7294 = vpack.c.b16 %v7086, %v7070
    %v7295 = vpack.c.b16 %v7087, %v7071
    %v7296 = vpack.c.b16 %v7088, %v7072
    %v7297 = vpack.c.b16 %v7089, %v7073
    %v7298 = vpack.c.b16 %v7090, %v7074
    %v7299 = vpack.c.b16 %v7091, %v7075
    %v7300 = vpack.c.b16 %v7092, %v7076
    %v7301 = vpack.c.b16 %v7093, %v7077
    %v7302 = vpack.c.b16 %v7094, %v7078
    %v7303 = vpack.c.b16 %v7095, %v7079
    %v7304 = vpack.c.b16 %v7096, %v7080
    %v7305 = vpack.c.b16 %v7097, %v7081
    %v7306 = vpack.c.b16 %v7098, %v7082
    %v7307 = vpack.c.b16 %v7115, %v7099
    %v7308 = vpack.c.b16 %v7116, %v7100
    %v7309 = vpack.c.b16 %v7117, %v7101
    %v7310 = vpack.c.b16 %v7118, %v7102
    %v7311 = vpack.c.b16 %v7119, %v7103
    %v7312 = vpack.c.b16 %v7120, %v7104
    %v7313 = vpack.c.b16 %v7121, %v7105
    %v7314 = vpack.c.b16 %v7122, %v7106
    %v7315 = vpack.c.b16 %v7123, %v7107
    %v7316 = vpack.c.b16 %v7124, %v7108
    %v7317 = vpack.c.b16 %v7125, %v7109
    %v7318 = vpack.c.b16 %v7126, %v7110
    %v7319 = vpack.c.b16 %v7127, %v7111
    %v7320 = vpack.c.b16 %v7128, %v7112
    %v7321 = vpack.c.b16 %v7129, %v7113
    %v7322 = vpack.c.b16 %v7130, %v7114
    %v7323 = vpack.c.b16 %v7147, %v7131
    %v7324 = vpack.c.b16 %v7148, %v7132
    %v7325 = vpack.c.b16 %v7149, %v7133
    %v7326 = vpack.c.b16 %v7150, %v7134
    %v7327 = vpack.c.b16 %v7151, %v7135
    %v7328 = vpack.c.b16 %v7152, %v7136
    %v7329 = vpack.c.b16 %v7153, %v7137
    %v7330 = vpack.c.b16 %v7154, %v7138
    %v7331 = vpack.c.b16 %v7155, %v7139
    %v7332 = vpack.c.b16 %v7156, %v7140
    %v7333 = vpack.c.b16 %v7157, %v7141
    %v7334 = vpack.c.b16 %v7158, %v7142
    %v7335 = vpack.c.b16 %v7159, %v7143
    %v7336 = vpack.c.b16 %v7160, %v7144
    %v7337 = vpack.c.b16 %v7161, %v7145
    %v7338 = vpack.c.b16 %v7162, %v7146
    %v7339 = vpack.c.b16 %v7179, %v7163
    %v7340 = vpack.c.b16 %v7180, %v7164
    %v7341 = vpack.c.b16 %v7181, %v7165
    %v7342 = vpack.c.b16 %v7182, %v7166
    %v7343 = vpack.c.b16 %v7183, %v7167
    %v7344 = vpack.c.b16 %v7184, %v7168
    %v7345 = vpack.c.b16 %v7185, %v7169
    %v7346 = vpack.c.b16 %v7186, %v7170
    %v7347 = vpack.c.b16 %v7187, %v7171
    %v7348 = vpack.c.b16 %v7188, %v7172
    %v7349 = vpack.c.b16 %v7189, %v7173
    %v7350 = vpack.c.b16 %v7190, %v7174
    %v7351 = vpack.c.b16 %v7191, %v7175
    %v7352 = vpack.c.b16 %v7192, %v7176
    %v7353 = vpack.c.b16 %v7193, %v7177
    %v7354 = vpack.c.b16 %v7194, %v7178
    %v7355 = vpack.c.b16 %v7211, %v7195
    %v7356 = vpack.c.b16 %v7212, %v7196
    %v7357 = vpack.c.b16 %v7213, %v7197
    %v7358 = vpack.c.b16 %v7214, %v7198
    %v7359 = vpack.c.b16 %v7215, %v7199
    %v7360 = vpack.c.b16 %v7216, %v7200
    %v7361 = vpack.c.b16 %v7217, %v7201
    %v7362 = vpack.c.b16 %v7218, %v7202
    %v7363 = vpack.c.b16 %v7219, %v7203
    %v7364 = vpack.c.b16 %v7220, %v7204
    %v7365 = vpack.c.b16 %v7221, %v7205
    %v7366 = vpack.c.b16 %v7222, %v7206
    %v7367 = vpack.c.b16 %v7223, %v7207
    %v7368 = vpack.c.b16 %v7224, %v7208
    %v7369 = vpack.c.b16 %v7225, %v7209
    %v7370 = vpack.c.b16 %v7226, %v7210
    %v7371 = vpack.c.b16 %v7243, %v7227
    %v7372 = vpack.c.b16 %v7244, %v7228
    %v7373 = vpack.c.b16 %v7245, %v7229
    %v7374 = vpack.c.b16 %v7246, %v7230
    %v7375 = vpack.c.b16 %v7247, %v7231
    %v7376 = vpack.c.b16 %v7248, %v7232
    %v7377 = vpack.c.b16 %v7249, %v7233
    %v7378 = vpack.c.b16 %v7250, %v7234
    %v7379 = vpack.c.b16 %v7251, %v7235
    %v7380 = vpack.c.b16 %v7252, %v7236
    %v7381 = vpack.c.b16 %v7253, %v7237
    %v7382 = vpack.c.b16 %v7254, %v7238
    %v7383 = vpack.c.b16 %v7255, %v7239
    %v7384 = vpack.c.b16 %v7256, %v7240
    %v7385 = vpack.c.b16 %v7257, %v7241
    %v7386 = vpack.c.b16 %v7258, %v7242
    %7515 = vmatprep.subr.bf16.mxu0 %v7372
    %7516 = vmatpush1.bf16.msra.mxu0 %v7371
    %7517 = vmatprep.subr.bf16.mxu0 %v7356
    %7518 = vmatpush1.bf16.msra.mxu0 %v7355
    %7519 = vmatprep.subr.bf16.mxu0 %v7340
    %7520 = vmatpush1.bf16.msra.mxu0 %v7339
    %7521 = vmatprep.subr.bf16.mxu0 %v7324
    %7522 = vmatpush1.bf16.msra.mxu0 %v7323
    %7523 = vmatprep.subr.bf16.mxu0 %v7308
    %7524 = vmatpush1.bf16.msra.mxu0 %v7307
    %7525 = vmatprep.subr.bf16.mxu0 %v7292
    %7526 = vmatpush1.bf16.msra.mxu0 %v7291
    %7527 = vmatprep.subr.bf16.mxu0 %v7276
    %7528 = vmatpush1.bf16.msra.mxu0 %v7275
    %7529 = vmatprep.subr.bf16.mxu0 %v7260
    %7530 = vmatpush1.bf16.msra.mxu0 %v7259
    %7531 = vmatprep.subr.bf16.mxu0 0
    %7532 = vmatpush2.bf16.msra.mxu0 0
    %7533 = vmatprep.subr.bf16.mxu0 0
    %7534 = vmatpush2.bf16.msra.mxu0 0
    %7535 = vmatprep.subr.bf16.mxu0 0
    %7536 = vmatpush2.bf16.msra.mxu0 0
    %7537 = vmatprep.subr.bf16.mxu0 0
    %7538 = vmatpush2.bf16.msra.mxu0 0
    %7539 = vmatprep.subr.bf16.mxu0 0
    %7540 = vmatpush2.bf16.msra.mxu0 0
    %7541 = vmatprep.subr.bf16.mxu0 0
    %7542 = vmatpush2.bf16.msra.mxu0 0
    %7543 = vmatprep.subr.bf16.mxu0 0
    %7544 = vmatpush2.bf16.msra.mxu0 0
    %7545 = vmatprep.subr.bf16.mxu0 0
    %7546 = vmatpush2.bf16.msra.mxu0 0
    %7547 = vmatprep.mubr.bf16.mxu0 0
    %7548 = vmatmul.mubr.bf16.gmra.mxu0 %v6784
    %v7549 = vpop.f32.mrf.mxu0
    %v7550 = vadd.f32 %v6798, %v7549
    %v7551 = vpop.f32.mrf.mxu0
    %v7552 = vadd.f32 %v6802, %v7551
    %v7553 = vpop.f32.mrf.mxu0
    %v7554 = vpop.f32.mrf.mxu0
    %7555 = vdwg.mxu0
    %7556 = vmatprep.subr.bf16.mxu0 %v7374
    %7557 = vmatpush1.bf16.msra.mxu0 %v7373
    %7558 = vmatprep.subr.bf16.mxu0 %v7358
    %7559 = vmatpush1.bf16.msra.mxu0 %v7357
    %7560 = vmatprep.subr.bf16.mxu0 %v7342
    %7561 = vmatpush1.bf16.msra.mxu0 %v7341
    %7562 = vmatprep.subr.bf16.mxu0 %v7326
    %7563 = vmatpush1.bf16.msra.mxu0 %v7325
    %7564 = vmatprep.subr.bf16.mxu0 %v7310
    %7565 = vmatpush1.bf16.msra.mxu0 %v7309
    %7566 = vmatprep.subr.bf16.mxu0 %v7294
    %7567 = vmatpush1.bf16.msra.mxu0 %v7293
    %7568 = vmatprep.subr.bf16.mxu0 %v7278
    %7569 = vmatpush1.bf16.msra.mxu0 %v7277
    %7570 = vmatprep.subr.bf16.mxu0 %v7262
    %7571 = vmatpush1.bf16.msra.mxu0 %v7261
    %7572 = vmatprep.subr.bf16.mxu0 0
    %7573 = vmatpush2.bf16.msra.mxu0 0
    %7574 = vmatprep.subr.bf16.mxu0 0
    %7575 = vmatpush2.bf16.msra.mxu0 0
    %7576 = vmatprep.subr.bf16.mxu0 0
    %7577 = vmatpush2.bf16.msra.mxu0 0
    %7578 = vmatprep.subr.bf16.mxu0 0
    %7579 = vmatpush2.bf16.msra.mxu0 0
    %7580 = vmatprep.subr.bf16.mxu0 0
    %7581 = vmatpush2.bf16.msra.mxu0 0
    %7582 = vmatprep.subr.bf16.mxu0 0
    %7583 = vmatpush2.bf16.msra.mxu0 0
    %7584 = vmatprep.subr.bf16.mxu0 0
    %7585 = vmatpush2.bf16.msra.mxu0 0
    %7586 = vmatprep.subr.bf16.mxu0 0
    %7587 = vmatpush2.bf16.msra.mxu0 0
    %7588 = vmatprep.mubr.bf16.mxu0 0
    %7589 = vmatmul.mubr.bf16.gmra.mxu0 %v6784
    %v7590 = vpop.f32.mrf.mxu0
    %v7591 = vadd.f32 %v6806, %v7590
    %v7592 = vpop.f32.mrf.mxu0
    %v7593 = vadd.f32 %v6810, %v7592
    %v7594 = vpop.f32.mrf.mxu0
    %v7595 = vpop.f32.mrf.mxu0
    %7596 = vdwg.mxu0
    %7597 = vmatprep.subr.bf16.mxu0 %v7376
    %7598 = vmatpush1.bf16.msra.mxu0 %v7375
    %7599 = vmatprep.subr.bf16.mxu0 %v7360
    %7600 = vmatpush1.bf16.msra.mxu0 %v7359
    %7601 = vmatprep.subr.bf16.mxu0 %v7344
    %7602 = vmatpush1.bf16.msra.mxu0 %v7343
    %7603 = vmatprep.subr.bf16.mxu0 %v7328
    %7604 = vmatpush1.bf16.msra.mxu0 %v7327
    %7605 = vmatprep.subr.bf16.mxu0 %v7312
    %7606 = vmatpush1.bf16.msra.mxu0 %v7311
    %7607 = vmatprep.subr.bf16.mxu0 %v7296
    %7608 = vmatpush1.bf16.msra.mxu0 %v7295
    %7609 = vmatprep.subr.bf16.mxu0 %v7280
    %7610 = vmatpush1.bf16.msra.mxu0 %v7279
    %7611 = vmatprep.subr.bf16.mxu0 %v7264
    %7612 = vmatpush1.bf16.msra.mxu0 %v7263
    %7613 = vmatprep.subr.bf16.mxu0 0
    %7614 = vmatpush2.bf16.msra.mxu0 0
    %7615 = vmatprep.subr.bf16.mxu0 0
    %7616 = vmatpush2.bf16.msra.mxu0 0
    %7617 = vmatprep.subr.bf16.mxu0 0
    %7618 = vmatpush2.bf16.msra.mxu0 0
    %7619 = vmatprep.subr.bf16.mxu0 0
    %7620 = vmatpush2.bf16.msra.mxu0 0
    %7621 = vmatprep.subr.bf16.mxu0 0
    %7622 = vmatpush2.bf16.msra.mxu0 0
    %7623 = vmatprep.subr.bf16.mxu0 0
    %7624 = vmatpush2.bf16.msra.mxu0 0
    %7625 = vmatprep.subr.bf16.mxu0 0
    %7626 = vmatpush2.bf16.msra.mxu0 0
    %7627 = vmatprep.subr.bf16.mxu0 0
    %7628 = vmatpush2.bf16.msra.mxu0 0
    %7629 = vmatprep.mubr.bf16.mxu0 0
    %7630 = vmatmul.mubr.bf16.gmra.mxu0 %v6784
    %v7631 = vpop.f32.mrf.mxu0
    %v7632 = vadd.f32 %v6814, %v7631
    %v7633 = vpop.f32.mrf.mxu0
    %v7634 = vadd.f32 %v6818, %v7633
    %v7635 = vpop.f32.mrf.mxu0
    %v7636 = vpop.f32.mrf.mxu0
    %7637 = vdwg.mxu0
    %7638 = vmatprep.subr.bf16.mxu0 %v7378
    %7639 = vmatpush1.bf16.msra.mxu0 %v7377
    %7640 = vmatprep.subr.bf16.mxu0 %v7362
    %7641 = vmatpush1.bf16.msra.mxu0 %v7361
    %7642 = vmatprep.subr.bf16.mxu0 %v7346
    %7643 = vmatpush1.bf16.msra.mxu0 %v7345
    %7644 = vmatprep.subr.bf16.mxu0 %v7330
    %7645 = vmatpush1.bf16.msra.mxu0 %v7329
    %7646 = vmatprep.subr.bf16.mxu0 %v7314
    %7647 = vmatpush1.bf16.msra.mxu0 %v7313
    %7648 = vmatprep.subr.bf16.mxu0 %v7298
    %7649 = vmatpush1.bf16.msra.mxu0 %v7297
    %7650 = vmatprep.subr.bf16.mxu0 %v7282
    %7651 = vmatpush1.bf16.msra.mxu0 %v7281
    %7652 = vmatprep.subr.bf16.mxu0 %v7266
    %7653 = vmatpush1.bf16.msra.mxu0 %v7265
    %7654 = vmatprep.subr.bf16.mxu0 0
    %7655 = vmatpush2.bf16.msra.mxu0 0
    %7656 = vmatprep.subr.bf16.mxu0 0
    %7657 = vmatpush2.bf16.msra.mxu0 0
    %7658 = vmatprep.subr.bf16.mxu0 0
    %7659 = vmatpush2.bf16.msra.mxu0 0
    %7660 = vmatprep.subr.bf16.mxu0 0
    %7661 = vmatpush2.bf16.msra.mxu0 0
    %7662 = vmatprep.subr.bf16.mxu0 0
    %7663 = vmatpush2.bf16.msra.mxu0 0
    %7664 = vmatprep.subr.bf16.mxu0 0
    %7665 = vmatpush2.bf16.msra.mxu0 0
    %7666 = vmatprep.subr.bf16.mxu0 0
    %7667 = vmatpush2.bf16.msra.mxu0 0
    %7668 = vmatprep.subr.bf16.mxu0 0
    %7669 = vmatpush2.bf16.msra.mxu0 0
    %7670 = vmatprep.mubr.bf16.mxu0 0
    %7671 = vmatmul.mubr.bf16.gmra.mxu0 %v6784
    %v7672 = vpop.f32.mrf.mxu0
    %v7673 = vadd.f32 %v6822, %v7672
    %v7674 = vpop.f32.mrf.mxu0
    %v7675 = vadd.f32 %v6826, %v7674
    %v7676 = vpop.f32.mrf.mxu0
    %v7677 = vpop.f32.mrf.mxu0
    %7678 = vdwg.mxu0
    %7679 = vmatprep.subr.bf16.mxu0 %v7380
    %7680 = vmatpush1.bf16.msra.mxu0 %v7379
    %7681 = vmatprep.subr.bf16.mxu0 %v7364
    %7682 = vmatpush1.bf16.msra.mxu0 %v7363
    %7683 = vmatprep.subr.bf16.mxu0 %v7348
    %7684 = vmatpush1.bf16.msra.mxu0 %v7347
    %7685 = vmatprep.subr.bf16.mxu0 %v7332
    %7686 = vmatpush1.bf16.msra.mxu0 %v7331
    %7687 = vmatprep.subr.bf16.mxu0 %v7316
    %7688 = vmatpush1.bf16.msra.mxu0 %v7315
    %7689 = vmatprep.subr.bf16.mxu0 %v7300
    %7690 = vmatpush1.bf16.msra.mxu0 %v7299
    %7691 = vmatprep.subr.bf16.mxu0 %v7284
    %7692 = vmatpush1.bf16.msra.mxu0 %v7283
    %7693 = vmatprep.subr.bf16.mxu0 %v7268
    %7694 = vmatpush1.bf16.msra.mxu0 %v7267
    %7695 = vmatprep.subr.bf16.mxu0 0
    %7696 = vmatpush2.bf16.msra.mxu0 0
    %7697 = vmatprep.subr.bf16.mxu0 0
    %7698 = vmatpush2.bf16.msra.mxu0 0
    %7699 = vmatprep.subr.bf16.mxu0 0
    %7700 = vmatpush2.bf16.msra.mxu0 0
    %7701 = vmatprep.subr.bf16.mxu0 0
    %7702 = vmatpush2.bf16.msra.mxu0 0
    %7703 = vmatprep.subr.bf16.mxu0 0
    %7704 = vmatpush2.bf16.msra.mxu0 0
    %7705 = vmatprep.subr.bf16.mxu0 0
    %7706 = vmatpush2.bf16.msra.mxu0 0
    %7707 = vmatprep.subr.bf16.mxu0 0
    %7708 = vmatpush2.bf16.msra.mxu0 0
    %7709 = vmatprep.subr.bf16.mxu0 0
    %7710 = vmatpush2.bf16.msra.mxu0 0
    %7711 = vmatprep.mubr.bf16.mxu0 0
    %7712 = vmatmul.mubr.bf16.gmra.mxu0 %v6784
    %v7713 = vpop.f32.mrf.mxu0
    %v7714 = vadd.f32 %v6830, %v7713
    %v7715 = vpop.f32.mrf.mxu0
    %v7716 = vadd.f32 %v6834, %v7715
    %v7717 = vpop.f32.mrf.mxu0
    %v7718 = vpop.f32.mrf.mxu0
    %7719 = vdwg.mxu0
    %7720 = vmatprep.subr.bf16.mxu0 %v7382
    %7721 = vmatpush1.bf16.msra.mxu0 %v7381
    %7722 = vmatprep.subr.bf16.mxu0 %v7366
    %7723 = vmatpush1.bf16.msra.mxu0 %v7365
    %7724 = vmatprep.subr.bf16.mxu0 %v7350
    %7725 = vmatpush1.bf16.msra.mxu0 %v7349
    %7726 = vmatprep.subr.bf16.mxu0 %v7334
    %7727 = vmatpush1.bf16.msra.mxu0 %v7333
    %7728 = vmatprep.subr.bf16.mxu0 %v7318
    %7729 = vmatpush1.bf16.msra.mxu0 %v7317
    %7730 = vmatprep.subr.bf16.mxu0 %v7302
    %7731 = vmatpush1.bf16.msra.mxu0 %v7301
    %7732 = vmatprep.subr.bf16.mxu0 %v7286
    %7733 = vmatpush1.bf16.msra.mxu0 %v7285
    %7734 = vmatprep.subr.bf16.mxu0 %v7270
    %7735 = vmatpush1.bf16.msra.mxu0 %v7269
    %7736 = vmatprep.subr.bf16.mxu0 0
    %7737 = vmatpush2.bf16.msra.mxu0 0
    %7738 = vmatprep.subr.bf16.mxu0 0
    %7739 = vmatpush2.bf16.msra.mxu0 0
    %7740 = vmatprep.subr.bf16.mxu0 0
    %7741 = vmatpush2.bf16.msra.mxu0 0
    %7742 = vmatprep.subr.bf16.mxu0 0
    %7743 = vmatpush2.bf16.msra.mxu0 0
    %7744 = vmatprep.subr.bf16.mxu0 0
    %7745 = vmatpush2.bf16.msra.mxu0 0
    %7746 = vmatprep.subr.bf16.mxu0 0
    %7747 = vmatpush2.bf16.msra.mxu0 0
    %7748 = vmatprep.subr.bf16.mxu0 0
    %7749 = vmatpush2.bf16.msra.mxu0 0
    %7750 = vmatprep.subr.bf16.mxu0 0
    %7751 = vmatpush2.bf16.msra.mxu0 0
    %7752 = vmatprep.mubr.bf16.mxu0 0
    %7753 = vmatmul.mubr.bf16.gmra.mxu0 %v6784
    %v7754 = vpop.f32.mrf.mxu0
    %v7755 = vadd.f32 %v6838, %v7754
    %v7756 = vpop.f32.mrf.mxu0
    %v7757 = vadd.f32 %v6842, %v7756
    %v7758 = vpop.f32.mrf.mxu0
    %v7759 = vpop.f32.mrf.mxu0
    %7760 = vdwg.mxu0
    %7761 = vmatprep.subr.bf16.mxu0 %v7384
    %7762 = vmatpush1.bf16.msra.mxu0 %v7383
    %7763 = vmatprep.subr.bf16.mxu0 %v7368
    %7764 = vmatpush1.bf16.msra.mxu0 %v7367
    %7765 = vmatprep.subr.bf16.mxu0 %v7352
    %7766 = vmatpush1.bf16.msra.mxu0 %v7351
    %7767 = vmatprep.subr.bf16.mxu0 %v7336
    %7768 = vmatpush1.bf16.msra.mxu0 %v7335
    %7769 = vmatprep.subr.bf16.mxu0 %v7320
    %7770 = vmatpush1.bf16.msra.mxu0 %v7319
    %7771 = vmatprep.subr.bf16.mxu0 %v7304
    %7772 = vmatpush1.bf16.msra.mxu0 %v7303
    %7773 = vmatprep.subr.bf16.mxu0 %v7288
    %7774 = vmatpush1.bf16.msra.mxu0 %v7287
    %7775 = vmatprep.subr.bf16.mxu0 %v7272
    %7776 = vmatpush1.bf16.msra.mxu0 %v7271
    %7777 = vmatprep.subr.bf16.mxu0 0
    %7778 = vmatpush2.bf16.msra.mxu0 0
    %7779 = vmatprep.subr.bf16.mxu0 0
    %7780 = vmatpush2.bf16.msra.mxu0 0
    %7781 = vmatprep.subr.bf16.mxu0 0
    %7782 = vmatpush2.bf16.msra.mxu0 0
    %7783 = vmatprep.subr.bf16.mxu0 0
    %7784 = vmatpush2.bf16.msra.mxu0 0
    %7785 = vmatprep.subr.bf16.mxu0 0
    %7786 = vmatpush2.bf16.msra.mxu0 0
    %7787 = vmatprep.subr.bf16.mxu0 0
    %7788 = vmatpush2.bf16.msra.mxu0 0
    %7789 = vmatprep.subr.bf16.mxu0 0
    %7790 = vmatpush2.bf16.msra.mxu0 0
    %7791 = vmatprep.subr.bf16.mxu0 0
    %7792 = vmatpush2.bf16.msra.mxu0 0
    %7793 = vmatprep.mubr.bf16.mxu0 0
    %7794 = vmatmul.mubr.bf16.gmra.mxu0 %v6784
    %v7795 = vpop.f32.mrf.mxu0
    %v7796 = vadd.f32 %v6846, %v7795
    %v7797 = vpop.f32.mrf.mxu0
    %v7798 = vadd.f32 %v6850, %v7797
    %v7799 = vpop.f32.mrf.mxu0
    %v7800 = vpop.f32.mrf.mxu0
    %7801 = vdwg.mxu0
    %7802 = vmatprep.subr.bf16.mxu0 %v7386
    %7803 = vmatpush1.bf16.msra.mxu0 %v7385
    %7804 = vmatprep.subr.bf16.mxu0 %v7370
    %7805 = vmatpush1.bf16.msra.mxu0 %v7369
    %7806 = vmatprep.subr.bf16.mxu0 %v7354
    %7807 = vmatpush1.bf16.msra.mxu0 %v7353
    %7808 = vmatprep.subr.bf16.mxu0 %v7338
    %7809 = vmatpush1.bf16.msra.mxu0 %v7337
    %7810 = vmatprep.subr.bf16.mxu0 %v7322
    %7811 = vmatpush1.bf16.msra.mxu0 %v7321
    %7812 = vmatprep.subr.bf16.mxu0 %v7306
    %7813 = vmatpush1.bf16.msra.mxu0 %v7305
    %7814 = vmatprep.subr.bf16.mxu0 %v7290
    %7815 = vmatpush1.bf16.msra.mxu0 %v7289
    %7816 = vmatprep.subr.bf16.mxu0 %v7274
    %7817 = vmatpush1.bf16.msra.mxu0 %v7273
    %7818 = vmatprep.subr.bf16.mxu0 0
    %7819 = vmatpush2.bf16.msra.mxu0 0
    %7820 = vmatprep.subr.bf16.mxu0 0
    %7821 = vmatpush2.bf16.msra.mxu0 0
    %7822 = vmatprep.subr.bf16.mxu0 0
    %7823 = vmatpush2.bf16.msra.mxu0 0
    %7824 = vmatprep.subr.bf16.mxu0 0
    %7825 = vmatpush2.bf16.msra.mxu0 0
    %7826 = vmatprep.subr.bf16.mxu0 0
    %7827 = vmatpush2.bf16.msra.mxu0 0
    %7828 = vmatprep.subr.bf16.mxu0 0
    %7829 = vmatpush2.bf16.msra.mxu0 0
    %7830 = vmatprep.subr.bf16.mxu0 0
    %7831 = vmatpush2.bf16.msra.mxu0 0
    %7832 = vmatprep.subr.bf16.mxu0 0
    %7833 = vmatpush2.bf16.msra.mxu0 0
    %7834 = vmatprep.mubr.bf16.mxu0 0
    %7835 = vmatmul.mubr.bf16.gmra.mxu0 %v6784
    %v7836 = vpop.f32.mrf.mxu0
    %v7837 = vadd.f32 %v6854, %v7836
    %v7838 = vpop.f32.mrf.mxu0
    %v7839 = vadd.f32 %v6858, %v7838
    %v7840 = vpop.f32.mrf.mxu0
    %v7841 = vpop.f32.mrf.mxu0
    %7842 = vdwg.mxu0
    %v7843 = vmax.f32 %v7550, 0.0
    %v7844 = vmax.f32 %v7552, 0.0
    %v7845 = vmax.f32 %v7591, 0.0
    %v7846 = vmax.f32 %v7593, 0.0
    %v7847 = vmax.f32 %v7632, 0.0
    %v7848 = vmax.f32 %v7634, 0.0
    %v7849 = vmax.f32 %v7673, 0.0
    %v7850 = vmax.f32 %v7675, 0.0
    %v7851 = vmax.f32 %v7714, 0.0
    %v7852 = vmax.f32 %v7716, 0.0
    %v7853 = vmax.f32 %v7755, 0.0
    %v7854 = vmax.f32 %v7757, 0.0
    %v7855 = vmax.f32 %v7796, 0.0
    %v7856 = vmax.f32 %v7798, 0.0
    %v7857 = vmax.f32 %v7837, 0.0
    %v7858 = vmax.f32 %v7839, 0.0
    %v7859 = vld [vmem:[#allocation13] sm:$0xff]
    %v7860 = vld [vmem:[#allocation13 + $0x8] sm:$0xff]
    %v7861 = vld [vmem:[#allocation13 + $0x10] sm:$0xff]
    %v7862 = vld [vmem:[#allocation13 + $0x18] sm:$0xff]
    %v7863 = vld [vmem:[#allocation13 + $0x20] sm:$0xff]
    %v7864 = vld [vmem:[#allocation13 + $0x28] sm:$0xff]
    %v7865 = vld [vmem:[#allocation13 + $0x30] sm:$0xff]
    %v7866 = vld [vmem:[#allocation13 + $0x38] sm:$0xff]
    %v7867 = vld [vmem:[#allocation13 + $0x40] sm:$0xff]
    %v7868 = vld [vmem:[#allocation13 + $0x48] sm:$0xff]
    %v7869 = vld [vmem:[#allocation13 + $0x50] sm:$0xff]
    %v7870 = vld [vmem:[#allocation13 + $0x58] sm:$0xff]
    %v7871 = vld [vmem:[#allocation13 + $0x60] sm:$0xff]
    %v7872 = vld [vmem:[#allocation13 + $0x68] sm:$0xff]
    %v7873 = vld [vmem:[#allocation13 + $0x70] sm:$0xff]
    %v7874 = vld [vmem:[#allocation13 + $0x78] sm:$0xff]
    %v7875 = vld [vmem:[#allocation13 + $0x80] sm:$0xff]
    %v7876 = vld [vmem:[#allocation13 + $0x88] sm:$0xff]
    %v7877 = vld [vmem:[#allocation13 + $0x90] sm:$0xff]
    %v7878 = vld [vmem:[#allocation13 + $0x98] sm:$0xff]
    %v7879 = vld [vmem:[#allocation13 + $0xa0] sm:$0xff]
    %v7880 = vld [vmem:[#allocation13 + $0xa8] sm:$0xff]
    %v7881 = vld [vmem:[#allocation13 + $0xb0] sm:$0xff]
    %v7882 = vld [vmem:[#allocation13 + $0xb8] sm:$0xff]
    %v7883 = vld [vmem:[#allocation13 + $0xc0] sm:$0xff]
    %v7884 = vld [vmem:[#allocation13 + $0xc8] sm:$0xff]
    %v7885 = vld [vmem:[#allocation13 + $0xd0] sm:$0xff]
    %v7886 = vld [vmem:[#allocation13 + $0xd8] sm:$0xff]
    %v7887 = vld [vmem:[#allocation13 + $0xe0] sm:$0xff]
    %v7888 = vld [vmem:[#allocation13 + $0xe8] sm:$0xff]
    %v7889 = vld [vmem:[#allocation13 + $0xf0] sm:$0xff]
    %v7890 = vld [vmem:[#allocation13 + $0xf8] sm:$0xff]
    %v7891 = vld [vmem:[#allocation13 + $0x100] sm:$0xff]
    %v7892 = vld [vmem:[#allocation13 + $0x108] sm:$0xff]
    %v7893 = vld [vmem:[#allocation13 + $0x110] sm:$0xff]
    %v7894 = vld [vmem:[#allocation13 + $0x118] sm:$0xff]
    %v7895 = vld [vmem:[#allocation13 + $0x120] sm:$0xff]
    %v7896 = vld [vmem:[#allocation13 + $0x128] sm:$0xff]
    %v7897 = vld [vmem:[#allocation13 + $0x130] sm:$0xff]
    %v7898 = vld [vmem:[#allocation13 + $0x138] sm:$0xff]
    %v7899 = vld [vmem:[#allocation13 + $0x140] sm:$0xff]
    %v7900 = vld [vmem:[#allocation13 + $0x148] sm:$0xff]
    %v7901 = vld [vmem:[#allocation13 + $0x150] sm:$0xff]
    %v7902 = vld [vmem:[#allocation13 + $0x158] sm:$0xff]
    %v7903 = vld [vmem:[#allocation13 + $0x160] sm:$0xff]
    %v7904 = vld [vmem:[#allocation13 + $0x168] sm:$0xff]
    %v7905 = vld [vmem:[#allocation13 + $0x170] sm:$0xff]
    %v7906 = vld [vmem:[#allocation13 + $0x178] sm:$0xff]
    %v7907 = vld [vmem:[#allocation13 + $0x180] sm:$0xff]
    %v7908 = vld [vmem:[#allocation13 + $0x188] sm:$0xff]
    %v7909 = vld [vmem:[#allocation13 + $0x190] sm:$0xff]
    %v7910 = vld [vmem:[#allocation13 + $0x198] sm:$0xff]
    %v7911 = vld [vmem:[#allocation13 + $0x1a0] sm:$0xff]
    %v7912 = vld [vmem:[#allocation13 + $0x1a8] sm:$0xff]
    %v7913 = vld [vmem:[#allocation13 + $0x1b0] sm:$0xff]
    %v7914 = vld [vmem:[#allocation13 + $0x1b8] sm:$0xff]
    %v7915 = vld [vmem:[#allocation13 + $0x1c0] sm:$0xff]
    %v7916 = vld [vmem:[#allocation13 + $0x1c8] sm:$0xff]
    %v7917 = vld [vmem:[#allocation13 + $0x1d0] sm:$0xff]
    %v7918 = vld [vmem:[#allocation13 + $0x1d8] sm:$0xff]
    %v7919 = vld [vmem:[#allocation13 + $0x1e0] sm:$0xff]
    %v7920 = vld [vmem:[#allocation13 + $0x1e8] sm:$0xff]
    %v7921 = vld [vmem:[#allocation13 + $0x1f0] sm:$0xff]
    %v7922 = vld [vmem:[#allocation13 + $0x1f8] sm:$0xff]
    %v7923 = vld [vmem:[#allocation13 + $0x200] sm:$0xff]
    %v7924 = vld [vmem:[#allocation13 + $0x208] sm:$0xff]
    %v7925 = vld [vmem:[#allocation13 + $0x210] sm:$0xff]
    %v7926 = vld [vmem:[#allocation13 + $0x218] sm:$0xff]
    %v7927 = vld [vmem:[#allocation13 + $0x220] sm:$0xff]
    %v7928 = vld [vmem:[#allocation13 + $0x228] sm:$0xff]
    %v7929 = vld [vmem:[#allocation13 + $0x230] sm:$0xff]
    %v7930 = vld [vmem:[#allocation13 + $0x238] sm:$0xff]
    %v7931 = vld [vmem:[#allocation13 + $0x240] sm:$0xff]
    %v7932 = vld [vmem:[#allocation13 + $0x248] sm:$0xff]
    %v7933 = vld [vmem:[#allocation13 + $0x250] sm:$0xff]
    %v7934 = vld [vmem:[#allocation13 + $0x258] sm:$0xff]
    %v7935 = vld [vmem:[#allocation13 + $0x260] sm:$0xff]
    %v7936 = vld [vmem:[#allocation13 + $0x268] sm:$0xff]
    %v7937 = vld [vmem:[#allocation13 + $0x270] sm:$0xff]
    %v7938 = vld [vmem:[#allocation13 + $0x278] sm:$0xff]
    %v7939 = vld [vmem:[#allocation13 + $0x280] sm:$0xff]
    %v7940 = vld [vmem:[#allocation13 + $0x288] sm:$0xff]
    %v7941 = vld [vmem:[#allocation13 + $0x290] sm:$0xff]
    %v7942 = vld [vmem:[#allocation13 + $0x298] sm:$0xff]
    %v7943 = vld [vmem:[#allocation13 + $0x2a0] sm:$0xff]
    %v7944 = vld [vmem:[#allocation13 + $0x2a8] sm:$0xff]
    %v7945 = vld [vmem:[#allocation13 + $0x2b0] sm:$0xff]
    %v7946 = vld [vmem:[#allocation13 + $0x2b8] sm:$0xff]
    %v7947 = vld [vmem:[#allocation13 + $0x2c0] sm:$0xff]
    %v7948 = vld [vmem:[#allocation13 + $0x2c8] sm:$0xff]
    %v7949 = vld [vmem:[#allocation13 + $0x2d0] sm:$0xff]
    %v7950 = vld [vmem:[#allocation13 + $0x2d8] sm:$0xff]
    %v7951 = vld [vmem:[#allocation13 + $0x2e0] sm:$0xff]
    %v7952 = vld [vmem:[#allocation13 + $0x2e8] sm:$0xff]
    %v7953 = vld [vmem:[#allocation13 + $0x2f0] sm:$0xff]
    %v7954 = vld [vmem:[#allocation13 + $0x2f8] sm:$0xff]
    %v7955 = vld [vmem:[#allocation13 + $0x300] sm:$0xff]
    %v7956 = vld [vmem:[#allocation13 + $0x308] sm:$0xff]
    %v7957 = vld [vmem:[#allocation13 + $0x310] sm:$0xff]
    %v7958 = vld [vmem:[#allocation13 + $0x318] sm:$0xff]
    %v7959 = vld [vmem:[#allocation13 + $0x320] sm:$0xff]
    %v7960 = vld [vmem:[#allocation13 + $0x328] sm:$0xff]
    %v7961 = vld [vmem:[#allocation13 + $0x330] sm:$0xff]
    %v7962 = vld [vmem:[#allocation13 + $0x338] sm:$0xff]
    %v7963 = vld [vmem:[#allocation13 + $0x340] sm:$0xff]
    %v7964 = vld [vmem:[#allocation13 + $0x348] sm:$0xff]
    %v7965 = vld [vmem:[#allocation13 + $0x350] sm:$0xff]
    %v7966 = vld [vmem:[#allocation13 + $0x358] sm:$0xff]
    %v7967 = vld [vmem:[#allocation13 + $0x360] sm:$0xff]
    %v7968 = vld [vmem:[#allocation13 + $0x368] sm:$0xff]
    %v7969 = vld [vmem:[#allocation13 + $0x370] sm:$0xff]
    %v7970 = vld [vmem:[#allocation13 + $0x378] sm:$0xff]
    %v7971 = vld [vmem:[#allocation13 + $0x380] sm:$0xff]
    %v7972 = vld [vmem:[#allocation13 + $0x388] sm:$0xff]
    %v7973 = vld [vmem:[#allocation13 + $0x390] sm:$0xff]
    %v7974 = vld [vmem:[#allocation13 + $0x398] sm:$0xff]
    %v7975 = vld [vmem:[#allocation13 + $0x3a0] sm:$0xff]
    %v7976 = vld [vmem:[#allocation13 + $0x3a8] sm:$0xff]
    %v7977 = vld [vmem:[#allocation13 + $0x3b0] sm:$0xff]
    %v7978 = vld [vmem:[#allocation13 + $0x3b8] sm:$0xff]
    %v7979 = vld [vmem:[#allocation13 + $0x3c0] sm:$0xff]
    %v7980 = vld [vmem:[#allocation13 + $0x3c8] sm:$0xff]
    %v7981 = vld [vmem:[#allocation13 + $0x3d0] sm:$0xff]
    %v7982 = vld [vmem:[#allocation13 + $0x3d8] sm:$0xff]
    %v7983 = vld [vmem:[#allocation13 + $0x3e0] sm:$0xff]
    %v7984 = vld [vmem:[#allocation13 + $0x3e8] sm:$0xff]
    %v7985 = vld [vmem:[#allocation13 + $0x3f0] sm:$0xff]
    %v7986 = vld [vmem:[#allocation13 + $0x3f8] sm:$0xff]
    %v7987 = vld [vmem:[#allocation13 + $0x400] sm:$0xff]
    %v7988 = vld [vmem:[#allocation13 + $0x408] sm:$0xff]
    %v7989 = vld [vmem:[#allocation13 + $0x410] sm:$0xff]
    %v7990 = vld [vmem:[#allocation13 + $0x418] sm:$0xff]
    %v7991 = vld [vmem:[#allocation13 + $0x420] sm:$0xff]
    %v7992 = vld [vmem:[#allocation13 + $0x428] sm:$0xff]
    %v7993 = vld [vmem:[#allocation13 + $0x430] sm:$0xff]
    %v7994 = vld [vmem:[#allocation13 + $0x438] sm:$0xff]
    %v7995 = vld [vmem:[#allocation13 + $0x440] sm:$0xff]
    %v7996 = vld [vmem:[#allocation13 + $0x448] sm:$0xff]
    %v7997 = vld [vmem:[#allocation13 + $0x450] sm:$0xff]
    %v7998 = vld [vmem:[#allocation13 + $0x458] sm:$0xff]
    %v7999 = vld [vmem:[#allocation13 + $0x460] sm:$0xff]
    %v8000 = vld [vmem:[#allocation13 + $0x468] sm:$0xff]
    %v8001 = vld [vmem:[#allocation13 + $0x470] sm:$0xff]
    %v8002 = vld [vmem:[#allocation13 + $0x478] sm:$0xff]
    %v8003 = vld [vmem:[#allocation13 + $0x480] sm:$0xff]
    %v8004 = vld [vmem:[#allocation13 + $0x488] sm:$0xff]
    %v8005 = vld [vmem:[#allocation13 + $0x490] sm:$0xff]
    %v8006 = vld [vmem:[#allocation13 + $0x498] sm:$0xff]
    %v8007 = vld [vmem:[#allocation13 + $0x4a0] sm:$0xff]
    %v8008 = vld [vmem:[#allocation13 + $0x4a8] sm:$0xff]
    %v8009 = vld [vmem:[#allocation13 + $0x4b0] sm:$0xff]
    %v8010 = vld [vmem:[#allocation13 + $0x4b8] sm:$0xff]
    %v8011 = vld [vmem:[#allocation13 + $0x4c0] sm:$0xff]
    %v8012 = vld [vmem:[#allocation13 + $0x4c8] sm:$0xff]
    %v8013 = vld [vmem:[#allocation13 + $0x4d0] sm:$0xff]
    %v8014 = vld [vmem:[#allocation13 + $0x4d8] sm:$0xff]
    %v8015 = vld [vmem:[#allocation13 + $0x4e0] sm:$0xff]
    %v8016 = vld [vmem:[#allocation13 + $0x4e8] sm:$0xff]
    %v8017 = vld [vmem:[#allocation13 + $0x4f0] sm:$0xff]
    %v8018 = vld [vmem:[#allocation13 + $0x4f8] sm:$0xff]
    %v8019 = vld [vmem:[#allocation13 + $0x500] sm:$0xff]
    %v8020 = vld [vmem:[#allocation13 + $0x508] sm:$0xff]
    %v8021 = vld [vmem:[#allocation13 + $0x510] sm:$0xff]
    %v8022 = vld [vmem:[#allocation13 + $0x518] sm:$0xff]
    %v8023 = vld [vmem:[#allocation13 + $0x520] sm:$0xff]
    %v8024 = vld [vmem:[#allocation13 + $0x528] sm:$0xff]
    %v8025 = vld [vmem:[#allocation13 + $0x530] sm:$0xff]
    %v8026 = vld [vmem:[#allocation13 + $0x538] sm:$0xff]
    %v8027 = vld [vmem:[#allocation13 + $0x540] sm:$0xff]
    %v8028 = vld [vmem:[#allocation13 + $0x548] sm:$0xff]
    %v8029 = vld [vmem:[#allocation13 + $0x550] sm:$0xff]
    %v8030 = vld [vmem:[#allocation13 + $0x558] sm:$0xff]
    %v8031 = vld [vmem:[#allocation13 + $0x560] sm:$0xff]
    %v8032 = vld [vmem:[#allocation13 + $0x568] sm:$0xff]
    %v8033 = vld [vmem:[#allocation13 + $0x570] sm:$0xff]
    %v8034 = vld [vmem:[#allocation13 + $0x578] sm:$0xff]
    %v8035 = vld [vmem:[#allocation13 + $0x580] sm:$0xff]
    %v8036 = vld [vmem:[#allocation13 + $0x588] sm:$0xff]
    %v8037 = vld [vmem:[#allocation13 + $0x590] sm:$0xff]
    %v8038 = vld [vmem:[#allocation13 + $0x598] sm:$0xff]
    %v8039 = vld [vmem:[#allocation13 + $0x5a0] sm:$0xff]
    %v8040 = vld [vmem:[#allocation13 + $0x5a8] sm:$0xff]
    %v8041 = vld [vmem:[#allocation13 + $0x5b0] sm:$0xff]
    %v8042 = vld [vmem:[#allocation13 + $0x5b8] sm:$0xff]
    %v8043 = vld [vmem:[#allocation13 + $0x5c0] sm:$0xff]
    %v8044 = vld [vmem:[#allocation13 + $0x5c8] sm:$0xff]
    %v8045 = vld [vmem:[#allocation13 + $0x5d0] sm:$0xff]
    %v8046 = vld [vmem:[#allocation13 + $0x5d8] sm:$0xff]
    %v8047 = vld [vmem:[#allocation13 + $0x5e0] sm:$0xff]
    %v8048 = vld [vmem:[#allocation13 + $0x5e8] sm:$0xff]
    %v8049 = vld [vmem:[#allocation13 + $0x5f0] sm:$0xff]
    %v8050 = vld [vmem:[#allocation13 + $0x5f8] sm:$0xff]
    %v8051 = vld [vmem:[#allocation13 + $0x600] sm:$0xff]
    %v8052 = vld [vmem:[#allocation13 + $0x608] sm:$0xff]
    %v8053 = vld [vmem:[#allocation13 + $0x610] sm:$0xff]
    %v8054 = vld [vmem:[#allocation13 + $0x618] sm:$0xff]
    %v8055 = vld [vmem:[#allocation13 + $0x620] sm:$0xff]
    %v8056 = vld [vmem:[#allocation13 + $0x628] sm:$0xff]
    %v8057 = vld [vmem:[#allocation13 + $0x630] sm:$0xff]
    %v8058 = vld [vmem:[#allocation13 + $0x638] sm:$0xff]
    %v8059 = vld [vmem:[#allocation13 + $0x640] sm:$0xff]
    %v8060 = vld [vmem:[#allocation13 + $0x648] sm:$0xff]
    %v8061 = vld [vmem:[#allocation13 + $0x650] sm:$0xff]
    %v8062 = vld [vmem:[#allocation13 + $0x658] sm:$0xff]
    %v8063 = vld [vmem:[#allocation13 + $0x660] sm:$0xff]
    %v8064 = vld [vmem:[#allocation13 + $0x668] sm:$0xff]
    %v8065 = vld [vmem:[#allocation13 + $0x670] sm:$0xff]
    %v8066 = vld [vmem:[#allocation13 + $0x678] sm:$0xff]
    %v8067 = vld [vmem:[#allocation13 + $0x680] sm:$0xff]
    %v8068 = vld [vmem:[#allocation13 + $0x688] sm:$0xff]
    %v8069 = vld [vmem:[#allocation13 + $0x690] sm:$0xff]
    %v8070 = vld [vmem:[#allocation13 + $0x698] sm:$0xff]
    %v8071 = vld [vmem:[#allocation13 + $0x6a0] sm:$0xff]
    %v8072 = vld [vmem:[#allocation13 + $0x6a8] sm:$0xff]
    %v8073 = vld [vmem:[#allocation13 + $0x6b0] sm:$0xff]
    %v8074 = vld [vmem:[#allocation13 + $0x6b8] sm:$0xff]
    %v8075 = vld [vmem:[#allocation13 + $0x6c0] sm:$0xff]
    %v8076 = vld [vmem:[#allocation13 + $0x6c8] sm:$0xff]
    %v8077 = vld [vmem:[#allocation13 + $0x6d0] sm:$0xff]
    %v8078 = vld [vmem:[#allocation13 + $0x6d8] sm:$0xff]
    %v8079 = vld [vmem:[#allocation13 + $0x6e0] sm:$0xff]
    %v8080 = vld [vmem:[#allocation13 + $0x6e8] sm:$0xff]
    %v8081 = vld [vmem:[#allocation13 + $0x6f0] sm:$0xff]
    %v8082 = vld [vmem:[#allocation13 + $0x6f8] sm:$0xff]
    %v8083 = vld [vmem:[#allocation13 + $0x700] sm:$0xff]
    %v8084 = vld [vmem:[#allocation13 + $0x708] sm:$0xff]
    %v8085 = vld [vmem:[#allocation13 + $0x710] sm:$0xff]
    %v8086 = vld [vmem:[#allocation13 + $0x718] sm:$0xff]
    %v8087 = vld [vmem:[#allocation13 + $0x720] sm:$0xff]
    %v8088 = vld [vmem:[#allocation13 + $0x728] sm:$0xff]
    %v8089 = vld [vmem:[#allocation13 + $0x730] sm:$0xff]
    %v8090 = vld [vmem:[#allocation13 + $0x738] sm:$0xff]
    %v8091 = vld [vmem:[#allocation13 + $0x740] sm:$0xff]
    %v8092 = vld [vmem:[#allocation13 + $0x748] sm:$0xff]
    %v8093 = vld [vmem:[#allocation13 + $0x750] sm:$0xff]
    %v8094 = vld [vmem:[#allocation13 + $0x758] sm:$0xff]
    %v8095 = vld [vmem:[#allocation13 + $0x760] sm:$0xff]
    %v8096 = vld [vmem:[#allocation13 + $0x768] sm:$0xff]
    %v8097 = vld [vmem:[#allocation13 + $0x770] sm:$0xff]
    %v8098 = vld [vmem:[#allocation13 + $0x778] sm:$0xff]
    %v8099 = vld [vmem:[#allocation13 + $0x780] sm:$0xff]
    %v8100 = vld [vmem:[#allocation13 + $0x788] sm:$0xff]
    %v8101 = vld [vmem:[#allocation13 + $0x790] sm:$0xff]
    %v8102 = vld [vmem:[#allocation13 + $0x798] sm:$0xff]
    %v8103 = vld [vmem:[#allocation13 + $0x7a0] sm:$0xff]
    %v8104 = vld [vmem:[#allocation13 + $0x7a8] sm:$0xff]
    %v8105 = vld [vmem:[#allocation13 + $0x7b0] sm:$0xff]
    %v8106 = vld [vmem:[#allocation13 + $0x7b8] sm:$0xff]
    %v8107 = vld [vmem:[#allocation13 + $0x7c0] sm:$0xff]
    %v8108 = vld [vmem:[#allocation13 + $0x7c8] sm:$0xff]
    %v8109 = vld [vmem:[#allocation13 + $0x7d0] sm:$0xff]
    %v8110 = vld [vmem:[#allocation13 + $0x7d8] sm:$0xff]
    %v8111 = vld [vmem:[#allocation13 + $0x7e0] sm:$0xff]
    %v8112 = vld [vmem:[#allocation13 + $0x7e8] sm:$0xff]
    %v8113 = vld [vmem:[#allocation13 + $0x7f0] sm:$0xff]
    %v8114 = vld [vmem:[#allocation13 + $0x7f8] sm:$0xff]
    %v8115 = vld [vmem:[#allocation13 + $0x800] sm:$0xff]
    %v8116 = vld [vmem:[#allocation13 + $0x808] sm:$0xff]
    %v8117 = vld [vmem:[#allocation13 + $0x810] sm:$0xff]
    %v8118 = vld [vmem:[#allocation13 + $0x818] sm:$0xff]
    %v8119 = vld [vmem:[#allocation13 + $0x820] sm:$0xff]
    %v8120 = vld [vmem:[#allocation13 + $0x828] sm:$0xff]
    %v8121 = vld [vmem:[#allocation13 + $0x830] sm:$0xff]
    %v8122 = vld [vmem:[#allocation13 + $0x838] sm:$0xff]
    %v8123 = vld [vmem:[#allocation13 + $0x840] sm:$0xff]
    %v8124 = vld [vmem:[#allocation13 + $0x848] sm:$0xff]
    %v8125 = vld [vmem:[#allocation13 + $0x850] sm:$0xff]
    %v8126 = vld [vmem:[#allocation13 + $0x858] sm:$0xff]
    %v8127 = vld [vmem:[#allocation13 + $0x860] sm:$0xff]
    %v8128 = vld [vmem:[#allocation13 + $0x868] sm:$0xff]
    %v8129 = vld [vmem:[#allocation13 + $0x870] sm:$0xff]
    %v8130 = vld [vmem:[#allocation13 + $0x878] sm:$0xff]
    %v8131 = vld [vmem:[#allocation13 + $0x880] sm:$0xff]
    %v8132 = vld [vmem:[#allocation13 + $0x888] sm:$0xff]
    %v8133 = vld [vmem:[#allocation13 + $0x890] sm:$0xff]
    %v8134 = vld [vmem:[#allocation13 + $0x898] sm:$0xff]
    %v8135 = vld [vmem:[#allocation13 + $0x8a0] sm:$0xff]
    %v8136 = vld [vmem:[#allocation13 + $0x8a8] sm:$0xff]
    %v8137 = vld [vmem:[#allocation13 + $0x8b0] sm:$0xff]
    %v8138 = vld [vmem:[#allocation13 + $0x8b8] sm:$0xff]
    %v8139 = vld [vmem:[#allocation13 + $0x8c0] sm:$0xff]
    %v8140 = vld [vmem:[#allocation13 + $0x8c8] sm:$0xff]
    %v8141 = vld [vmem:[#allocation13 + $0x8d0] sm:$0xff]
    %v8142 = vld [vmem:[#allocation13 + $0x8d8] sm:$0xff]
    %v8143 = vld [vmem:[#allocation13 + $0x8e0] sm:$0xff]
    %v8144 = vld [vmem:[#allocation13 + $0x8e8] sm:$0xff]
    %v8145 = vld [vmem:[#allocation13 + $0x8f0] sm:$0xff]
    %v8146 = vld [vmem:[#allocation13 + $0x8f8] sm:$0xff]
    %v8147 = vld [vmem:[#allocation13 + $0x900] sm:$0xff]
    %v8148 = vld [vmem:[#allocation13 + $0x908] sm:$0xff]
    %v8149 = vld [vmem:[#allocation13 + $0x910] sm:$0xff]
    %v8150 = vld [vmem:[#allocation13 + $0x918] sm:$0xff]
    %v8151 = vld [vmem:[#allocation13 + $0x920] sm:$0xff]
    %v8152 = vld [vmem:[#allocation13 + $0x928] sm:$0xff]
    %v8153 = vld [vmem:[#allocation13 + $0x930] sm:$0xff]
    %v8154 = vld [vmem:[#allocation13 + $0x938] sm:$0xff]
    %v8155 = vld [vmem:[#allocation13 + $0x940] sm:$0xff]
    %v8156 = vld [vmem:[#allocation13 + $0x948] sm:$0xff]
    %v8157 = vld [vmem:[#allocation13 + $0x950] sm:$0xff]
    %v8158 = vld [vmem:[#allocation13 + $0x958] sm:$0xff]
    %v8159 = vld [vmem:[#allocation13 + $0x960] sm:$0xff]
    %v8160 = vld [vmem:[#allocation13 + $0x968] sm:$0xff]
    %v8161 = vld [vmem:[#allocation13 + $0x970] sm:$0xff]
    %v8162 = vld [vmem:[#allocation13 + $0x978] sm:$0xff]
    %v8163 = vld [vmem:[#allocation13 + $0x980] sm:$0xff]
    %v8164 = vld [vmem:[#allocation13 + $0x988] sm:$0xff]
    %v8165 = vld [vmem:[#allocation13 + $0x990] sm:$0xff]
    %v8166 = vld [vmem:[#allocation13 + $0x998] sm:$0xff]
    %v8167 = vld [vmem:[#allocation13 + $0x9a0] sm:$0xff]
    %v8168 = vld [vmem:[#allocation13 + $0x9a8] sm:$0xff]
    %v8169 = vld [vmem:[#allocation13 + $0x9b0] sm:$0xff]
    %v8170 = vld [vmem:[#allocation13 + $0x9b8] sm:$0xff]
    %v8171 = vld [vmem:[#allocation13 + $0x9c0] sm:$0xff]
    %v8172 = vld [vmem:[#allocation13 + $0x9c8] sm:$0xff]
    %v8173 = vld [vmem:[#allocation13 + $0x9d0] sm:$0xff]
    %v8174 = vld [vmem:[#allocation13 + $0x9d8] sm:$0xff]
    %v8175 = vld [vmem:[#allocation13 + $0x9e0] sm:$0xff]
    %v8176 = vld [vmem:[#allocation13 + $0x9e8] sm:$0xff]
    %v8177 = vld [vmem:[#allocation13 + $0x9f0] sm:$0xff]
    %v8178 = vld [vmem:[#allocation13 + $0x9f8] sm:$0xff]
    %v8179 = vld [vmem:[#allocation13 + $0xa00] sm:$0xff]
    %v8180 = vld [vmem:[#allocation13 + $0xa08] sm:$0xff]
    %v8181 = vld [vmem:[#allocation13 + $0xa10] sm:$0xff]
    %v8182 = vld [vmem:[#allocation13 + $0xa18] sm:$0xff]
    %v8183 = vld [vmem:[#allocation13 + $0xa20] sm:$0xff]
    %v8184 = vld [vmem:[#allocation13 + $0xa28] sm:$0xff]
    %v8185 = vld [vmem:[#allocation13 + $0xa30] sm:$0xff]
    %v8186 = vld [vmem:[#allocation13 + $0xa38] sm:$0xff]
    %v8187 = vld [vmem:[#allocation13 + $0xa40] sm:$0xff]
    %v8188 = vld [vmem:[#allocation13 + $0xa48] sm:$0xff]
    %v8189 = vld [vmem:[#allocation13 + $0xa50] sm:$0xff]
    %v8190 = vld [vmem:[#allocation13 + $0xa58] sm:$0xff]
    %v8191 = vld [vmem:[#allocation13 + $0xa60] sm:$0xff]
    %v8192 = vld [vmem:[#allocation13 + $0xa68] sm:$0xff]
    %v8193 = vld [vmem:[#allocation13 + $0xa70] sm:$0xff]
    %v8194 = vld [vmem:[#allocation13 + $0xa78] sm:$0xff]
    %v8195 = vld [vmem:[#allocation13 + $0xa80] sm:$0xff]
    %v8196 = vld [vmem:[#allocation13 + $0xa88] sm:$0xff]
    %v8197 = vld [vmem:[#allocation13 + $0xa90] sm:$0xff]
    %v8198 = vld [vmem:[#allocation13 + $0xa98] sm:$0xff]
    %v8199 = vld [vmem:[#allocation13 + $0xaa0] sm:$0xff]
    %v8200 = vld [vmem:[#allocation13 + $0xaa8] sm:$0xff]
    %v8201 = vld [vmem:[#allocation13 + $0xab0] sm:$0xff]
    %v8202 = vld [vmem:[#allocation13 + $0xab8] sm:$0xff]
    %v8203 = vld [vmem:[#allocation13 + $0xac0] sm:$0xff]
    %v8204 = vld [vmem:[#allocation13 + $0xac8] sm:$0xff]
    %v8205 = vld [vmem:[#allocation13 + $0xad0] sm:$0xff]
    %v8206 = vld [vmem:[#allocation13 + $0xad8] sm:$0xff]
    %v8207 = vld [vmem:[#allocation13 + $0xae0] sm:$0xff]
    %v8208 = vld [vmem:[#allocation13 + $0xae8] sm:$0xff]
    %v8209 = vld [vmem:[#allocation13 + $0xaf0] sm:$0xff]
    %v8210 = vld [vmem:[#allocation13 + $0xaf8] sm:$0xff]
    %v8211 = vld [vmem:[#allocation13 + $0xb00] sm:$0xff]
    %v8212 = vld [vmem:[#allocation13 + $0xb08] sm:$0xff]
    %v8213 = vld [vmem:[#allocation13 + $0xb10] sm:$0xff]
    %v8214 = vld [vmem:[#allocation13 + $0xb18] sm:$0xff]
    %v8215 = vld [vmem:[#allocation13 + $0xb20] sm:$0xff]
    %v8216 = vld [vmem:[#allocation13 + $0xb28] sm:$0xff]
    %v8217 = vld [vmem:[#allocation13 + $0xb30] sm:$0xff]
    %v8218 = vld [vmem:[#allocation13 + $0xb38] sm:$0xff]
    %v8219 = vld [vmem:[#allocation13 + $0xb40] sm:$0xff]
    %v8220 = vld [vmem:[#allocation13 + $0xb48] sm:$0xff]
    %v8221 = vld [vmem:[#allocation13 + $0xb50] sm:$0xff]
    %v8222 = vld [vmem:[#allocation13 + $0xb58] sm:$0xff]
    %v8223 = vld [vmem:[#allocation13 + $0xb60] sm:$0xff]
    %v8224 = vld [vmem:[#allocation13 + $0xb68] sm:$0xff]
    %v8225 = vld [vmem:[#allocation13 + $0xb70] sm:$0xff]
    %v8226 = vld [vmem:[#allocation13 + $0xb78] sm:$0xff]
    %v8227 = vld [vmem:[#allocation13 + $0xb80] sm:$0xff]
    %v8228 = vld [vmem:[#allocation13 + $0xb88] sm:$0xff]
    %v8229 = vld [vmem:[#allocation13 + $0xb90] sm:$0xff]
    %v8230 = vld [vmem:[#allocation13 + $0xb98] sm:$0xff]
    %v8231 = vld [vmem:[#allocation13 + $0xba0] sm:$0xff]
    %v8232 = vld [vmem:[#allocation13 + $0xba8] sm:$0xff]
    %v8233 = vld [vmem:[#allocation13 + $0xbb0] sm:$0xff]
    %v8234 = vld [vmem:[#allocation13 + $0xbb8] sm:$0xff]
    %v8235 = vld [vmem:[#allocation13 + $0xbc0] sm:$0xff]
    %v8236 = vld [vmem:[#allocation13 + $0xbc8] sm:$0xff]
    %v8237 = vld [vmem:[#allocation13 + $0xbd0] sm:$0xff]
    %v8238 = vld [vmem:[#allocation13 + $0xbd8] sm:$0xff]
    %v8239 = vld [vmem:[#allocation13 + $0xbe0] sm:$0xff]
    %v8240 = vld [vmem:[#allocation13 + $0xbe8] sm:$0xff]
    %v8241 = vld [vmem:[#allocation13 + $0xbf0] sm:$0xff]
    %v8242 = vld [vmem:[#allocation13 + $0xbf8] sm:$0xff]
    %v8243 = vld [vmem:[#allocation13 + $0xc00] sm:$0xff]
    %v8244 = vld [vmem:[#allocation13 + $0xc08] sm:$0xff]
    %v8245 = vld [vmem:[#allocation13 + $0xc10] sm:$0xff]
    %v8246 = vld [vmem:[#allocation13 + $0xc18] sm:$0xff]
    %v8247 = vld [vmem:[#allocation13 + $0xc20] sm:$0xff]
    %v8248 = vld [vmem:[#allocation13 + $0xc28] sm:$0xff]
    %v8249 = vld [vmem:[#allocation13 + $0xc30] sm:$0xff]
    %v8250 = vld [vmem:[#allocation13 + $0xc38] sm:$0xff]
    %v8251 = vld [vmem:[#allocation13 + $0xc40] sm:$0xff]
    %v8252 = vld [vmem:[#allocation13 + $0xc48] sm:$0xff]
    %v8253 = vld [vmem:[#allocation13 + $0xc50] sm:$0xff]
    %v8254 = vld [vmem:[#allocation13 + $0xc58] sm:$0xff]
    %v8255 = vld [vmem:[#allocation13 + $0xc60] sm:$0xff]
    %v8256 = vld [vmem:[#allocation13 + $0xc68] sm:$0xff]
    %v8257 = vld [vmem:[#allocation13 + $0xc70] sm:$0xff]
    %v8258 = vld [vmem:[#allocation13 + $0xc78] sm:$0xff]
    %v8259 = vld [vmem:[#allocation13 + $0xc80] sm:$0xff]
    %v8260 = vld [vmem:[#allocation13 + $0xc88] sm:$0xff]
    %v8261 = vld [vmem:[#allocation13 + $0xc90] sm:$0xff]
    %v8262 = vld [vmem:[#allocation13 + $0xc98] sm:$0xff]
    %v8263 = vld [vmem:[#allocation13 + $0xca0] sm:$0xff]
    %v8264 = vld [vmem:[#allocation13 + $0xca8] sm:$0xff]
    %v8265 = vld [vmem:[#allocation13 + $0xcb0] sm:$0xff]
    %v8266 = vld [vmem:[#allocation13 + $0xcb8] sm:$0xff]
    %v8267 = vld [vmem:[#allocation13 + $0xcc0] sm:$0xff]
    %v8268 = vld [vmem:[#allocation13 + $0xcc8] sm:$0xff]
    %v8269 = vld [vmem:[#allocation13 + $0xcd0] sm:$0xff]
    %v8270 = vld [vmem:[#allocation13 + $0xcd8] sm:$0xff]
    %v8271 = vld [vmem:[#allocation13 + $0xce0] sm:$0xff]
    %v8272 = vld [vmem:[#allocation13 + $0xce8] sm:$0xff]
    %v8273 = vld [vmem:[#allocation13 + $0xcf0] sm:$0xff]
    %v8274 = vld [vmem:[#allocation13 + $0xcf8] sm:$0xff]
    %v8275 = vld [vmem:[#allocation13 + $0xd00] sm:$0xff]
    %v8276 = vld [vmem:[#allocation13 + $0xd08] sm:$0xff]
    %v8277 = vld [vmem:[#allocation13 + $0xd10] sm:$0xff]
    %v8278 = vld [vmem:[#allocation13 + $0xd18] sm:$0xff]
    %v8279 = vld [vmem:[#allocation13 + $0xd20] sm:$0xff]
    %v8280 = vld [vmem:[#allocation13 + $0xd28] sm:$0xff]
    %v8281 = vld [vmem:[#allocation13 + $0xd30] sm:$0xff]
    %v8282 = vld [vmem:[#allocation13 + $0xd38] sm:$0xff]
    %v8283 = vld [vmem:[#allocation13 + $0xd40] sm:$0xff]
    %v8284 = vld [vmem:[#allocation13 + $0xd48] sm:$0xff]
    %v8285 = vld [vmem:[#allocation13 + $0xd50] sm:$0xff]
    %v8286 = vld [vmem:[#allocation13 + $0xd58] sm:$0xff]
    %v8287 = vld [vmem:[#allocation13 + $0xd60] sm:$0xff]
    %v8288 = vld [vmem:[#allocation13 + $0xd68] sm:$0xff]
    %v8289 = vld [vmem:[#allocation13 + $0xd70] sm:$0xff]
    %v8290 = vld [vmem:[#allocation13 + $0xd78] sm:$0xff]
    %v8291 = vld [vmem:[#allocation13 + $0xd80] sm:$0xff]
    %v8292 = vld [vmem:[#allocation13 + $0xd88] sm:$0xff]
    %v8293 = vld [vmem:[#allocation13 + $0xd90] sm:$0xff]
    %v8294 = vld [vmem:[#allocation13 + $0xd98] sm:$0xff]
    %v8295 = vld [vmem:[#allocation13 + $0xda0] sm:$0xff]
    %v8296 = vld [vmem:[#allocation13 + $0xda8] sm:$0xff]
    %v8297 = vld [vmem:[#allocation13 + $0xdb0] sm:$0xff]
    %v8298 = vld [vmem:[#allocation13 + $0xdb8] sm:$0xff]
    %v8299 = vld [vmem:[#allocation13 + $0xdc0] sm:$0xff]
    %v8300 = vld [vmem:[#allocation13 + $0xdc8] sm:$0xff]
    %v8301 = vld [vmem:[#allocation13 + $0xdd0] sm:$0xff]
    %v8302 = vld [vmem:[#allocation13 + $0xdd8] sm:$0xff]
    %v8303 = vld [vmem:[#allocation13 + $0xde0] sm:$0xff]
    %v8304 = vld [vmem:[#allocation13 + $0xde8] sm:$0xff]
    %v8305 = vld [vmem:[#allocation13 + $0xdf0] sm:$0xff]
    %v8306 = vld [vmem:[#allocation13 + $0xdf8] sm:$0xff]
    %v8307 = vld [vmem:[#allocation13 + $0xe00] sm:$0xff]
    %v8308 = vld [vmem:[#allocation13 + $0xe08] sm:$0xff]
    %v8309 = vld [vmem:[#allocation13 + $0xe10] sm:$0xff]
    %v8310 = vld [vmem:[#allocation13 + $0xe18] sm:$0xff]
    %v8311 = vld [vmem:[#allocation13 + $0xe20] sm:$0xff]
    %v8312 = vld [vmem:[#allocation13 + $0xe28] sm:$0xff]
    %v8313 = vld [vmem:[#allocation13 + $0xe30] sm:$0xff]
    %v8314 = vld [vmem:[#allocation13 + $0xe38] sm:$0xff]
    %v8315 = vld [vmem:[#allocation13 + $0xe40] sm:$0xff]
    %v8316 = vld [vmem:[#allocation13 + $0xe48] sm:$0xff]
    %v8317 = vld [vmem:[#allocation13 + $0xe50] sm:$0xff]
    %v8318 = vld [vmem:[#allocation13 + $0xe58] sm:$0xff]
    %v8319 = vld [vmem:[#allocation13 + $0xe60] sm:$0xff]
    %v8320 = vld [vmem:[#allocation13 + $0xe68] sm:$0xff]
    %v8321 = vld [vmem:[#allocation13 + $0xe70] sm:$0xff]
    %v8322 = vld [vmem:[#allocation13 + $0xe78] sm:$0xff]
    %v8323 = vld [vmem:[#allocation13 + $0xe80] sm:$0xff]
    %v8324 = vld [vmem:[#allocation13 + $0xe88] sm:$0xff]
    %v8325 = vld [vmem:[#allocation13 + $0xe90] sm:$0xff]
    %v8326 = vld [vmem:[#allocation13 + $0xe98] sm:$0xff]
    %v8327 = vld [vmem:[#allocation13 + $0xea0] sm:$0xff]
    %v8328 = vld [vmem:[#allocation13 + $0xea8] sm:$0xff]
    %v8329 = vld [vmem:[#allocation13 + $0xeb0] sm:$0xff]
    %v8330 = vld [vmem:[#allocation13 + $0xeb8] sm:$0xff]
    %v8331 = vld [vmem:[#allocation13 + $0xec0] sm:$0xff]
    %v8332 = vld [vmem:[#allocation13 + $0xec8] sm:$0xff]
    %v8333 = vld [vmem:[#allocation13 + $0xed0] sm:$0xff]
    %v8334 = vld [vmem:[#allocation13 + $0xed8] sm:$0xff]
    %v8335 = vld [vmem:[#allocation13 + $0xee0] sm:$0xff]
    %v8336 = vld [vmem:[#allocation13 + $0xee8] sm:$0xff]
    %v8337 = vld [vmem:[#allocation13 + $0xef0] sm:$0xff]
    %v8338 = vld [vmem:[#allocation13 + $0xef8] sm:$0xff]
    %v8339 = vld [vmem:[#allocation13 + $0xf00] sm:$0xff]
    %v8340 = vld [vmem:[#allocation13 + $0xf08] sm:$0xff]
    %v8341 = vld [vmem:[#allocation13 + $0xf10] sm:$0xff]
    %v8342 = vld [vmem:[#allocation13 + $0xf18] sm:$0xff]
    %v8343 = vld [vmem:[#allocation13 + $0xf20] sm:$0xff]
    %v8344 = vld [vmem:[#allocation13 + $0xf28] sm:$0xff]
    %v8345 = vld [vmem:[#allocation13 + $0xf30] sm:$0xff]
    %v8346 = vld [vmem:[#allocation13 + $0xf38] sm:$0xff]
    %v8347 = vld [vmem:[#allocation13 + $0xf40] sm:$0xff]
    %v8348 = vld [vmem:[#allocation13 + $0xf48] sm:$0xff]
    %v8349 = vld [vmem:[#allocation13 + $0xf50] sm:$0xff]
    %v8350 = vld [vmem:[#allocation13 + $0xf58] sm:$0xff]
    %v8351 = vld [vmem:[#allocation13 + $0xf60] sm:$0xff]
    %v8352 = vld [vmem:[#allocation13 + $0xf68] sm:$0xff]
    %v8353 = vld [vmem:[#allocation13 + $0xf70] sm:$0xff]
    %v8354 = vld [vmem:[#allocation13 + $0xf78] sm:$0xff]
    %v8355 = vld [vmem:[#allocation13 + $0xf80] sm:$0xff]
    %v8356 = vld [vmem:[#allocation13 + $0xf88] sm:$0xff]
    %v8357 = vld [vmem:[#allocation13 + $0xf90] sm:$0xff]
    %v8358 = vld [vmem:[#allocation13 + $0xf98] sm:$0xff]
    %v8359 = vld [vmem:[#allocation13 + $0xfa0] sm:$0xff]
    %v8360 = vld [vmem:[#allocation13 + $0xfa8] sm:$0xff]
    %v8361 = vld [vmem:[#allocation13 + $0xfb0] sm:$0xff]
    %v8362 = vld [vmem:[#allocation13 + $0xfb8] sm:$0xff]
    %v8363 = vld [vmem:[#allocation13 + $0xfc0] sm:$0xff]
    %v8364 = vld [vmem:[#allocation13 + $0xfc8] sm:$0xff]
    %v8365 = vld [vmem:[#allocation13 + $0xfd0] sm:$0xff]
    %v8366 = vld [vmem:[#allocation13 + $0xfd8] sm:$0xff]
    %v8367 = vld [vmem:[#allocation13 + $0xfe0] sm:$0xff]
    %v8368 = vld [vmem:[#allocation13 + $0xfe8] sm:$0xff]
    %v8369 = vld [vmem:[#allocation13 + $0xff0] sm:$0xff]
    %v8370 = vld [vmem:[#allocation13 + $0xff8] sm:$0xff]
    %v8371 = vpack.c.bf16 %v7843, %v7843
    %v8372 = vpack.c.bf16 %v7844, %v7844
    %v8373 = vpack.c.bf16 %v7845, %v7845
    %v8374 = vpack.c.bf16 %v7846, %v7846
    %v8375 = vpack.c.bf16 %v7847, %v7847
    %v8376 = vpack.c.bf16 %v7848, %v7848
    %v8377 = vpack.c.bf16 %v7849, %v7849
    %v8378 = vpack.c.bf16 %v7850, %v7850
    %v8379 = vpack.c.bf16 %v7851, %v7851
    %v8380 = vpack.c.bf16 %v7852, %v7852
    %v8381 = vpack.c.bf16 %v7853, %v7853
    %v8382 = vpack.c.bf16 %v7854, %v7854
    %v8383 = vpack.c.bf16 %v7855, %v7855
    %v8384 = vpack.c.bf16 %v7856, %v7856
    %v8385 = vpack.c.bf16 %v7857, %v7857
    %v8386 = vpack.c.bf16 %v7858, %v7858
    %s8387 = scalar_lea.vmem [#allocation17], 5
    %v8388 = vld [vmem:[%s8387] ss:$8 sm:$0xf]
    %v8390 = vlaneseq
    %v8391 = vshrl.u32 %v8390, 7
    %v8392 = vsub.s32 0, %v8391
    %v8393 = vrot.slane %v8388, %v8392
    %v8394 = vlaneseq
    %v8395 = vshrl.u32 %v8394, 7
    %v8396 = vsub.s32 1, %v8395
    %v8397 = vrot.slane %v8388, %v8396
    %v8398 = vlaneseq
    %v8399 = vshrl.u32 %v8398, 7
    %v8400 = vsub.s32 2, %v8399
    %v8401 = vrot.slane %v8388, %v8400
    %v8402 = vlaneseq
    %v8403 = vshrl.u32 %v8402, 7
    %v8404 = vsub.s32 3, %v8403
    %v8405 = vrot.slane %v8388, %v8404
    %v8922 = vunpack.c.l.b16 %v7859
    %v8923 = vunpack.c.h.b16 %v7859
    %v8924 = vunpack.c.l.b16 %v7860
    %v8925 = vunpack.c.h.b16 %v7860
    %v8926 = vunpack.c.l.b16 %v7861
    %v8927 = vunpack.c.h.b16 %v7861
    %v8928 = vunpack.c.l.b16 %v7862
    %v8929 = vunpack.c.h.b16 %v7862
    %v8930 = vunpack.c.l.b16 %v7863
    %v8931 = vunpack.c.h.b16 %v7863
    %v8932 = vunpack.c.l.b16 %v7864
    %v8933 = vunpack.c.h.b16 %v7864
    %v8934 = vunpack.c.l.b16 %v7865
    %v8935 = vunpack.c.h.b16 %v7865
    %v8936 = vunpack.c.l.b16 %v7866
    %v8937 = vunpack.c.h.b16 %v7866
    %v8938 = vunpack.c.l.b16 %v7867
    %v8939 = vunpack.c.h.b16 %v7867
    %v8940 = vunpack.c.l.b16 %v7868
    %v8941 = vunpack.c.h.b16 %v7868
    %v8942 = vunpack.c.l.b16 %v7869
    %v8943 = vunpack.c.h.b16 %v7869
    %v8944 = vunpack.c.l.b16 %v7870
    %v8945 = vunpack.c.h.b16 %v7870
    %v8946 = vunpack.c.l.b16 %v7871
    %v8947 = vunpack.c.h.b16 %v7871
    %v8948 = vunpack.c.l.b16 %v7872
    %v8949 = vunpack.c.h.b16 %v7872
    %v8950 = vunpack.c.l.b16 %v7873
    %v8951 = vunpack.c.h.b16 %v7873
    %v8952 = vunpack.c.l.b16 %v7874
    %v8953 = vunpack.c.h.b16 %v7874
    %v8954 = vunpack.c.l.b16 %v7875
    %v8955 = vunpack.c.h.b16 %v7875
    %v8956 = vunpack.c.l.b16 %v7876
    %v8957 = vunpack.c.h.b16 %v7876
    %v8958 = vunpack.c.l.b16 %v7877
    %v8959 = vunpack.c.h.b16 %v7877
    %v8960 = vunpack.c.l.b16 %v7878
    %v8961 = vunpack.c.h.b16 %v7878
    %v8962 = vunpack.c.l.b16 %v7879
    %v8963 = vunpack.c.h.b16 %v7879
    %v8964 = vunpack.c.l.b16 %v7880
    %v8965 = vunpack.c.h.b16 %v7880
    %v8966 = vunpack.c.l.b16 %v7881
    %v8967 = vunpack.c.h.b16 %v7881
    %v8968 = vunpack.c.l.b16 %v7882
    %v8969 = vunpack.c.h.b16 %v7882
    %v8970 = vunpack.c.l.b16 %v7883
    %v8971 = vunpack.c.h.b16 %v7883
    %v8972 = vunpack.c.l.b16 %v7884
    %v8973 = vunpack.c.h.b16 %v7884
    %v8974 = vunpack.c.l.b16 %v7885
    %v8975 = vunpack.c.h.b16 %v7885
    %v8976 = vunpack.c.l.b16 %v7886
    %v8977 = vunpack.c.h.b16 %v7886
    %v8978 = vunpack.c.l.b16 %v7887
    %v8979 = vunpack.c.h.b16 %v7887
    %v8980 = vunpack.c.l.b16 %v7888
    %v8981 = vunpack.c.h.b16 %v7888
    %v8982 = vunpack.c.l.b16 %v7889
    %v8983 = vunpack.c.h.b16 %v7889
    %v8984 = vunpack.c.l.b16 %v7890
    %v8985 = vunpack.c.h.b16 %v7890
    %v8986 = vunpack.c.l.b16 %v7891
    %v8987 = vunpack.c.h.b16 %v7891
    %v8988 = vunpack.c.l.b16 %v7892
    %v8989 = vunpack.c.h.b16 %v7892
    %v8990 = vunpack.c.l.b16 %v7893
    %v8991 = vunpack.c.h.b16 %v7893
    %v8992 = vunpack.c.l.b16 %v7894
    %v8993 = vunpack.c.h.b16 %v7894
    %v8994 = vunpack.c.l.b16 %v7895
    %v8995 = vunpack.c.h.b16 %v7895
    %v8996 = vunpack.c.l.b16 %v7896
    %v8997 = vunpack.c.h.b16 %v7896
    %v8998 = vunpack.c.l.b16 %v7897
    %v8999 = vunpack.c.h.b16 %v7897
    %v9000 = vunpack.c.l.b16 %v7898
    %v9001 = vunpack.c.h.b16 %v7898
    %v9002 = vunpack.c.l.b16 %v7899
    %v9003 = vunpack.c.h.b16 %v7899
    %v9004 = vunpack.c.l.b16 %v7900
    %v9005 = vunpack.c.h.b16 %v7900
    %v9006 = vunpack.c.l.b16 %v7901
    %v9007 = vunpack.c.h.b16 %v7901
    %v9008 = vunpack.c.l.b16 %v7902
    %v9009 = vunpack.c.h.b16 %v7902
    %v9010 = vunpack.c.l.b16 %v7903
    %v9011 = vunpack.c.h.b16 %v7903
    %v9012 = vunpack.c.l.b16 %v7904
    %v9013 = vunpack.c.h.b16 %v7904
    %v9014 = vunpack.c.l.b16 %v7905
    %v9015 = vunpack.c.h.b16 %v7905
    %v9016 = vunpack.c.l.b16 %v7906
    %v9017 = vunpack.c.h.b16 %v7906
    %v9018 = vunpack.c.l.b16 %v7907
    %v9019 = vunpack.c.h.b16 %v7907
    %v9020 = vunpack.c.l.b16 %v7908
    %v9021 = vunpack.c.h.b16 %v7908
    %v9022 = vunpack.c.l.b16 %v7909
    %v9023 = vunpack.c.h.b16 %v7909
    %v9024 = vunpack.c.l.b16 %v7910
    %v9025 = vunpack.c.h.b16 %v7910
    %v9026 = vunpack.c.l.b16 %v7911
    %v9027 = vunpack.c.h.b16 %v7911
    %v9028 = vunpack.c.l.b16 %v7912
    %v9029 = vunpack.c.h.b16 %v7912
    %v9030 = vunpack.c.l.b16 %v7913
    %v9031 = vunpack.c.h.b16 %v7913
    %v9032 = vunpack.c.l.b16 %v7914
    %v9033 = vunpack.c.h.b16 %v7914
    %v9034 = vunpack.c.l.b16 %v7915
    %v9035 = vunpack.c.h.b16 %v7915
    %v9036 = vunpack.c.l.b16 %v7916
    %v9037 = vunpack.c.h.b16 %v7916
    %v9038 = vunpack.c.l.b16 %v7917
    %v9039 = vunpack.c.h.b16 %v7917
    %v9040 = vunpack.c.l.b16 %v7918
    %v9041 = vunpack.c.h.b16 %v7918
    %v9042 = vunpack.c.l.b16 %v7919
    %v9043 = vunpack.c.h.b16 %v7919
    %v9044 = vunpack.c.l.b16 %v7920
    %v9045 = vunpack.c.h.b16 %v7920
    %v9046 = vunpack.c.l.b16 %v7921
    %v9047 = vunpack.c.h.b16 %v7921
    %v9048 = vunpack.c.l.b16 %v7922
    %v9049 = vunpack.c.h.b16 %v7922
    %v9050 = vunpack.c.l.b16 %v7923
    %v9051 = vunpack.c.h.b16 %v7923
    %v9052 = vunpack.c.l.b16 %v7924
    %v9053 = vunpack.c.h.b16 %v7924
    %v9054 = vunpack.c.l.b16 %v7925
    %v9055 = vunpack.c.h.b16 %v7925
    %v9056 = vunpack.c.l.b16 %v7926
    %v9057 = vunpack.c.h.b16 %v7926
    %v9058 = vunpack.c.l.b16 %v7927
    %v9059 = vunpack.c.h.b16 %v7927
    %v9060 = vunpack.c.l.b16 %v7928
    %v9061 = vunpack.c.h.b16 %v7928
    %v9062 = vunpack.c.l.b16 %v7929
    %v9063 = vunpack.c.h.b16 %v7929
    %v9064 = vunpack.c.l.b16 %v7930
    %v9065 = vunpack.c.h.b16 %v7930
    %v9066 = vunpack.c.l.b16 %v7931
    %v9067 = vunpack.c.h.b16 %v7931
    %v9068 = vunpack.c.l.b16 %v7932
    %v9069 = vunpack.c.h.b16 %v7932
    %v9070 = vunpack.c.l.b16 %v7933
    %v9071 = vunpack.c.h.b16 %v7933
    %v9072 = vunpack.c.l.b16 %v7934
    %v9073 = vunpack.c.h.b16 %v7934
    %v9074 = vunpack.c.l.b16 %v7935
    %v9075 = vunpack.c.h.b16 %v7935
    %v9076 = vunpack.c.l.b16 %v7936
    %v9077 = vunpack.c.h.b16 %v7936
    %v9078 = vunpack.c.l.b16 %v7937
    %v9079 = vunpack.c.h.b16 %v7937
    %v9080 = vunpack.c.l.b16 %v7938
    %v9081 = vunpack.c.h.b16 %v7938
    %v9082 = vunpack.c.l.b16 %v7939
    %v9083 = vunpack.c.h.b16 %v7939
    %v9084 = vunpack.c.l.b16 %v7940
    %v9085 = vunpack.c.h.b16 %v7940
    %v9086 = vunpack.c.l.b16 %v7941
    %v9087 = vunpack.c.h.b16 %v7941
    %v9088 = vunpack.c.l.b16 %v7942
    %v9089 = vunpack.c.h.b16 %v7942
    %v9090 = vunpack.c.l.b16 %v7943
    %v9091 = vunpack.c.h.b16 %v7943
    %v9092 = vunpack.c.l.b16 %v7944
    %v9093 = vunpack.c.h.b16 %v7944
    %v9094 = vunpack.c.l.b16 %v7945
    %v9095 = vunpack.c.h.b16 %v7945
    %v9096 = vunpack.c.l.b16 %v7946
    %v9097 = vunpack.c.h.b16 %v7946
    %v9098 = vunpack.c.l.b16 %v7947
    %v9099 = vunpack.c.h.b16 %v7947
    %v9100 = vunpack.c.l.b16 %v7948
    %v9101 = vunpack.c.h.b16 %v7948
    %v9102 = vunpack.c.l.b16 %v7949
    %v9103 = vunpack.c.h.b16 %v7949
    %v9104 = vunpack.c.l.b16 %v7950
    %v9105 = vunpack.c.h.b16 %v7950
    %v9106 = vunpack.c.l.b16 %v7951
    %v9107 = vunpack.c.h.b16 %v7951
    %v9108 = vunpack.c.l.b16 %v7952
    %v9109 = vunpack.c.h.b16 %v7952
    %v9110 = vunpack.c.l.b16 %v7953
    %v9111 = vunpack.c.h.b16 %v7953
    %v9112 = vunpack.c.l.b16 %v7954
    %v9113 = vunpack.c.h.b16 %v7954
    %v9114 = vunpack.c.l.b16 %v7955
    %v9115 = vunpack.c.h.b16 %v7955
    %v9116 = vunpack.c.l.b16 %v7956
    %v9117 = vunpack.c.h.b16 %v7956
    %v9118 = vunpack.c.l.b16 %v7957
    %v9119 = vunpack.c.h.b16 %v7957
    %v9120 = vunpack.c.l.b16 %v7958
    %v9121 = vunpack.c.h.b16 %v7958
    %v9122 = vunpack.c.l.b16 %v7959
    %v9123 = vunpack.c.h.b16 %v7959
    %v9124 = vunpack.c.l.b16 %v7960
    %v9125 = vunpack.c.h.b16 %v7960
    %v9126 = vunpack.c.l.b16 %v7961
    %v9127 = vunpack.c.h.b16 %v7961
    %v9128 = vunpack.c.l.b16 %v7962
    %v9129 = vunpack.c.h.b16 %v7962
    %v9130 = vunpack.c.l.b16 %v7963
    %v9131 = vunpack.c.h.b16 %v7963
    %v9132 = vunpack.c.l.b16 %v7964
    %v9133 = vunpack.c.h.b16 %v7964
    %v9134 = vunpack.c.l.b16 %v7965
    %v9135 = vunpack.c.h.b16 %v7965
    %v9136 = vunpack.c.l.b16 %v7966
    %v9137 = vunpack.c.h.b16 %v7966
    %v9138 = vunpack.c.l.b16 %v7967
    %v9139 = vunpack.c.h.b16 %v7967
    %v9140 = vunpack.c.l.b16 %v7968
    %v9141 = vunpack.c.h.b16 %v7968
    %v9142 = vunpack.c.l.b16 %v7969
    %v9143 = vunpack.c.h.b16 %v7969
    %v9144 = vunpack.c.l.b16 %v7970
    %v9145 = vunpack.c.h.b16 %v7970
    %v9146 = vunpack.c.l.b16 %v7971
    %v9147 = vunpack.c.h.b16 %v7971
    %v9148 = vunpack.c.l.b16 %v7972
    %v9149 = vunpack.c.h.b16 %v7972
    %v9150 = vunpack.c.l.b16 %v7973
    %v9151 = vunpack.c.h.b16 %v7973
    %v9152 = vunpack.c.l.b16 %v7974
    %v9153 = vunpack.c.h.b16 %v7974
    %v9154 = vunpack.c.l.b16 %v7975
    %v9155 = vunpack.c.h.b16 %v7975
    %v9156 = vunpack.c.l.b16 %v7976
    %v9157 = vunpack.c.h.b16 %v7976
    %v9158 = vunpack.c.l.b16 %v7977
    %v9159 = vunpack.c.h.b16 %v7977
    %v9160 = vunpack.c.l.b16 %v7978
    %v9161 = vunpack.c.h.b16 %v7978
    %v9162 = vunpack.c.l.b16 %v7979
    %v9163 = vunpack.c.h.b16 %v7979
    %v9164 = vunpack.c.l.b16 %v7980
    %v9165 = vunpack.c.h.b16 %v7980
    %v9166 = vunpack.c.l.b16 %v7981
    %v9167 = vunpack.c.h.b16 %v7981
    %v9168 = vunpack.c.l.b16 %v7982
    %v9169 = vunpack.c.h.b16 %v7982
    %v9170 = vunpack.c.l.b16 %v7983
    %v9171 = vunpack.c.h.b16 %v7983
    %v9172 = vunpack.c.l.b16 %v7984
    %v9173 = vunpack.c.h.b16 %v7984
    %v9174 = vunpack.c.l.b16 %v7985
    %v9175 = vunpack.c.h.b16 %v7985
    %v9176 = vunpack.c.l.b16 %v7986
    %v9177 = vunpack.c.h.b16 %v7986
    %v9178 = vunpack.c.l.b16 %v7987
    %v9179 = vunpack.c.h.b16 %v7987
    %v9180 = vunpack.c.l.b16 %v7988
    %v9181 = vunpack.c.h.b16 %v7988
    %v9182 = vunpack.c.l.b16 %v7989
    %v9183 = vunpack.c.h.b16 %v7989
    %v9184 = vunpack.c.l.b16 %v7990
    %v9185 = vunpack.c.h.b16 %v7990
    %v9186 = vunpack.c.l.b16 %v7991
    %v9187 = vunpack.c.h.b16 %v7991
    %v9188 = vunpack.c.l.b16 %v7992
    %v9189 = vunpack.c.h.b16 %v7992
    %v9190 = vunpack.c.l.b16 %v7993
    %v9191 = vunpack.c.h.b16 %v7993
    %v9192 = vunpack.c.l.b16 %v7994
    %v9193 = vunpack.c.h.b16 %v7994
    %v9194 = vunpack.c.l.b16 %v7995
    %v9195 = vunpack.c.h.b16 %v7995
    %v9196 = vunpack.c.l.b16 %v7996
    %v9197 = vunpack.c.h.b16 %v7996
    %v9198 = vunpack.c.l.b16 %v7997
    %v9199 = vunpack.c.h.b16 %v7997
    %v9200 = vunpack.c.l.b16 %v7998
    %v9201 = vunpack.c.h.b16 %v7998
    %v9202 = vunpack.c.l.b16 %v7999
    %v9203 = vunpack.c.h.b16 %v7999
    %v9204 = vunpack.c.l.b16 %v8000
    %v9205 = vunpack.c.h.b16 %v8000
    %v9206 = vunpack.c.l.b16 %v8001
    %v9207 = vunpack.c.h.b16 %v8001
    %v9208 = vunpack.c.l.b16 %v8002
    %v9209 = vunpack.c.h.b16 %v8002
    %v9210 = vunpack.c.l.b16 %v8003
    %v9211 = vunpack.c.h.b16 %v8003
    %v9212 = vunpack.c.l.b16 %v8004
    %v9213 = vunpack.c.h.b16 %v8004
    %v9214 = vunpack.c.l.b16 %v8005
    %v9215 = vunpack.c.h.b16 %v8005
    %v9216 = vunpack.c.l.b16 %v8006
    %v9217 = vunpack.c.h.b16 %v8006
    %v9218 = vunpack.c.l.b16 %v8007
    %v9219 = vunpack.c.h.b16 %v8007
    %v9220 = vunpack.c.l.b16 %v8008
    %v9221 = vunpack.c.h.b16 %v8008
    %v9222 = vunpack.c.l.b16 %v8009
    %v9223 = vunpack.c.h.b16 %v8009
    %v9224 = vunpack.c.l.b16 %v8010
    %v9225 = vunpack.c.h.b16 %v8010
    %v9226 = vunpack.c.l.b16 %v8011
    %v9227 = vunpack.c.h.b16 %v8011
    %v9228 = vunpack.c.l.b16 %v8012
    %v9229 = vunpack.c.h.b16 %v8012
    %v9230 = vunpack.c.l.b16 %v8013
    %v9231 = vunpack.c.h.b16 %v8013
    %v9232 = vunpack.c.l.b16 %v8014
    %v9233 = vunpack.c.h.b16 %v8014
    %v9234 = vunpack.c.l.b16 %v8015
    %v9235 = vunpack.c.h.b16 %v8015
    %v9236 = vunpack.c.l.b16 %v8016
    %v9237 = vunpack.c.h.b16 %v8016
    %v9238 = vunpack.c.l.b16 %v8017
    %v9239 = vunpack.c.h.b16 %v8017
    %v9240 = vunpack.c.l.b16 %v8018
    %v9241 = vunpack.c.h.b16 %v8018
    %v9242 = vunpack.c.l.b16 %v8019
    %v9243 = vunpack.c.h.b16 %v8019
    %v9244 = vunpack.c.l.b16 %v8020
    %v9245 = vunpack.c.h.b16 %v8020
    %v9246 = vunpack.c.l.b16 %v8021
    %v9247 = vunpack.c.h.b16 %v8021
    %v9248 = vunpack.c.l.b16 %v8022
    %v9249 = vunpack.c.h.b16 %v8022
    %v9250 = vunpack.c.l.b16 %v8023
    %v9251 = vunpack.c.h.b16 %v8023
    %v9252 = vunpack.c.l.b16 %v8024
    %v9253 = vunpack.c.h.b16 %v8024
    %v9254 = vunpack.c.l.b16 %v8025
    %v9255 = vunpack.c.h.b16 %v8025
    %v9256 = vunpack.c.l.b16 %v8026
    %v9257 = vunpack.c.h.b16 %v8026
    %v9258 = vunpack.c.l.b16 %v8027
    %v9259 = vunpack.c.h.b16 %v8027
    %v9260 = vunpack.c.l.b16 %v8028
    %v9261 = vunpack.c.h.b16 %v8028
    %v9262 = vunpack.c.l.b16 %v8029
    %v9263 = vunpack.c.h.b16 %v8029
    %v9264 = vunpack.c.l.b16 %v8030
    %v9265 = vunpack.c.h.b16 %v8030
    %v9266 = vunpack.c.l.b16 %v8031
    %v9267 = vunpack.c.h.b16 %v8031
    %v9268 = vunpack.c.l.b16 %v8032
    %v9269 = vunpack.c.h.b16 %v8032
    %v9270 = vunpack.c.l.b16 %v8033
    %v9271 = vunpack.c.h.b16 %v8033
    %v9272 = vunpack.c.l.b16 %v8034
    %v9273 = vunpack.c.h.b16 %v8034
    %v9274 = vunpack.c.l.b16 %v8035
    %v9275 = vunpack.c.h.b16 %v8035
    %v9276 = vunpack.c.l.b16 %v8036
    %v9277 = vunpack.c.h.b16 %v8036
    %v9278 = vunpack.c.l.b16 %v8037
    %v9279 = vunpack.c.h.b16 %v8037
    %v9280 = vunpack.c.l.b16 %v8038
    %v9281 = vunpack.c.h.b16 %v8038
    %v9282 = vunpack.c.l.b16 %v8039
    %v9283 = vunpack.c.h.b16 %v8039
    %v9284 = vunpack.c.l.b16 %v8040
    %v9285 = vunpack.c.h.b16 %v8040
    %v9286 = vunpack.c.l.b16 %v8041
    %v9287 = vunpack.c.h.b16 %v8041
    %v9288 = vunpack.c.l.b16 %v8042
    %v9289 = vunpack.c.h.b16 %v8042
    %v9290 = vunpack.c.l.b16 %v8043
    %v9291 = vunpack.c.h.b16 %v8043
    %v9292 = vunpack.c.l.b16 %v8044
    %v9293 = vunpack.c.h.b16 %v8044
    %v9294 = vunpack.c.l.b16 %v8045
    %v9295 = vunpack.c.h.b16 %v8045
    %v9296 = vunpack.c.l.b16 %v8046
    %v9297 = vunpack.c.h.b16 %v8046
    %v9298 = vunpack.c.l.b16 %v8047
    %v9299 = vunpack.c.h.b16 %v8047
    %v9300 = vunpack.c.l.b16 %v8048
    %v9301 = vunpack.c.h.b16 %v8048
    %v9302 = vunpack.c.l.b16 %v8049
    %v9303 = vunpack.c.h.b16 %v8049
    %v9304 = vunpack.c.l.b16 %v8050
    %v9305 = vunpack.c.h.b16 %v8050
    %v9306 = vunpack.c.l.b16 %v8051
    %v9307 = vunpack.c.h.b16 %v8051
    %v9308 = vunpack.c.l.b16 %v8052
    %v9309 = vunpack.c.h.b16 %v8052
    %v9310 = vunpack.c.l.b16 %v8053
    %v9311 = vunpack.c.h.b16 %v8053
    %v9312 = vunpack.c.l.b16 %v8054
    %v9313 = vunpack.c.h.b16 %v8054
    %v9314 = vunpack.c.l.b16 %v8055
    %v9315 = vunpack.c.h.b16 %v8055
    %v9316 = vunpack.c.l.b16 %v8056
    %v9317 = vunpack.c.h.b16 %v8056
    %v9318 = vunpack.c.l.b16 %v8057
    %v9319 = vunpack.c.h.b16 %v8057
    %v9320 = vunpack.c.l.b16 %v8058
    %v9321 = vunpack.c.h.b16 %v8058
    %v9322 = vunpack.c.l.b16 %v8059
    %v9323 = vunpack.c.h.b16 %v8059
    %v9324 = vunpack.c.l.b16 %v8060
    %v9325 = vunpack.c.h.b16 %v8060
    %v9326 = vunpack.c.l.b16 %v8061
    %v9327 = vunpack.c.h.b16 %v8061
    %v9328 = vunpack.c.l.b16 %v8062
    %v9329 = vunpack.c.h.b16 %v8062
    %v9330 = vunpack.c.l.b16 %v8063
    %v9331 = vunpack.c.h.b16 %v8063
    %v9332 = vunpack.c.l.b16 %v8064
    %v9333 = vunpack.c.h.b16 %v8064
    %v9334 = vunpack.c.l.b16 %v8065
    %v9335 = vunpack.c.h.b16 %v8065
    %v9336 = vunpack.c.l.b16 %v8066
    %v9337 = vunpack.c.h.b16 %v8066
    %v9338 = vunpack.c.l.b16 %v8067
    %v9339 = vunpack.c.h.b16 %v8067
    %v9340 = vunpack.c.l.b16 %v8068
    %v9341 = vunpack.c.h.b16 %v8068
    %v9342 = vunpack.c.l.b16 %v8069
    %v9343 = vunpack.c.h.b16 %v8069
    %v9344 = vunpack.c.l.b16 %v8070
    %v9345 = vunpack.c.h.b16 %v8070
    %v9346 = vunpack.c.l.b16 %v8071
    %v9347 = vunpack.c.h.b16 %v8071
    %v9348 = vunpack.c.l.b16 %v8072
    %v9349 = vunpack.c.h.b16 %v8072
    %v9350 = vunpack.c.l.b16 %v8073
    %v9351 = vunpack.c.h.b16 %v8073
    %v9352 = vunpack.c.l.b16 %v8074
    %v9353 = vunpack.c.h.b16 %v8074
    %v9354 = vunpack.c.l.b16 %v8075
    %v9355 = vunpack.c.h.b16 %v8075
    %v9356 = vunpack.c.l.b16 %v8076
    %v9357 = vunpack.c.h.b16 %v8076
    %v9358 = vunpack.c.l.b16 %v8077
    %v9359 = vunpack.c.h.b16 %v8077
    %v9360 = vunpack.c.l.b16 %v8078
    %v9361 = vunpack.c.h.b16 %v8078
    %v9362 = vunpack.c.l.b16 %v8079
    %v9363 = vunpack.c.h.b16 %v8079
    %v9364 = vunpack.c.l.b16 %v8080
    %v9365 = vunpack.c.h.b16 %v8080
    %v9366 = vunpack.c.l.b16 %v8081
    %v9367 = vunpack.c.h.b16 %v8081
    %v9368 = vunpack.c.l.b16 %v8082
    %v9369 = vunpack.c.h.b16 %v8082
    %v9370 = vunpack.c.l.b16 %v8083
    %v9371 = vunpack.c.h.b16 %v8083
    %v9372 = vunpack.c.l.b16 %v8084
    %v9373 = vunpack.c.h.b16 %v8084
    %v9374 = vunpack.c.l.b16 %v8085
    %v9375 = vunpack.c.h.b16 %v8085
    %v9376 = vunpack.c.l.b16 %v8086
    %v9377 = vunpack.c.h.b16 %v8086
    %v9378 = vunpack.c.l.b16 %v8087
    %v9379 = vunpack.c.h.b16 %v8087
    %v9380 = vunpack.c.l.b16 %v8088
    %v9381 = vunpack.c.h.b16 %v8088
    %v9382 = vunpack.c.l.b16 %v8089
    %v9383 = vunpack.c.h.b16 %v8089
    %v9384 = vunpack.c.l.b16 %v8090
    %v9385 = vunpack.c.h.b16 %v8090
    %v9386 = vunpack.c.l.b16 %v8091
    %v9387 = vunpack.c.h.b16 %v8091
    %v9388 = vunpack.c.l.b16 %v8092
    %v9389 = vunpack.c.h.b16 %v8092
    %v9390 = vunpack.c.l.b16 %v8093
    %v9391 = vunpack.c.h.b16 %v8093
    %v9392 = vunpack.c.l.b16 %v8094
    %v9393 = vunpack.c.h.b16 %v8094
    %v9394 = vunpack.c.l.b16 %v8095
    %v9395 = vunpack.c.h.b16 %v8095
    %v9396 = vunpack.c.l.b16 %v8096
    %v9397 = vunpack.c.h.b16 %v8096
    %v9398 = vunpack.c.l.b16 %v8097
    %v9399 = vunpack.c.h.b16 %v8097
    %v9400 = vunpack.c.l.b16 %v8098
    %v9401 = vunpack.c.h.b16 %v8098
    %v9402 = vunpack.c.l.b16 %v8099
    %v9403 = vunpack.c.h.b16 %v8099
    %v9404 = vunpack.c.l.b16 %v8100
    %v9405 = vunpack.c.h.b16 %v8100
    %v9406 = vunpack.c.l.b16 %v8101
    %v9407 = vunpack.c.h.b16 %v8101
    %v9408 = vunpack.c.l.b16 %v8102
    %v9409 = vunpack.c.h.b16 %v8102
    %v9410 = vunpack.c.l.b16 %v8103
    %v9411 = vunpack.c.h.b16 %v8103
    %v9412 = vunpack.c.l.b16 %v8104
    %v9413 = vunpack.c.h.b16 %v8104
    %v9414 = vunpack.c.l.b16 %v8105
    %v9415 = vunpack.c.h.b16 %v8105
    %v9416 = vunpack.c.l.b16 %v8106
    %v9417 = vunpack.c.h.b16 %v8106
    %v9418 = vunpack.c.l.b16 %v8107
    %v9419 = vunpack.c.h.b16 %v8107
    %v9420 = vunpack.c.l.b16 %v8108
    %v9421 = vunpack.c.h.b16 %v8108
    %v9422 = vunpack.c.l.b16 %v8109
    %v9423 = vunpack.c.h.b16 %v8109
    %v9424 = vunpack.c.l.b16 %v8110
    %v9425 = vunpack.c.h.b16 %v8110
    %v9426 = vunpack.c.l.b16 %v8111
    %v9427 = vunpack.c.h.b16 %v8111
    %v9428 = vunpack.c.l.b16 %v8112
    %v9429 = vunpack.c.h.b16 %v8112
    %v9430 = vunpack.c.l.b16 %v8113
    %v9431 = vunpack.c.h.b16 %v8113
    %v9432 = vunpack.c.l.b16 %v8114
    %v9433 = vunpack.c.h.b16 %v8114
    %v9434 = vunpack.c.l.b16 %v8115
    %v9435 = vunpack.c.h.b16 %v8115
    %v9436 = vunpack.c.l.b16 %v8116
    %v9437 = vunpack.c.h.b16 %v8116
    %v9438 = vunpack.c.l.b16 %v8117
    %v9439 = vunpack.c.h.b16 %v8117
    %v9440 = vunpack.c.l.b16 %v8118
    %v9441 = vunpack.c.h.b16 %v8118
    %v9442 = vunpack.c.l.b16 %v8119
    %v9443 = vunpack.c.h.b16 %v8119
    %v9444 = vunpack.c.l.b16 %v8120
    %v9445 = vunpack.c.h.b16 %v8120
    %v9446 = vunpack.c.l.b16 %v8121
    %v9447 = vunpack.c.h.b16 %v8121
    %v9448 = vunpack.c.l.b16 %v8122
    %v9449 = vunpack.c.h.b16 %v8122
    %v9450 = vunpack.c.l.b16 %v8123
    %v9451 = vunpack.c.h.b16 %v8123
    %v9452 = vunpack.c.l.b16 %v8124
    %v9453 = vunpack.c.h.b16 %v8124
    %v9454 = vunpack.c.l.b16 %v8125
    %v9455 = vunpack.c.h.b16 %v8125
    %v9456 = vunpack.c.l.b16 %v8126
    %v9457 = vunpack.c.h.b16 %v8126
    %v9458 = vunpack.c.l.b16 %v8127
    %v9459 = vunpack.c.h.b16 %v8127
    %v9460 = vunpack.c.l.b16 %v8128
    %v9461 = vunpack.c.h.b16 %v8128
    %v9462 = vunpack.c.l.b16 %v8129
    %v9463 = vunpack.c.h.b16 %v8129
    %v9464 = vunpack.c.l.b16 %v8130
    %v9465 = vunpack.c.h.b16 %v8130
    %v9466 = vunpack.c.l.b16 %v8131
    %v9467 = vunpack.c.h.b16 %v8131
    %v9468 = vunpack.c.l.b16 %v8132
    %v9469 = vunpack.c.h.b16 %v8132
    %v9470 = vunpack.c.l.b16 %v8133
    %v9471 = vunpack.c.h.b16 %v8133
    %v9472 = vunpack.c.l.b16 %v8134
    %v9473 = vunpack.c.h.b16 %v8134
    %v9474 = vunpack.c.l.b16 %v8135
    %v9475 = vunpack.c.h.b16 %v8135
    %v9476 = vunpack.c.l.b16 %v8136
    %v9477 = vunpack.c.h.b16 %v8136
    %v9478 = vunpack.c.l.b16 %v8137
    %v9479 = vunpack.c.h.b16 %v8137
    %v9480 = vunpack.c.l.b16 %v8138
    %v9481 = vunpack.c.h.b16 %v8138
    %v9482 = vunpack.c.l.b16 %v8139
    %v9483 = vunpack.c.h.b16 %v8139
    %v9484 = vunpack.c.l.b16 %v8140
    %v9485 = vunpack.c.h.b16 %v8140
    %v9486 = vunpack.c.l.b16 %v8141
    %v9487 = vunpack.c.h.b16 %v8141
    %v9488 = vunpack.c.l.b16 %v8142
    %v9489 = vunpack.c.h.b16 %v8142
    %v9490 = vunpack.c.l.b16 %v8143
    %v9491 = vunpack.c.h.b16 %v8143
    %v9492 = vunpack.c.l.b16 %v8144
    %v9493 = vunpack.c.h.b16 %v8144
    %v9494 = vunpack.c.l.b16 %v8145
    %v9495 = vunpack.c.h.b16 %v8145
    %v9496 = vunpack.c.l.b16 %v8146
    %v9497 = vunpack.c.h.b16 %v8146
    %v9498 = vunpack.c.l.b16 %v8147
    %v9499 = vunpack.c.h.b16 %v8147
    %v9500 = vunpack.c.l.b16 %v8148
    %v9501 = vunpack.c.h.b16 %v8148
    %v9502 = vunpack.c.l.b16 %v8149
    %v9503 = vunpack.c.h.b16 %v8149
    %v9504 = vunpack.c.l.b16 %v8150
    %v9505 = vunpack.c.h.b16 %v8150
    %v9506 = vunpack.c.l.b16 %v8151
    %v9507 = vunpack.c.h.b16 %v8151
    %v9508 = vunpack.c.l.b16 %v8152
    %v9509 = vunpack.c.h.b16 %v8152
    %v9510 = vunpack.c.l.b16 %v8153
    %v9511 = vunpack.c.h.b16 %v8153
    %v9512 = vunpack.c.l.b16 %v8154
    %v9513 = vunpack.c.h.b16 %v8154
    %v9514 = vunpack.c.l.b16 %v8155
    %v9515 = vunpack.c.h.b16 %v8155
    %v9516 = vunpack.c.l.b16 %v8156
    %v9517 = vunpack.c.h.b16 %v8156
    %v9518 = vunpack.c.l.b16 %v8157
    %v9519 = vunpack.c.h.b16 %v8157
    %v9520 = vunpack.c.l.b16 %v8158
    %v9521 = vunpack.c.h.b16 %v8158
    %v9522 = vunpack.c.l.b16 %v8159
    %v9523 = vunpack.c.h.b16 %v8159
    %v9524 = vunpack.c.l.b16 %v8160
    %v9525 = vunpack.c.h.b16 %v8160
    %v9526 = vunpack.c.l.b16 %v8161
    %v9527 = vunpack.c.h.b16 %v8161
    %v9528 = vunpack.c.l.b16 %v8162
    %v9529 = vunpack.c.h.b16 %v8162
    %v9530 = vunpack.c.l.b16 %v8163
    %v9531 = vunpack.c.h.b16 %v8163
    %v9532 = vunpack.c.l.b16 %v8164
    %v9533 = vunpack.c.h.b16 %v8164
    %v9534 = vunpack.c.l.b16 %v8165
    %v9535 = vunpack.c.h.b16 %v8165
    %v9536 = vunpack.c.l.b16 %v8166
    %v9537 = vunpack.c.h.b16 %v8166
    %v9538 = vunpack.c.l.b16 %v8167
    %v9539 = vunpack.c.h.b16 %v8167
    %v9540 = vunpack.c.l.b16 %v8168
    %v9541 = vunpack.c.h.b16 %v8168
    %v9542 = vunpack.c.l.b16 %v8169
    %v9543 = vunpack.c.h.b16 %v8169
    %v9544 = vunpack.c.l.b16 %v8170
    %v9545 = vunpack.c.h.b16 %v8170
    %v9546 = vunpack.c.l.b16 %v8171
    %v9547 = vunpack.c.h.b16 %v8171
    %v9548 = vunpack.c.l.b16 %v8172
    %v9549 = vunpack.c.h.b16 %v8172
    %v9550 = vunpack.c.l.b16 %v8173
    %v9551 = vunpack.c.h.b16 %v8173
    %v9552 = vunpack.c.l.b16 %v8174
    %v9553 = vunpack.c.h.b16 %v8174
    %v9554 = vunpack.c.l.b16 %v8175
    %v9555 = vunpack.c.h.b16 %v8175
    %v9556 = vunpack.c.l.b16 %v8176
    %v9557 = vunpack.c.h.b16 %v8176
    %v9558 = vunpack.c.l.b16 %v8177
    %v9559 = vunpack.c.h.b16 %v8177
    %v9560 = vunpack.c.l.b16 %v8178
    %v9561 = vunpack.c.h.b16 %v8178
    %v9562 = vunpack.c.l.b16 %v8179
    %v9563 = vunpack.c.h.b16 %v8179
    %v9564 = vunpack.c.l.b16 %v8180
    %v9565 = vunpack.c.h.b16 %v8180
    %v9566 = vunpack.c.l.b16 %v8181
    %v9567 = vunpack.c.h.b16 %v8181
    %v9568 = vunpack.c.l.b16 %v8182
    %v9569 = vunpack.c.h.b16 %v8182
    %v9570 = vunpack.c.l.b16 %v8183
    %v9571 = vunpack.c.h.b16 %v8183
    %v9572 = vunpack.c.l.b16 %v8184
    %v9573 = vunpack.c.h.b16 %v8184
    %v9574 = vunpack.c.l.b16 %v8185
    %v9575 = vunpack.c.h.b16 %v8185
    %v9576 = vunpack.c.l.b16 %v8186
    %v9577 = vunpack.c.h.b16 %v8186
    %v9578 = vunpack.c.l.b16 %v8187
    %v9579 = vunpack.c.h.b16 %v8187
    %v9580 = vunpack.c.l.b16 %v8188
    %v9581 = vunpack.c.h.b16 %v8188
    %v9582 = vunpack.c.l.b16 %v8189
    %v9583 = vunpack.c.h.b16 %v8189
    %v9584 = vunpack.c.l.b16 %v8190
    %v9585 = vunpack.c.h.b16 %v8190
    %v9586 = vunpack.c.l.b16 %v8191
    %v9587 = vunpack.c.h.b16 %v8191
    %v9588 = vunpack.c.l.b16 %v8192
    %v9589 = vunpack.c.h.b16 %v8192
    %v9590 = vunpack.c.l.b16 %v8193
    %v9591 = vunpack.c.h.b16 %v8193
    %v9592 = vunpack.c.l.b16 %v8194
    %v9593 = vunpack.c.h.b16 %v8194
    %v9594 = vunpack.c.l.b16 %v8195
    %v9595 = vunpack.c.h.b16 %v8195
    %v9596 = vunpack.c.l.b16 %v8196
    %v9597 = vunpack.c.h.b16 %v8196
    %v9598 = vunpack.c.l.b16 %v8197
    %v9599 = vunpack.c.h.b16 %v8197
    %v9600 = vunpack.c.l.b16 %v8198
    %v9601 = vunpack.c.h.b16 %v8198
    %v9602 = vunpack.c.l.b16 %v8199
    %v9603 = vunpack.c.h.b16 %v8199
    %v9604 = vunpack.c.l.b16 %v8200
    %v9605 = vunpack.c.h.b16 %v8200
    %v9606 = vunpack.c.l.b16 %v8201
    %v9607 = vunpack.c.h.b16 %v8201
    %v9608 = vunpack.c.l.b16 %v8202
    %v9609 = vunpack.c.h.b16 %v8202
    %v9610 = vunpack.c.l.b16 %v8203
    %v9611 = vunpack.c.h.b16 %v8203
    %v9612 = vunpack.c.l.b16 %v8204
    %v9613 = vunpack.c.h.b16 %v8204
    %v9614 = vunpack.c.l.b16 %v8205
    %v9615 = vunpack.c.h.b16 %v8205
    %v9616 = vunpack.c.l.b16 %v8206
    %v9617 = vunpack.c.h.b16 %v8206
    %v9618 = vunpack.c.l.b16 %v8207
    %v9619 = vunpack.c.h.b16 %v8207
    %v9620 = vunpack.c.l.b16 %v8208
    %v9621 = vunpack.c.h.b16 %v8208
    %v9622 = vunpack.c.l.b16 %v8209
    %v9623 = vunpack.c.h.b16 %v8209
    %v9624 = vunpack.c.l.b16 %v8210
    %v9625 = vunpack.c.h.b16 %v8210
    %v9626 = vunpack.c.l.b16 %v8211
    %v9627 = vunpack.c.h.b16 %v8211
    %v9628 = vunpack.c.l.b16 %v8212
    %v9629 = vunpack.c.h.b16 %v8212
    %v9630 = vunpack.c.l.b16 %v8213
    %v9631 = vunpack.c.h.b16 %v8213
    %v9632 = vunpack.c.l.b16 %v8214
    %v9633 = vunpack.c.h.b16 %v8214
    %v9634 = vunpack.c.l.b16 %v8215
    %v9635 = vunpack.c.h.b16 %v8215
    %v9636 = vunpack.c.l.b16 %v8216
    %v9637 = vunpack.c.h.b16 %v8216
    %v9638 = vunpack.c.l.b16 %v8217
    %v9639 = vunpack.c.h.b16 %v8217
    %v9640 = vunpack.c.l.b16 %v8218
    %v9641 = vunpack.c.h.b16 %v8218
    %v9642 = vunpack.c.l.b16 %v8219
    %v9643 = vunpack.c.h.b16 %v8219
    %v9644 = vunpack.c.l.b16 %v8220
    %v9645 = vunpack.c.h.b16 %v8220
    %v9646 = vunpack.c.l.b16 %v8221
    %v9647 = vunpack.c.h.b16 %v8221
    %v9648 = vunpack.c.l.b16 %v8222
    %v9649 = vunpack.c.h.b16 %v8222
    %v9650 = vunpack.c.l.b16 %v8223
    %v9651 = vunpack.c.h.b16 %v8223
    %v9652 = vunpack.c.l.b16 %v8224
    %v9653 = vunpack.c.h.b16 %v8224
    %v9654 = vunpack.c.l.b16 %v8225
    %v9655 = vunpack.c.h.b16 %v8225
    %v9656 = vunpack.c.l.b16 %v8226
    %v9657 = vunpack.c.h.b16 %v8226
    %v9658 = vunpack.c.l.b16 %v8227
    %v9659 = vunpack.c.h.b16 %v8227
    %v9660 = vunpack.c.l.b16 %v8228
    %v9661 = vunpack.c.h.b16 %v8228
    %v9662 = vunpack.c.l.b16 %v8229
    %v9663 = vunpack.c.h.b16 %v8229
    %v9664 = vunpack.c.l.b16 %v8230
    %v9665 = vunpack.c.h.b16 %v8230
    %v9666 = vunpack.c.l.b16 %v8231
    %v9667 = vunpack.c.h.b16 %v8231
    %v9668 = vunpack.c.l.b16 %v8232
    %v9669 = vunpack.c.h.b16 %v8232
    %v9670 = vunpack.c.l.b16 %v8233
    %v9671 = vunpack.c.h.b16 %v8233
    %v9672 = vunpack.c.l.b16 %v8234
    %v9673 = vunpack.c.h.b16 %v8234
    %v9674 = vunpack.c.l.b16 %v8235
    %v9675 = vunpack.c.h.b16 %v8235
    %v9676 = vunpack.c.l.b16 %v8236
    %v9677 = vunpack.c.h.b16 %v8236
    %v9678 = vunpack.c.l.b16 %v8237
    %v9679 = vunpack.c.h.b16 %v8237
    %v9680 = vunpack.c.l.b16 %v8238
    %v9681 = vunpack.c.h.b16 %v8238
    %v9682 = vunpack.c.l.b16 %v8239
    %v9683 = vunpack.c.h.b16 %v8239
    %v9684 = vunpack.c.l.b16 %v8240
    %v9685 = vunpack.c.h.b16 %v8240
    %v9686 = vunpack.c.l.b16 %v8241
    %v9687 = vunpack.c.h.b16 %v8241
    %v9688 = vunpack.c.l.b16 %v8242
    %v9689 = vunpack.c.h.b16 %v8242
    %v9690 = vunpack.c.l.b16 %v8243
    %v9691 = vunpack.c.h.b16 %v8243
    %v9692 = vunpack.c.l.b16 %v8244
    %v9693 = vunpack.c.h.b16 %v8244
    %v9694 = vunpack.c.l.b16 %v8245
    %v9695 = vunpack.c.h.b16 %v8245
    %v9696 = vunpack.c.l.b16 %v8246
    %v9697 = vunpack.c.h.b16 %v8246
    %v9698 = vunpack.c.l.b16 %v8247
    %v9699 = vunpack.c.h.b16 %v8247
    %v9700 = vunpack.c.l.b16 %v8248
    %v9701 = vunpack.c.h.b16 %v8248
    %v9702 = vunpack.c.l.b16 %v8249
    %v9703 = vunpack.c.h.b16 %v8249
    %v9704 = vunpack.c.l.b16 %v8250
    %v9705 = vunpack.c.h.b16 %v8250
    %v9706 = vunpack.c.l.b16 %v8251
    %v9707 = vunpack.c.h.b16 %v8251
    %v9708 = vunpack.c.l.b16 %v8252
    %v9709 = vunpack.c.h.b16 %v8252
    %v9710 = vunpack.c.l.b16 %v8253
    %v9711 = vunpack.c.h.b16 %v8253
    %v9712 = vunpack.c.l.b16 %v8254
    %v9713 = vunpack.c.h.b16 %v8254
    %v9714 = vunpack.c.l.b16 %v8255
    %v9715 = vunpack.c.h.b16 %v8255
    %v9716 = vunpack.c.l.b16 %v8256
    %v9717 = vunpack.c.h.b16 %v8256
    %v9718 = vunpack.c.l.b16 %v8257
    %v9719 = vunpack.c.h.b16 %v8257
    %v9720 = vunpack.c.l.b16 %v8258
    %v9721 = vunpack.c.h.b16 %v8258
    %v9722 = vunpack.c.l.b16 %v8259
    %v9723 = vunpack.c.h.b16 %v8259
    %v9724 = vunpack.c.l.b16 %v8260
    %v9725 = vunpack.c.h.b16 %v8260
    %v9726 = vunpack.c.l.b16 %v8261
    %v9727 = vunpack.c.h.b16 %v8261
    %v9728 = vunpack.c.l.b16 %v8262
    %v9729 = vunpack.c.h.b16 %v8262
    %v9730 = vunpack.c.l.b16 %v8263
    %v9731 = vunpack.c.h.b16 %v8263
    %v9732 = vunpack.c.l.b16 %v8264
    %v9733 = vunpack.c.h.b16 %v8264
    %v9734 = vunpack.c.l.b16 %v8265
    %v9735 = vunpack.c.h.b16 %v8265
    %v9736 = vunpack.c.l.b16 %v8266
    %v9737 = vunpack.c.h.b16 %v8266
    %v9738 = vunpack.c.l.b16 %v8267
    %v9739 = vunpack.c.h.b16 %v8267
    %v9740 = vunpack.c.l.b16 %v8268
    %v9741 = vunpack.c.h.b16 %v8268
    %v9742 = vunpack.c.l.b16 %v8269
    %v9743 = vunpack.c.h.b16 %v8269
    %v9744 = vunpack.c.l.b16 %v8270
    %v9745 = vunpack.c.h.b16 %v8270
    %v9746 = vunpack.c.l.b16 %v8271
    %v9747 = vunpack.c.h.b16 %v8271
    %v9748 = vunpack.c.l.b16 %v8272
    %v9749 = vunpack.c.h.b16 %v8272
    %v9750 = vunpack.c.l.b16 %v8273
    %v9751 = vunpack.c.h.b16 %v8273
    %v9752 = vunpack.c.l.b16 %v8274
    %v9753 = vunpack.c.h.b16 %v8274
    %v9754 = vunpack.c.l.b16 %v8275
    %v9755 = vunpack.c.h.b16 %v8275
    %v9756 = vunpack.c.l.b16 %v8276
    %v9757 = vunpack.c.h.b16 %v8276
    %v9758 = vunpack.c.l.b16 %v8277
    %v9759 = vunpack.c.h.b16 %v8277
    %v9760 = vunpack.c.l.b16 %v8278
    %v9761 = vunpack.c.h.b16 %v8278
    %v9762 = vunpack.c.l.b16 %v8279
    %v9763 = vunpack.c.h.b16 %v8279
    %v9764 = vunpack.c.l.b16 %v8280
    %v9765 = vunpack.c.h.b16 %v8280
    %v9766 = vunpack.c.l.b16 %v8281
    %v9767 = vunpack.c.h.b16 %v8281
    %v9768 = vunpack.c.l.b16 %v8282
    %v9769 = vunpack.c.h.b16 %v8282
    %v9770 = vunpack.c.l.b16 %v8283
    %v9771 = vunpack.c.h.b16 %v8283
    %v9772 = vunpack.c.l.b16 %v8284
    %v9773 = vunpack.c.h.b16 %v8284
    %v9774 = vunpack.c.l.b16 %v8285
    %v9775 = vunpack.c.h.b16 %v8285
    %v9776 = vunpack.c.l.b16 %v8286
    %v9777 = vunpack.c.h.b16 %v8286
    %v9778 = vunpack.c.l.b16 %v8287
    %v9779 = vunpack.c.h.b16 %v8287
    %v9780 = vunpack.c.l.b16 %v8288
    %v9781 = vunpack.c.h.b16 %v8288
    %v9782 = vunpack.c.l.b16 %v8289
    %v9783 = vunpack.c.h.b16 %v8289
    %v9784 = vunpack.c.l.b16 %v8290
    %v9785 = vunpack.c.h.b16 %v8290
    %v9786 = vunpack.c.l.b16 %v8291
    %v9787 = vunpack.c.h.b16 %v8291
    %v9788 = vunpack.c.l.b16 %v8292
    %v9789 = vunpack.c.h.b16 %v8292
    %v9790 = vunpack.c.l.b16 %v8293
    %v9791 = vunpack.c.h.b16 %v8293
    %v9792 = vunpack.c.l.b16 %v8294
    %v9793 = vunpack.c.h.b16 %v8294
    %v9794 = vunpack.c.l.b16 %v8295
    %v9795 = vunpack.c.h.b16 %v8295
    %v9796 = vunpack.c.l.b16 %v8296
    %v9797 = vunpack.c.h.b16 %v8296
    %v9798 = vunpack.c.l.b16 %v8297
    %v9799 = vunpack.c.h.b16 %v8297
    %v9800 = vunpack.c.l.b16 %v8298
    %v9801 = vunpack.c.h.b16 %v8298
    %v9802 = vunpack.c.l.b16 %v8299
    %v9803 = vunpack.c.h.b16 %v8299
    %v9804 = vunpack.c.l.b16 %v8300
    %v9805 = vunpack.c.h.b16 %v8300
    %v9806 = vunpack.c.l.b16 %v8301
    %v9807 = vunpack.c.h.b16 %v8301
    %v9808 = vunpack.c.l.b16 %v8302
    %v9809 = vunpack.c.h.b16 %v8302
    %v9810 = vunpack.c.l.b16 %v8303
    %v9811 = vunpack.c.h.b16 %v8303
    %v9812 = vunpack.c.l.b16 %v8304
    %v9813 = vunpack.c.h.b16 %v8304
    %v9814 = vunpack.c.l.b16 %v8305
    %v9815 = vunpack.c.h.b16 %v8305
    %v9816 = vunpack.c.l.b16 %v8306
    %v9817 = vunpack.c.h.b16 %v8306
    %v9818 = vunpack.c.l.b16 %v8307
    %v9819 = vunpack.c.h.b16 %v8307
    %v9820 = vunpack.c.l.b16 %v8308
    %v9821 = vunpack.c.h.b16 %v8308
    %v9822 = vunpack.c.l.b16 %v8309
    %v9823 = vunpack.c.h.b16 %v8309
    %v9824 = vunpack.c.l.b16 %v8310
    %v9825 = vunpack.c.h.b16 %v8310
    %v9826 = vunpack.c.l.b16 %v8311
    %v9827 = vunpack.c.h.b16 %v8311
    %v9828 = vunpack.c.l.b16 %v8312
    %v9829 = vunpack.c.h.b16 %v8312
    %v9830 = vunpack.c.l.b16 %v8313
    %v9831 = vunpack.c.h.b16 %v8313
    %v9832 = vunpack.c.l.b16 %v8314
    %v9833 = vunpack.c.h.b16 %v8314
    %v9834 = vunpack.c.l.b16 %v8315
    %v9835 = vunpack.c.h.b16 %v8315
    %v9836 = vunpack.c.l.b16 %v8316
    %v9837 = vunpack.c.h.b16 %v8316
    %v9838 = vunpack.c.l.b16 %v8317
    %v9839 = vunpack.c.h.b16 %v8317
    %v9840 = vunpack.c.l.b16 %v8318
    %v9841 = vunpack.c.h.b16 %v8318
    %v9842 = vunpack.c.l.b16 %v8319
    %v9843 = vunpack.c.h.b16 %v8319
    %v9844 = vunpack.c.l.b16 %v8320
    %v9845 = vunpack.c.h.b16 %v8320
    %v9846 = vunpack.c.l.b16 %v8321
    %v9847 = vunpack.c.h.b16 %v8321
    %v9848 = vunpack.c.l.b16 %v8322
    %v9849 = vunpack.c.h.b16 %v8322
    %v9850 = vunpack.c.l.b16 %v8323
    %v9851 = vunpack.c.h.b16 %v8323
    %v9852 = vunpack.c.l.b16 %v8324
    %v9853 = vunpack.c.h.b16 %v8324
    %v9854 = vunpack.c.l.b16 %v8325
    %v9855 = vunpack.c.h.b16 %v8325
    %v9856 = vunpack.c.l.b16 %v8326
    %v9857 = vunpack.c.h.b16 %v8326
    %v9858 = vunpack.c.l.b16 %v8327
    %v9859 = vunpack.c.h.b16 %v8327
    %v9860 = vunpack.c.l.b16 %v8328
    %v9861 = vunpack.c.h.b16 %v8328
    %v9862 = vunpack.c.l.b16 %v8329
    %v9863 = vunpack.c.h.b16 %v8329
    %v9864 = vunpack.c.l.b16 %v8330
    %v9865 = vunpack.c.h.b16 %v8330
    %v9866 = vunpack.c.l.b16 %v8331
    %v9867 = vunpack.c.h.b16 %v8331
    %v9868 = vunpack.c.l.b16 %v8332
    %v9869 = vunpack.c.h.b16 %v8332
    %v9870 = vunpack.c.l.b16 %v8333
    %v9871 = vunpack.c.h.b16 %v8333
    %v9872 = vunpack.c.l.b16 %v8334
    %v9873 = vunpack.c.h.b16 %v8334
    %v9874 = vunpack.c.l.b16 %v8335
    %v9875 = vunpack.c.h.b16 %v8335
    %v9876 = vunpack.c.l.b16 %v8336
    %v9877 = vunpack.c.h.b16 %v8336
    %v9878 = vunpack.c.l.b16 %v8337
    %v9879 = vunpack.c.h.b16 %v8337
    %v9880 = vunpack.c.l.b16 %v8338
    %v9881 = vunpack.c.h.b16 %v8338
    %v9882 = vunpack.c.l.b16 %v8339
    %v9883 = vunpack.c.h.b16 %v8339
    %v9884 = vunpack.c.l.b16 %v8340
    %v9885 = vunpack.c.h.b16 %v8340
    %v9886 = vunpack.c.l.b16 %v8341
    %v9887 = vunpack.c.h.b16 %v8341
    %v9888 = vunpack.c.l.b16 %v8342
    %v9889 = vunpack.c.h.b16 %v8342
    %v9890 = vunpack.c.l.b16 %v8343
    %v9891 = vunpack.c.h.b16 %v8343
    %v9892 = vunpack.c.l.b16 %v8344
    %v9893 = vunpack.c.h.b16 %v8344
    %v9894 = vunpack.c.l.b16 %v8345
    %v9895 = vunpack.c.h.b16 %v8345
    %v9896 = vunpack.c.l.b16 %v8346
    %v9897 = vunpack.c.h.b16 %v8346
    %v9898 = vunpack.c.l.b16 %v8347
    %v9899 = vunpack.c.h.b16 %v8347
    %v9900 = vunpack.c.l.b16 %v8348
    %v9901 = vunpack.c.h.b16 %v8348
    %v9902 = vunpack.c.l.b16 %v8349
    %v9903 = vunpack.c.h.b16 %v8349
    %v9904 = vunpack.c.l.b16 %v8350
    %v9905 = vunpack.c.h.b16 %v8350
    %v9906 = vunpack.c.l.b16 %v8351
    %v9907 = vunpack.c.h.b16 %v8351
    %v9908 = vunpack.c.l.b16 %v8352
    %v9909 = vunpack.c.h.b16 %v8352
    %v9910 = vunpack.c.l.b16 %v8353
    %v9911 = vunpack.c.h.b16 %v8353
    %v9912 = vunpack.c.l.b16 %v8354
    %v9913 = vunpack.c.h.b16 %v8354
    %v9914 = vunpack.c.l.b16 %v8355
    %v9915 = vunpack.c.h.b16 %v8355
    %v9916 = vunpack.c.l.b16 %v8356
    %v9917 = vunpack.c.h.b16 %v8356
    %v9918 = vunpack.c.l.b16 %v8357
    %v9919 = vunpack.c.h.b16 %v8357
    %v9920 = vunpack.c.l.b16 %v8358
    %v9921 = vunpack.c.h.b16 %v8358
    %v9922 = vunpack.c.l.b16 %v8359
    %v9923 = vunpack.c.h.b16 %v8359
    %v9924 = vunpack.c.l.b16 %v8360
    %v9925 = vunpack.c.h.b16 %v8360
    %v9926 = vunpack.c.l.b16 %v8361
    %v9927 = vunpack.c.h.b16 %v8361
    %v9928 = vunpack.c.l.b16 %v8362
    %v9929 = vunpack.c.h.b16 %v8362
    %v9930 = vunpack.c.l.b16 %v8363
    %v9931 = vunpack.c.h.b16 %v8363
    %v9932 = vunpack.c.l.b16 %v8364
    %v9933 = vunpack.c.h.b16 %v8364
    %v9934 = vunpack.c.l.b16 %v8365
    %v9935 = vunpack.c.h.b16 %v8365
    %v9936 = vunpack.c.l.b16 %v8366
    %v9937 = vunpack.c.h.b16 %v8366
    %v9938 = vunpack.c.l.b16 %v8367
    %v9939 = vunpack.c.h.b16 %v8367
    %v9940 = vunpack.c.l.b16 %v8368
    %v9941 = vunpack.c.h.b16 %v8368
    %v9942 = vunpack.c.l.b16 %v8369
    %v9943 = vunpack.c.h.b16 %v8369
    %v9944 = vunpack.c.l.b16 %v8370
    %v9945 = vunpack.c.h.b16 %v8370
    %v9946 = vpack.c.b16 %v8926, %v8922
    %v9947 = vpack.c.b16 %v8927, %v8923
    %v9948 = vpack.c.b16 %v8928, %v8924
    %v9949 = vpack.c.b16 %v8929, %v8925
    %v9950 = vpack.c.b16 %v8934, %v8930
    %v9951 = vpack.c.b16 %v8935, %v8931
    %v9952 = vpack.c.b16 %v8936, %v8932
    %v9953 = vpack.c.b16 %v8937, %v8933
    %v9954 = vpack.c.b16 %v8942, %v8938
    %v9955 = vpack.c.b16 %v8943, %v8939
    %v9956 = vpack.c.b16 %v8944, %v8940
    %v9957 = vpack.c.b16 %v8945, %v8941
    %v9958 = vpack.c.b16 %v8950, %v8946
    %v9959 = vpack.c.b16 %v8951, %v8947
    %v9960 = vpack.c.b16 %v8952, %v8948
    %v9961 = vpack.c.b16 %v8953, %v8949
    %v9962 = vpack.c.b16 %v8958, %v8954
    %v9963 = vpack.c.b16 %v8959, %v8955
    %v9964 = vpack.c.b16 %v8960, %v8956
    %v9965 = vpack.c.b16 %v8961, %v8957
    %v9966 = vpack.c.b16 %v8966, %v8962
    %v9967 = vpack.c.b16 %v8967, %v8963
    %v9968 = vpack.c.b16 %v8968, %v8964
    %v9969 = vpack.c.b16 %v8969, %v8965
    %v9970 = vpack.c.b16 %v8974, %v8970
    %v9971 = vpack.c.b16 %v8975, %v8971
    %v9972 = vpack.c.b16 %v8976, %v8972
    %v9973 = vpack.c.b16 %v8977, %v8973
    %v9974 = vpack.c.b16 %v8982, %v8978
    %v9975 = vpack.c.b16 %v8983, %v8979
    %v9976 = vpack.c.b16 %v8984, %v8980
    %v9977 = vpack.c.b16 %v8985, %v8981
    %v9978 = vpack.c.b16 %v8990, %v8986
    %v9979 = vpack.c.b16 %v8991, %v8987
    %v9980 = vpack.c.b16 %v8992, %v8988
    %v9981 = vpack.c.b16 %v8993, %v8989
    %v9982 = vpack.c.b16 %v8998, %v8994
    %v9983 = vpack.c.b16 %v8999, %v8995
    %v9984 = vpack.c.b16 %v9000, %v8996
    %v9985 = vpack.c.b16 %v9001, %v8997
    %v9986 = vpack.c.b16 %v9006, %v9002
    %v9987 = vpack.c.b16 %v9007, %v9003
    %v9988 = vpack.c.b16 %v9008, %v9004
    %v9989 = vpack.c.b16 %v9009, %v9005
    %v9990 = vpack.c.b16 %v9014, %v9010
    %v9991 = vpack.c.b16 %v9015, %v9011
    %v9992 = vpack.c.b16 %v9016, %v9012
    %v9993 = vpack.c.b16 %v9017, %v9013
    %v9994 = vpack.c.b16 %v9022, %v9018
    %v9995 = vpack.c.b16 %v9023, %v9019
    %v9996 = vpack.c.b16 %v9024, %v9020
    %v9997 = vpack.c.b16 %v9025, %v9021
    %v9998 = vpack.c.b16 %v9030, %v9026
    %v9999 = vpack.c.b16 %v9031, %v9027
    %v10000 = vpack.c.b16 %v9032, %v9028
    %v10001 = vpack.c.b16 %v9033, %v9029
    %v10002 = vpack.c.b16 %v9038, %v9034
    %v10003 = vpack.c.b16 %v9039, %v9035
    %v10004 = vpack.c.b16 %v9040, %v9036
    %v10005 = vpack.c.b16 %v9041, %v9037
    %v10006 = vpack.c.b16 %v9046, %v9042
    %v10007 = vpack.c.b16 %v9047, %v9043
    %v10008 = vpack.c.b16 %v9048, %v9044
    %v10009 = vpack.c.b16 %v9049, %v9045
    %v10010 = vpack.c.b16 %v9054, %v9050
    %v10011 = vpack.c.b16 %v9055, %v9051
    %v10012 = vpack.c.b16 %v9056, %v9052
    %v10013 = vpack.c.b16 %v9057, %v9053
    %v10014 = vpack.c.b16 %v9062, %v9058
    %v10015 = vpack.c.b16 %v9063, %v9059
    %v10016 = vpack.c.b16 %v9064, %v9060
    %v10017 = vpack.c.b16 %v9065, %v9061
    %v10018 = vpack.c.b16 %v9070, %v9066
    %v10019 = vpack.c.b16 %v9071, %v9067
    %v10020 = vpack.c.b16 %v9072, %v9068
    %v10021 = vpack.c.b16 %v9073, %v9069
    %v10022 = vpack.c.b16 %v9078, %v9074
    %v10023 = vpack.c.b16 %v9079, %v9075
    %v10024 = vpack.c.b16 %v9080, %v9076
    %v10025 = vpack.c.b16 %v9081, %v9077
    %v10026 = vpack.c.b16 %v9086, %v9082
    %v10027 = vpack.c.b16 %v9087, %v9083
    %v10028 = vpack.c.b16 %v9088, %v9084
    %v10029 = vpack.c.b16 %v9089, %v9085
    %v10030 = vpack.c.b16 %v9094, %v9090
    %v10031 = vpack.c.b16 %v9095, %v9091
    %v10032 = vpack.c.b16 %v9096, %v9092
    %v10033 = vpack.c.b16 %v9097, %v9093
    %v10034 = vpack.c.b16 %v9102, %v9098
    %v10035 = vpack.c.b16 %v9103, %v9099
    %v10036 = vpack.c.b16 %v9104, %v9100
    %v10037 = vpack.c.b16 %v9105, %v9101
    %v10038 = vpack.c.b16 %v9110, %v9106
    %v10039 = vpack.c.b16 %v9111, %v9107
    %v10040 = vpack.c.b16 %v9112, %v9108
    %v10041 = vpack.c.b16 %v9113, %v9109
    %v10042 = vpack.c.b16 %v9118, %v9114
    %v10043 = vpack.c.b16 %v9119, %v9115
    %v10044 = vpack.c.b16 %v9120, %v9116
    %v10045 = vpack.c.b16 %v9121, %v9117
    %v10046 = vpack.c.b16 %v9126, %v9122
    %v10047 = vpack.c.b16 %v9127, %v9123
    %v10048 = vpack.c.b16 %v9128, %v9124
    %v10049 = vpack.c.b16 %v9129, %v9125
    %v10050 = vpack.c.b16 %v9134, %v9130
    %v10051 = vpack.c.b16 %v9135, %v9131
    %v10052 = vpack.c.b16 %v9136, %v9132
    %v10053 = vpack.c.b16 %v9137, %v9133
    %v10054 = vpack.c.b16 %v9142, %v9138
    %v10055 = vpack.c.b16 %v9143, %v9139
    %v10056 = vpack.c.b16 %v9144, %v9140
    %v10057 = vpack.c.b16 %v9145, %v9141
    %v10058 = vpack.c.b16 %v9150, %v9146
    %v10059 = vpack.c.b16 %v9151, %v9147
    %v10060 = vpack.c.b16 %v9152, %v9148
    %v10061 = vpack.c.b16 %v9153, %v9149
    %v10062 = vpack.c.b16 %v9158, %v9154
    %v10063 = vpack.c.b16 %v9159, %v9155
    %v10064 = vpack.c.b16 %v9160, %v9156
    %v10065 = vpack.c.b16 %v9161, %v9157
    %v10066 = vpack.c.b16 %v9166, %v9162
    %v10067 = vpack.c.b16 %v9167, %v9163
    %v10068 = vpack.c.b16 %v9168, %v9164
    %v10069 = vpack.c.b16 %v9169, %v9165
    %v10070 = vpack.c.b16 %v9174, %v9170
    %v10071 = vpack.c.b16 %v9175, %v9171
    %v10072 = vpack.c.b16 %v9176, %v9172
    %v10073 = vpack.c.b16 %v9177, %v9173
    %v10074 = vpack.c.b16 %v9182, %v9178
    %v10075 = vpack.c.b16 %v9183, %v9179
    %v10076 = vpack.c.b16 %v9184, %v9180
    %v10077 = vpack.c.b16 %v9185, %v9181
    %v10078 = vpack.c.b16 %v9190, %v9186
    %v10079 = vpack.c.b16 %v9191, %v9187
    %v10080 = vpack.c.b16 %v9192, %v9188
    %v10081 = vpack.c.b16 %v9193, %v9189
    %v10082 = vpack.c.b16 %v9198, %v9194
    %v10083 = vpack.c.b16 %v9199, %v9195
    %v10084 = vpack.c.b16 %v9200, %v9196
    %v10085 = vpack.c.b16 %v9201, %v9197
    %v10086 = vpack.c.b16 %v9206, %v9202
    %v10087 = vpack.c.b16 %v9207, %v9203
    %v10088 = vpack.c.b16 %v9208, %v9204
    %v10089 = vpack.c.b16 %v9209, %v9205
    %v10090 = vpack.c.b16 %v9214, %v9210
    %v10091 = vpack.c.b16 %v9215, %v9211
    %v10092 = vpack.c.b16 %v9216, %v9212
    %v10093 = vpack.c.b16 %v9217, %v9213
    %v10094 = vpack.c.b16 %v9222, %v9218
    %v10095 = vpack.c.b16 %v9223, %v9219
    %v10096 = vpack.c.b16 %v9224, %v9220
    %v10097 = vpack.c.b16 %v9225, %v9221
    %v10098 = vpack.c.b16 %v9230, %v9226
    %v10099 = vpack.c.b16 %v9231, %v9227
    %v10100 = vpack.c.b16 %v9232, %v9228
    %v10101 = vpack.c.b16 %v9233, %v9229
    %v10102 = vpack.c.b16 %v9238, %v9234
    %v10103 = vpack.c.b16 %v9239, %v9235
    %v10104 = vpack.c.b16 %v9240, %v9236
    %v10105 = vpack.c.b16 %v9241, %v9237
    %v10106 = vpack.c.b16 %v9246, %v9242
    %v10107 = vpack.c.b16 %v9247, %v9243
    %v10108 = vpack.c.b16 %v9248, %v9244
    %v10109 = vpack.c.b16 %v9249, %v9245
    %v10110 = vpack.c.b16 %v9254, %v9250
    %v10111 = vpack.c.b16 %v9255, %v9251
    %v10112 = vpack.c.b16 %v9256, %v9252
    %v10113 = vpack.c.b16 %v9257, %v9253
    %v10114 = vpack.c.b16 %v9262, %v9258
    %v10115 = vpack.c.b16 %v9263, %v9259
    %v10116 = vpack.c.b16 %v9264, %v9260
    %v10117 = vpack.c.b16 %v9265, %v9261
    %v10118 = vpack.c.b16 %v9270, %v9266
    %v10119 = vpack.c.b16 %v9271, %v9267
    %v10120 = vpack.c.b16 %v9272, %v9268
    %v10121 = vpack.c.b16 %v9273, %v9269
    %v10122 = vpack.c.b16 %v9278, %v9274
    %v10123 = vpack.c.b16 %v9279, %v9275
    %v10124 = vpack.c.b16 %v9280, %v9276
    %v10125 = vpack.c.b16 %v9281, %v9277
    %v10126 = vpack.c.b16 %v9286, %v9282
    %v10127 = vpack.c.b16 %v9287, %v9283
    %v10128 = vpack.c.b16 %v9288, %v9284
    %v10129 = vpack.c.b16 %v9289, %v9285
    %v10130 = vpack.c.b16 %v9294, %v9290
    %v10131 = vpack.c.b16 %v9295, %v9291
    %v10132 = vpack.c.b16 %v9296, %v9292
    %v10133 = vpack.c.b16 %v9297, %v9293
    %v10134 = vpack.c.b16 %v9302, %v9298
    %v10135 = vpack.c.b16 %v9303, %v9299
    %v10136 = vpack.c.b16 %v9304, %v9300
    %v10137 = vpack.c.b16 %v9305, %v9301
    %v10138 = vpack.c.b16 %v9310, %v9306
    %v10139 = vpack.c.b16 %v9311, %v9307
    %v10140 = vpack.c.b16 %v9312, %v9308
    %v10141 = vpack.c.b16 %v9313, %v9309
    %v10142 = vpack.c.b16 %v9318, %v9314
    %v10143 = vpack.c.b16 %v9319, %v9315
    %v10144 = vpack.c.b16 %v9320, %v9316
    %v10145 = vpack.c.b16 %v9321, %v9317
    %v10146 = vpack.c.b16 %v9326, %v9322
    %v10147 = vpack.c.b16 %v9327, %v9323
    %v10148 = vpack.c.b16 %v9328, %v9324
    %v10149 = vpack.c.b16 %v9329, %v9325
    %v10150 = vpack.c.b16 %v9334, %v9330
    %v10151 = vpack.c.b16 %v9335, %v9331
    %v10152 = vpack.c.b16 %v9336, %v9332
    %v10153 = vpack.c.b16 %v9337, %v9333
    %v10154 = vpack.c.b16 %v9342, %v9338
    %v10155 = vpack.c.b16 %v9343, %v9339
    %v10156 = vpack.c.b16 %v9344, %v9340
    %v10157 = vpack.c.b16 %v9345, %v9341
    %v10158 = vpack.c.b16 %v9350, %v9346
    %v10159 = vpack.c.b16 %v9351, %v9347
    %v10160 = vpack.c.b16 %v9352, %v9348
    %v10161 = vpack.c.b16 %v9353, %v9349
    %v10162 = vpack.c.b16 %v9358, %v9354
    %v10163 = vpack.c.b16 %v9359, %v9355
    %v10164 = vpack.c.b16 %v9360, %v9356
    %v10165 = vpack.c.b16 %v9361, %v9357
    %v10166 = vpack.c.b16 %v9366, %v9362
    %v10167 = vpack.c.b16 %v9367, %v9363
    %v10168 = vpack.c.b16 %v9368, %v9364
    %v10169 = vpack.c.b16 %v9369, %v9365
    %v10170 = vpack.c.b16 %v9374, %v9370
    %v10171 = vpack.c.b16 %v9375, %v9371
    %v10172 = vpack.c.b16 %v9376, %v9372
    %v10173 = vpack.c.b16 %v9377, %v9373
    %v10174 = vpack.c.b16 %v9382, %v9378
    %v10175 = vpack.c.b16 %v9383, %v9379
    %v10176 = vpack.c.b16 %v9384, %v9380
    %v10177 = vpack.c.b16 %v9385, %v9381
    %v10178 = vpack.c.b16 %v9390, %v9386
    %v10179 = vpack.c.b16 %v9391, %v9387
    %v10180 = vpack.c.b16 %v9392, %v9388
    %v10181 = vpack.c.b16 %v9393, %v9389
    %v10182 = vpack.c.b16 %v9398, %v9394
    %v10183 = vpack.c.b16 %v9399, %v9395
    %v10184 = vpack.c.b16 %v9400, %v9396
    %v10185 = vpack.c.b16 %v9401, %v9397
    %v10186 = vpack.c.b16 %v9406, %v9402
    %v10187 = vpack.c.b16 %v9407, %v9403
    %v10188 = vpack.c.b16 %v9408, %v9404
    %v10189 = vpack.c.b16 %v9409, %v9405
    %v10190 = vpack.c.b16 %v9414, %v9410
    %v10191 = vpack.c.b16 %v9415, %v9411
    %v10192 = vpack.c.b16 %v9416, %v9412
    %v10193 = vpack.c.b16 %v9417, %v9413
    %v10194 = vpack.c.b16 %v9422, %v9418
    %v10195 = vpack.c.b16 %v9423, %v9419
    %v10196 = vpack.c.b16 %v9424, %v9420
    %v10197 = vpack.c.b16 %v9425, %v9421
    %v10198 = vpack.c.b16 %v9430, %v9426
    %v10199 = vpack.c.b16 %v9431, %v9427
    %v10200 = vpack.c.b16 %v9432, %v9428
    %v10201 = vpack.c.b16 %v9433, %v9429
    %v10202 = vpack.c.b16 %v9438, %v9434
    %v10203 = vpack.c.b16 %v9439, %v9435
    %v10204 = vpack.c.b16 %v9440, %v9436
    %v10205 = vpack.c.b16 %v9441, %v9437
    %v10206 = vpack.c.b16 %v9446, %v9442
    %v10207 = vpack.c.b16 %v9447, %v9443
    %v10208 = vpack.c.b16 %v9448, %v9444
    %v10209 = vpack.c.b16 %v9449, %v9445
    %v10210 = vpack.c.b16 %v9454, %v9450
    %v10211 = vpack.c.b16 %v9455, %v9451
    %v10212 = vpack.c.b16 %v9456, %v9452
    %v10213 = vpack.c.b16 %v9457, %v9453
    %v10214 = vpack.c.b16 %v9462, %v9458
    %v10215 = vpack.c.b16 %v9463, %v9459
    %v10216 = vpack.c.b16 %v9464, %v9460
    %v10217 = vpack.c.b16 %v9465, %v9461
    %v10218 = vpack.c.b16 %v9470, %v9466
    %v10219 = vpack.c.b16 %v9471, %v9467
    %v10220 = vpack.c.b16 %v9472, %v9468
    %v10221 = vpack.c.b16 %v9473, %v9469
    %v10222 = vpack.c.b16 %v9478, %v9474
    %v10223 = vpack.c.b16 %v9479, %v9475
    %v10224 = vpack.c.b16 %v9480, %v9476
    %v10225 = vpack.c.b16 %v9481, %v9477
    %v10226 = vpack.c.b16 %v9486, %v9482
    %v10227 = vpack.c.b16 %v9487, %v9483
    %v10228 = vpack.c.b16 %v9488, %v9484
    %v10229 = vpack.c.b16 %v9489, %v9485
    %v10230 = vpack.c.b16 %v9494, %v9490
    %v10231 = vpack.c.b16 %v9495, %v9491
    %v10232 = vpack.c.b16 %v9496, %v9492
    %v10233 = vpack.c.b16 %v9497, %v9493
    %v10234 = vpack.c.b16 %v9502, %v9498
    %v10235 = vpack.c.b16 %v9503, %v9499
    %v10236 = vpack.c.b16 %v9504, %v9500
    %v10237 = vpack.c.b16 %v9505, %v9501
    %v10238 = vpack.c.b16 %v9510, %v9506
    %v10239 = vpack.c.b16 %v9511, %v9507
    %v10240 = vpack.c.b16 %v9512, %v9508
    %v10241 = vpack.c.b16 %v9513, %v9509
    %v10242 = vpack.c.b16 %v9518, %v9514
    %v10243 = vpack.c.b16 %v9519, %v9515
    %v10244 = vpack.c.b16 %v9520, %v9516
    %v10245 = vpack.c.b16 %v9521, %v9517
    %v10246 = vpack.c.b16 %v9526, %v9522
    %v10247 = vpack.c.b16 %v9527, %v9523
    %v10248 = vpack.c.b16 %v9528, %v9524
    %v10249 = vpack.c.b16 %v9529, %v9525
    %v10250 = vpack.c.b16 %v9534, %v9530
    %v10251 = vpack.c.b16 %v9535, %v9531
    %v10252 = vpack.c.b16 %v9536, %v9532
    %v10253 = vpack.c.b16 %v9537, %v9533
    %v10254 = vpack.c.b16 %v9542, %v9538
    %v10255 = vpack.c.b16 %v9543, %v9539
    %v10256 = vpack.c.b16 %v9544, %v9540
    %v10257 = vpack.c.b16 %v9545, %v9541
    %v10258 = vpack.c.b16 %v9550, %v9546
    %v10259 = vpack.c.b16 %v9551, %v9547
    %v10260 = vpack.c.b16 %v9552, %v9548
    %v10261 = vpack.c.b16 %v9553, %v9549
    %v10262 = vpack.c.b16 %v9558, %v9554
    %v10263 = vpack.c.b16 %v9559, %v9555
    %v10264 = vpack.c.b16 %v9560, %v9556
    %v10265 = vpack.c.b16 %v9561, %v9557
    %v10266 = vpack.c.b16 %v9566, %v9562
    %v10267 = vpack.c.b16 %v9567, %v9563
    %v10268 = vpack.c.b16 %v9568, %v9564
    %v10269 = vpack.c.b16 %v9569, %v9565
    %v10270 = vpack.c.b16 %v9574, %v9570
    %v10271 = vpack.c.b16 %v9575, %v9571
    %v10272 = vpack.c.b16 %v9576, %v9572
    %v10273 = vpack.c.b16 %v9577, %v9573
    %v10274 = vpack.c.b16 %v9582, %v9578
    %v10275 = vpack.c.b16 %v9583, %v9579
    %v10276 = vpack.c.b16 %v9584, %v9580
    %v10277 = vpack.c.b16 %v9585, %v9581
    %v10278 = vpack.c.b16 %v9590, %v9586
    %v10279 = vpack.c.b16 %v9591, %v9587
    %v10280 = vpack.c.b16 %v9592, %v9588
    %v10281 = vpack.c.b16 %v9593, %v9589
    %v10282 = vpack.c.b16 %v9598, %v9594
    %v10283 = vpack.c.b16 %v9599, %v9595
    %v10284 = vpack.c.b16 %v9600, %v9596
    %v10285 = vpack.c.b16 %v9601, %v9597
    %v10286 = vpack.c.b16 %v9606, %v9602
    %v10287 = vpack.c.b16 %v9607, %v9603
    %v10288 = vpack.c.b16 %v9608, %v9604
    %v10289 = vpack.c.b16 %v9609, %v9605
    %v10290 = vpack.c.b16 %v9614, %v9610
    %v10291 = vpack.c.b16 %v9615, %v9611
    %v10292 = vpack.c.b16 %v9616, %v9612
    %v10293 = vpack.c.b16 %v9617, %v9613
    %v10294 = vpack.c.b16 %v9622, %v9618
    %v10295 = vpack.c.b16 %v9623, %v9619
    %v10296 = vpack.c.b16 %v9624, %v9620
    %v10297 = vpack.c.b16 %v9625, %v9621
    %v10298 = vpack.c.b16 %v9630, %v9626
    %v10299 = vpack.c.b16 %v9631, %v9627
    %v10300 = vpack.c.b16 %v9632, %v9628
    %v10301 = vpack.c.b16 %v9633, %v9629
    %v10302 = vpack.c.b16 %v9638, %v9634
    %v10303 = vpack.c.b16 %v9639, %v9635
    %v10304 = vpack.c.b16 %v9640, %v9636
    %v10305 = vpack.c.b16 %v9641, %v9637
    %v10306 = vpack.c.b16 %v9646, %v9642
    %v10307 = vpack.c.b16 %v9647, %v9643
    %v10308 = vpack.c.b16 %v9648, %v9644
    %v10309 = vpack.c.b16 %v9649, %v9645
    %v10310 = vpack.c.b16 %v9654, %v9650
    %v10311 = vpack.c.b16 %v9655, %v9651
    %v10312 = vpack.c.b16 %v9656, %v9652
    %v10313 = vpack.c.b16 %v9657, %v9653
    %v10314 = vpack.c.b16 %v9662, %v9658
    %v10315 = vpack.c.b16 %v9663, %v9659
    %v10316 = vpack.c.b16 %v9664, %v9660
    %v10317 = vpack.c.b16 %v9665, %v9661
    %v10318 = vpack.c.b16 %v9670, %v9666
    %v10319 = vpack.c.b16 %v9671, %v9667
    %v10320 = vpack.c.b16 %v9672, %v9668
    %v10321 = vpack.c.b16 %v9673, %v9669
    %v10322 = vpack.c.b16 %v9678, %v9674
    %v10323 = vpack.c.b16 %v9679, %v9675
    %v10324 = vpack.c.b16 %v9680, %v9676
    %v10325 = vpack.c.b16 %v9681, %v9677
    %v10326 = vpack.c.b16 %v9686, %v9682
    %v10327 = vpack.c.b16 %v9687, %v9683
    %v10328 = vpack.c.b16 %v9688, %v9684
    %v10329 = vpack.c.b16 %v9689, %v9685
    %v10330 = vpack.c.b16 %v9694, %v9690
    %v10331 = vpack.c.b16 %v9695, %v9691
    %v10332 = vpack.c.b16 %v9696, %v9692
    %v10333 = vpack.c.b16 %v9697, %v9693
    %v10334 = vpack.c.b16 %v9702, %v9698
    %v10335 = vpack.c.b16 %v9703, %v9699
    %v10336 = vpack.c.b16 %v9704, %v9700
    %v10337 = vpack.c.b16 %v9705, %v9701
    %v10338 = vpack.c.b16 %v9710, %v9706
    %v10339 = vpack.c.b16 %v9711, %v9707
    %v10340 = vpack.c.b16 %v9712, %v9708
    %v10341 = vpack.c.b16 %v9713, %v9709
    %v10342 = vpack.c.b16 %v9718, %v9714
    %v10343 = vpack.c.b16 %v9719, %v9715
    %v10344 = vpack.c.b16 %v9720, %v9716
    %v10345 = vpack.c.b16 %v9721, %v9717
    %v10346 = vpack.c.b16 %v9726, %v9722
    %v10347 = vpack.c.b16 %v9727, %v9723
    %v10348 = vpack.c.b16 %v9728, %v9724
    %v10349 = vpack.c.b16 %v9729, %v9725
    %v10350 = vpack.c.b16 %v9734, %v9730
    %v10351 = vpack.c.b16 %v9735, %v9731
    %v10352 = vpack.c.b16 %v9736, %v9732
    %v10353 = vpack.c.b16 %v9737, %v9733
    %v10354 = vpack.c.b16 %v9742, %v9738
    %v10355 = vpack.c.b16 %v9743, %v9739
    %v10356 = vpack.c.b16 %v9744, %v9740
    %v10357 = vpack.c.b16 %v9745, %v9741
    %v10358 = vpack.c.b16 %v9750, %v9746
    %v10359 = vpack.c.b16 %v9751, %v9747
    %v10360 = vpack.c.b16 %v9752, %v9748
    %v10361 = vpack.c.b16 %v9753, %v9749
    %v10362 = vpack.c.b16 %v9758, %v9754
    %v10363 = vpack.c.b16 %v9759, %v9755
    %v10364 = vpack.c.b16 %v9760, %v9756
    %v10365 = vpack.c.b16 %v9761, %v9757
    %v10366 = vpack.c.b16 %v9766, %v9762
    %v10367 = vpack.c.b16 %v9767, %v9763
    %v10368 = vpack.c.b16 %v9768, %v9764
    %v10369 = vpack.c.b16 %v9769, %v9765
    %v10370 = vpack.c.b16 %v9774, %v9770
    %v10371 = vpack.c.b16 %v9775, %v9771
    %v10372 = vpack.c.b16 %v9776, %v9772
    %v10373 = vpack.c.b16 %v9777, %v9773
    %v10374 = vpack.c.b16 %v9782, %v9778
    %v10375 = vpack.c.b16 %v9783, %v9779
    %v10376 = vpack.c.b16 %v9784, %v9780
    %v10377 = vpack.c.b16 %v9785, %v9781
    %v10378 = vpack.c.b16 %v9790, %v9786
    %v10379 = vpack.c.b16 %v9791, %v9787
    %v10380 = vpack.c.b16 %v9792, %v9788
    %v10381 = vpack.c.b16 %v9793, %v9789
    %v10382 = vpack.c.b16 %v9798, %v9794
    %v10383 = vpack.c.b16 %v9799, %v9795
    %v10384 = vpack.c.b16 %v9800, %v9796
    %v10385 = vpack.c.b16 %v9801, %v9797
    %v10386 = vpack.c.b16 %v9806, %v9802
    %v10387 = vpack.c.b16 %v9807, %v9803
    %v10388 = vpack.c.b16 %v9808, %v9804
    %v10389 = vpack.c.b16 %v9809, %v9805
    %v10390 = vpack.c.b16 %v9814, %v9810
    %v10391 = vpack.c.b16 %v9815, %v9811
    %v10392 = vpack.c.b16 %v9816, %v9812
    %v10393 = vpack.c.b16 %v9817, %v9813
    %v10394 = vpack.c.b16 %v9822, %v9818
    %v10395 = vpack.c.b16 %v9823, %v9819
    %v10396 = vpack.c.b16 %v9824, %v9820
    %v10397 = vpack.c.b16 %v9825, %v9821
    %v10398 = vpack.c.b16 %v9830, %v9826
    %v10399 = vpack.c.b16 %v9831, %v9827
    %v10400 = vpack.c.b16 %v9832, %v9828
    %v10401 = vpack.c.b16 %v9833, %v9829
    %v10402 = vpack.c.b16 %v9838, %v9834
    %v10403 = vpack.c.b16 %v9839, %v9835
    %v10404 = vpack.c.b16 %v9840, %v9836
    %v10405 = vpack.c.b16 %v9841, %v9837
    %v10406 = vpack.c.b16 %v9846, %v9842
    %v10407 = vpack.c.b16 %v9847, %v9843
    %v10408 = vpack.c.b16 %v9848, %v9844
    %v10409 = vpack.c.b16 %v9849, %v9845
    %v10410 = vpack.c.b16 %v9854, %v9850
    %v10411 = vpack.c.b16 %v9855, %v9851
    %v10412 = vpack.c.b16 %v9856, %v9852
    %v10413 = vpack.c.b16 %v9857, %v9853
    %v10414 = vpack.c.b16 %v9862, %v9858
    %v10415 = vpack.c.b16 %v9863, %v9859
    %v10416 = vpack.c.b16 %v9864, %v9860
    %v10417 = vpack.c.b16 %v9865, %v9861
    %v10418 = vpack.c.b16 %v9870, %v9866
    %v10419 = vpack.c.b16 %v9871, %v9867
    %v10420 = vpack.c.b16 %v9872, %v9868
    %v10421 = vpack.c.b16 %v9873, %v9869
    %v10422 = vpack.c.b16 %v9878, %v9874
    %v10423 = vpack.c.b16 %v9879, %v9875
    %v10424 = vpack.c.b16 %v9880, %v9876
    %v10425 = vpack.c.b16 %v9881, %v9877
    %v10426 = vpack.c.b16 %v9886, %v9882
    %v10427 = vpack.c.b16 %v9887, %v9883
    %v10428 = vpack.c.b16 %v9888, %v9884
    %v10429 = vpack.c.b16 %v9889, %v9885
    %v10430 = vpack.c.b16 %v9894, %v9890
    %v10431 = vpack.c.b16 %v9895, %v9891
    %v10432 = vpack.c.b16 %v9896, %v9892
    %v10433 = vpack.c.b16 %v9897, %v9893
    %v10434 = vpack.c.b16 %v9902, %v9898
    %v10435 = vpack.c.b16 %v9903, %v9899
    %v10436 = vpack.c.b16 %v9904, %v9900
    %v10437 = vpack.c.b16 %v9905, %v9901
    %v10438 = vpack.c.b16 %v9910, %v9906
    %v10439 = vpack.c.b16 %v9911, %v9907
    %v10440 = vpack.c.b16 %v9912, %v9908
    %v10441 = vpack.c.b16 %v9913, %v9909
    %v10442 = vpack.c.b16 %v9918, %v9914
    %v10443 = vpack.c.b16 %v9919, %v9915
    %v10444 = vpack.c.b16 %v9920, %v9916
    %v10445 = vpack.c.b16 %v9921, %v9917
    %v10446 = vpack.c.b16 %v9926, %v9922
    %v10447 = vpack.c.b16 %v9927, %v9923
    %v10448 = vpack.c.b16 %v9928, %v9924
    %v10449 = vpack.c.b16 %v9929, %v9925
    %v10450 = vpack.c.b16 %v9934, %v9930
    %v10451 = vpack.c.b16 %v9935, %v9931
    %v10452 = vpack.c.b16 %v9936, %v9932
    %v10453 = vpack.c.b16 %v9937, %v9933
    %v10454 = vpack.c.b16 %v9942, %v9938
    %v10455 = vpack.c.b16 %v9943, %v9939
    %v10456 = vpack.c.b16 %v9944, %v9940
    %v10457 = vpack.c.b16 %v9945, %v9941
    %10970 = vmatprep.subr.bf16.mxu0 %v9975
    %10971 = vmatpush1.bf16.msra.mxu0 %v9974
    %10972 = vmatprep.subr.bf16.mxu0 %v9971
    %10973 = vmatpush1.bf16.msra.mxu0 %v9970
    %10974 = vmatprep.subr.bf16.mxu0 %v9967
    %10975 = vmatpush1.bf16.msra.mxu0 %v9966
    %10976 = vmatprep.subr.bf16.mxu0 %v9963
    %10977 = vmatpush1.bf16.msra.mxu0 %v9962
    %10978 = vmatprep.subr.bf16.mxu0 %v9959
    %10979 = vmatpush1.bf16.msra.mxu0 %v9958
    %10980 = vmatprep.subr.bf16.mxu0 %v9955
    %10981 = vmatpush1.bf16.msra.mxu0 %v9954
    %10982 = vmatprep.subr.bf16.mxu0 %v9951
    %10983 = vmatpush1.bf16.msra.mxu0 %v9950
    %10984 = vmatprep.subr.bf16.mxu0 %v9947
    %10985 = vmatpush1.bf16.msra.mxu0 %v9946
    %10986 = vmatprep.subr.bf16.mxu0 %v10007
    %10987 = vmatpush2.bf16.msra.mxu0 %v10006
    %10988 = vmatprep.subr.bf16.mxu0 %v10003
    %10989 = vmatpush2.bf16.msra.mxu0 %v10002
    %10990 = vmatprep.subr.bf16.mxu0 %v9999
    %10991 = vmatpush2.bf16.msra.mxu0 %v9998
    %10992 = vmatprep.subr.bf16.mxu0 %v9995
    %10993 = vmatpush2.bf16.msra.mxu0 %v9994
    %10994 = vmatprep.subr.bf16.mxu0 %v9991
    %10995 = vmatpush2.bf16.msra.mxu0 %v9990
    %10996 = vmatprep.subr.bf16.mxu0 %v9987
    %10997 = vmatpush2.bf16.msra.mxu0 %v9986
    %10998 = vmatprep.subr.bf16.mxu0 %v9983
    %10999 = vmatpush2.bf16.msra.mxu0 %v9982
    %11000 = vmatprep.subr.bf16.mxu0 %v9979
    %11001 = vmatpush2.bf16.msra.mxu0 %v9978
    %11002 = vmatprep.mubr.bf16.mxu0 %v8372
    %11003 = vmatmul.mubr.bf16.gmra.mxu0 %v8371
    %v11004 = vpop.f32.mrf.mxu0
    %v11005 = vadd.f32 %v8393, %v11004
    %v11006 = vpop.f32.mrf.mxu0
    %v11007 = vadd.f32 %v8397, %v11006
    %v11008 = vpop.f32.mrf.mxu0
    %v11009 = vpop.f32.mrf.mxu0
    %11010 = vdwg.mxu0
    %11011 = vmatprep.subr.bf16.mxu0 %v10039
    %11012 = vmatpush1.bf16.msra.mxu0 %v10038
    %11013 = vmatprep.subr.bf16.mxu0 %v10035
    %11014 = vmatpush1.bf16.msra.mxu0 %v10034
    %11015 = vmatprep.subr.bf16.mxu0 %v10031
    %11016 = vmatpush1.bf16.msra.mxu0 %v10030
    %11017 = vmatprep.subr.bf16.mxu0 %v10027
    %11018 = vmatpush1.bf16.msra.mxu0 %v10026
    %11019 = vmatprep.subr.bf16.mxu0 %v10023
    %11020 = vmatpush1.bf16.msra.mxu0 %v10022
    %11021 = vmatprep.subr.bf16.mxu0 %v10019
    %11022 = vmatpush1.bf16.msra.mxu0 %v10018
    %11023 = vmatprep.subr.bf16.mxu0 %v10015
    %11024 = vmatpush1.bf16.msra.mxu0 %v10014
    %11025 = vmatprep.subr.bf16.mxu0 %v10011
    %11026 = vmatpush1.bf16.msra.mxu0 %v10010
    %11027 = vmatprep.subr.bf16.mxu0 %v10071
    %11028 = vmatpush2.bf16.msra.mxu0 %v10070
    %11029 = vmatprep.subr.bf16.mxu0 %v10067
    %11030 = vmatpush2.bf16.msra.mxu0 %v10066
    %11031 = vmatprep.subr.bf16.mxu0 %v10063
    %11032 = vmatpush2.bf16.msra.mxu0 %v10062
    %11033 = vmatprep.subr.bf16.mxu0 %v10059
    %11034 = vmatpush2.bf16.msra.mxu0 %v10058
    %11035 = vmatprep.subr.bf16.mxu0 %v10055
    %11036 = vmatpush2.bf16.msra.mxu0 %v10054
    %11037 = vmatprep.subr.bf16.mxu0 %v10051
    %11038 = vmatpush2.bf16.msra.mxu0 %v10050
    %11039 = vmatprep.subr.bf16.mxu0 %v10047
    %11040 = vmatpush2.bf16.msra.mxu0 %v10046
    %11041 = vmatprep.subr.bf16.mxu0 %v10043
    %11042 = vmatpush2.bf16.msra.mxu0 %v10042
    %11043 = vmatprep.mubr.bf16.mxu0 %v8374
    %11044 = vmatmul.mubr.bf16.gmra.mxu0 %v8373
    %v11045 = vpop.f32.mrf.mxu0
    %v11046 = vadd.f32 %v11005, %v11045
    %v11047 = vpop.f32.mrf.mxu0
    %v11048 = vadd.f32 %v11007, %v11047
    %v11049 = vpop.f32.mrf.mxu0
    %v11050 = vpop.f32.mrf.mxu0
    %11051 = vdwg.mxu0
    %11052 = vmatprep.subr.bf16.mxu0 %v10103
    %11053 = vmatpush1.bf16.msra.mxu0 %v10102
    %11054 = vmatprep.subr.bf16.mxu0 %v10099
    %11055 = vmatpush1.bf16.msra.mxu0 %v10098
    %11056 = vmatprep.subr.bf16.mxu0 %v10095
    %11057 = vmatpush1.bf16.msra.mxu0 %v10094
    %11058 = vmatprep.subr.bf16.mxu0 %v10091
    %11059 = vmatpush1.bf16.msra.mxu0 %v10090
    %11060 = vmatprep.subr.bf16.mxu0 %v10087
    %11061 = vmatpush1.bf16.msra.mxu0 %v10086
    %11062 = vmatprep.subr.bf16.mxu0 %v10083
    %11063 = vmatpush1.bf16.msra.mxu0 %v10082
    %11064 = vmatprep.subr.bf16.mxu0 %v10079
    %11065 = vmatpush1.bf16.msra.mxu0 %v10078
    %11066 = vmatprep.subr.bf16.mxu0 %v10075
    %11067 = vmatpush1.bf16.msra.mxu0 %v10074
    %11068 = vmatprep.subr.bf16.mxu0 %v10135
    %11069 = vmatpush2.bf16.msra.mxu0 %v10134
    %11070 = vmatprep.subr.bf16.mxu0 %v10131
    %11071 = vmatpush2.bf16.msra.mxu0 %v10130
    %11072 = vmatprep.subr.bf16.mxu0 %v10127
    %11073 = vmatpush2.bf16.msra.mxu0 %v10126
    %11074 = vmatprep.subr.bf16.mxu0 %v10123
    %11075 = vmatpush2.bf16.msra.mxu0 %v10122
    %11076 = vmatprep.subr.bf16.mxu0 %v10119
    %11077 = vmatpush2.bf16.msra.mxu0 %v10118
    %11078 = vmatprep.subr.bf16.mxu0 %v10115
    %11079 = vmatpush2.bf16.msra.mxu0 %v10114
    %11080 = vmatprep.subr.bf16.mxu0 %v10111
    %11081 = vmatpush2.bf16.msra.mxu0 %v10110
    %11082 = vmatprep.subr.bf16.mxu0 %v10107
    %11083 = vmatpush2.bf16.msra.mxu0 %v10106
    %11084 = vmatprep.mubr.bf16.mxu0 %v8376
    %11085 = vmatmul.mubr.bf16.gmra.mxu0 %v8375
    %v11086 = vpop.f32.mrf.mxu0
    %v11087 = vadd.f32 %v11046, %v11086
    %v11088 = vpop.f32.mrf.mxu0
    %v11089 = vadd.f32 %v11048, %v11088
    %v11090 = vpop.f32.mrf.mxu0
    %v11091 = vpop.f32.mrf.mxu0
    %11092 = vdwg.mxu0
    %11093 = vmatprep.subr.bf16.mxu0 %v10167
    %11094 = vmatpush1.bf16.msra.mxu0 %v10166
    %11095 = vmatprep.subr.bf16.mxu0 %v10163
    %11096 = vmatpush1.bf16.msra.mxu0 %v10162
    %11097 = vmatprep.subr.bf16.mxu0 %v10159
    %11098 = vmatpush1.bf16.msra.mxu0 %v10158
    %11099 = vmatprep.subr.bf16.mxu0 %v10155
    %11100 = vmatpush1.bf16.msra.mxu0 %v10154
    %11101 = vmatprep.subr.bf16.mxu0 %v10151
    %11102 = vmatpush1.bf16.msra.mxu0 %v10150
    %11103 = vmatprep.subr.bf16.mxu0 %v10147
    %11104 = vmatpush1.bf16.msra.mxu0 %v10146
    %11105 = vmatprep.subr.bf16.mxu0 %v10143
    %11106 = vmatpush1.bf16.msra.mxu0 %v10142
    %11107 = vmatprep.subr.bf16.mxu0 %v10139
    %11108 = vmatpush1.bf16.msra.mxu0 %v10138
    %11109 = vmatprep.subr.bf16.mxu0 %v10199
    %11110 = vmatpush2.bf16.msra.mxu0 %v10198
    %11111 = vmatprep.subr.bf16.mxu0 %v10195
    %11112 = vmatpush2.bf16.msra.mxu0 %v10194
    %11113 = vmatprep.subr.bf16.mxu0 %v10191
    %11114 = vmatpush2.bf16.msra.mxu0 %v10190
    %11115 = vmatprep.subr.bf16.mxu0 %v10187
    %11116 = vmatpush2.bf16.msra.mxu0 %v10186
    %11117 = vmatprep.subr.bf16.mxu0 %v10183
    %11118 = vmatpush2.bf16.msra.mxu0 %v10182
    %11119 = vmatprep.subr.bf16.mxu0 %v10179
    %11120 = vmatpush2.bf16.msra.mxu0 %v10178
    %11121 = vmatprep.subr.bf16.mxu0 %v10175
    %11122 = vmatpush2.bf16.msra.mxu0 %v10174
    %11123 = vmatprep.subr.bf16.mxu0 %v10171
    %11124 = vmatpush2.bf16.msra.mxu0 %v10170
    %11125 = vmatprep.mubr.bf16.mxu0 %v8378
    %11126 = vmatmul.mubr.bf16.gmra.mxu0 %v8377
    %v11127 = vpop.f32.mrf.mxu0
    %v11128 = vadd.f32 %v11087, %v11127
    %v11129 = vpop.f32.mrf.mxu0
    %v11130 = vadd.f32 %v11089, %v11129
    %v11131 = vpop.f32.mrf.mxu0
    %v11132 = vpop.f32.mrf.mxu0
    %11133 = vdwg.mxu0
    %11134 = vmatprep.subr.bf16.mxu0 %v10231
    %11135 = vmatpush1.bf16.msra.mxu0 %v10230
    %11136 = vmatprep.subr.bf16.mxu0 %v10227
    %11137 = vmatpush1.bf16.msra.mxu0 %v10226
    %11138 = vmatprep.subr.bf16.mxu0 %v10223
    %11139 = vmatpush1.bf16.msra.mxu0 %v10222
    %11140 = vmatprep.subr.bf16.mxu0 %v10219
    %11141 = vmatpush1.bf16.msra.mxu0 %v10218
    %11142 = vmatprep.subr.bf16.mxu0 %v10215
    %11143 = vmatpush1.bf16.msra.mxu0 %v10214
    %11144 = vmatprep.subr.bf16.mxu0 %v10211
    %11145 = vmatpush1.bf16.msra.mxu0 %v10210
    %11146 = vmatprep.subr.bf16.mxu0 %v10207
    %11147 = vmatpush1.bf16.msra.mxu0 %v10206
    %11148 = vmatprep.subr.bf16.mxu0 %v10203
    %11149 = vmatpush1.bf16.msra.mxu0 %v10202
    %11150 = vmatprep.subr.bf16.mxu0 %v10263
    %11151 = vmatpush2.bf16.msra.mxu0 %v10262
    %11152 = vmatprep.subr.bf16.mxu0 %v10259
    %11153 = vmatpush2.bf16.msra.mxu0 %v10258
    %11154 = vmatprep.subr.bf16.mxu0 %v10255
    %11155 = vmatpush2.bf16.msra.mxu0 %v10254
    %11156 = vmatprep.subr.bf16.mxu0 %v10251
    %11157 = vmatpush2.bf16.msra.mxu0 %v10250
    %11158 = vmatprep.subr.bf16.mxu0 %v10247
    %11159 = vmatpush2.bf16.msra.mxu0 %v10246
    %11160 = vmatprep.subr.bf16.mxu0 %v10243
    %11161 = vmatpush2.bf16.msra.mxu0 %v10242
    %11162 = vmatprep.subr.bf16.mxu0 %v10239
    %11163 = vmatpush2.bf16.msra.mxu0 %v10238
    %11164 = vmatprep.subr.bf16.mxu0 %v10235
    %11165 = vmatpush2.bf16.msra.mxu0 %v10234
    %11166 = vmatprep.mubr.bf16.mxu0 %v8380
    %11167 = vmatmul.mubr.bf16.gmra.mxu0 %v8379
    %v11168 = vpop.f32.mrf.mxu0
    %v11169 = vadd.f32 %v11128, %v11168
    %v11170 = vpop.f32.mrf.mxu0
    %v11171 = vadd.f32 %v11130, %v11170
    %v11172 = vpop.f32.mrf.mxu0
    %v11173 = vpop.f32.mrf.mxu0
    %11174 = vdwg.mxu0
    %11175 = vmatprep.subr.bf16.mxu0 %v10295
    %11176 = vmatpush1.bf16.msra.mxu0 %v10294
    %11177 = vmatprep.subr.bf16.mxu0 %v10291
    %11178 = vmatpush1.bf16.msra.mxu0 %v10290
    %11179 = vmatprep.subr.bf16.mxu0 %v10287
    %11180 = vmatpush1.bf16.msra.mxu0 %v10286
    %11181 = vmatprep.subr.bf16.mxu0 %v10283
    %11182 = vmatpush1.bf16.msra.mxu0 %v10282
    %11183 = vmatprep.subr.bf16.mxu0 %v10279
    %11184 = vmatpush1.bf16.msra.mxu0 %v10278
    %11185 = vmatprep.subr.bf16.mxu0 %v10275
    %11186 = vmatpush1.bf16.msra.mxu0 %v10274
    %11187 = vmatprep.subr.bf16.mxu0 %v10271
    %11188 = vmatpush1.bf16.msra.mxu0 %v10270
    %11189 = vmatprep.subr.bf16.mxu0 %v10267
    %11190 = vmatpush1.bf16.msra.mxu0 %v10266
    %11191 = vmatprep.subr.bf16.mxu0 %v10327
    %11192 = vmatpush2.bf16.msra.mxu0 %v10326
    %11193 = vmatprep.subr.bf16.mxu0 %v10323
    %11194 = vmatpush2.bf16.msra.mxu0 %v10322
    %11195 = vmatprep.subr.bf16.mxu0 %v10319
    %11196 = vmatpush2.bf16.msra.mxu0 %v10318
    %11197 = vmatprep.subr.bf16.mxu0 %v10315
    %11198 = vmatpush2.bf16.msra.mxu0 %v10314
    %11199 = vmatprep.subr.bf16.mxu0 %v10311
    %11200 = vmatpush2.bf16.msra.mxu0 %v10310
    %11201 = vmatprep.subr.bf16.mxu0 %v10307
    %11202 = vmatpush2.bf16.msra.mxu0 %v10306
    %11203 = vmatprep.subr.bf16.mxu0 %v10303
    %11204 = vmatpush2.bf16.msra.mxu0 %v10302
    %11205 = vmatprep.subr.bf16.mxu0 %v10299
    %11206 = vmatpush2.bf16.msra.mxu0 %v10298
    %11207 = vmatprep.mubr.bf16.mxu0 %v8382
    %11208 = vmatmul.mubr.bf16.gmra.mxu0 %v8381
    %v11209 = vpop.f32.mrf.mxu0
    %v11210 = vadd.f32 %v11169, %v11209
    %v11211 = vpop.f32.mrf.mxu0
    %v11212 = vadd.f32 %v11171, %v11211
    %v11213 = vpop.f32.mrf.mxu0
    %v11214 = vpop.f32.mrf.mxu0
    %11215 = vdwg.mxu0
    %11216 = vmatprep.subr.bf16.mxu0 %v10359
    %11217 = vmatpush1.bf16.msra.mxu0 %v10358
    %11218 = vmatprep.subr.bf16.mxu0 %v10355
    %11219 = vmatpush1.bf16.msra.mxu0 %v10354
    %11220 = vmatprep.subr.bf16.mxu0 %v10351
    %11221 = vmatpush1.bf16.msra.mxu0 %v10350
    %11222 = vmatprep.subr.bf16.mxu0 %v10347
    %11223 = vmatpush1.bf16.msra.mxu0 %v10346
    %11224 = vmatprep.subr.bf16.mxu0 %v10343
    %11225 = vmatpush1.bf16.msra.mxu0 %v10342
    %11226 = vmatprep.subr.bf16.mxu0 %v10339
    %11227 = vmatpush1.bf16.msra.mxu0 %v10338
    %11228 = vmatprep.subr.bf16.mxu0 %v10335
    %11229 = vmatpush1.bf16.msra.mxu0 %v10334
    %11230 = vmatprep.subr.bf16.mxu0 %v10331
    %11231 = vmatpush1.bf16.msra.mxu0 %v10330
    %11232 = vmatprep.subr.bf16.mxu0 %v10391
    %11233 = vmatpush2.bf16.msra.mxu0 %v10390
    %11234 = vmatprep.subr.bf16.mxu0 %v10387
    %11235 = vmatpush2.bf16.msra.mxu0 %v10386
    %11236 = vmatprep.subr.bf16.mxu0 %v10383
    %11237 = vmatpush2.bf16.msra.mxu0 %v10382
    %11238 = vmatprep.subr.bf16.mxu0 %v10379
    %11239 = vmatpush2.bf16.msra.mxu0 %v10378
    %11240 = vmatprep.subr.bf16.mxu0 %v10375
    %11241 = vmatpush2.bf16.msra.mxu0 %v10374
    %11242 = vmatprep.subr.bf16.mxu0 %v10371
    %11243 = vmatpush2.bf16.msra.mxu0 %v10370
    %11244 = vmatprep.subr.bf16.mxu0 %v10367
    %11245 = vmatpush2.bf16.msra.mxu0 %v10366
    %11246 = vmatprep.subr.bf16.mxu0 %v10363
    %11247 = vmatpush2.bf16.msra.mxu0 %v10362
    %11248 = vmatprep.mubr.bf16.mxu0 %v8384
    %11249 = vmatmul.mubr.bf16.gmra.mxu0 %v8383
    %v11250 = vpop.f32.mrf.mxu0
    %v11251 = vadd.f32 %v11210, %v11250
    %v11252 = vpop.f32.mrf.mxu0
    %v11253 = vadd.f32 %v11212, %v11252
    %v11254 = vpop.f32.mrf.mxu0
    %v11255 = vpop.f32.mrf.mxu0
    %11256 = vdwg.mxu0
    %11257 = vmatprep.subr.bf16.mxu0 %v10423
    %11258 = vmatpush1.bf16.msra.mxu0 %v10422
    %11259 = vmatprep.subr.bf16.mxu0 %v10419
    %11260 = vmatpush1.bf16.msra.mxu0 %v10418
    %11261 = vmatprep.subr.bf16.mxu0 %v10415
    %11262 = vmatpush1.bf16.msra.mxu0 %v10414
    %11263 = vmatprep.subr.bf16.mxu0 %v10411
    %11264 = vmatpush1.bf16.msra.mxu0 %v10410
    %11265 = vmatprep.subr.bf16.mxu0 %v10407
    %11266 = vmatpush1.bf16.msra.mxu0 %v10406
    %11267 = vmatprep.subr.bf16.mxu0 %v10403
    %11268 = vmatpush1.bf16.msra.mxu0 %v10402
    %11269 = vmatprep.subr.bf16.mxu0 %v10399
    %11270 = vmatpush1.bf16.msra.mxu0 %v10398
    %11271 = vmatprep.subr.bf16.mxu0 %v10395
    %11272 = vmatpush1.bf16.msra.mxu0 %v10394
    %11273 = vmatprep.subr.bf16.mxu0 %v10455
    %11274 = vmatpush2.bf16.msra.mxu0 %v10454
    %11275 = vmatprep.subr.bf16.mxu0 %v10451
    %11276 = vmatpush2.bf16.msra.mxu0 %v10450
    %11277 = vmatprep.subr.bf16.mxu0 %v10447
    %11278 = vmatpush2.bf16.msra.mxu0 %v10446
    %11279 = vmatprep.subr.bf16.mxu0 %v10443
    %11280 = vmatpush2.bf16.msra.mxu0 %v10442
    %11281 = vmatprep.subr.bf16.mxu0 %v10439
    %11282 = vmatpush2.bf16.msra.mxu0 %v10438
    %11283 = vmatprep.subr.bf16.mxu0 %v10435
    %11284 = vmatpush2.bf16.msra.mxu0 %v10434
    %11285 = vmatprep.subr.bf16.mxu0 %v10431
    %11286 = vmatpush2.bf16.msra.mxu0 %v10430
    %11287 = vmatprep.subr.bf16.mxu0 %v10427
    %11288 = vmatpush2.bf16.msra.mxu0 %v10426
    %11289 = vmatprep.mubr.bf16.mxu0 %v8386
    %11290 = vmatmul.mubr.bf16.gmra.mxu0 %v8385
    %v11291 = vpop.f32.mrf.mxu0
    %v11292 = vadd.f32 %v11251, %v11291
    %v11293 = vpop.f32.mrf.mxu0
    %v11294 = vadd.f32 %v11253, %v11293
    %v11295 = vpop.f32.mrf.mxu0
    %v11296 = vpop.f32.mrf.mxu0
    %11297 = vdwg.mxu0
    %11298 = vmatprep.subr.bf16.mxu0 %v9977
    %11299 = vmatpush1.bf16.msra.mxu0 %v9976
    %11300 = vmatprep.subr.bf16.mxu0 %v9973
    %11301 = vmatpush1.bf16.msra.mxu0 %v9972
    %11302 = vmatprep.subr.bf16.mxu0 %v9969
    %11303 = vmatpush1.bf16.msra.mxu0 %v9968
    %11304 = vmatprep.subr.bf16.mxu0 %v9965
    %11305 = vmatpush1.bf16.msra.mxu0 %v9964
    %11306 = vmatprep.subr.bf16.mxu0 %v9961
    %11307 = vmatpush1.bf16.msra.mxu0 %v9960
    %11308 = vmatprep.subr.bf16.mxu0 %v9957
    %11309 = vmatpush1.bf16.msra.mxu0 %v9956
    %11310 = vmatprep.subr.bf16.mxu0 %v9953
    %11311 = vmatpush1.bf16.msra.mxu0 %v9952
    %11312 = vmatprep.subr.bf16.mxu0 %v9949
    %11313 = vmatpush1.bf16.msra.mxu0 %v9948
    %11314 = vmatprep.subr.bf16.mxu0 %v10009
    %11315 = vmatpush2.bf16.msra.mxu0 %v10008
    %11316 = vmatprep.subr.bf16.mxu0 %v10005
    %11317 = vmatpush2.bf16.msra.mxu0 %v10004
    %11318 = vmatprep.subr.bf16.mxu0 %v10001
    %11319 = vmatpush2.bf16.msra.mxu0 %v10000
    %11320 = vmatprep.subr.bf16.mxu0 %v9997
    %11321 = vmatpush2.bf16.msra.mxu0 %v9996
    %11322 = vmatprep.subr.bf16.mxu0 %v9993
    %11323 = vmatpush2.bf16.msra.mxu0 %v9992
    %11324 = vmatprep.subr.bf16.mxu0 %v9989
    %11325 = vmatpush2.bf16.msra.mxu0 %v9988
    %11326 = vmatprep.subr.bf16.mxu0 %v9985
    %11327 = vmatpush2.bf16.msra.mxu0 %v9984
    %11328 = vmatprep.subr.bf16.mxu0 %v9981
    %11329 = vmatpush2.bf16.msra.mxu0 %v9980
    %11330 = vmatprep.mubr.bf16.mxu0 %v8372
    %11331 = vmatmul.mubr.bf16.gmra.mxu0 %v8371
    %v11332 = vpop.f32.mrf.mxu0
    %v11333 = vadd.f32 %v8401, %v11332
    %v11334 = vpop.f32.mrf.mxu0
    %v11335 = vadd.f32 %v8405, %v11334
    %v11336 = vpop.f32.mrf.mxu0
    %v11337 = vpop.f32.mrf.mxu0
    %11338 = vdwg.mxu0
    %11339 = vmatprep.subr.bf16.mxu0 %v10041
    %11340 = vmatpush1.bf16.msra.mxu0 %v10040
    %11341 = vmatprep.subr.bf16.mxu0 %v10037
    %11342 = vmatpush1.bf16.msra.mxu0 %v10036
    %11343 = vmatprep.subr.bf16.mxu0 %v10033
    %11344 = vmatpush1.bf16.msra.mxu0 %v10032
    %11345 = vmatprep.subr.bf16.mxu0 %v10029
    %11346 = vmatpush1.bf16.msra.mxu0 %v10028
    %11347 = vmatprep.subr.bf16.mxu0 %v10025
    %11348 = vmatpush1.bf16.msra.mxu0 %v10024
    %11349 = vmatprep.subr.bf16.mxu0 %v10021
    %11350 = vmatpush1.bf16.msra.mxu0 %v10020
    %11351 = vmatprep.subr.bf16.mxu0 %v10017
    %11352 = vmatpush1.bf16.msra.mxu0 %v10016
    %11353 = vmatprep.subr.bf16.mxu0 %v10013
    %11354 = vmatpush1.bf16.msra.mxu0 %v10012
    %11355 = vmatprep.subr.bf16.mxu0 %v10073
    %11356 = vmatpush2.bf16.msra.mxu0 %v10072
    %11357 = vmatprep.subr.bf16.mxu0 %v10069
    %11358 = vmatpush2.bf16.msra.mxu0 %v10068
    %11359 = vmatprep.subr.bf16.mxu0 %v10065
    %11360 = vmatpush2.bf16.msra.mxu0 %v10064
    %11361 = vmatprep.subr.bf16.mxu0 %v10061
    %11362 = vmatpush2.bf16.msra.mxu0 %v10060
    %11363 = vmatprep.subr.bf16.mxu0 %v10057
    %11364 = vmatpush2.bf16.msra.mxu0 %v10056
    %11365 = vmatprep.subr.bf16.mxu0 %v10053
    %11366 = vmatpush2.bf16.msra.mxu0 %v10052
    %11367 = vmatprep.subr.bf16.mxu0 %v10049
    %11368 = vmatpush2.bf16.msra.mxu0 %v10048
    %11369 = vmatprep.subr.bf16.mxu0 %v10045
    %11370 = vmatpush2.bf16.msra.mxu0 %v10044
    %11371 = vmatprep.mubr.bf16.mxu0 %v8374
    %11372 = vmatmul.mubr.bf16.gmra.mxu0 %v8373
    %v11373 = vpop.f32.mrf.mxu0
    %v11374 = vadd.f32 %v11333, %v11373
    %v11375 = vpop.f32.mrf.mxu0
    %v11376 = vadd.f32 %v11335, %v11375
    %v11377 = vpop.f32.mrf.mxu0
    %v11378 = vpop.f32.mrf.mxu0
    %11379 = vdwg.mxu0
    %11380 = vmatprep.subr.bf16.mxu0 %v10105
    %11381 = vmatpush1.bf16.msra.mxu0 %v10104
    %11382 = vmatprep.subr.bf16.mxu0 %v10101
    %11383 = vmatpush1.bf16.msra.mxu0 %v10100
    %11384 = vmatprep.subr.bf16.mxu0 %v10097
    %11385 = vmatpush1.bf16.msra.mxu0 %v10096
    %11386 = vmatprep.subr.bf16.mxu0 %v10093
    %11387 = vmatpush1.bf16.msra.mxu0 %v10092
    %11388 = vmatprep.subr.bf16.mxu0 %v10089
    %11389 = vmatpush1.bf16.msra.mxu0 %v10088
    %11390 = vmatprep.subr.bf16.mxu0 %v10085
    %11391 = vmatpush1.bf16.msra.mxu0 %v10084
    %11392 = vmatprep.subr.bf16.mxu0 %v10081
    %11393 = vmatpush1.bf16.msra.mxu0 %v10080
    %11394 = vmatprep.subr.bf16.mxu0 %v10077
    %11395 = vmatpush1.bf16.msra.mxu0 %v10076
    %11396 = vmatprep.subr.bf16.mxu0 %v10137
    %11397 = vmatpush2.bf16.msra.mxu0 %v10136
    %11398 = vmatprep.subr.bf16.mxu0 %v10133
    %11399 = vmatpush2.bf16.msra.mxu0 %v10132
    %11400 = vmatprep.subr.bf16.mxu0 %v10129
    %11401 = vmatpush2.bf16.msra.mxu0 %v10128
    %11402 = vmatprep.subr.bf16.mxu0 %v10125
    %11403 = vmatpush2.bf16.msra.mxu0 %v10124
    %11404 = vmatprep.subr.bf16.mxu0 %v10121
    %11405 = vmatpush2.bf16.msra.mxu0 %v10120
    %11406 = vmatprep.subr.bf16.mxu0 %v10117
    %11407 = vmatpush2.bf16.msra.mxu0 %v10116
    %11408 = vmatprep.subr.bf16.mxu0 %v10113
    %11409 = vmatpush2.bf16.msra.mxu0 %v10112
    %11410 = vmatprep.subr.bf16.mxu0 %v10109
    %11411 = vmatpush2.bf16.msra.mxu0 %v10108
    %11412 = vmatprep.mubr.bf16.mxu0 %v8376
    %11413 = vmatmul.mubr.bf16.gmra.mxu0 %v8375
    %v11414 = vpop.f32.mrf.mxu0
    %v11415 = vadd.f32 %v11374, %v11414
    %v11416 = vpop.f32.mrf.mxu0
    %v11417 = vadd.f32 %v11376, %v11416
    %v11418 = vpop.f32.mrf.mxu0
    %v11419 = vpop.f32.mrf.mxu0
    %11420 = vdwg.mxu0
    %11421 = vmatprep.subr.bf16.mxu0 %v10169
    %11422 = vmatpush1.bf16.msra.mxu0 %v10168
    %11423 = vmatprep.subr.bf16.mxu0 %v10165
    %11424 = vmatpush1.bf16.msra.mxu0 %v10164
    %11425 = vmatprep.subr.bf16.mxu0 %v10161
    %11426 = vmatpush1.bf16.msra.mxu0 %v10160
    %11427 = vmatprep.subr.bf16.mxu0 %v10157
    %11428 = vmatpush1.bf16.msra.mxu0 %v10156
    %11429 = vmatprep.subr.bf16.mxu0 %v10153
    %11430 = vmatpush1.bf16.msra.mxu0 %v10152
    %11431 = vmatprep.subr.bf16.mxu0 %v10149
    %11432 = vmatpush1.bf16.msra.mxu0 %v10148
    %11433 = vmatprep.subr.bf16.mxu0 %v10145
    %11434 = vmatpush1.bf16.msra.mxu0 %v10144
    %11435 = vmatprep.subr.bf16.mxu0 %v10141
    %11436 = vmatpush1.bf16.msra.mxu0 %v10140
    %11437 = vmatprep.subr.bf16.mxu0 %v10201
    %11438 = vmatpush2.bf16.msra.mxu0 %v10200
    %11439 = vmatprep.subr.bf16.mxu0 %v10197
    %11440 = vmatpush2.bf16.msra.mxu0 %v10196
    %11441 = vmatprep.subr.bf16.mxu0 %v10193
    %11442 = vmatpush2.bf16.msra.mxu0 %v10192
    %11443 = vmatprep.subr.bf16.mxu0 %v10189
    %11444 = vmatpush2.bf16.msra.mxu0 %v10188
    %11445 = vmatprep.subr.bf16.mxu0 %v10185
    %11446 = vmatpush2.bf16.msra.mxu0 %v10184
    %11447 = vmatprep.subr.bf16.mxu0 %v10181
    %11448 = vmatpush2.bf16.msra.mxu0 %v10180
    %11449 = vmatprep.subr.bf16.mxu0 %v10177
    %11450 = vmatpush2.bf16.msra.mxu0 %v10176
    %11451 = vmatprep.subr.bf16.mxu0 %v10173
    %11452 = vmatpush2.bf16.msra.mxu0 %v10172
    %11453 = vmatprep.mubr.bf16.mxu0 %v8378
    %11454 = vmatmul.mubr.bf16.gmra.mxu0 %v8377
    %v11455 = vpop.f32.mrf.mxu0
    %v11456 = vadd.f32 %v11415, %v11455
    %v11457 = vpop.f32.mrf.mxu0
    %v11458 = vadd.f32 %v11417, %v11457
    %v11459 = vpop.f32.mrf.mxu0
    %v11460 = vpop.f32.mrf.mxu0
    %11461 = vdwg.mxu0
    %11462 = vmatprep.subr.bf16.mxu0 %v10233
    %11463 = vmatpush1.bf16.msra.mxu0 %v10232
    %11464 = vmatprep.subr.bf16.mxu0 %v10229
    %11465 = vmatpush1.bf16.msra.mxu0 %v10228
    %11466 = vmatprep.subr.bf16.mxu0 %v10225
    %11467 = vmatpush1.bf16.msra.mxu0 %v10224
    %11468 = vmatprep.subr.bf16.mxu0 %v10221
    %11469 = vmatpush1.bf16.msra.mxu0 %v10220
    %11470 = vmatprep.subr.bf16.mxu0 %v10217
    %11471 = vmatpush1.bf16.msra.mxu0 %v10216
    %11472 = vmatprep.subr.bf16.mxu0 %v10213
    %11473 = vmatpush1.bf16.msra.mxu0 %v10212
    %11474 = vmatprep.subr.bf16.mxu0 %v10209
    %11475 = vmatpush1.bf16.msra.mxu0 %v10208
    %11476 = vmatprep.subr.bf16.mxu0 %v10205
    %11477 = vmatpush1.bf16.msra.mxu0 %v10204
    %11478 = vmatprep.subr.bf16.mxu0 %v10265
    %11479 = vmatpush2.bf16.msra.mxu0 %v10264
    %11480 = vmatprep.subr.bf16.mxu0 %v10261
    %11481 = vmatpush2.bf16.msra.mxu0 %v10260
    %11482 = vmatprep.subr.bf16.mxu0 %v10257
    %11483 = vmatpush2.bf16.msra.mxu0 %v10256
    %11484 = vmatprep.subr.bf16.mxu0 %v10253
    %11485 = vmatpush2.bf16.msra.mxu0 %v10252
    %11486 = vmatprep.subr.bf16.mxu0 %v10249
    %11487 = vmatpush2.bf16.msra.mxu0 %v10248
    %11488 = vmatprep.subr.bf16.mxu0 %v10245
    %11489 = vmatpush2.bf16.msra.mxu0 %v10244
    %11490 = vmatprep.subr.bf16.mxu0 %v10241
    %11491 = vmatpush2.bf16.msra.mxu0 %v10240
    %11492 = vmatprep.subr.bf16.mxu0 %v10237
    %11493 = vmatpush2.bf16.msra.mxu0 %v10236
    %11494 = vmatprep.mubr.bf16.mxu0 %v8380
    %11495 = vmatmul.mubr.bf16.gmra.mxu0 %v8379
    %v11496 = vpop.f32.mrf.mxu0
    %v11497 = vadd.f32 %v11456, %v11496
    %v11498 = vpop.f32.mrf.mxu0
    %v11499 = vadd.f32 %v11458, %v11498
    %v11500 = vpop.f32.mrf.mxu0
    %v11501 = vpop.f32.mrf.mxu0
    %11502 = vdwg.mxu0
    %11503 = vmatprep.subr.bf16.mxu0 %v10297
    %11504 = vmatpush1.bf16.msra.mxu0 %v10296
    %11505 = vmatprep.subr.bf16.mxu0 %v10293
    %11506 = vmatpush1.bf16.msra.mxu0 %v10292
    %11507 = vmatprep.subr.bf16.mxu0 %v10289
    %11508 = vmatpush1.bf16.msra.mxu0 %v10288
    %11509 = vmatprep.subr.bf16.mxu0 %v10285
    %11510 = vmatpush1.bf16.msra.mxu0 %v10284
    %11511 = vmatprep.subr.bf16.mxu0 %v10281
    %11512 = vmatpush1.bf16.msra.mxu0 %v10280
    %11513 = vmatprep.subr.bf16.mxu0 %v10277
    %11514 = vmatpush1.bf16.msra.mxu0 %v10276
    %11515 = vmatprep.subr.bf16.mxu0 %v10273
    %11516 = vmatpush1.bf16.msra.mxu0 %v10272
    %11517 = vmatprep.subr.bf16.mxu0 %v10269
    %11518 = vmatpush1.bf16.msra.mxu0 %v10268
    %11519 = vmatprep.subr.bf16.mxu0 %v10329
    %11520 = vmatpush2.bf16.msra.mxu0 %v10328
    %11521 = vmatprep.subr.bf16.mxu0 %v10325
    %11522 = vmatpush2.bf16.msra.mxu0 %v10324
    %11523 = vmatprep.subr.bf16.mxu0 %v10321
    %11524 = vmatpush2.bf16.msra.mxu0 %v10320
    %11525 = vmatprep.subr.bf16.mxu0 %v10317
    %11526 = vmatpush2.bf16.msra.mxu0 %v10316
    %11527 = vmatprep.subr.bf16.mxu0 %v10313
    %11528 = vmatpush2.bf16.msra.mxu0 %v10312
    %11529 = vmatprep.subr.bf16.mxu0 %v10309
    %11530 = vmatpush2.bf16.msra.mxu0 %v10308
    %11531 = vmatprep.subr.bf16.mxu0 %v10305
    %11532 = vmatpush2.bf16.msra.mxu0 %v10304
    %11533 = vmatprep.subr.bf16.mxu0 %v10301
    %11534 = vmatpush2.bf16.msra.mxu0 %v10300
    %11535 = vmatprep.mubr.bf16.mxu0 %v8382
    %11536 = vmatmul.mubr.bf16.gmra.mxu0 %v8381
    %v11537 = vpop.f32.mrf.mxu0
    %v11538 = vadd.f32 %v11497, %v11537
    %v11539 = vpop.f32.mrf.mxu0
    %v11540 = vadd.f32 %v11499, %v11539
    %v11541 = vpop.f32.mrf.mxu0
    %v11542 = vpop.f32.mrf.mxu0
    %11543 = vdwg.mxu0
    %11544 = vmatprep.subr.bf16.mxu0 %v10361
    %11545 = vmatpush1.bf16.msra.mxu0 %v10360
    %11546 = vmatprep.subr.bf16.mxu0 %v10357
    %11547 = vmatpush1.bf16.msra.mxu0 %v10356
    %11548 = vmatprep.subr.bf16.mxu0 %v10353
    %11549 = vmatpush1.bf16.msra.mxu0 %v10352
    %11550 = vmatprep.subr.bf16.mxu0 %v10349
    %11551 = vmatpush1.bf16.msra.mxu0 %v10348
    %11552 = vmatprep.subr.bf16.mxu0 %v10345
    %11553 = vmatpush1.bf16.msra.mxu0 %v10344
    %11554 = vmatprep.subr.bf16.mxu0 %v10341
    %11555 = vmatpush1.bf16.msra.mxu0 %v10340
    %11556 = vmatprep.subr.bf16.mxu0 %v10337
    %11557 = vmatpush1.bf16.msra.mxu0 %v10336
    %11558 = vmatprep.subr.bf16.mxu0 %v10333
    %11559 = vmatpush1.bf16.msra.mxu0 %v10332
    %11560 = vmatprep.subr.bf16.mxu0 %v10393
    %11561 = vmatpush2.bf16.msra.mxu0 %v10392
    %11562 = vmatprep.subr.bf16.mxu0 %v10389
    %11563 = vmatpush2.bf16.msra.mxu0 %v10388
    %11564 = vmatprep.subr.bf16.mxu0 %v10385
    %11565 = vmatpush2.bf16.msra.mxu0 %v10384
    %11566 = vmatprep.subr.bf16.mxu0 %v10381
    %11567 = vmatpush2.bf16.msra.mxu0 %v10380
    %11568 = vmatprep.subr.bf16.mxu0 %v10377
    %11569 = vmatpush2.bf16.msra.mxu0 %v10376
    %11570 = vmatprep.subr.bf16.mxu0 %v10373
    %11571 = vmatpush2.bf16.msra.mxu0 %v10372
    %11572 = vmatprep.subr.bf16.mxu0 %v10369
    %11573 = vmatpush2.bf16.msra.mxu0 %v10368
    %11574 = vmatprep.subr.bf16.mxu0 %v10365
    %11575 = vmatpush2.bf16.msra.mxu0 %v10364
    %11576 = vmatprep.mubr.bf16.mxu0 %v8384
    %11577 = vmatmul.mubr.bf16.gmra.mxu0 %v8383
    %v11578 = vpop.f32.mrf.mxu0
    %v11579 = vadd.f32 %v11538, %v11578
    %v11580 = vpop.f32.mrf.mxu0
    %v11581 = vadd.f32 %v11540, %v11580
    %v11582 = vpop.f32.mrf.mxu0
    %v11583 = vpop.f32.mrf.mxu0
    %11584 = vdwg.mxu0
    %11585 = vmatprep.subr.bf16.mxu0 %v10425
    %11586 = vmatpush1.bf16.msra.mxu0 %v10424
    %11587 = vmatprep.subr.bf16.mxu0 %v10421
    %11588 = vmatpush1.bf16.msra.mxu0 %v10420
    %11589 = vmatprep.subr.bf16.mxu0 %v10417
    %11590 = vmatpush1.bf16.msra.mxu0 %v10416
    %11591 = vmatprep.subr.bf16.mxu0 %v10413
    %11592 = vmatpush1.bf16.msra.mxu0 %v10412
    %11593 = vmatprep.subr.bf16.mxu0 %v10409
    %11594 = vmatpush1.bf16.msra.mxu0 %v10408
    %11595 = vmatprep.subr.bf16.mxu0 %v10405
    %11596 = vmatpush1.bf16.msra.mxu0 %v10404
    %11597 = vmatprep.subr.bf16.mxu0 %v10401
    %11598 = vmatpush1.bf16.msra.mxu0 %v10400
    %11599 = vmatprep.subr.bf16.mxu0 %v10397
    %11600 = vmatpush1.bf16.msra.mxu0 %v10396
    %11601 = vmatprep.subr.bf16.mxu0 %v10457
    %11602 = vmatpush2.bf16.msra.mxu0 %v10456
    %11603 = vmatprep.subr.bf16.mxu0 %v10453
    %11604 = vmatpush2.bf16.msra.mxu0 %v10452
    %11605 = vmatprep.subr.bf16.mxu0 %v10449
    %11606 = vmatpush2.bf16.msra.mxu0 %v10448
    %11607 = vmatprep.subr.bf16.mxu0 %v10445
    %11608 = vmatpush2.bf16.msra.mxu0 %v10444
    %11609 = vmatprep.subr.bf16.mxu0 %v10441
    %11610 = vmatpush2.bf16.msra.mxu0 %v10440
    %11611 = vmatprep.subr.bf16.mxu0 %v10437
    %11612 = vmatpush2.bf16.msra.mxu0 %v10436
    %11613 = vmatprep.subr.bf16.mxu0 %v10433
    %11614 = vmatpush2.bf16.msra.mxu0 %v10432
    %11615 = vmatprep.subr.bf16.mxu0 %v10429
    %11616 = vmatpush2.bf16.msra.mxu0 %v10428
    %11617 = vmatprep.mubr.bf16.mxu0 %v8386
    %11618 = vmatmul.mubr.bf16.gmra.mxu0 %v8385
    %v11619 = vpop.f32.mrf.mxu0
    %v11620 = vadd.f32 %v11579, %v11619
    %v11621 = vpop.f32.mrf.mxu0
    %v11622 = vadd.f32 %v11581, %v11621
    %v11623 = vpop.f32.mrf.mxu0
    %v11624 = vpop.f32.mrf.mxu0
    %11625 = vdwg.mxu0
    %v11626 = vmax.f32 %v11292, 0.0
    %v11627 = vmax.f32 %v11294, 0.0
    %v11628 = vmax.f32 %v11620, 0.0
    %v11629 = vmax.f32 %v11622, 0.0
    %v11630 = vld [vmem:[#allocation14] sm:$0xff]
    %v11631 = vld [vmem:[#allocation14 + $0x8] sm:$0xff]
    %v11632 = vld [vmem:[#allocation14 + $0x10] sm:$0xff]
    %v11633 = vld [vmem:[#allocation14 + $0x18] sm:$0xff]
    %v11634 = vld [vmem:[#allocation14 + $0x20] sm:$0xff]
    %v11635 = vld [vmem:[#allocation14 + $0x28] sm:$0xff]
    %v11636 = vld [vmem:[#allocation14 + $0x30] sm:$0xff]
    %v11637 = vld [vmem:[#allocation14 + $0x38] sm:$0xff]
    %v11638 = vld [vmem:[#allocation14 + $0x40] sm:$0xff]
    %v11639 = vld [vmem:[#allocation14 + $0x48] sm:$0xff]
    %v11640 = vld [vmem:[#allocation14 + $0x50] sm:$0xff]
    %v11641 = vld [vmem:[#allocation14 + $0x58] sm:$0xff]
    %v11642 = vld [vmem:[#allocation14 + $0x60] sm:$0xff]
    %v11643 = vld [vmem:[#allocation14 + $0x68] sm:$0xff]
    %v11644 = vld [vmem:[#allocation14 + $0x70] sm:$0xff]
    %v11645 = vld [vmem:[#allocation14 + $0x78] sm:$0xff]
    %v11646 = vld [vmem:[#allocation14 + $0x80] sm:$0xff]
    %v11647 = vld [vmem:[#allocation14 + $0x88] sm:$0xff]
    %v11648 = vld [vmem:[#allocation14 + $0x90] sm:$0xff]
    %v11649 = vld [vmem:[#allocation14 + $0x98] sm:$0xff]
    %v11650 = vld [vmem:[#allocation14 + $0xa0] sm:$0xff]
    %v11651 = vld [vmem:[#allocation14 + $0xa8] sm:$0xff]
    %v11652 = vld [vmem:[#allocation14 + $0xb0] sm:$0xff]
    %v11653 = vld [vmem:[#allocation14 + $0xb8] sm:$0xff]
    %v11654 = vld [vmem:[#allocation14 + $0xc0] sm:$0xff]
    %v11655 = vld [vmem:[#allocation14 + $0xc8] sm:$0xff]
    %v11656 = vld [vmem:[#allocation14 + $0xd0] sm:$0xff]
    %v11657 = vld [vmem:[#allocation14 + $0xd8] sm:$0xff]
    %v11658 = vld [vmem:[#allocation14 + $0xe0] sm:$0xff]
    %v11659 = vld [vmem:[#allocation14 + $0xe8] sm:$0xff]
    %v11660 = vld [vmem:[#allocation14 + $0xf0] sm:$0xff]
    %v11661 = vld [vmem:[#allocation14 + $0xf8] sm:$0xff]
    %v11662 = vld [vmem:[#allocation14 + $0x100] sm:$0xff]
    %v11663 = vld [vmem:[#allocation14 + $0x108] sm:$0xff]
    %v11664 = vld [vmem:[#allocation14 + $0x110] sm:$0xff]
    %v11665 = vld [vmem:[#allocation14 + $0x118] sm:$0xff]
    %v11666 = vld [vmem:[#allocation14 + $0x120] sm:$0xff]
    %v11667 = vld [vmem:[#allocation14 + $0x128] sm:$0xff]
    %v11668 = vld [vmem:[#allocation14 + $0x130] sm:$0xff]
    %v11669 = vld [vmem:[#allocation14 + $0x138] sm:$0xff]
    %v11670 = vld [vmem:[#allocation14 + $0x140] sm:$0xff]
    %v11671 = vld [vmem:[#allocation14 + $0x148] sm:$0xff]
    %v11672 = vld [vmem:[#allocation14 + $0x150] sm:$0xff]
    %v11673 = vld [vmem:[#allocation14 + $0x158] sm:$0xff]
    %v11674 = vld [vmem:[#allocation14 + $0x160] sm:$0xff]
    %v11675 = vld [vmem:[#allocation14 + $0x168] sm:$0xff]
    %v11676 = vld [vmem:[#allocation14 + $0x170] sm:$0xff]
    %v11677 = vld [vmem:[#allocation14 + $0x178] sm:$0xff]
    %v11678 = vld [vmem:[#allocation14 + $0x180] sm:$0xff]
    %v11679 = vld [vmem:[#allocation14 + $0x188] sm:$0xff]
    %v11680 = vld [vmem:[#allocation14 + $0x190] sm:$0xff]
    %v11681 = vld [vmem:[#allocation14 + $0x198] sm:$0xff]
    %v11682 = vld [vmem:[#allocation14 + $0x1a0] sm:$0xff]
    %v11683 = vld [vmem:[#allocation14 + $0x1a8] sm:$0xff]
    %v11684 = vld [vmem:[#allocation14 + $0x1b0] sm:$0xff]
    %v11685 = vld [vmem:[#allocation14 + $0x1b8] sm:$0xff]
    %v11686 = vld [vmem:[#allocation14 + $0x1c0] sm:$0xff]
    %v11687 = vld [vmem:[#allocation14 + $0x1c8] sm:$0xff]
    %v11688 = vld [vmem:[#allocation14 + $0x1d0] sm:$0xff]
    %v11689 = vld [vmem:[#allocation14 + $0x1d8] sm:$0xff]
    %v11690 = vld [vmem:[#allocation14 + $0x1e0] sm:$0xff]
    %v11691 = vld [vmem:[#allocation14 + $0x1e8] sm:$0xff]
    %v11692 = vld [vmem:[#allocation14 + $0x1f0] sm:$0xff]
    %v11693 = vld [vmem:[#allocation14 + $0x1f8] sm:$0xff]
    %v11694 = vld [vmem:[#allocation14 + $0x200] sm:$0xff]
    %v11695 = vld [vmem:[#allocation14 + $0x208] sm:$0xff]
    %v11696 = vld [vmem:[#allocation14 + $0x210] sm:$0xff]
    %v11697 = vld [vmem:[#allocation14 + $0x218] sm:$0xff]
    %v11698 = vld [vmem:[#allocation14 + $0x220] sm:$0xff]
    %v11699 = vld [vmem:[#allocation14 + $0x228] sm:$0xff]
    %v11700 = vld [vmem:[#allocation14 + $0x230] sm:$0xff]
    %v11701 = vld [vmem:[#allocation14 + $0x238] sm:$0xff]
    %v11702 = vld [vmem:[#allocation14 + $0x240] sm:$0xff]
    %v11703 = vld [vmem:[#allocation14 + $0x248] sm:$0xff]
    %v11704 = vld [vmem:[#allocation14 + $0x250] sm:$0xff]
    %v11705 = vld [vmem:[#allocation14 + $0x258] sm:$0xff]
    %v11706 = vld [vmem:[#allocation14 + $0x260] sm:$0xff]
    %v11707 = vld [vmem:[#allocation14 + $0x268] sm:$0xff]
    %v11708 = vld [vmem:[#allocation14 + $0x270] sm:$0xff]
    %v11709 = vld [vmem:[#allocation14 + $0x278] sm:$0xff]
    %v11710 = vld [vmem:[#allocation14 + $0x280] sm:$0xff]
    %v11711 = vld [vmem:[#allocation14 + $0x288] sm:$0xff]
    %v11712 = vld [vmem:[#allocation14 + $0x290] sm:$0xff]
    %v11713 = vld [vmem:[#allocation14 + $0x298] sm:$0xff]
    %v11714 = vld [vmem:[#allocation14 + $0x2a0] sm:$0xff]
    %v11715 = vld [vmem:[#allocation14 + $0x2a8] sm:$0xff]
    %v11716 = vld [vmem:[#allocation14 + $0x2b0] sm:$0xff]
    %v11717 = vld [vmem:[#allocation14 + $0x2b8] sm:$0xff]
    %v11718 = vld [vmem:[#allocation14 + $0x2c0] sm:$0xff]
    %v11719 = vld [vmem:[#allocation14 + $0x2c8] sm:$0xff]
    %v11720 = vld [vmem:[#allocation14 + $0x2d0] sm:$0xff]
    %v11721 = vld [vmem:[#allocation14 + $0x2d8] sm:$0xff]
    %v11722 = vld [vmem:[#allocation14 + $0x2e0] sm:$0xff]
    %v11723 = vld [vmem:[#allocation14 + $0x2e8] sm:$0xff]
    %v11724 = vld [vmem:[#allocation14 + $0x2f0] sm:$0xff]
    %v11725 = vld [vmem:[#allocation14 + $0x2f8] sm:$0xff]
    %v11726 = vld [vmem:[#allocation14 + $0x300] sm:$0xff]
    %v11727 = vld [vmem:[#allocation14 + $0x308] sm:$0xff]
    %v11728 = vld [vmem:[#allocation14 + $0x310] sm:$0xff]
    %v11729 = vld [vmem:[#allocation14 + $0x318] sm:$0xff]
    %v11730 = vld [vmem:[#allocation14 + $0x320] sm:$0xff]
    %v11731 = vld [vmem:[#allocation14 + $0x328] sm:$0xff]
    %v11732 = vld [vmem:[#allocation14 + $0x330] sm:$0xff]
    %v11733 = vld [vmem:[#allocation14 + $0x338] sm:$0xff]
    %v11734 = vld [vmem:[#allocation14 + $0x340] sm:$0xff]
    %v11735 = vld [vmem:[#allocation14 + $0x348] sm:$0xff]
    %v11736 = vld [vmem:[#allocation14 + $0x350] sm:$0xff]
    %v11737 = vld [vmem:[#allocation14 + $0x358] sm:$0xff]
    %v11738 = vld [vmem:[#allocation14 + $0x360] sm:$0xff]
    %v11739 = vld [vmem:[#allocation14 + $0x368] sm:$0xff]
    %v11740 = vld [vmem:[#allocation14 + $0x370] sm:$0xff]
    %v11741 = vld [vmem:[#allocation14 + $0x378] sm:$0xff]
    %v11742 = vld [vmem:[#allocation14 + $0x380] sm:$0xff]
    %v11743 = vld [vmem:[#allocation14 + $0x388] sm:$0xff]
    %v11744 = vld [vmem:[#allocation14 + $0x390] sm:$0xff]
    %v11745 = vld [vmem:[#allocation14 + $0x398] sm:$0xff]
    %v11746 = vld [vmem:[#allocation14 + $0x3a0] sm:$0xff]
    %v11747 = vld [vmem:[#allocation14 + $0x3a8] sm:$0xff]
    %v11748 = vld [vmem:[#allocation14 + $0x3b0] sm:$0xff]
    %v11749 = vld [vmem:[#allocation14 + $0x3b8] sm:$0xff]
    %v11750 = vld [vmem:[#allocation14 + $0x3c0] sm:$0xff]
    %v11751 = vld [vmem:[#allocation14 + $0x3c8] sm:$0xff]
    %v11752 = vld [vmem:[#allocation14 + $0x3d0] sm:$0xff]
    %v11753 = vld [vmem:[#allocation14 + $0x3d8] sm:$0xff]
    %v11754 = vld [vmem:[#allocation14 + $0x3e0] sm:$0xff]
    %v11755 = vld [vmem:[#allocation14 + $0x3e8] sm:$0xff]
    %v11756 = vld [vmem:[#allocation14 + $0x3f0] sm:$0xff]
    %v11757 = vld [vmem:[#allocation14 + $0x3f8] sm:$0xff]
    %v11758 = vpack.c.bf16 %v11626, %v11626
    %v11759 = vpack.c.bf16 %v11627, %v11627
    %v11760 = vpack.c.bf16 %v11628, %v11628
    %v11761 = vpack.c.bf16 %v11629, %v11629
    %s11762 = scalar_lea.vmem [#allocation17], 6
    %v11763 = vld [vmem:[%s11762] ss:$8 sm:$0xf]
    %v11765 = vlaneseq
    %v11766 = vshrl.u32 %v11765, 7
    %v11767 = vsub.s32 0, %v11766
    %v11768 = vrot.slane %v11763, %v11767
    %v11769 = vlaneseq
    %v11770 = vshrl.u32 %v11769, 7
    %v11771 = vsub.s32 1, %v11770
    %v11772 = vrot.slane %v11763, %v11771
    %v11773 = vlaneseq
    %v11774 = vshrl.u32 %v11773, 7
    %v11775 = vsub.s32 2, %v11774
    %v11776 = vrot.slane %v11763, %v11775
    %v11777 = vlaneseq
    %v11778 = vshrl.u32 %v11777, 7
    %v11779 = vsub.s32 3, %v11778
    %v11780 = vrot.slane %v11763, %v11779
    %v11913 = vunpack.c.l.b16 %v11630
    %v11914 = vunpack.c.h.b16 %v11630
    %v11915 = vunpack.c.l.b16 %v11631
    %v11916 = vunpack.c.h.b16 %v11631
    %v11917 = vunpack.c.l.b16 %v11632
    %v11918 = vunpack.c.h.b16 %v11632
    %v11919 = vunpack.c.l.b16 %v11633
    %v11920 = vunpack.c.h.b16 %v11633
    %v11921 = vunpack.c.l.b16 %v11634
    %v11922 = vunpack.c.h.b16 %v11634
    %v11923 = vunpack.c.l.b16 %v11635
    %v11924 = vunpack.c.h.b16 %v11635
    %v11925 = vunpack.c.l.b16 %v11636
    %v11926 = vunpack.c.h.b16 %v11636
    %v11927 = vunpack.c.l.b16 %v11637
    %v11928 = vunpack.c.h.b16 %v11637
    %v11929 = vunpack.c.l.b16 %v11638
    %v11930 = vunpack.c.h.b16 %v11638
    %v11931 = vunpack.c.l.b16 %v11639
    %v11932 = vunpack.c.h.b16 %v11639
    %v11933 = vunpack.c.l.b16 %v11640
    %v11934 = vunpack.c.h.b16 %v11640
    %v11935 = vunpack.c.l.b16 %v11641
    %v11936 = vunpack.c.h.b16 %v11641
    %v11937 = vunpack.c.l.b16 %v11642
    %v11938 = vunpack.c.h.b16 %v11642
    %v11939 = vunpack.c.l.b16 %v11643
    %v11940 = vunpack.c.h.b16 %v11643
    %v11941 = vunpack.c.l.b16 %v11644
    %v11942 = vunpack.c.h.b16 %v11644
    %v11943 = vunpack.c.l.b16 %v11645
    %v11944 = vunpack.c.h.b16 %v11645
    %v11945 = vunpack.c.l.b16 %v11646
    %v11946 = vunpack.c.h.b16 %v11646
    %v11947 = vunpack.c.l.b16 %v11647
    %v11948 = vunpack.c.h.b16 %v11647
    %v11949 = vunpack.c.l.b16 %v11648
    %v11950 = vunpack.c.h.b16 %v11648
    %v11951 = vunpack.c.l.b16 %v11649
    %v11952 = vunpack.c.h.b16 %v11649
    %v11953 = vunpack.c.l.b16 %v11650
    %v11954 = vunpack.c.h.b16 %v11650
    %v11955 = vunpack.c.l.b16 %v11651
    %v11956 = vunpack.c.h.b16 %v11651
    %v11957 = vunpack.c.l.b16 %v11652
    %v11958 = vunpack.c.h.b16 %v11652
    %v11959 = vunpack.c.l.b16 %v11653
    %v11960 = vunpack.c.h.b16 %v11653
    %v11961 = vunpack.c.l.b16 %v11654
    %v11962 = vunpack.c.h.b16 %v11654
    %v11963 = vunpack.c.l.b16 %v11655
    %v11964 = vunpack.c.h.b16 %v11655
    %v11965 = vunpack.c.l.b16 %v11656
    %v11966 = vunpack.c.h.b16 %v11656
    %v11967 = vunpack.c.l.b16 %v11657
    %v11968 = vunpack.c.h.b16 %v11657
    %v11969 = vunpack.c.l.b16 %v11658
    %v11970 = vunpack.c.h.b16 %v11658
    %v11971 = vunpack.c.l.b16 %v11659
    %v11972 = vunpack.c.h.b16 %v11659
    %v11973 = vunpack.c.l.b16 %v11660
    %v11974 = vunpack.c.h.b16 %v11660
    %v11975 = vunpack.c.l.b16 %v11661
    %v11976 = vunpack.c.h.b16 %v11661
    %v11977 = vunpack.c.l.b16 %v11662
    %v11978 = vunpack.c.h.b16 %v11662
    %v11979 = vunpack.c.l.b16 %v11663
    %v11980 = vunpack.c.h.b16 %v11663
    %v11981 = vunpack.c.l.b16 %v11664
    %v11982 = vunpack.c.h.b16 %v11664
    %v11983 = vunpack.c.l.b16 %v11665
    %v11984 = vunpack.c.h.b16 %v11665
    %v11985 = vunpack.c.l.b16 %v11666
    %v11986 = vunpack.c.h.b16 %v11666
    %v11987 = vunpack.c.l.b16 %v11667
    %v11988 = vunpack.c.h.b16 %v11667
    %v11989 = vunpack.c.l.b16 %v11668
    %v11990 = vunpack.c.h.b16 %v11668
    %v11991 = vunpack.c.l.b16 %v11669
    %v11992 = vunpack.c.h.b16 %v11669
    %v11993 = vunpack.c.l.b16 %v11670
    %v11994 = vunpack.c.h.b16 %v11670
    %v11995 = vunpack.c.l.b16 %v11671
    %v11996 = vunpack.c.h.b16 %v11671
    %v11997 = vunpack.c.l.b16 %v11672
    %v11998 = vunpack.c.h.b16 %v11672
    %v11999 = vunpack.c.l.b16 %v11673
    %v12000 = vunpack.c.h.b16 %v11673
    %v12001 = vunpack.c.l.b16 %v11674
    %v12002 = vunpack.c.h.b16 %v11674
    %v12003 = vunpack.c.l.b16 %v11675
    %v12004 = vunpack.c.h.b16 %v11675
    %v12005 = vunpack.c.l.b16 %v11676
    %v12006 = vunpack.c.h.b16 %v11676
    %v12007 = vunpack.c.l.b16 %v11677
    %v12008 = vunpack.c.h.b16 %v11677
    %v12009 = vunpack.c.l.b16 %v11678
    %v12010 = vunpack.c.h.b16 %v11678
    %v12011 = vunpack.c.l.b16 %v11679
    %v12012 = vunpack.c.h.b16 %v11679
    %v12013 = vunpack.c.l.b16 %v11680
    %v12014 = vunpack.c.h.b16 %v11680
    %v12015 = vunpack.c.l.b16 %v11681
    %v12016 = vunpack.c.h.b16 %v11681
    %v12017 = vunpack.c.l.b16 %v11682
    %v12018 = vunpack.c.h.b16 %v11682
    %v12019 = vunpack.c.l.b16 %v11683
    %v12020 = vunpack.c.h.b16 %v11683
    %v12021 = vunpack.c.l.b16 %v11684
    %v12022 = vunpack.c.h.b16 %v11684
    %v12023 = vunpack.c.l.b16 %v11685
    %v12024 = vunpack.c.h.b16 %v11685
    %v12025 = vunpack.c.l.b16 %v11686
    %v12026 = vunpack.c.h.b16 %v11686
    %v12027 = vunpack.c.l.b16 %v11687
    %v12028 = vunpack.c.h.b16 %v11687
    %v12029 = vunpack.c.l.b16 %v11688
    %v12030 = vunpack.c.h.b16 %v11688
    %v12031 = vunpack.c.l.b16 %v11689
    %v12032 = vunpack.c.h.b16 %v11689
    %v12033 = vunpack.c.l.b16 %v11690
    %v12034 = vunpack.c.h.b16 %v11690
    %v12035 = vunpack.c.l.b16 %v11691
    %v12036 = vunpack.c.h.b16 %v11691
    %v12037 = vunpack.c.l.b16 %v11692
    %v12038 = vunpack.c.h.b16 %v11692
    %v12039 = vunpack.c.l.b16 %v11693
    %v12040 = vunpack.c.h.b16 %v11693
    %v12041 = vunpack.c.l.b16 %v11694
    %v12042 = vunpack.c.h.b16 %v11694
    %v12043 = vunpack.c.l.b16 %v11695
    %v12044 = vunpack.c.h.b16 %v11695
    %v12045 = vunpack.c.l.b16 %v11696
    %v12046 = vunpack.c.h.b16 %v11696
    %v12047 = vunpack.c.l.b16 %v11697
    %v12048 = vunpack.c.h.b16 %v11697
    %v12049 = vunpack.c.l.b16 %v11698
    %v12050 = vunpack.c.h.b16 %v11698
    %v12051 = vunpack.c.l.b16 %v11699
    %v12052 = vunpack.c.h.b16 %v11699
    %v12053 = vunpack.c.l.b16 %v11700
    %v12054 = vunpack.c.h.b16 %v11700
    %v12055 = vunpack.c.l.b16 %v11701
    %v12056 = vunpack.c.h.b16 %v11701
    %v12057 = vunpack.c.l.b16 %v11702
    %v12058 = vunpack.c.h.b16 %v11702
    %v12059 = vunpack.c.l.b16 %v11703
    %v12060 = vunpack.c.h.b16 %v11703
    %v12061 = vunpack.c.l.b16 %v11704
    %v12062 = vunpack.c.h.b16 %v11704
    %v12063 = vunpack.c.l.b16 %v11705
    %v12064 = vunpack.c.h.b16 %v11705
    %v12065 = vunpack.c.l.b16 %v11706
    %v12066 = vunpack.c.h.b16 %v11706
    %v12067 = vunpack.c.l.b16 %v11707
    %v12068 = vunpack.c.h.b16 %v11707
    %v12069 = vunpack.c.l.b16 %v11708
    %v12070 = vunpack.c.h.b16 %v11708
    %v12071 = vunpack.c.l.b16 %v11709
    %v12072 = vunpack.c.h.b16 %v11709
    %v12073 = vunpack.c.l.b16 %v11710
    %v12074 = vunpack.c.h.b16 %v11710
    %v12075 = vunpack.c.l.b16 %v11711
    %v12076 = vunpack.c.h.b16 %v11711
    %v12077 = vunpack.c.l.b16 %v11712
    %v12078 = vunpack.c.h.b16 %v11712
    %v12079 = vunpack.c.l.b16 %v11713
    %v12080 = vunpack.c.h.b16 %v11713
    %v12081 = vunpack.c.l.b16 %v11714
    %v12082 = vunpack.c.h.b16 %v11714
    %v12083 = vunpack.c.l.b16 %v11715
    %v12084 = vunpack.c.h.b16 %v11715
    %v12085 = vunpack.c.l.b16 %v11716
    %v12086 = vunpack.c.h.b16 %v11716
    %v12087 = vunpack.c.l.b16 %v11717
    %v12088 = vunpack.c.h.b16 %v11717
    %v12089 = vunpack.c.l.b16 %v11718
    %v12090 = vunpack.c.h.b16 %v11718
    %v12091 = vunpack.c.l.b16 %v11719
    %v12092 = vunpack.c.h.b16 %v11719
    %v12093 = vunpack.c.l.b16 %v11720
    %v12094 = vunpack.c.h.b16 %v11720
    %v12095 = vunpack.c.l.b16 %v11721
    %v12096 = vunpack.c.h.b16 %v11721
    %v12097 = vunpack.c.l.b16 %v11722
    %v12098 = vunpack.c.h.b16 %v11722
    %v12099 = vunpack.c.l.b16 %v11723
    %v12100 = vunpack.c.h.b16 %v11723
    %v12101 = vunpack.c.l.b16 %v11724
    %v12102 = vunpack.c.h.b16 %v11724
    %v12103 = vunpack.c.l.b16 %v11725
    %v12104 = vunpack.c.h.b16 %v11725
    %v12105 = vunpack.c.l.b16 %v11726
    %v12106 = vunpack.c.h.b16 %v11726
    %v12107 = vunpack.c.l.b16 %v11727
    %v12108 = vunpack.c.h.b16 %v11727
    %v12109 = vunpack.c.l.b16 %v11728
    %v12110 = vunpack.c.h.b16 %v11728
    %v12111 = vunpack.c.l.b16 %v11729
    %v12112 = vunpack.c.h.b16 %v11729
    %v12113 = vunpack.c.l.b16 %v11730
    %v12114 = vunpack.c.h.b16 %v11730
    %v12115 = vunpack.c.l.b16 %v11731
    %v12116 = vunpack.c.h.b16 %v11731
    %v12117 = vunpack.c.l.b16 %v11732
    %v12118 = vunpack.c.h.b16 %v11732
    %v12119 = vunpack.c.l.b16 %v11733
    %v12120 = vunpack.c.h.b16 %v11733
    %v12121 = vunpack.c.l.b16 %v11734
    %v12122 = vunpack.c.h.b16 %v11734
    %v12123 = vunpack.c.l.b16 %v11735
    %v12124 = vunpack.c.h.b16 %v11735
    %v12125 = vunpack.c.l.b16 %v11736
    %v12126 = vunpack.c.h.b16 %v11736
    %v12127 = vunpack.c.l.b16 %v11737
    %v12128 = vunpack.c.h.b16 %v11737
    %v12129 = vunpack.c.l.b16 %v11738
    %v12130 = vunpack.c.h.b16 %v11738
    %v12131 = vunpack.c.l.b16 %v11739
    %v12132 = vunpack.c.h.b16 %v11739
    %v12133 = vunpack.c.l.b16 %v11740
    %v12134 = vunpack.c.h.b16 %v11740
    %v12135 = vunpack.c.l.b16 %v11741
    %v12136 = vunpack.c.h.b16 %v11741
    %v12137 = vunpack.c.l.b16 %v11742
    %v12138 = vunpack.c.h.b16 %v11742
    %v12139 = vunpack.c.l.b16 %v11743
    %v12140 = vunpack.c.h.b16 %v11743
    %v12141 = vunpack.c.l.b16 %v11744
    %v12142 = vunpack.c.h.b16 %v11744
    %v12143 = vunpack.c.l.b16 %v11745
    %v12144 = vunpack.c.h.b16 %v11745
    %v12145 = vunpack.c.l.b16 %v11746
    %v12146 = vunpack.c.h.b16 %v11746
    %v12147 = vunpack.c.l.b16 %v11747
    %v12148 = vunpack.c.h.b16 %v11747
    %v12149 = vunpack.c.l.b16 %v11748
    %v12150 = vunpack.c.h.b16 %v11748
    %v12151 = vunpack.c.l.b16 %v11749
    %v12152 = vunpack.c.h.b16 %v11749
    %v12153 = vunpack.c.l.b16 %v11750
    %v12154 = vunpack.c.h.b16 %v11750
    %v12155 = vunpack.c.l.b16 %v11751
    %v12156 = vunpack.c.h.b16 %v11751
    %v12157 = vunpack.c.l.b16 %v11752
    %v12158 = vunpack.c.h.b16 %v11752
    %v12159 = vunpack.c.l.b16 %v11753
    %v12160 = vunpack.c.h.b16 %v11753
    %v12161 = vunpack.c.l.b16 %v11754
    %v12162 = vunpack.c.h.b16 %v11754
    %v12163 = vunpack.c.l.b16 %v11755
    %v12164 = vunpack.c.h.b16 %v11755
    %v12165 = vunpack.c.l.b16 %v11756
    %v12166 = vunpack.c.h.b16 %v11756
    %v12167 = vunpack.c.l.b16 %v11757
    %v12168 = vunpack.c.h.b16 %v11757
    %v12169 = vpack.c.b16 %v11917, %v11913
    %v12170 = vpack.c.b16 %v11918, %v11914
    %v12171 = vpack.c.b16 %v11919, %v11915
    %v12172 = vpack.c.b16 %v11920, %v11916
    %v12173 = vpack.c.b16 %v11925, %v11921
    %v12174 = vpack.c.b16 %v11926, %v11922
    %v12175 = vpack.c.b16 %v11927, %v11923
    %v12176 = vpack.c.b16 %v11928, %v11924
    %v12177 = vpack.c.b16 %v11933, %v11929
    %v12178 = vpack.c.b16 %v11934, %v11930
    %v12179 = vpack.c.b16 %v11935, %v11931
    %v12180 = vpack.c.b16 %v11936, %v11932
    %v12181 = vpack.c.b16 %v11941, %v11937
    %v12182 = vpack.c.b16 %v11942, %v11938
    %v12183 = vpack.c.b16 %v11943, %v11939
    %v12184 = vpack.c.b16 %v11944, %v11940
    %v12185 = vpack.c.b16 %v11949, %v11945
    %v12186 = vpack.c.b16 %v11950, %v11946
    %v12187 = vpack.c.b16 %v11951, %v11947
    %v12188 = vpack.c.b16 %v11952, %v11948
    %v12189 = vpack.c.b16 %v11957, %v11953
    %v12190 = vpack.c.b16 %v11958, %v11954
    %v12191 = vpack.c.b16 %v11959, %v11955
    %v12192 = vpack.c.b16 %v11960, %v11956
    %v12193 = vpack.c.b16 %v11965, %v11961
    %v12194 = vpack.c.b16 %v11966, %v11962
    %v12195 = vpack.c.b16 %v11967, %v11963
    %v12196 = vpack.c.b16 %v11968, %v11964
    %v12197 = vpack.c.b16 %v11973, %v11969
    %v12198 = vpack.c.b16 %v11974, %v11970
    %v12199 = vpack.c.b16 %v11975, %v11971
    %v12200 = vpack.c.b16 %v11976, %v11972
    %v12201 = vpack.c.b16 %v11981, %v11977
    %v12202 = vpack.c.b16 %v11982, %v11978
    %v12203 = vpack.c.b16 %v11983, %v11979
    %v12204 = vpack.c.b16 %v11984, %v11980
    %v12205 = vpack.c.b16 %v11989, %v11985
    %v12206 = vpack.c.b16 %v11990, %v11986
    %v12207 = vpack.c.b16 %v11991, %v11987
    %v12208 = vpack.c.b16 %v11992, %v11988
    %v12209 = vpack.c.b16 %v11997, %v11993
    %v12210 = vpack.c.b16 %v11998, %v11994
    %v12211 = vpack.c.b16 %v11999, %v11995
    %v12212 = vpack.c.b16 %v12000, %v11996
    %v12213 = vpack.c.b16 %v12005, %v12001
    %v12214 = vpack.c.b16 %v12006, %v12002
    %v12215 = vpack.c.b16 %v12007, %v12003
    %v12216 = vpack.c.b16 %v12008, %v12004
    %v12217 = vpack.c.b16 %v12013, %v12009
    %v12218 = vpack.c.b16 %v12014, %v12010
    %v12219 = vpack.c.b16 %v12015, %v12011
    %v12220 = vpack.c.b16 %v12016, %v12012
    %v12221 = vpack.c.b16 %v12021, %v12017
    %v12222 = vpack.c.b16 %v12022, %v12018
    %v12223 = vpack.c.b16 %v12023, %v12019
    %v12224 = vpack.c.b16 %v12024, %v12020
    %v12225 = vpack.c.b16 %v12029, %v12025
    %v12226 = vpack.c.b16 %v12030, %v12026
    %v12227 = vpack.c.b16 %v12031, %v12027
    %v12228 = vpack.c.b16 %v12032, %v12028
    %v12229 = vpack.c.b16 %v12037, %v12033
    %v12230 = vpack.c.b16 %v12038, %v12034
    %v12231 = vpack.c.b16 %v12039, %v12035
    %v12232 = vpack.c.b16 %v12040, %v12036
    %v12233 = vpack.c.b16 %v12045, %v12041
    %v12234 = vpack.c.b16 %v12046, %v12042
    %v12235 = vpack.c.b16 %v12047, %v12043
    %v12236 = vpack.c.b16 %v12048, %v12044
    %v12237 = vpack.c.b16 %v12053, %v12049
    %v12238 = vpack.c.b16 %v12054, %v12050
    %v12239 = vpack.c.b16 %v12055, %v12051
    %v12240 = vpack.c.b16 %v12056, %v12052
    %v12241 = vpack.c.b16 %v12061, %v12057
    %v12242 = vpack.c.b16 %v12062, %v12058
    %v12243 = vpack.c.b16 %v12063, %v12059
    %v12244 = vpack.c.b16 %v12064, %v12060
    %v12245 = vpack.c.b16 %v12069, %v12065
    %v12246 = vpack.c.b16 %v12070, %v12066
    %v12247 = vpack.c.b16 %v12071, %v12067
    %v12248 = vpack.c.b16 %v12072, %v12068
    %v12249 = vpack.c.b16 %v12077, %v12073
    %v12250 = vpack.c.b16 %v12078, %v12074
    %v12251 = vpack.c.b16 %v12079, %v12075
    %v12252 = vpack.c.b16 %v12080, %v12076
    %v12253 = vpack.c.b16 %v12085, %v12081
    %v12254 = vpack.c.b16 %v12086, %v12082
    %v12255 = vpack.c.b16 %v12087, %v12083
    %v12256 = vpack.c.b16 %v12088, %v12084
    %v12257 = vpack.c.b16 %v12093, %v12089
    %v12258 = vpack.c.b16 %v12094, %v12090
    %v12259 = vpack.c.b16 %v12095, %v12091
    %v12260 = vpack.c.b16 %v12096, %v12092
    %v12261 = vpack.c.b16 %v12101, %v12097
    %v12262 = vpack.c.b16 %v12102, %v12098
    %v12263 = vpack.c.b16 %v12103, %v12099
    %v12264 = vpack.c.b16 %v12104, %v12100
    %v12265 = vpack.c.b16 %v12109, %v12105
    %v12266 = vpack.c.b16 %v12110, %v12106
    %v12267 = vpack.c.b16 %v12111, %v12107
    %v12268 = vpack.c.b16 %v12112, %v12108
    %v12269 = vpack.c.b16 %v12117, %v12113
    %v12270 = vpack.c.b16 %v12118, %v12114
    %v12271 = vpack.c.b16 %v12119, %v12115
    %v12272 = vpack.c.b16 %v12120, %v12116
    %v12273 = vpack.c.b16 %v12125, %v12121
    %v12274 = vpack.c.b16 %v12126, %v12122
    %v12275 = vpack.c.b16 %v12127, %v12123
    %v12276 = vpack.c.b16 %v12128, %v12124
    %v12277 = vpack.c.b16 %v12133, %v12129
    %v12278 = vpack.c.b16 %v12134, %v12130
    %v12279 = vpack.c.b16 %v12135, %v12131
    %v12280 = vpack.c.b16 %v12136, %v12132
    %v12281 = vpack.c.b16 %v12141, %v12137
    %v12282 = vpack.c.b16 %v12142, %v12138
    %v12283 = vpack.c.b16 %v12143, %v12139
    %v12284 = vpack.c.b16 %v12144, %v12140
    %v12285 = vpack.c.b16 %v12149, %v12145
    %v12286 = vpack.c.b16 %v12150, %v12146
    %v12287 = vpack.c.b16 %v12151, %v12147
    %v12288 = vpack.c.b16 %v12152, %v12148
    %v12289 = vpack.c.b16 %v12157, %v12153
    %v12290 = vpack.c.b16 %v12158, %v12154
    %v12291 = vpack.c.b16 %v12159, %v12155
    %v12292 = vpack.c.b16 %v12160, %v12156
    %v12293 = vpack.c.b16 %v12165, %v12161
    %v12294 = vpack.c.b16 %v12166, %v12162
    %v12295 = vpack.c.b16 %v12167, %v12163
    %v12296 = vpack.c.b16 %v12168, %v12164
    %12425 = vmatprep.subr.bf16.mxu0 %v12198
    %12426 = vmatpush1.bf16.msra.mxu0 %v12197
    %12427 = vmatprep.subr.bf16.mxu0 %v12194
    %12428 = vmatpush1.bf16.msra.mxu0 %v12193
    %12429 = vmatprep.subr.bf16.mxu0 %v12190
    %12430 = vmatpush1.bf16.msra.mxu0 %v12189
    %12431 = vmatprep.subr.bf16.mxu0 %v12186
    %12432 = vmatpush1.bf16.msra.mxu0 %v12185
    %12433 = vmatprep.subr.bf16.mxu0 %v12182
    %12434 = vmatpush1.bf16.msra.mxu0 %v12181
    %12435 = vmatprep.subr.bf16.mxu0 %v12178
    %12436 = vmatpush1.bf16.msra.mxu0 %v12177
    %12437 = vmatprep.subr.bf16.mxu0 %v12174
    %12438 = vmatpush1.bf16.msra.mxu0 %v12173
    %12439 = vmatprep.subr.bf16.mxu0 %v12170
    %12440 = vmatpush1.bf16.msra.mxu0 %v12169
    %12441 = vmatprep.subr.bf16.mxu0 %v12230
    %12442 = vmatpush2.bf16.msra.mxu0 %v12229
    %12443 = vmatprep.subr.bf16.mxu0 %v12226
    %12444 = vmatpush2.bf16.msra.mxu0 %v12225
    %12445 = vmatprep.subr.bf16.mxu0 %v12222
    %12446 = vmatpush2.bf16.msra.mxu0 %v12221
    %12447 = vmatprep.subr.bf16.mxu0 %v12218
    %12448 = vmatpush2.bf16.msra.mxu0 %v12217
    %12449 = vmatprep.subr.bf16.mxu0 %v12214
    %12450 = vmatpush2.bf16.msra.mxu0 %v12213
    %12451 = vmatprep.subr.bf16.mxu0 %v12210
    %12452 = vmatpush2.bf16.msra.mxu0 %v12209
    %12453 = vmatprep.subr.bf16.mxu0 %v12206
    %12454 = vmatpush2.bf16.msra.mxu0 %v12205
    %12455 = vmatprep.subr.bf16.mxu0 %v12202
    %12456 = vmatpush2.bf16.msra.mxu0 %v12201
    %12457 = vmatprep.mubr.bf16.mxu0 %v11759
    %12458 = vmatmul.mubr.bf16.gmra.mxu0 %v11758
    %v12459 = vpop.f32.mrf.mxu0
    %v12460 = vadd.f32 %v11768, %v12459
    %v12461 = vpop.f32.mrf.mxu0
    %v12462 = vadd.f32 %v11772, %v12461
    %v12463 = vpop.f32.mrf.mxu0
    %v12464 = vpop.f32.mrf.mxu0
    %12465 = vdwg.mxu0
    %12466 = vmatprep.subr.bf16.mxu0 %v12262
    %12467 = vmatpush1.bf16.msra.mxu0 %v12261
    %12468 = vmatprep.subr.bf16.mxu0 %v12258
    %12469 = vmatpush1.bf16.msra.mxu0 %v12257
    %12470 = vmatprep.subr.bf16.mxu0 %v12254
    %12471 = vmatpush1.bf16.msra.mxu0 %v12253
    %12472 = vmatprep.subr.bf16.mxu0 %v12250
    %12473 = vmatpush1.bf16.msra.mxu0 %v12249
    %12474 = vmatprep.subr.bf16.mxu0 %v12246
    %12475 = vmatpush1.bf16.msra.mxu0 %v12245
    %12476 = vmatprep.subr.bf16.mxu0 %v12242
    %12477 = vmatpush1.bf16.msra.mxu0 %v12241
    %12478 = vmatprep.subr.bf16.mxu0 %v12238
    %12479 = vmatpush1.bf16.msra.mxu0 %v12237
    %12480 = vmatprep.subr.bf16.mxu0 %v12234
    %12481 = vmatpush1.bf16.msra.mxu0 %v12233
    %12482 = vmatprep.subr.bf16.mxu0 %v12294
    %12483 = vmatpush2.bf16.msra.mxu0 %v12293
    %12484 = vmatprep.subr.bf16.mxu0 %v12290
    %12485 = vmatpush2.bf16.msra.mxu0 %v12289
    %12486 = vmatprep.subr.bf16.mxu0 %v12286
    %12487 = vmatpush2.bf16.msra.mxu0 %v12285
    %12488 = vmatprep.subr.bf16.mxu0 %v12282
    %12489 = vmatpush2.bf16.msra.mxu0 %v12281
    %12490 = vmatprep.subr.bf16.mxu0 %v12278
    %12491 = vmatpush2.bf16.msra.mxu0 %v12277
    %12492 = vmatprep.subr.bf16.mxu0 %v12274
    %12493 = vmatpush2.bf16.msra.mxu0 %v12273
    %12494 = vmatprep.subr.bf16.mxu0 %v12270
    %12495 = vmatpush2.bf16.msra.mxu0 %v12269
    %12496 = vmatprep.subr.bf16.mxu0 %v12266
    %12497 = vmatpush2.bf16.msra.mxu0 %v12265
    %12498 = vmatprep.mubr.bf16.mxu0 %v11761
    %12499 = vmatmul.mubr.bf16.gmra.mxu0 %v11760
    %v12500 = vpop.f32.mrf.mxu0
    %v12501 = vadd.f32 %v12460, %v12500
    %v12502 = vpop.f32.mrf.mxu0
    %v12503 = vadd.f32 %v12462, %v12502
    %v12504 = vpop.f32.mrf.mxu0
    %v12505 = vpop.f32.mrf.mxu0
    %12506 = vdwg.mxu0
    %12507 = vmatprep.subr.bf16.mxu0 %v12200
    %12508 = vmatpush1.bf16.msra.mxu0 %v12199
    %12509 = vmatprep.subr.bf16.mxu0 %v12196
    %12510 = vmatpush1.bf16.msra.mxu0 %v12195
    %12511 = vmatprep.subr.bf16.mxu0 %v12192
    %12512 = vmatpush1.bf16.msra.mxu0 %v12191
    %12513 = vmatprep.subr.bf16.mxu0 %v12188
    %12514 = vmatpush1.bf16.msra.mxu0 %v12187
    %12515 = vmatprep.subr.bf16.mxu0 %v12184
    %12516 = vmatpush1.bf16.msra.mxu0 %v12183
    %12517 = vmatprep.subr.bf16.mxu0 %v12180
    %12518 = vmatpush1.bf16.msra.mxu0 %v12179
    %12519 = vmatprep.subr.bf16.mxu0 %v12176
    %12520 = vmatpush1.bf16.msra.mxu0 %v12175
    %12521 = vmatprep.subr.bf16.mxu0 %v12172
    %12522 = vmatpush1.bf16.msra.mxu0 %v12171
    %12523 = vmatprep.subr.bf16.mxu0 %v12232
    %12524 = vmatpush2.bf16.msra.mxu0 %v12231
    %12525 = vmatprep.subr.bf16.mxu0 %v12228
    %12526 = vmatpush2.bf16.msra.mxu0 %v12227
    %12527 = vmatprep.subr.bf16.mxu0 %v12224
    %12528 = vmatpush2.bf16.msra.mxu0 %v12223
    %12529 = vmatprep.subr.bf16.mxu0 %v12220
    %12530 = vmatpush2.bf16.msra.mxu0 %v12219
    %12531 = vmatprep.subr.bf16.mxu0 %v12216
    %12532 = vmatpush2.bf16.msra.mxu0 %v12215
    %12533 = vmatprep.subr.bf16.mxu0 %v12212
    %12534 = vmatpush2.bf16.msra.mxu0 %v12211
    %12535 = vmatprep.subr.bf16.mxu0 %v12208
    %12536 = vmatpush2.bf16.msra.mxu0 %v12207
    %12537 = vmatprep.subr.bf16.mxu0 %v12204
    %12538 = vmatpush2.bf16.msra.mxu0 %v12203
    %12539 = vmatprep.mubr.bf16.mxu0 %v11759
    %12540 = vmatmul.mubr.bf16.gmra.mxu0 %v11758
    %v12541 = vpop.f32.mrf.mxu0
    %v12542 = vadd.f32 %v11776, %v12541
    %v12543 = vpop.f32.mrf.mxu0
    %v12544 = vadd.f32 %v11780, %v12543
    %v12545 = vpop.f32.mrf.mxu0
    %v12546 = vpop.f32.mrf.mxu0
    %12547 = vdwg.mxu0
    %12548 = vmatprep.subr.bf16.mxu0 %v12264
    %12549 = vmatpush1.bf16.msra.mxu0 %v12263
    %12550 = vmatprep.subr.bf16.mxu0 %v12260
    %12551 = vmatpush1.bf16.msra.mxu0 %v12259
    %12552 = vmatprep.subr.bf16.mxu0 %v12256
    %12553 = vmatpush1.bf16.msra.mxu0 %v12255
    %12554 = vmatprep.subr.bf16.mxu0 %v12252
    %12555 = vmatpush1.bf16.msra.mxu0 %v12251
    %12556 = vmatprep.subr.bf16.mxu0 %v12248
    %12557 = vmatpush1.bf16.msra.mxu0 %v12247
    %12558 = vmatprep.subr.bf16.mxu0 %v12244
    %12559 = vmatpush1.bf16.msra.mxu0 %v12243
    %12560 = vmatprep.subr.bf16.mxu0 %v12240
    %12561 = vmatpush1.bf16.msra.mxu0 %v12239
    %12562 = vmatprep.subr.bf16.mxu0 %v12236
    %12563 = vmatpush1.bf16.msra.mxu0 %v12235
    %12564 = vmatprep.subr.bf16.mxu0 %v12296
    %12565 = vmatpush2.bf16.msra.mxu0 %v12295
    %12566 = vmatprep.subr.bf16.mxu0 %v12292
    %12567 = vmatpush2.bf16.msra.mxu0 %v12291
    %12568 = vmatprep.subr.bf16.mxu0 %v12288
    %12569 = vmatpush2.bf16.msra.mxu0 %v12287
    %12570 = vmatprep.subr.bf16.mxu0 %v12284
    %12571 = vmatpush2.bf16.msra.mxu0 %v12283
    %12572 = vmatprep.subr.bf16.mxu0 %v12280
    %12573 = vmatpush2.bf16.msra.mxu0 %v12279
    %12574 = vmatprep.subr.bf16.mxu0 %v12276
    %12575 = vmatpush2.bf16.msra.mxu0 %v12275
    %12576 = vmatprep.subr.bf16.mxu0 %v12272
    %12577 = vmatpush2.bf16.msra.mxu0 %v12271
    %12578 = vmatprep.subr.bf16.mxu0 %v12268
    %12579 = vmatpush2.bf16.msra.mxu0 %v12267
    %12580 = vmatprep.mubr.bf16.mxu0 %v11761
    %12581 = vmatmul.mubr.bf16.gmra.mxu0 %v11760
    %v12582 = vpop.f32.mrf.mxu0
    %v12583 = vadd.f32 %v12542, %v12582
    %v12584 = vpop.f32.mrf.mxu0
    %v12585 = vadd.f32 %v12544, %v12584
    %v12586 = vpop.f32.mrf.mxu0
    %v12587 = vpop.f32.mrf.mxu0
    %12588 = vdwg.mxu0
    %v12589 = vmax.f32 %v12501, 0.0
    %v12590 = vmax.f32 %v12503, 0.0
    %v12591 = vmax.f32 %v12583, 0.0
    %v12592 = vmax.f32 %v12585, 0.0
    %v12593 = vld [vmem:[#allocation16] sm:$0xf]
    %v12594 = vld [vmem:[#allocation16 + $0x4] sm:$0xf]
    %v12595 = vld [vmem:[#allocation16 + $0x8] sm:$0xf]
    %v12596 = vld [vmem:[#allocation16 + $0xc] sm:$0xf]
    %v12597 = vld [vmem:[#allocation16 + $0x10] sm:$0xf]
    %v12598 = vld [vmem:[#allocation16 + $0x14] sm:$0xf]
    %v12599 = vld [vmem:[#allocation16 + $0x18] sm:$0xf]
    %v12600 = vld [vmem:[#allocation16 + $0x1c] sm:$0xf]
    %v12601 = vld [vmem:[#allocation16 + $0x20] sm:$0xf]
    %v12602 = vld [vmem:[#allocation16 + $0x24] sm:$0xf]
    %v12603 = vld [vmem:[#allocation16 + $0x28] sm:$0xf]
    %v12604 = vld [vmem:[#allocation16 + $0x2c] sm:$0xf]
    %v12605 = vld [vmem:[#allocation16 + $0x30] sm:$0xf]
    %v12606 = vld [vmem:[#allocation16 + $0x34] sm:$0xf]
    %v12607 = vld [vmem:[#allocation16 + $0x38] sm:$0xf]
    %v12608 = vld [vmem:[#allocation16 + $0x3c] sm:$0xf]
    %v12609 = vld [vmem:[#allocation16 + $0x40] sm:$0xf]
    %v12610 = vld [vmem:[#allocation16 + $0x44] sm:$0xf]
    %v12611 = vld [vmem:[#allocation16 + $0x48] sm:$0xf]
    %v12612 = vld [vmem:[#allocation16 + $0x4c] sm:$0xf]
    %v12613 = vld [vmem:[#allocation16 + $0x50] sm:$0xf]
    %v12614 = vld [vmem:[#allocation16 + $0x54] sm:$0xf]
    %v12615 = vld [vmem:[#allocation16 + $0x58] sm:$0xf]
    %v12616 = vld [vmem:[#allocation16 + $0x5c] sm:$0xf]
    %v12617 = vld [vmem:[#allocation16 + $0x60] sm:$0xf]
    %v12618 = vld [vmem:[#allocation16 + $0x64] sm:$0xf]
    %v12619 = vld [vmem:[#allocation16 + $0x68] sm:$0xf]
    %v12620 = vld [vmem:[#allocation16 + $0x6c] sm:$0xf]
    %v12621 = vld [vmem:[#allocation16 + $0x70] sm:$0xf]
    %v12622 = vld [vmem:[#allocation16 + $0x74] sm:$0xf]
    %v12623 = vld [vmem:[#allocation16 + $0x78] sm:$0xf]
    %v12624 = vld [vmem:[#allocation16 + $0x7c] sm:$0xf]
    %v12625 = vld [vmem:[#allocation16 + $0x80] sm:$0xf]
    %v12626 = vld [vmem:[#allocation16 + $0x84] sm:$0xf]
    %v12627 = vld [vmem:[#allocation16 + $0x88] sm:$0xf]
    %v12628 = vld [vmem:[#allocation16 + $0x8c] sm:$0xf]
    %v12629 = vld [vmem:[#allocation16 + $0x90] sm:$0xf]
    %v12630 = vld [vmem:[#allocation16 + $0x94] sm:$0xf]
    %v12631 = vld [vmem:[#allocation16 + $0x98] sm:$0xf]
    %v12632 = vld [vmem:[#allocation16 + $0x9c] sm:$0xf]
    %v12633 = vld [vmem:[#allocation16 + $0xa0] sm:$0xf]
    %v12634 = vld [vmem:[#allocation16 + $0xa4] sm:$0xf]
    %v12635 = vld [vmem:[#allocation16 + $0xa8] sm:$0xf]
    %v12636 = vld [vmem:[#allocation16 + $0xac] sm:$0xf]
    %v12637 = vld [vmem:[#allocation16 + $0xb0] sm:$0xf]
    %v12638 = vld [vmem:[#allocation16 + $0xb4] sm:$0xf]
    %v12639 = vld [vmem:[#allocation16 + $0xb8] sm:$0xf]
    %v12640 = vld [vmem:[#allocation16 + $0xbc] sm:$0xf]
    %v12641 = vld [vmem:[#allocation16 + $0xc0] sm:$0xf]
    %v12642 = vld [vmem:[#allocation16 + $0xc4] sm:$0xf]
    %v12643 = vld [vmem:[#allocation16 + $0xc8] sm:$0xf]
    %v12644 = vld [vmem:[#allocation16 + $0xcc] sm:$0xf]
    %v12645 = vld [vmem:[#allocation16 + $0xd0] sm:$0xf]
    %v12646 = vld [vmem:[#allocation16 + $0xd4] sm:$0xf]
    %v12647 = vld [vmem:[#allocation16 + $0xd8] sm:$0xf]
    %v12648 = vld [vmem:[#allocation16 + $0xdc] sm:$0xf]
    %v12649 = vld [vmem:[#allocation16 + $0xe0] sm:$0xf]
    %v12650 = vld [vmem:[#allocation16 + $0xe4] sm:$0xf]
    %v12651 = vld [vmem:[#allocation16 + $0xe8] sm:$0xf]
    %v12652 = vld [vmem:[#allocation16 + $0xec] sm:$0xf]
    %v12653 = vld [vmem:[#allocation16 + $0xf0] sm:$0xf]
    %v12654 = vld [vmem:[#allocation16 + $0xf4] sm:$0xf]
    %v12655 = vld [vmem:[#allocation16 + $0xf8] sm:$0xf]
    %v12656 = vld [vmem:[#allocation16 + $0xfc] sm:$0xf]
    %v12657 = vpack.c.bf16 %v12589, %v12589
    %v12658 = vpack.c.bf16 %v12590, %v12590
    %v12659 = vpack.c.bf16 %v12591, %v12591
    %v12660 = vpack.c.bf16 %v12592, %v12592
    %v12661 = vld [vmem:[#allocation17 + $0x7] ss:$0 sm:$0xff]
    %v12726 = vunpack.c.l.b16 %v12593
    %v12727 = vunpack.c.l.b16 %v12594
    %v12728 = vunpack.c.l.b16 %v12595
    %v12729 = vunpack.c.l.b16 %v12596
    %v12730 = vunpack.c.l.b16 %v12597
    %v12731 = vunpack.c.l.b16 %v12598
    %v12732 = vunpack.c.l.b16 %v12599
    %v12733 = vunpack.c.l.b16 %v12600
    %v12734 = vunpack.c.l.b16 %v12601
    %v12735 = vunpack.c.l.b16 %v12602
    %v12736 = vunpack.c.l.b16 %v12603
    %v12737 = vunpack.c.l.b16 %v12604
    %v12738 = vunpack.c.l.b16 %v12605
    %v12739 = vunpack.c.l.b16 %v12606
    %v12740 = vunpack.c.l.b16 %v12607
    %v12741 = vunpack.c.l.b16 %v12608
    %v12742 = vunpack.c.l.b16 %v12609
    %v12743 = vunpack.c.l.b16 %v12610
    %v12744 = vunpack.c.l.b16 %v12611
    %v12745 = vunpack.c.l.b16 %v12612
    %v12746 = vunpack.c.l.b16 %v12613
    %v12747 = vunpack.c.l.b16 %v12614
    %v12748 = vunpack.c.l.b16 %v12615
    %v12749 = vunpack.c.l.b16 %v12616
    %v12750 = vunpack.c.l.b16 %v12617
    %v12751 = vunpack.c.l.b16 %v12618
    %v12752 = vunpack.c.l.b16 %v12619
    %v12753 = vunpack.c.l.b16 %v12620
    %v12754 = vunpack.c.l.b16 %v12621
    %v12755 = vunpack.c.l.b16 %v12622
    %v12756 = vunpack.c.l.b16 %v12623
    %v12757 = vunpack.c.l.b16 %v12624
    %v12758 = vunpack.c.l.b16 %v12625
    %v12759 = vunpack.c.l.b16 %v12626
    %v12760 = vunpack.c.l.b16 %v12627
    %v12761 = vunpack.c.l.b16 %v12628
    %v12762 = vunpack.c.l.b16 %v12629
    %v12763 = vunpack.c.l.b16 %v12630
    %v12764 = vunpack.c.l.b16 %v12631
    %v12765 = vunpack.c.l.b16 %v12632
    %v12766 = vunpack.c.l.b16 %v12633
    %v12767 = vunpack.c.l.b16 %v12634
    %v12768 = vunpack.c.l.b16 %v12635
    %v12769 = vunpack.c.l.b16 %v12636
    %v12770 = vunpack.c.l.b16 %v12637
    %v12771 = vunpack.c.l.b16 %v12638
    %v12772 = vunpack.c.l.b16 %v12639
    %v12773 = vunpack.c.l.b16 %v12640
    %v12774 = vunpack.c.l.b16 %v12641
    %v12775 = vunpack.c.l.b16 %v12642
    %v12776 = vunpack.c.l.b16 %v12643
    %v12777 = vunpack.c.l.b16 %v12644
    %v12778 = vunpack.c.l.b16 %v12645
    %v12779 = vunpack.c.l.b16 %v12646
    %v12780 = vunpack.c.l.b16 %v12647
    %v12781 = vunpack.c.l.b16 %v12648
    %v12782 = vunpack.c.l.b16 %v12649
    %v12783 = vunpack.c.l.b16 %v12650
    %v12784 = vunpack.c.l.b16 %v12651
    %v12785 = vunpack.c.l.b16 %v12652
    %v12786 = vunpack.c.l.b16 %v12653
    %v12787 = vunpack.c.l.b16 %v12654
    %v12788 = vunpack.c.l.b16 %v12655
    %v12789 = vunpack.c.l.b16 %v12656
    %v12790 = vpack.c.b16 %v12727, %v12726
    %v12791 = vpack.c.b16 %v12729, %v12728
    %v12792 = vpack.c.b16 %v12731, %v12730
    %v12793 = vpack.c.b16 %v12733, %v12732
    %v12794 = vpack.c.b16 %v12735, %v12734
    %v12795 = vpack.c.b16 %v12737, %v12736
    %v12796 = vpack.c.b16 %v12739, %v12738
    %v12797 = vpack.c.b16 %v12741, %v12740
    %v12798 = vpack.c.b16 %v12743, %v12742
    %v12799 = vpack.c.b16 %v12745, %v12744
    %v12800 = vpack.c.b16 %v12747, %v12746
    %v12801 = vpack.c.b16 %v12749, %v12748
    %v12802 = vpack.c.b16 %v12751, %v12750
    %v12803 = vpack.c.b16 %v12753, %v12752
    %v12804 = vpack.c.b16 %v12755, %v12754
    %v12805 = vpack.c.b16 %v12757, %v12756
    %v12806 = vpack.c.b16 %v12759, %v12758
    %v12807 = vpack.c.b16 %v12761, %v12760
    %v12808 = vpack.c.b16 %v12763, %v12762
    %v12809 = vpack.c.b16 %v12765, %v12764
    %v12810 = vpack.c.b16 %v12767, %v12766
    %v12811 = vpack.c.b16 %v12769, %v12768
    %v12812 = vpack.c.b16 %v12771, %v12770
    %v12813 = vpack.c.b16 %v12773, %v12772
    %v12814 = vpack.c.b16 %v12775, %v12774
    %v12815 = vpack.c.b16 %v12777, %v12776
    %v12816 = vpack.c.b16 %v12779, %v12778
    %v12817 = vpack.c.b16 %v12781, %v12780
    %v12818 = vpack.c.b16 %v12783, %v12782
    %v12819 = vpack.c.b16 %v12785, %v12784
    %v12820 = vpack.c.b16 %v12787, %v12786
    %v12821 = vpack.c.b16 %v12789, %v12788
    %12854 = vmatprep.subr.bf16.mxu0 0
    %12855 = vmatpush1.bf16.msra.mxu0 %v12797
    %12856 = vmatprep.subr.bf16.mxu0 0
    %12857 = vmatpush1.bf16.msra.mxu0 %v12796
    %12858 = vmatprep.subr.bf16.mxu0 0
    %12859 = vmatpush1.bf16.msra.mxu0 %v12795
    %12860 = vmatprep.subr.bf16.mxu0 0
    %12861 = vmatpush1.bf16.msra.mxu0 %v12794
    %12862 = vmatprep.subr.bf16.mxu0 0
    %12863 = vmatpush1.bf16.msra.mxu0 %v12793
    %12864 = vmatprep.subr.bf16.mxu0 0
    %12865 = vmatpush1.bf16.msra.mxu0 %v12792
    %12866 = vmatprep.subr.bf16.mxu0 0
    %12867 = vmatpush1.bf16.msra.mxu0 %v12791
    %12868 = vmatprep.subr.bf16.mxu0 0
    %12869 = vmatpush1.bf16.msra.mxu0 %v12790
    %12870 = vmatprep.subr.bf16.mxu0 0
    %12871 = vmatpush2.bf16.msra.mxu0 %v12805
    %12872 = vmatprep.subr.bf16.mxu0 0
    %12873 = vmatpush2.bf16.msra.mxu0 %v12804
    %12874 = vmatprep.subr.bf16.mxu0 0
    %12875 = vmatpush2.bf16.msra.mxu0 %v12803
    %12876 = vmatprep.subr.bf16.mxu0 0
    %12877 = vmatpush2.bf16.msra.mxu0 %v12802
    %12878 = vmatprep.subr.bf16.mxu0 0
    %12879 = vmatpush2.bf16.msra.mxu0 %v12801
    %12880 = vmatprep.subr.bf16.mxu0 0
    %12881 = vmatpush2.bf16.msra.mxu0 %v12800
    %12882 = vmatprep.subr.bf16.mxu0 0
    %12883 = vmatpush2.bf16.msra.mxu0 %v12799
    %12884 = vmatprep.subr.bf16.mxu0 0
    %12885 = vmatpush2.bf16.msra.mxu0 %v12798
    %12886 = vmatprep.mubr.bf16.mxu0 %v12658
    %12887 = vmatmul.mubr.bf16.gmra.mxu0 %v12657
    %v12888 = vpop.f32.mrf.mxu0
    %v12889 = vadd.f32 %v12661, %v12888
    %v12890 = vpop.f32.mrf.mxu0
    %v12891 = vpop.f32.mrf.mxu0
    %v12892 = vpop.f32.mrf.mxu0
    %12893 = vdwg.mxu0
    %12894 = vmatprep.subr.bf16.mxu0 0
    %12895 = vmatpush1.bf16.msra.mxu0 %v12813
    %12896 = vmatprep.subr.bf16.mxu0 0
    %12897 = vmatpush1.bf16.msra.mxu0 %v12812
    %12898 = vmatprep.subr.bf16.mxu0 0
    %12899 = vmatpush1.bf16.msra.mxu0 %v12811
    %12900 = vmatprep.subr.bf16.mxu0 0
    %12901 = vmatpush1.bf16.msra.mxu0 %v12810
    %12902 = vmatprep.subr.bf16.mxu0 0
    %12903 = vmatpush1.bf16.msra.mxu0 %v12809
    %12904 = vmatprep.subr.bf16.mxu0 0
    %12905 = vmatpush1.bf16.msra.mxu0 %v12808
    %12906 = vmatprep.subr.bf16.mxu0 0
    %12907 = vmatpush1.bf16.msra.mxu0 %v12807
    %12908 = vmatprep.subr.bf16.mxu0 0
    %12909 = vmatpush1.bf16.msra.mxu0 %v12806
    %12910 = vmatprep.subr.bf16.mxu0 0
    %12911 = vmatpush2.bf16.msra.mxu0 %v12821
    %12912 = vmatprep.subr.bf16.mxu0 0
    %12913 = vmatpush2.bf16.msra.mxu0 %v12820
    %12914 = vmatprep.subr.bf16.mxu0 0
    %12915 = vmatpush2.bf16.msra.mxu0 %v12819
    %12916 = vmatprep.subr.bf16.mxu0 0
    %12917 = vmatpush2.bf16.msra.mxu0 %v12818
    %12918 = vmatprep.subr.bf16.mxu0 0
    %12919 = vmatpush2.bf16.msra.mxu0 %v12817
    %12920 = vmatprep.subr.bf16.mxu0 0
    %12921 = vmatpush2.bf16.msra.mxu0 %v12816
    %12922 = vmatprep.subr.bf16.mxu0 0
    %12923 = vmatpush2.bf16.msra.mxu0 %v12815
    %12924 = vmatprep.subr.bf16.mxu0 0
    %12925 = vmatpush2.bf16.msra.mxu0 %v12814
    %12926 = vmatprep.mubr.bf16.mxu0 %v12660
    %12927 = vmatmul.mubr.bf16.gmra.mxu0 %v12659
    %v12928 = vpop.f32.mrf.mxu0
    %v12929 = vadd.f32 %v12889, %v12928
    %v12930 = vpop.f32.mrf.mxu0
    %v12931 = vpop.f32.mrf.mxu0
    %v12932 = vpop.f32.mrf.mxu0
    %12933 = vdwg.mxu0
    %12934 = vst [vmem:[#allocation21] sm:$0xff] %v12929
    %v12935 = vld [vmem:[#allocation19] sm:$0xff]
    %v12936 = vld [vmem:[#allocation19 + $0x8] sm:$0xff]
    %v12937 = vld [vmem:[#allocation19 + $0x10] sm:$0xff]
    %v12938 = vld [vmem:[#allocation19 + $0x18] sm:$0xff]
    %v12939 = vld [vmem:[#allocation19 + $0x20] sm:$0xff]
    %v12940 = vld [vmem:[#allocation19 + $0x28] sm:$0xff]
    %v12941 = vld [vmem:[#allocation19 + $0x30] sm:$0xff]
    %v12942 = vld [vmem:[#allocation19 + $0x38] sm:$0xff]
    %v12943 = vld [vmem:[#allocation19 + $0x40] sm:$0xff]
    %v12944 = vld [vmem:[#allocation19 + $0x48] sm:$0xff]
    %v12945 = vld [vmem:[#allocation19 + $0x50] sm:$0xff]
    %v12946 = vld [vmem:[#allocation19 + $0x58] sm:$0xff]
    %v12947 = vld [vmem:[#allocation19 + $0x60] sm:$0xff]
    %v12948 = vld [vmem:[#allocation19 + $0x68] sm:$0xff]
    %v12949 = vld [vmem:[#allocation19 + $0x70] sm:$0xff]
    %v12950 = vld [vmem:[#allocation19 + $0x78] sm:$0xff]
    %12951 = vmatprep.subr.mxu0 0.0
    %12952 = vmatpush1.msra.mxu0 %v12950
    %12953 = vmatprep.subr.mxu0 0.0
    %12954 = vmatpush1.msra.mxu0 %v12949
    %12955 = vmatprep.subr.mxu0 0.0
    %12956 = vmatpush1.msra.mxu0 %v12948
    %12957 = vmatprep.subr.mxu0 0.0
    %12958 = vmatpush1.msra.mxu0 %v12947
    %12959 = vmatprep.subr.mxu0 0.0
    %12960 = vmatpush1.msra.mxu0 %v12946
    %12961 = vmatprep.subr.mxu0 0.0
    %12962 = vmatpush1.msra.mxu0 %v12945
    %12963 = vmatprep.subr.mxu0 0.0
    %12964 = vmatpush1.msra.mxu0 %v12944
    %12965 = vmatprep.subr.mxu0 0.0
    %12966 = vmatpush1.msra.mxu0 %v12943
    %12967 = vmatprep.subr.mxu0 0.0
    %12968 = vmatpush1.msra.mxu0 %v12942
    %12969 = vmatprep.subr.mxu0 0.0
    %12970 = vmatpush1.msra.mxu0 %v12941
    %12971 = vmatprep.subr.mxu0 0.0
    %12972 = vmatpush1.msra.mxu0 %v12940
    %12973 = vmatprep.subr.mxu0 0.0
    %12974 = vmatpush1.msra.mxu0 %v12939
    %12975 = vmatprep.subr.mxu0 0.0
    %12976 = vmatpush1.msra.mxu0 %v12938
    %12977 = vmatprep.subr.mxu0 0.0
    %12978 = vmatpush1.msra.mxu0 %v12937
    %12979 = vmatprep.subr.mxu0 0.0
    %12980 = vmatpush1.msra.mxu0 %v12936
    %12981 = vmatprep.subr.mxu0 0.0
    %12982 = vmatpush1.msra.mxu0 %v12935
    %12983 = vmatprep.subr.mxu0 0.0
    %12984 = vmatpush2.msra.mxu0 0.0
    %12985 = vmatprep.subr.mxu0 0.0
    %12986 = vmatpush2.msra.mxu0 0.0
    %12987 = vmatprep.subr.mxu0 0.0
    %12988 = vmatpush2.msra.mxu0 0.0
    %12989 = vmatprep.subr.mxu0 0.0
    %12990 = vmatpush2.msra.mxu0 0.0
    %12991 = vmatprep.subr.mxu0 0.0
    %12992 = vmatpush2.msra.mxu0 0.0
    %12993 = vmatprep.subr.mxu0 0.0
    %12994 = vmatpush2.msra.mxu0 0.0
    %12995 = vmatprep.subr.mxu0 0.0
    %12996 = vmatpush2.msra.mxu0 0.0
    %12997 = vmatprep.subr.mxu0 0.0
    %12998 = vmatpush2.msra.mxu0 0.0
    %12999 = vmatprep.subr.mxu0 0.0
    %13000 = vmatpush2.msra.mxu0 0.0
    %13001 = vmatprep.subr.mxu0 0.0
    %13002 = vmatpush2.msra.mxu0 0.0
    %13003 = vmatprep.subr.mxu0 0.0
    %13004 = vmatpush2.msra.mxu0 0.0
    %13005 = vmatprep.subr.mxu0 0.0
    %13006 = vmatpush2.msra.mxu0 0.0
    %13007 = vmatprep.subr.mxu0 0.0
    %13008 = vmatpush2.msra.mxu0 0.0
    %13009 = vmatprep.subr.mxu0 0.0
    %13010 = vmatpush2.msra.mxu0 0.0
    %13011 = vmatprep.subr.mxu0 0.0
    %13012 = vmatpush2.msra.mxu0 0.0
    %13013 = vmatprep.subr.mxu0 0.0
    %13014 = vmatpush2.msra.mxu0 0.0
    %13015 = vmatprep.mubr.f32.mxu0 0.0
    %13016 = vmatmul.mubr.f32.gmra.mxu0 %v6650
    %v13017 = vpop.f32.mrf.mxu0
    %v13018 = vadd.f32 0.0, %v13017
    %v13019 = vpop.f32.mrf.mxu0
    %13020 = vdwg.mxu0
    %v13021 = vmul.f32 %v6650, %v6650
    %13022 = vadd.xlane.f32.xlu0 %v13021
    %v13023 = vpop.xlane.xlu0 %13022
    %v13024 = vld [vmem:[#allocation17 + $0x80] ss:$0 sm:$0xff]
    %v13025 = vadd.f32 %v13023, %v13024
    %v13026 = vmul.f32 %v13018, 2.0
    %v13027 = vsub.f32 %v13025, %v13026
    %v13028 = vmax.f32 %v13027, 0.0
    %v13029 = vlaneseq
    %v13030 = vand.u32 %v13029, 127
    %vm13031 = vcmp.lt.s32.totalorder %v13030, 3
    %v13032 = vadd.f32 %v13028, 1.0
    %v13033 = vrcp.pop %v13032
    %v13034 = vmul.f32 1.0, %v13033
    %v13035 = vsel %vm13031, %v13034, 0.0
    %13036 = vadd.xlane.f32.xlu0 %v13035
    %v13037 = vpop.xlane.xlu0 %13036
    %v13038 = vrcp.pop %v13037
    %v13039 = vmul.f32 %v13035, %v13038
    %13040 = vst [vmem:[#allocation23] sm:$0xff] %v13039
    // Predicated region
    $region90: #{tpu_custom_call.1} parent=1 // pred_check
      _
    $region91: #{tpu_custom_call.1} parent=1 // pred_check_branch
      %13042 = sbr.rel (0) target = $region93
    $region92: #{tpu_custom_call.1} parent=1 // pred_region
      %s13044 = ssub.s32 128, 128
      %13045 = vsyncadd [#allocation4], %s13044
      %s13047 = sshll.u32 [#allocation20], 4
      %s13048 = int_to_ptr.vmem [resolvable:$true] %s13047
      %13050 = dma.vmem_to_hbm [thread:$0]  %s13048, 128, %s11, [#allocation4]
    $region93: #{tpu_custom_call.1} parent=1 // pred_fallthru
      _
    // Predicated region
    $region94: #{tpu_custom_call.1} parent=1 // pred_check
      _
    $region95: #{tpu_custom_call.1} parent=1 // pred_check_branch
      %13052 = sbr.rel (0) target = $region97
    $region96: #{tpu_custom_call.1} parent=1 // pred_region
      %s13054 = ssub.s32 128, 128
      %13055 = vsyncadd [#allocation22], %s13054
      %s13057 = sshll.u32 [#allocation21], 4
      %s13058 = int_to_ptr.vmem [resolvable:$true] %s13057
      %13060 = dma.vmem_to_hbm [thread:$0]  %s13058, 128, %s12, [#allocation22]
    $region97: #{tpu_custom_call.1} parent=1 // pred_fallthru
      _
    // Predicated region
    $region98: #{tpu_custom_call.1} parent=1 // pred_check
      _
    $region99: #{tpu_custom_call.1} parent=1 // pred_check_branch
      %13062 = sbr.rel (0) target = $region101
    $region100: #{tpu_custom_call.1} parent=1 // pred_region
      %s13064 = ssub.s32 128, 128
      %13065 = vsyncadd [#allocation22], %s13064
      %s13067 = sshll.u32 [#allocation23], 4
      %s13068 = int_to_ptr.vmem [resolvable:$true] %s13067
      %13070 = dma.vmem_to_hbm [thread:$0]  %s13068, 128, %s13, [#allocation22]
    $region101: #{tpu_custom_call.1} parent=1 // pred_fallthru
      _
    // Predicated region
    $region102: #{tpu_custom_call.1} parent=1 // pred_check
      _
    $region103: #{tpu_custom_call.1} parent=1 // pred_check_branch
      %13072 = sbr.rel (0) target = $region105
    $region104: #{tpu_custom_call.1} parent=1 // pred_region
      %13073 = dma.done [#allocation4], 128
    $region105: #{tpu_custom_call.1} parent=1 // pred_fallthru
      _
    // Predicated region
    $region106: #{tpu_custom_call.1} parent=1 // pred_check
      _
    $region107: #{tpu_custom_call.1} parent=1 // pred_check_branch
      %13075 = sbr.rel (0) target = $region109
    $region108: #{tpu_custom_call.1} parent=1 // pred_region
      %13076 = dma.done [#allocation22], 128
    $region109: #{tpu_custom_call.1} parent=1 // pred_fallthru
      _
    // Predicated region
    $region110: #{tpu_custom_call.1} parent=1 // pred_check
      _
    $region111: #{tpu_custom_call.1} parent=1 // pred_check_branch
      %13078 = sbr.rel (0) target = $region113
    $region112: #{tpu_custom_call.1} parent=1 // pred_region
      %13079 = dma.done [#allocation22], 128
    $region113: #{tpu_custom_call.1} parent=1 // pred_fallthru
      _
    %13080 = vsyncpa [#allocation3], 1
    %13081 = vsyncpa [#allocation6], 1
    %13082 = vsyncpa [#allocation9], 1
    %13083 = vsyncpa [#allocation12], 1
    %13084 = vsyncpa [#allocation15], 1
    %13085 = vsyncpa [#allocation18], 1
    %13086 = vsyncpa [#allocation4], 1
    %13087 = vsyncpa [#allocation22], 1

</llo_original>
